<compile_context>
chip_gen: v6e
topology: v6e:2x2x1
jax: 0.10.0
libtpu: 0.0.40
codegen_flags: <defaults>
</compile_context>

<pallas_src>
import functools

import jax
import jax.numpy as jnp
from jax.experimental import pallas as pl
from jax.experimental.pallas import tpu as pltpu

_PADW = 8  # W zero-pad on each side: one f32 sublane tile, keeps every concat piece aligned


# ----------------------------- Pallas kernel -----------------------------

def _conv3x3_bn_relu(a_hwc, w_ref, s_ref, o_ref):
    """3x3 'same' conv + folded BN + ReLU as 9 accumulated MXU dots over shifted views.

    a_hwc : (H, W, Ci) f32 activation (already ReLU'd -> conv zero-padding is a true zero ring).
    w_ref : (9, Ci, Co) bf16 VMEM ref, tap order (kh, kw).
    s_ref, o_ref : (1, Co) f32 folded BN scale / bias.
    Returns (H*W, Co) f32.
    """
    H, W, Ci = a_hwc.shape
    # Zero ring: pad H by 1 (leading, untiled dim) and W by _PADW (sublane-tile aligned).
    zrow = jnp.zeros((1, W, Ci), a_hwc.dtype)
    ap = jnp.concatenate([zrow, a_hwc, zrow], axis=0)             # (H+2, W, Ci)
    zcol = jnp.zeros((H + 2, _PADW, Ci), ap.dtype)
    ap = jnp.concatenate([zcol, ap, zcol], axis=1)                # (H+2, W+2*_PADW, Ci)
    acc = None
    for kh in range(3):
        for kw in range(3):
            tap = ap[kh:kh + H, _PADW - 1 + kw:_PADW - 1 + kw + W, :]
            tap = tap.reshape(H * W, Ci).astype(jnp.bfloat16)
            d = jnp.dot(tap, w_ref[kh * 3 + kw], preferred_element_type=jnp.float32)
            acc = d if acc is None else acc + d
    return jnp.maximum(acc * s_ref[...] + o_ref[...], 0.0)


def _inception_a_kernel(
    x_ref,                             # (1, H*W, Cin) bf16
    s1_w_ref, s1_s_ref, s1_o_ref,      # (3, Cin, 32) bf16, (3, 1, 32) f32 x2 : 1x1 branch heads
    w2b_ref, s2b_ref, o2b_ref,         # branch3x3      3x3: (9, 32, 32) bf16, (1, 32) f32 x2
    w3b_ref, s3b_ref, o3b_ref,         # branch3x3stack 3x3: (9, 32, 48) bf16, (1, 48) f32 x2
    w3c_ref, s3c_ref, o3c_ref,         # branch3x3stack 3x3: (9, 48, 64) bf16, (1, 64) f32 x2
    wred_ref,                          # (128, 384) bf16  reduction1x1 weight
    wsc_ref,                           # (Cin, 384) bf16  shortcut 1x1 weight
    sf_ref, of_ref,                    # (1, 384) f32     final BN scale / (bias + conv biases)
    out_ref,                           # (1, H*W, 384) f32
    *, H, W):
    f32, bf16 = jnp.float32, jnp.bfloat16
    HW = H * W

    x2 = x_ref[0]                      # (HW, Cin) bf16

    # ---- the three 1x1 BasicConv2d branch heads (conv + folded BN + ReLU) ----
    def head(i):
        y = jnp.dot(x2, s1_w_ref[i], preferred_element_type=f32)
        return jnp.maximum(y * s1_s_ref[i] + s1_o_ref[i], 0.0)    # (HW, 32) f32

    b1 = head(0)        # branch1x1 output
    b2a = head(1)       # branch3x3, first stage
    b3a = head(2)       # branch3x3stack, first stage

    # ---- 3x3 BasicConv2d stages, im2col-free, activations never leave VMEM ----
    b2b = _conv3x3_bn_relu(b2a.reshape(H, W, 32), w2b_ref, s2b_ref, o2b_ref)   # (HW, 32)
    b3b = _conv3x3_bn_relu(b3a.reshape(H, W, 32), w3b_ref, s3b_ref, o3b_ref)   # (HW, 48)
    b3c = _conv3x3_bn_relu(b3b.reshape(H, W, 48), w3c_ref, s3c_ref, o3c_ref)   # (HW, 64)

    # ---- torch.cat([b1, b2b, b3c], 1) @ reduction1x1, expressed as a row-partitioned
    #      matmul so the concatenated tensor is never materialized ----
    red = (jnp.dot(b1.astype(bf16), wred_ref[0:32, :], preferred_element_type=f32)
           + jnp.dot(b2b.astype(bf16), wred_ref[32:64, :], preferred_element_type=f32)
           + jnp.dot(b3c.astype(bf16), wred_ref[64:128, :], preferred_element_type=f32))

    # ---- shortcut 1x1 conv + final BN + ReLU (both conv biases folded into of_ref) ----
    sc = jnp.dot(x2, wsc_ref[...], preferred_element_type=f32)
    out = jnp.maximum((red + sc) * sf_ref[...] + of_ref[...], 0.0)             # (HW, 384)
    out_ref[...] = out.reshape(1, HW, 384)


# ------------------------------ JAX wrapper --------------------------------

def _zero_index_map(ndim, n):
    return (0,) * ndim


def _prep_params(params, eps=1e-5):
    """Fold BN into scale/bias, reorder conv weights for the kernel, cast weights to bf16."""
    f32, bf16 = jnp.float32, jnp.bfloat16

    def w1x1(w):   # (Co, Ci, 1, 1) -> (Ci, Co)
        return jnp.transpose(w[:, :, 0, 0], (1, 0))

    def w3x3(w):   # (Co, Ci, 3, 3) -> (9, Ci, Co), tap order (kh, kw)
        return jnp.transpose(w, (2, 3, 1, 0)).reshape(9, w.shape[1], w.shape[0])

    def fold(bn):
        g, b, m, v = bn
        s = g / jnp.sqrt(v + eps)
        return s.astype(f32), (b - m * s).astype(f32)

    s1_w = jnp.stack([w1x1(params["b1_w"]), w1x1(params["b2a_w"]),
                      w1x1(params["b3a_w"])], axis=0).astype(bf16)      # (3, Cin, 32)
    s1_s, s1_o = zip(*[fold(params[k]) for k in ("b1_bn", "b2a_bn", "b3a_bn")])
    s1_s = jnp.stack(s1_s).reshape(3, 1, 32)
    s1_o = jnp.stack(s1_o).reshape(3, 1, 32)

    s_b2b, o_b2b = fold(params["b2b_bn"])
    s_b3b, o_b3b = fold(params["b3b_bn"])
    s_b3c, o_b3c = fold(params["b3c_bn"])

    g, b, m, v = params["bn_f"]
    s_f = (g / jnp.sqrt(v + eps)).astype(f32)
    o_f = ((params["red_b"] + params["sc_b"] - m) * s_f + b).astype(f32)

    return (
        s1_w, s1_s, s1_o,
        w3x3(params["b2b_w"]).astype(bf16), s_b2b.reshape(1, 32), o_b2b.reshape(1, 32),
        w3x3(params["b3b_w"]).astype(bf16), s_b3b.reshape(1, 48), o_b3b.reshape(1, 48),
        w3x3(params["b3c_w"]).astype(bf16), s_b3c.reshape(1, 64), o_b3c.reshape(1, 64),
        w1x1(params["red_w"]).astype(bf16),        # (128, 384)
        w1x1(params["sc_w"]).astype(bf16),         # (Cin, 384)
        s_f.reshape(1, 384), o_f.reshape(1, 384),
    )


def inception_resnet_a_forward(x_nchw, params, eps=1e-5):
    """InceptionResNetA.forward; input/output are NCHW float32 (PyTorch layout)."""
    N, Cin, H, W = x_nchw.shape
    assert H % 8 == 0 and W % 8 == 0, "kernel assumes spatial dims are multiples of 8"
    HW = H * W

    # NCHW -> NHWC only at the module boundary; bf16 matmul operands.
    x_flat = (jnp.transpose(x_nchw, (0, 2, 3, 1))
              .reshape(N, HW, Cin).astype(jnp.bfloat16))
    prepped = _prep_params(params, eps)

    in_specs = [pl.BlockSpec((1, HW, Cin), lambda n: (n, 0, 0))]
    for a in prepped:  # weights / folded BN params: full blocks, fetched once (constant index)
        in_specs.append(pl.BlockSpec(a.shape, functools.partial(_zero_index_map, a.ndim)))

    kernel = functools.partial(_inception_a_kernel, H=H, W=W)
    out_flat = pl.pallas_call(
        kernel,
        out_shape=jax.ShapeDtypeStruct((N, HW, 384), jnp.float32),
        grid=(N,),
        in_specs=in_specs,
        out_specs=pl.BlockSpec((1, HW, 384), lambda n: (n, 0, 0)),
        compiler_params=pltpu.CompilerParams(
            dimension_semantics=("parallel",),
            vmem_limit_bytes=32 * 1024 * 1024,
        ),
    )(x_flat, *prepped)

    return jnp.transpose(out_flat.reshape(N, H, W, 384), (0, 3, 1, 2))  # back to NCHW


# --------------------------- pure-JAX reference ----------------------------
# Matched numerics: conv operands in bf16, accumulation / BN / ReLU in f32 (same as the kernel).

def _conv_ref(x_nhwc, w_oihw, pad):
    return jax.lax.conv_general_dilated(
        x_nhwc.astype(jnp.bfloat16),
        jnp.transpose(w_oihw, (2, 3, 1, 0)).astype(jnp.bfloat16),
        window_strides=(1, 1),
        padding=[(pad, pad), (pad, pad)],
        dimension_numbers=("NHWC", "HWIO", "NHWC"),
        preferred_element_type=jnp.float32)


def _bn_ref(x, bn, eps=1e-5):
    g, b, m, v = bn
    return (x - m) / jnp.sqrt(v + eps) * g + b


def inception_resnet_a_ref(x_nchw, params, eps=1e-5):
    x = jnp.transpose(x_nchw, (0, 2, 3, 1))

    def basic(v, w, bn, pad):
        return jax.nn.relu(_bn_ref(_conv_ref(v, w, pad), bn, eps))

    b1 = basic(x, params["b1_w"], params["b1_bn"], 0)
    b2 = basic(x, params["b2a_w"], params["b2a_bn"], 0)
    b2 = basic(b2, params["b2b_w"], params["b2b_bn"], 1)
    b3 = basic(x, params["b3a_w"], params["b3a_bn"], 0)
    b3 = basic(b3, params["b3b_w"], params["b3b_bn"], 1)
    b3 = basic(b3, params["b3c_w"], params["b3c_bn"], 1)

    residual = jnp.concatenate([b1, b2, b3], axis=-1)                       # (N,H,W,128)
    red = _conv_ref(residual, params["red_w"], 0) + params["red_b"]
    sc = _conv_ref(x, params["sc_w"], 0) + params["sc_b"]
    out = jax.nn.relu(_bn_ref(sc + red, params["bn_f"], eps))
    return jnp.transpose(out, (0, 3, 1, 2))


# ------------------------------- params / main -----------------------------

def make_params(key, in_channels):
    keys = iter(jax.random.split(key, 64))

    def conv_w(co, ci, k):
        return jax.random.normal(next(keys), (co, ci, k, k), jnp.float32) * 0.1

    def bn_p(c):
        return (jax.random.normal(next(keys), (c,), jnp.float32) * 0.1 + 1.0,   # gamma
                jax.random.normal(next(keys), (c,), jnp.float32) * 0.1,          # beta
                jax.random.normal(next(keys), (c,), jnp.float32) * 0.1,          # running_mean
                jnp.abs(jax.random.normal(next(keys), (c,), jnp.float32)) + 0.5)  # running_var

    return {
        "b1_w": conv_w(32, in_channels, 1), "b1_bn": bn_p(32),     # branch1x1
        "b2a_w": conv_w(32, in_channels, 1), "b2a_bn": bn_p(32),   # branch3x3
        "b2b_w": conv_w(32, 32, 3), "b2b_bn": bn_p(32),
        "b3a_w": conv_w(32, in_channels, 1), "b3a_bn": bn_p(32),   # branch3x3stack
        "b3b_w": conv_w(48, 32, 3), "b3b_bn": bn_p(48),
        "b3c_w": conv_w(64, 48, 3), "b3c_bn": bn_p(64),
        "red_w": conv_w(384, 128, 1),                              # reduction1x1 (has bias)
        "red_b": jax.random.normal(next(keys), (384,), jnp.float32) * 0.1,
        "sc_w": conv_w(384, in_channels, 1),                       # shortcut (has bias)
        "sc_b": jax.random.normal(next(keys), (384,), jnp.float32) * 0.1,
        "bn_f": bn_p(384),
    }


if __name__ == "__main__":
    key = jax.random.PRNGKey(0)
    k_x, k_p = jax.random.split(key)

    N, Cin, H, W = 2, 4, 16, 16
    x = jax.random.normal(k_x, (N, Cin, H, W), jnp.float32)   # NCHW, like PyTorch
    params = make_params(k_p, Cin)

    fwd = jax.jit(inception_resnet_a_forward)
    out = jax.block_until_ready(fwd(x, params))

    ref = jax.block_until_ready(inception_resnet_a_ref(x, params))
    assert out.shape == ref.shape == (N, 384, H, W), out.shape
    max_diff = float(jnp.max(jnp.abs(out - ref)))
    assert jnp.allclose(out, ref, atol=5e-3, rtol=5e-3), f"mismatch vs reference: {max_diff}"

    print("KERNEL_OK")
</pallas_src>

<mosaic_0001>
module attributes {stable_mosaic.version = 11 : i64} {
  func.func @_inception_a_kernel(%arg0: i32, %arg1: memref<1x256x4xbf16, #tpu.memory_space<vmem>>, %arg2: memref<3x4x32xbf16, #tpu.memory_space<vmem>>, %arg3: memref<3x1x32xf32, #tpu.memory_space<vmem>>, %arg4: memref<3x1x32xf32, #tpu.memory_space<vmem>>, %arg5: memref<9x32x32xbf16, #tpu.memory_space<vmem>>, %arg6: memref<1x32xf32, #tpu.memory_space<vmem>>, %arg7: memref<1x32xf32, #tpu.memory_space<vmem>>, %arg8: memref<9x32x48xbf16, #tpu.memory_space<vmem>>, %arg9: memref<1x48xf32, #tpu.memory_space<vmem>>, %arg10: memref<1x48xf32, #tpu.memory_space<vmem>>, %arg11: memref<9x48x64xbf16, #tpu.memory_space<vmem>>, %arg12: memref<1x64xf32, #tpu.memory_space<vmem>>, %arg13: memref<1x64xf32, #tpu.memory_space<vmem>>, %arg14: memref<128x384xbf16, #tpu.memory_space<vmem>>, %arg15: memref<4x384xbf16, #tpu.memory_space<vmem>>, %arg16: memref<1x384xf32, #tpu.memory_space<vmem>>, %arg17: memref<1x384xf32, #tpu.memory_space<vmem>>, %arg18: memref<1x256x384xf32, #tpu.memory_space<vmem>>) attributes {dimension_semantics = [#tpu.dimension_semantics<parallel>], iteration_bounds = array<i64: 2>, scalar_prefetch = 0 : i64, scratch_operands = 0 : i64, tpu.core_type = #tpu.core_type<tc>, window_params = [{transform_indices = @transform_0, window_bounds = array<i64: 1, 256, 4>}, {pipeline_mode = #tpu.pipeline_mode<synchronous>, transform_indices = @transform_1, window_bounds = array<i64: 3, 4, 32>}, {pipeline_mode = #tpu.pipeline_mode<synchronous>, transform_indices = @transform_2, window_bounds = array<i64: 3, 1, 32>}, {pipeline_mode = #tpu.pipeline_mode<synchronous>, transform_indices = @transform_3, window_bounds = array<i64: 3, 1, 32>}, {pipeline_mode = #tpu.pipeline_mode<synchronous>, transform_indices = @transform_4, window_bounds = array<i64: 9, 32, 32>}, {pipeline_mode = #tpu.pipeline_mode<synchronous>, transform_indices = @transform_5, window_bounds = array<i64: 1, 32>}, {pipeline_mode = #tpu.pipeline_mode<synchronous>, transform_indices = @transform_6, window_bounds = array<i64: 1, 32>}, {pipeline_mode = #tpu.pipeline_mode<synchronous>, transform_indices = @transform_7, window_bounds = array<i64: 9, 32, 48>}, {pipeline_mode = #tpu.pipeline_mode<synchronous>, transform_indices = @transform_8, window_bounds = array<i64: 1, 48>}, {pipeline_mode = #tpu.pipeline_mode<synchronous>, transform_indices = @transform_9, window_bounds = array<i64: 1, 48>}, {pipeline_mode = #tpu.pipeline_mode<synchronous>, transform_indices = @transform_10, window_bounds = array<i64: 9, 48, 64>}, {pipeline_mode = #tpu.pipeline_mode<synchronous>, transform_indices = @transform_11, window_bounds = array<i64: 1, 64>}, {pipeline_mode = #tpu.pipeline_mode<synchronous>, transform_indices = @transform_12, window_bounds = array<i64: 1, 64>}, {pipeline_mode = #tpu.pipeline_mode<synchronous>, transform_indices = @transform_13, window_bounds = array<i64: 128, 384>}, {pipeline_mode = #tpu.pipeline_mode<synchronous>, transform_indices = @transform_14, window_bounds = array<i64: 4, 384>}, {pipeline_mode = #tpu.pipeline_mode<synchronous>, transform_indices = @transform_15, window_bounds = array<i64: 1, 384>}, {pipeline_mode = #tpu.pipeline_mode<synchronous>, transform_indices = @transform_16, window_bounds = array<i64: 1, 384>}, {transform_indices = @transform_17, window_bounds = array<i64: 1, 256, 384>}]} {
    %c0 = arith.constant 0 : index
    %c0_0 = arith.constant 0 : index
    %c0_1 = arith.constant 0 : index
    %0 = vector.load %arg1[%c0, %c0_0, %c0_1] : memref<1x256x4xbf16, #tpu.memory_space<vmem>>, vector<1x256x4xbf16>
    %1 = vector.shape_cast %0 : vector<1x256x4xbf16> to vector<256x4xbf16>
    %c0_2 = arith.constant 0 : index
    %c0_3 = arith.constant 0 : index
    %c0_4 = arith.constant 0 : index
    %2 = vector.load %arg2[%c0_2, %c0_3, %c0_4] : memref<3x4x32xbf16, #tpu.memory_space<vmem>>, vector<1x4x32xbf16>
    %3 = vector.shape_cast %2 : vector<1x4x32xbf16> to vector<4x32xbf16>
    %cst = arith.constant dense<0.000000e+00> : vector<256x32xf32>
    %4 = tpu.matmul %1, %3, %cst {dimension_numbers = #tpu.dot_dimension_numbers<[1], [0], [0], [1], [0, 0, 1, 1], [], []>} : vector<256x4xbf16>, vector<4x32xbf16>, vector<256x32xf32> -> vector<256x32xf32>
    %c0_5 = arith.constant 0 : index
    %c0_6 = arith.constant 0 : index
    %c0_7 = arith.constant 0 : index
    %5 = vector.load %arg3[%c0_5, %c0_6, %c0_7] : memref<3x1x32xf32, #tpu.memory_space<vmem>>, vector<1x1x32xf32>
    %6 = vector.shape_cast %5 : vector<1x1x32xf32> to vector<1x32xf32>
    %7 = vector.broadcast %6 : vector<1x32xf32> to vector<256x32xf32>
    %8 = arith.mulf %4, %7 : vector<256x32xf32>
    %c0_8 = arith.constant 0 : index
    %c0_9 = arith.constant 0 : index
    %c0_10 = arith.constant 0 : index
    %9 = vector.load %arg4[%c0_8, %c0_9, %c0_10] : memref<3x1x32xf32, #tpu.memory_space<vmem>>, vector<1x1x32xf32>
    %10 = vector.shape_cast %9 : vector<1x1x32xf32> to vector<1x32xf32>
    %11 = vector.broadcast %10 : vector<1x32xf32> to vector<256x32xf32>
    %12 = arith.addf %8, %11 : vector<256x32xf32>
    %cst_11 = arith.constant 0.000000e+00 : f32
    %13 = vector.broadcast %cst_11 : f32 to vector<256x32xf32>
    %14 = arith.maximumf %12, %13 : vector<256x32xf32>
    %c1 = arith.constant 1 : index
    %c0_12 = arith.constant 0 : index
    %c0_13 = arith.constant 0 : index
    %15 = vector.load %arg2[%c1, %c0_12, %c0_13] : memref<3x4x32xbf16, #tpu.memory_space<vmem>>, vector<1x4x32xbf16>
    %16 = vector.shape_cast %15 : vector<1x4x32xbf16> to vector<4x32xbf16>
    %cst_14 = arith.constant dense<0.000000e+00> : vector<256x32xf32>
    %17 = tpu.matmul %1, %16, %cst_14 {dimension_numbers = #tpu.dot_dimension_numbers<[1], [0], [0], [1], [0, 0, 1, 1], [], []>} : vector<256x4xbf16>, vector<4x32xbf16>, vector<256x32xf32> -> vector<256x32xf32>
    %c1_15 = arith.constant 1 : index
    %c0_16 = arith.constant 0 : index
    %c0_17 = arith.constant 0 : index
    %18 = vector.load %arg3[%c1_15, %c0_16, %c0_17] : memref<3x1x32xf32, #tpu.memory_space<vmem>>, vector<1x1x32xf32>
    %19 = vector.shape_cast %18 : vector<1x1x32xf32> to vector<1x32xf32>
    %20 = vector.broadcast %19 : vector<1x32xf32> to vector<256x32xf32>
    %21 = arith.mulf %17, %20 : vector<256x32xf32>
    %c1_18 = arith.constant 1 : index
    %c0_19 = arith.constant 0 : index
    %c0_20 = arith.constant 0 : index
    %22 = vector.load %arg4[%c1_18, %c0_19, %c0_20] : memref<3x1x32xf32, #tpu.memory_space<vmem>>, vector<1x1x32xf32>
    %23 = vector.shape_cast %22 : vector<1x1x32xf32> to vector<1x32xf32>
    %24 = vector.broadcast %23 : vector<1x32xf32> to vector<256x32xf32>
    %25 = arith.addf %21, %24 : vector<256x32xf32>
    %cst_21 = arith.constant 0.000000e+00 : f32
    %26 = vector.broadcast %cst_21 : f32 to vector<256x32xf32>
    %27 = arith.maximumf %25, %26 : vector<256x32xf32>
    %c2 = arith.constant 2 : index
    %c0_22 = arith.constant 0 : index
    %c0_23 = arith.constant 0 : index
    %28 = vector.load %arg2[%c2, %c0_22, %c0_23] : memref<3x4x32xbf16, #tpu.memory_space<vmem>>, vector<1x4x32xbf16>
    %29 = vector.shape_cast %28 : vector<1x4x32xbf16> to vector<4x32xbf16>
    %cst_24 = arith.constant dense<0.000000e+00> : vector<256x32xf32>
    %30 = tpu.matmul %1, %29, %cst_24 {dimension_numbers = #tpu.dot_dimension_numbers<[1], [0], [0], [1], [0, 0, 1, 1], [], []>} : vector<256x4xbf16>, vector<4x32xbf16>, vector<256x32xf32> -> vector<256x32xf32>
    %c2_25 = arith.constant 2 : index
    %c0_26 = arith.constant 0 : index
    %c0_27 = arith.constant 0 : index
    %31 = vector.load %arg3[%c2_25, %c0_26, %c0_27] : memref<3x1x32xf32, #tpu.memory_space<vmem>>, vector<1x1x32xf32>
    %32 = vector.shape_cast %31 : vector<1x1x32xf32> to vector<1x32xf32>
    %33 = vector.broadcast %32 : vector<1x32xf32> to vector<256x32xf32>
    %34 = arith.mulf %30, %33 : vector<256x32xf32>
    %c2_28 = arith.constant 2 : index
    %c0_29 = arith.constant 0 : index
    %c0_30 = arith.constant 0 : index
    %35 = vector.load %arg4[%c2_28, %c0_29, %c0_30] : memref<3x1x32xf32, #tpu.memory_space<vmem>>, vector<1x1x32xf32>
    %36 = vector.shape_cast %35 : vector<1x1x32xf32> to vector<1x32xf32>
    %37 = vector.broadcast %36 : vector<1x32xf32> to vector<256x32xf32>
    %38 = arith.addf %34, %37 : vector<256x32xf32>
    %cst_31 = arith.constant 0.000000e+00 : f32
    %39 = vector.broadcast %cst_31 : f32 to vector<256x32xf32>
    %40 = arith.maximumf %38, %39 : vector<256x32xf32>
    %41 = vector.shape_cast %27 : vector<256x32xf32> to vector<16x16x32xf32>
    %cst_32 = arith.constant 0.000000e+00 : f32
    %42 = vector.broadcast %cst_32 : f32 to vector<1x16x32xf32>
    %43 = tpu.concatenate %42, %41, %42 in 0 : vector<1x16x32xf32>, vector<16x16x32xf32>, vector<1x16x32xf32> -> vector<18x16x32xf32>
    %cst_33 = arith.constant 0.000000e+00 : f32
    %44 = vector.broadcast %cst_33 : f32 to vector<18x8x32xf32>
    %45 = tpu.concatenate %44, %43, %44 in 1 : vector<18x8x32xf32>, vector<18x16x32xf32>, vector<18x8x32xf32> -> vector<18x32x32xf32>
    %46 = vector.extract_strided_slice %45 {offsets = [0, 7, 0], sizes = [16, 16, 32], strides = [1, 1, 1]} : vector<18x32x32xf32> to vector<16x16x32xf32>
    %47 = vector.shape_cast %46 : vector<16x16x32xf32> to vector<256x32xf32>
    %48 = arith.truncf %47 : vector<256x32xf32> to vector<256x32xbf16>
    %c0_34 = arith.constant 0 : index
    %c0_35 = arith.constant 0 : index
    %c0_36 = arith.constant 0 : index
    %49 = vector.load %arg5[%c0_34, %c0_35, %c0_36] : memref<9x32x32xbf16, #tpu.memory_space<vmem>>, vector<1x32x32xbf16>
    %50 = vector.shape_cast %49 : vector<1x32x32xbf16> to vector<32x32xbf16>
    %cst_37 = arith.constant dense<0.000000e+00> : vector<256x32xf32>
    %51 = tpu.matmul %48, %50, %cst_37 {dimension_numbers = #tpu.dot_dimension_numbers<[1], [0], [0], [1], [0, 0, 1, 1], [], []>} : vector<256x32xbf16>, vector<32x32xbf16>, vector<256x32xf32> -> vector<256x32xf32>
    %52 = vector.extract_strided_slice %45 {offsets = [0, 8, 0], sizes = [16, 16, 32], strides = [1, 1, 1]} : vector<18x32x32xf32> to vector<16x16x32xf32>
    %53 = vector.shape_cast %52 : vector<16x16x32xf32> to vector<256x32xf32>
    %54 = arith.truncf %53 : vector<256x32xf32> to vector<256x32xbf16>
    %c1_38 = arith.constant 1 : index
    %c0_39 = arith.constant 0 : index
    %c0_40 = arith.constant 0 : index
    %55 = vector.load %arg5[%c1_38, %c0_39, %c0_40] : memref<9x32x32xbf16, #tpu.memory_space<vmem>>, vector<1x32x32xbf16>
    %56 = vector.shape_cast %55 : vector<1x32x32xbf16> to vector<32x32xbf16>
    %cst_41 = arith.constant dense<0.000000e+00> : vector<256x32xf32>
    %57 = tpu.matmul %54, %56, %cst_41 {dimension_numbers = #tpu.dot_dimension_numbers<[1], [0], [0], [1], [0, 0, 1, 1], [], []>} : vector<256x32xbf16>, vector<32x32xbf16>, vector<256x32xf32> -> vector<256x32xf32>
    %58 = arith.addf %51, %57 : vector<256x32xf32>
    %59 = vector.extract_strided_slice %45 {offsets = [0, 9, 0], sizes = [16, 16, 32], strides = [1, 1, 1]} : vector<18x32x32xf32> to vector<16x16x32xf32>
    %60 = vector.shape_cast %59 : vector<16x16x32xf32> to vector<256x32xf32>
    %61 = arith.truncf %60 : vector<256x32xf32> to vector<256x32xbf16>
    %c2_42 = arith.constant 2 : index
    %c0_43 = arith.constant 0 : index
    %c0_44 = arith.constant 0 : index
    %62 = vector.load %arg5[%c2_42, %c0_43, %c0_44] : memref<9x32x32xbf16, #tpu.memory_space<vmem>>, vector<1x32x32xbf16>
    %63 = vector.shape_cast %62 : vector<1x32x32xbf16> to vector<32x32xbf16>
    %cst_45 = arith.constant dense<0.000000e+00> : vector<256x32xf32>
    %64 = tpu.matmul %61, %63, %cst_45 {dimension_numbers = #tpu.dot_dimension_numbers<[1], [0], [0], [1], [0, 0, 1, 1], [], []>} : vector<256x32xbf16>, vector<32x32xbf16>, vector<256x32xf32> -> vector<256x32xf32>
    %65 = arith.addf %58, %64 : vector<256x32xf32>
    %66 = vector.extract_strided_slice %45 {offsets = [1, 7, 0], sizes = [16, 16, 32], strides = [1, 1, 1]} : vector<18x32x32xf32> to vector<16x16x32xf32>
    %67 = vector.shape_cast %66 : vector<16x16x32xf32> to vector<256x32xf32>
    %68 = arith.truncf %67 : vector<256x32xf32> to vector<256x32xbf16>
    %c3 = arith.constant 3 : index
    %c0_46 = arith.constant 0 : index
    %c0_47 = arith.constant 0 : index
    %69 = vector.load %arg5[%c3, %c0_46, %c0_47] : memref<9x32x32xbf16, #tpu.memory_space<vmem>>, vector<1x32x32xbf16>
    %70 = vector.shape_cast %69 : vector<1x32x32xbf16> to vector<32x32xbf16>
    %cst_48 = arith.constant dense<0.000000e+00> : vector<256x32xf32>
    %71 = tpu.matmul %68, %70, %cst_48 {dimension_numbers = #tpu.dot_dimension_numbers<[1], [0], [0], [1], [0, 0, 1, 1], [], []>} : vector<256x32xbf16>, vector<32x32xbf16>, vector<256x32xf32> -> vector<256x32xf32>
    %72 = arith.addf %65, %71 : vector<256x32xf32>
    %73 = vector.extract_strided_slice %45 {offsets = [1, 8, 0], sizes = [16, 16, 32], strides = [1, 1, 1]} : vector<18x32x32xf32> to vector<16x16x32xf32>
    %74 = vector.shape_cast %73 : vector<16x16x32xf32> to vector<256x32xf32>
    %75 = arith.truncf %74 : vector<256x32xf32> to vector<256x32xbf16>
    %c4 = arith.constant 4 : index
    %c0_49 = arith.constant 0 : index
    %c0_50 = arith.constant 0 : index
    %76 = vector.load %arg5[%c4, %c0_49, %c0_50] : memref<9x32x32xbf16, #tpu.memory_space<vmem>>, vector<1x32x32xbf16>
    %77 = vector.shape_cast %76 : vector<1x32x32xbf16> to vector<32x32xbf16>
    %cst_51 = arith.constant dense<0.000000e+00> : vector<256x32xf32>
    %78 = tpu.matmul %75, %77, %cst_51 {dimension_numbers = #tpu.dot_dimension_numbers<[1], [0], [0], [1], [0, 0, 1, 1], [], []>} : vector<256x32xbf16>, vector<32x32xbf16>, vector<256x32xf32> -> vector<256x32xf32>
    %79 = arith.addf %72, %78 : vector<256x32xf32>
    %80 = vector.extract_strided_slice %45 {offsets = [1, 9, 0], sizes = [16, 16, 32], strides = [1, 1, 1]} : vector<18x32x32xf32> to vector<16x16x32xf32>
    %81 = vector.shape_cast %80 : vector<16x16x32xf32> to vector<256x32xf32>
    %82 = arith.truncf %81 : vector<256x32xf32> to vector<256x32xbf16>
    %c5 = arith.constant 5 : index
    %c0_52 = arith.constant 0 : index
    %c0_53 = arith.constant 0 : index
    %83 = vector.load %arg5[%c5, %c0_52, %c0_53] : memref<9x32x32xbf16, #tpu.memory_space<vmem>>, vector<1x32x32xbf16>
    %84 = vector.shape_cast %83 : vector<1x32x32xbf16> to vector<32x32xbf16>
    %cst_54 = arith.constant dense<0.000000e+00> : vector<256x32xf32>
    %85 = tpu.matmul %82, %84, %cst_54 {dimension_numbers = #tpu.dot_dimension_numbers<[1], [0], [0], [1], [0, 0, 1, 1], [], []>} : vector<256x32xbf16>, vector<32x32xbf16>, vector<256x32xf32> -> vector<256x32xf32>
    %86 = arith.addf %79, %85 : vector<256x32xf32>
    %87 = vector.extract_strided_slice %45 {offsets = [2, 7, 0], sizes = [16, 16, 32], strides = [1, 1, 1]} : vector<18x32x32xf32> to vector<16x16x32xf32>
    %88 = vector.shape_cast %87 : vector<16x16x32xf32> to vector<256x32xf32>
    %89 = arith.truncf %88 : vector<256x32xf32> to vector<256x32xbf16>
    %c6 = arith.constant 6 : index
    %c0_55 = arith.constant 0 : index
    %c0_56 = arith.constant 0 : index
    %90 = vector.load %arg5[%c6, %c0_55, %c0_56] : memref<9x32x32xbf16, #tpu.memory_space<vmem>>, vector<1x32x32xbf16>
    %91 = vector.shape_cast %90 : vector<1x32x32xbf16> to vector<32x32xbf16>
    %cst_57 = arith.constant dense<0.000000e+00> : vector<256x32xf32>
    %92 = tpu.matmul %89, %91, %cst_57 {dimension_numbers = #tpu.dot_dimension_numbers<[1], [0], [0], [1], [0, 0, 1, 1], [], []>} : vector<256x32xbf16>, vector<32x32xbf16>, vector<256x32xf32> -> vector<256x32xf32>
    %93 = arith.addf %86, %92 : vector<256x32xf32>
    %94 = vector.extract_strided_slice %45 {offsets = [2, 8, 0], sizes = [16, 16, 32], strides = [1, 1, 1]} : vector<18x32x32xf32> to vector<16x16x32xf32>
    %95 = vector.shape_cast %94 : vector<16x16x32xf32> to vector<256x32xf32>
    %96 = arith.truncf %95 : vector<256x32xf32> to vector<256x32xbf16>
    %c7 = arith.constant 7 : index
    %c0_58 = arith.constant 0 : index
    %c0_59 = arith.constant 0 : index
    %97 = vector.load %arg5[%c7, %c0_58, %c0_59] : memref<9x32x32xbf16, #tpu.memory_space<vmem>>, vector<1x32x32xbf16>
    %98 = vector.shape_cast %97 : vector<1x32x32xbf16> to vector<32x32xbf16>
    %cst_60 = arith.constant dense<0.000000e+00> : vector<256x32xf32>
    %99 = tpu.matmul %96, %98, %cst_60 {dimension_numbers = #tpu.dot_dimension_numbers<[1], [0], [0], [1], [0, 0, 1, 1], [], []>} : vector<256x32xbf16>, vector<32x32xbf16>, vector<256x32xf32> -> vector<256x32xf32>
    %100 = arith.addf %93, %99 : vector<256x32xf32>
    %101 = vector.extract_strided_slice %45 {offsets = [2, 9, 0], sizes = [16, 16, 32], strides = [1, 1, 1]} : vector<18x32x32xf32> to vector<16x16x32xf32>
    %102 = vector.shape_cast %101 : vector<16x16x32xf32> to vector<256x32xf32>
    %103 = arith.truncf %102 : vector<256x32xf32> to vector<256x32xbf16>
    %c8 = arith.constant 8 : index
    %c0_61 = arith.constant 0 : index
    %c0_62 = arith.constant 0 : index
    %104 = vector.load %arg5[%c8, %c0_61, %c0_62] : memref<9x32x32xbf16, #tpu.memory_space<vmem>>, vector<1x32x32xbf16>
    %105 = vector.shape_cast %104 : vector<1x32x32xbf16> to vector<32x32xbf16>
    %cst_63 = arith.constant dense<0.000000e+00> : vector<256x32xf32>
    %106 = tpu.matmul %103, %105, %cst_63 {dimension_numbers = #tpu.dot_dimension_numbers<[1], [0], [0], [1], [0, 0, 1, 1], [], []>} : vector<256x32xbf16>, vector<32x32xbf16>, vector<256x32xf32> -> vector<256x32xf32>
    %107 = arith.addf %100, %106 : vector<256x32xf32>
    %c0_64 = arith.constant 0 : index
    %c0_65 = arith.constant 0 : index
    %108 = vector.load %arg6[%c0_64, %c0_65] : memref<1x32xf32, #tpu.memory_space<vmem>>, vector<1x32xf32>
    %109 = vector.broadcast %108 : vector<1x32xf32> to vector<256x32xf32>
    %110 = arith.mulf %107, %109 : vector<256x32xf32>
    %c0_66 = arith.constant 0 : index
    %c0_67 = arith.constant 0 : index
    %111 = vector.load %arg7[%c0_66, %c0_67] : memref<1x32xf32, #tpu.memory_space<vmem>>, vector<1x32xf32>
    %112 = vector.broadcast %111 : vector<1x32xf32> to vector<256x32xf32>
    %113 = arith.addf %110, %112 : vector<256x32xf32>
    %cst_68 = arith.constant 0.000000e+00 : f32
    %114 = vector.broadcast %cst_68 : f32 to vector<256x32xf32>
    %115 = arith.maximumf %113, %114 : vector<256x32xf32>
    %116 = vector.shape_cast %40 : vector<256x32xf32> to vector<16x16x32xf32>
    %cst_69 = arith.constant 0.000000e+00 : f32
    %117 = vector.broadcast %cst_69 : f32 to vector<1x16x32xf32>
    %118 = tpu.concatenate %117, %116, %117 in 0 : vector<1x16x32xf32>, vector<16x16x32xf32>, vector<1x16x32xf32> -> vector<18x16x32xf32>
    %cst_70 = arith.constant 0.000000e+00 : f32
    %119 = vector.broadcast %cst_70 : f32 to vector<18x8x32xf32>
    %120 = tpu.concatenate %119, %118, %119 in 1 : vector<18x8x32xf32>, vector<18x16x32xf32>, vector<18x8x32xf32> -> vector<18x32x32xf32>
    %121 = vector.extract_strided_slice %120 {offsets = [0, 7, 0], sizes = [16, 16, 32], strides = [1, 1, 1]} : vector<18x32x32xf32> to vector<16x16x32xf32>
    %122 = vector.shape_cast %121 : vector<16x16x32xf32> to vector<256x32xf32>
    %123 = arith.truncf %122 : vector<256x32xf32> to vector<256x32xbf16>
    %c0_71 = arith.constant 0 : index
    %c0_72 = arith.constant 0 : index
    %c0_73 = arith.constant 0 : index
    %124 = vector.load %arg8[%c0_71, %c0_72, %c0_73] : memref<9x32x48xbf16, #tpu.memory_space<vmem>>, vector<1x32x48xbf16>
    %125 = vector.shape_cast %124 : vector<1x32x48xbf16> to vector<32x48xbf16>
    %cst_74 = arith.constant dense<0.000000e+00> : vector<256x48xf32>
    %126 = tpu.matmul %123, %125, %cst_74 {dimension_numbers = #tpu.dot_dimension_numbers<[1], [0], [0], [1], [0, 0, 1, 1], [], []>} : vector<256x32xbf16>, vector<32x48xbf16>, vector<256x48xf32> -> vector<256x48xf32>
    %127 = vector.extract_strided_slice %120 {offsets = [0, 8, 0], sizes = [16, 16, 32], strides = [1, 1, 1]} : vector<18x32x32xf32> to vector<16x16x32xf32>
    %128 = vector.shape_cast %127 : vector<16x16x32xf32> to vector<256x32xf32>
    %129 = arith.truncf %128 : vector<256x32xf32> to vector<256x32xbf16>
    %c1_75 = arith.constant 1 : index
    %c0_76 = arith.constant 0 : index
    %c0_77 = arith.constant 0 : index
    %130 = vector.load %arg8[%c1_75, %c0_76, %c0_77] : memref<9x32x48xbf16, #tpu.memory_space<vmem>>, vector<1x32x48xbf16>
    %131 = vector.shape_cast %130 : vector<1x32x48xbf16> to vector<32x48xbf16>
    %cst_78 = arith.constant dense<0.000000e+00> : vector<256x48xf32>
    %132 = tpu.matmul %129, %131, %cst_78 {dimension_numbers = #tpu.dot_dimension_numbers<[1], [0], [0], [1], [0, 0, 1, 1], [], []>} : vector<256x32xbf16>, vector<32x48xbf16>, vector<256x48xf32> -> vector<256x48xf32>
    %133 = arith.addf %126, %132 : vector<256x48xf32>
    %134 = vector.extract_strided_slice %120 {offsets = [0, 9, 0], sizes = [16, 16, 32], strides = [1, 1, 1]} : vector<18x32x32xf32> to vector<16x16x32xf32>
    %135 = vector.shape_cast %134 : vector<16x16x32xf32> to vector<256x32xf32>
    %136 = arith.truncf %135 : vector<256x32xf32> to vector<256x32xbf16>
    %c2_79 = arith.constant 2 : index
    %c0_80 = arith.constant 0 : index
    %c0_81 = arith.constant 0 : index
    %137 = vector.load %arg8[%c2_79, %c0_80, %c0_81] : memref<9x32x48xbf16, #tpu.memory_space<vmem>>, vector<1x32x48xbf16>
    %138 = vector.shape_cast %137 : vector<1x32x48xbf16> to vector<32x48xbf16>
    %cst_82 = arith.constant dense<0.000000e+00> : vector<256x48xf32>
    %139 = tpu.matmul %136, %138, %cst_82 {dimension_numbers = #tpu.dot_dimension_numbers<[1], [0], [0], [1], [0, 0, 1, 1], [], []>} : vector<256x32xbf16>, vector<32x48xbf16>, vector<256x48xf32> -> vector<256x48xf32>
    %140 = arith.addf %133, %139 : vector<256x48xf32>
    %141 = vector.extract_strided_slice %120 {offsets = [1, 7, 0], sizes = [16, 16, 32], strides = [1, 1, 1]} : vector<18x32x32xf32> to vector<16x16x32xf32>
    %142 = vector.shape_cast %141 : vector<16x16x32xf32> to vector<256x32xf32>
    %143 = arith.truncf %142 : vector<256x32xf32> to vector<256x32xbf16>
    %c3_83 = arith.constant 3 : index
    %c0_84 = arith.constant 0 : index
    %c0_85 = arith.constant 0 : index
    %144 = vector.load %arg8[%c3_83, %c0_84, %c0_85] : memref<9x32x48xbf16, #tpu.memory_space<vmem>>, vector<1x32x48xbf16>
    %145 = vector.shape_cast %144 : vector<1x32x48xbf16> to vector<32x48xbf16>
    %cst_86 = arith.constant dense<0.000000e+00> : vector<256x48xf32>
    %146 = tpu.matmul %143, %145, %cst_86 {dimension_numbers = #tpu.dot_dimension_numbers<[1], [0], [0], [1], [0, 0, 1, 1], [], []>} : vector<256x32xbf16>, vector<32x48xbf16>, vector<256x48xf32> -> vector<256x48xf32>
    %147 = arith.addf %140, %146 : vector<256x48xf32>
    %148 = vector.extract_strided_slice %120 {offsets = [1, 8, 0], sizes = [16, 16, 32], strides = [1, 1, 1]} : vector<18x32x32xf32> to vector<16x16x32xf32>
    %149 = vector.shape_cast %148 : vector<16x16x32xf32> to vector<256x32xf32>
    %150 = arith.truncf %149 : vector<256x32xf32> to vector<256x32xbf16>
    %c4_87 = arith.constant 4 : index
    %c0_88 = arith.constant 0 : index
    %c0_89 = arith.constant 0 : index
    %151 = vector.load %arg8[%c4_87, %c0_88, %c0_89] : memref<9x32x48xbf16, #tpu.memory_space<vmem>>, vector<1x32x48xbf16>
    %152 = vector.shape_cast %151 : vector<1x32x48xbf16> to vector<32x48xbf16>
    %cst_90 = arith.constant dense<0.000000e+00> : vector<256x48xf32>
    %153 = tpu.matmul %150, %152, %cst_90 {dimension_numbers = #tpu.dot_dimension_numbers<[1], [0], [0], [1], [0, 0, 1, 1], [], []>} : vector<256x32xbf16>, vector<32x48xbf16>, vector<256x48xf32> -> vector<256x48xf32>
    %154 = arith.addf %147, %153 : vector<256x48xf32>
    %155 = vector.extract_strided_slice %120 {offsets = [1, 9, 0], sizes = [16, 16, 32], strides = [1, 1, 1]} : vector<18x32x32xf32> to vector<16x16x32xf32>
    %156 = vector.shape_cast %155 : vector<16x16x32xf32> to vector<256x32xf32>
    %157 = arith.truncf %156 : vector<256x32xf32> to vector<256x32xbf16>
    %c5_91 = arith.constant 5 : index
    %c0_92 = arith.constant 0 : index
    %c0_93 = arith.constant 0 : index
    %158 = vector.load %arg8[%c5_91, %c0_92, %c0_93] : memref<9x32x48xbf16, #tpu.memory_space<vmem>>, vector<1x32x48xbf16>
    %159 = vector.shape_cast %158 : vector<1x32x48xbf16> to vector<32x48xbf16>
    %cst_94 = arith.constant dense<0.000000e+00> : vector<256x48xf32>
    %160 = tpu.matmul %157, %159, %cst_94 {dimension_numbers = #tpu.dot_dimension_numbers<[1], [0], [0], [1], [0, 0, 1, 1], [], []>} : vector<256x32xbf16>, vector<32x48xbf16>, vector<256x48xf32> -> vector<256x48xf32>
    %161 = arith.addf %154, %160 : vector<256x48xf32>
    %162 = vector.extract_strided_slice %120 {offsets = [2, 7, 0], sizes = [16, 16, 32], strides = [1, 1, 1]} : vector<18x32x32xf32> to vector<16x16x32xf32>
    %163 = vector.shape_cast %162 : vector<16x16x32xf32> to vector<256x32xf32>
    %164 = arith.truncf %163 : vector<256x32xf32> to vector<256x32xbf16>
    %c6_95 = arith.constant 6 : index
    %c0_96 = arith.constant 0 : index
    %c0_97 = arith.constant 0 : index
    %165 = vector.load %arg8[%c6_95, %c0_96, %c0_97] : memref<9x32x48xbf16, #tpu.memory_space<vmem>>, vector<1x32x48xbf16>
    %166 = vector.shape_cast %165 : vector<1x32x48xbf16> to vector<32x48xbf16>
    %cst_98 = arith.constant dense<0.000000e+00> : vector<256x48xf32>
    %167 = tpu.matmul %164, %166, %cst_98 {dimension_numbers = #tpu.dot_dimension_numbers<[1], [0], [0], [1], [0, 0, 1, 1], [], []>} : vector<256x32xbf16>, vector<32x48xbf16>, vector<256x48xf32> -> vector<256x48xf32>
    %168 = arith.addf %161, %167 : vector<256x48xf32>
    %169 = vector.extract_strided_slice %120 {offsets = [2, 8, 0], sizes = [16, 16, 32], strides = [1, 1, 1]} : vector<18x32x32xf32> to vector<16x16x32xf32>
    %170 = vector.shape_cast %169 : vector<16x16x32xf32> to vector<256x32xf32>
    %171 = arith.truncf %170 : vector<256x32xf32> to vector<256x32xbf16>
    %c7_99 = arith.constant 7 : index
    %c0_100 = arith.constant 0 : index
    %c0_101 = arith.constant 0 : index
    %172 = vector.load %arg8[%c7_99, %c0_100, %c0_101] : memref<9x32x48xbf16, #tpu.memory_space<vmem>>, vector<1x32x48xbf16>
    %173 = vector.shape_cast %172 : vector<1x32x48xbf16> to vector<32x48xbf16>
    %cst_102 = arith.constant dense<0.000000e+00> : vector<256x48xf32>
    %174 = tpu.matmul %171, %173, %cst_102 {dimension_numbers = #tpu.dot_dimension_numbers<[1], [0], [0], [1], [0, 0, 1, 1], [], []>} : vector<256x32xbf16>, vector<32x48xbf16>, vector<256x48xf32> -> vector<256x48xf32>
    %175 = arith.addf %168, %174 : vector<256x48xf32>
    %176 = vector.extract_strided_slice %120 {offsets = [2, 9, 0], sizes = [16, 16, 32], strides = [1, 1, 1]} : vector<18x32x32xf32> to vector<16x16x32xf32>
    %177 = vector.shape_cast %176 : vector<16x16x32xf32> to vector<256x32xf32>
    %178 = arith.truncf %177 : vector<256x32xf32> to vector<256x32xbf16>
    %c8_103 = arith.constant 8 : index
    %c0_104 = arith.constant 0 : index
    %c0_105 = arith.constant 0 : index
    %179 = vector.load %arg8[%c8_103, %c0_104, %c0_105] : memref<9x32x48xbf16, #tpu.memory_space<vmem>>, vector<1x32x48xbf16>
    %180 = vector.shape_cast %179 : vector<1x32x48xbf16> to vector<32x48xbf16>
    %cst_106 = arith.constant dense<0.000000e+00> : vector<256x48xf32>
    %181 = tpu.matmul %178, %180, %cst_106 {dimension_numbers = #tpu.dot_dimension_numbers<[1], [0], [0], [1], [0, 0, 1, 1], [], []>} : vector<256x32xbf16>, vector<32x48xbf16>, vector<256x48xf32> -> vector<256x48xf32>
    %182 = arith.addf %175, %181 : vector<256x48xf32>
    %c0_107 = arith.constant 0 : index
    %c0_108 = arith.constant 0 : index
    %183 = vector.load %arg9[%c0_107, %c0_108] : memref<1x48xf32, #tpu.memory_space<vmem>>, vector<1x48xf32>
    %184 = vector.broadcast %183 : vector<1x48xf32> to vector<256x48xf32>
    %185 = arith.mulf %182, %184 : vector<256x48xf32>
    %c0_109 = arith.constant 0 : index
    %c0_110 = arith.constant 0 : index
    %186 = vector.load %arg10[%c0_109, %c0_110] : memref<1x48xf32, #tpu.memory_space<vmem>>, vector<1x48xf32>
    %187 = vector.broadcast %186 : vector<1x48xf32> to vector<256x48xf32>
    %188 = arith.addf %185, %187 : vector<256x48xf32>
    %cst_111 = arith.constant 0.000000e+00 : f32
    %189 = vector.broadcast %cst_111 : f32 to vector<256x48xf32>
    %190 = arith.maximumf %188, %189 : vector<256x48xf32>
    %191 = vector.shape_cast %190 : vector<256x48xf32> to vector<16x16x48xf32>
    %cst_112 = arith.constant 0.000000e+00 : f32
    %192 = vector.broadcast %cst_112 : f32 to vector<1x16x48xf32>
    %193 = tpu.concatenate %192, %191, %192 in 0 : vector<1x16x48xf32>, vector<16x16x48xf32>, vector<1x16x48xf32> -> vector<18x16x48xf32>
    %cst_113 = arith.constant 0.000000e+00 : f32
    %194 = vector.broadcast %cst_113 : f32 to vector<18x8x48xf32>
    %195 = tpu.concatenate %194, %193, %194 in 1 : vector<18x8x48xf32>, vector<18x16x48xf32>, vector<18x8x48xf32> -> vector<18x32x48xf32>
    %196 = vector.extract_strided_slice %195 {offsets = [0, 7, 0], sizes = [16, 16, 48], strides = [1, 1, 1]} : vector<18x32x48xf32> to vector<16x16x48xf32>
    %197 = vector.shape_cast %196 : vector<16x16x48xf32> to vector<256x48xf32>
    %198 = arith.truncf %197 : vector<256x48xf32> to vector<256x48xbf16>
    %c0_114 = arith.constant 0 : index
    %c0_115 = arith.constant 0 : index
    %c0_116 = arith.constant 0 : index
    %199 = vector.load %arg11[%c0_114, %c0_115, %c0_116] : memref<9x48x64xbf16, #tpu.memory_space<vmem>>, vector<1x48x64xbf16>
    %200 = vector.shape_cast %199 : vector<1x48x64xbf16> to vector<48x64xbf16>
    %cst_117 = arith.constant dense<0.000000e+00> : vector<256x64xf32>
    %201 = tpu.matmul %198, %200, %cst_117 {dimension_numbers = #tpu.dot_dimension_numbers<[1], [0], [0], [1], [0, 0, 1, 1], [], []>} : vector<256x48xbf16>, vector<48x64xbf16>, vector<256x64xf32> -> vector<256x64xf32>
    %202 = vector.extract_strided_slice %195 {offsets = [0, 8, 0], sizes = [16, 16, 48], strides = [1, 1, 1]} : vector<18x32x48xf32> to vector<16x16x48xf32>
    %203 = vector.shape_cast %202 : vector<16x16x48xf32> to vector<256x48xf32>
    %204 = arith.truncf %203 : vector<256x48xf32> to vector<256x48xbf16>
    %c1_118 = arith.constant 1 : index
    %c0_119 = arith.constant 0 : index
    %c0_120 = arith.constant 0 : index
    %205 = vector.load %arg11[%c1_118, %c0_119, %c0_120] : memref<9x48x64xbf16, #tpu.memory_space<vmem>>, vector<1x48x64xbf16>
    %206 = vector.shape_cast %205 : vector<1x48x64xbf16> to vector<48x64xbf16>
    %cst_121 = arith.constant dense<0.000000e+00> : vector<256x64xf32>
    %207 = tpu.matmul %204, %206, %cst_121 {dimension_numbers = #tpu.dot_dimension_numbers<[1], [0], [0], [1], [0, 0, 1, 1], [], []>} : vector<256x48xbf16>, vector<48x64xbf16>, vector<256x64xf32> -> vector<256x64xf32>
    %208 = arith.addf %201, %207 : vector<256x64xf32>
    %209 = vector.extract_strided_slice %195 {offsets = [0, 9, 0], sizes = [16, 16, 48], strides = [1, 1, 1]} : vector<18x32x48xf32> to vector<16x16x48xf32>
    %210 = vector.shape_cast %209 : vector<16x16x48xf32> to vector<256x48xf32>
    %211 = arith.truncf %210 : vector<256x48xf32> to vector<256x48xbf16>
    %c2_122 = arith.constant 2 : index
    %c0_123 = arith.constant 0 : index
    %c0_124 = arith.constant 0 : index
    %212 = vector.load %arg11[%c2_122, %c0_123, %c0_124] : memref<9x48x64xbf16, #tpu.memory_space<vmem>>, vector<1x48x64xbf16>
    %213 = vector.shape_cast %212 : vector<1x48x64xbf16> to vector<48x64xbf16>
    %cst_125 = arith.constant dense<0.000000e+00> : vector<256x64xf32>
    %214 = tpu.matmul %211, %213, %cst_125 {dimension_numbers = #tpu.dot_dimension_numbers<[1], [0], [0], [1], [0, 0, 1, 1], [], []>} : vector<256x48xbf16>, vector<48x64xbf16>, vector<256x64xf32> -> vector<256x64xf32>
    %215 = arith.addf %208, %214 : vector<256x64xf32>
    %216 = vector.extract_strided_slice %195 {offsets = [1, 7, 0], sizes = [16, 16, 48], strides = [1, 1, 1]} : vector<18x32x48xf32> to vector<16x16x48xf32>
    %217 = vector.shape_cast %216 : vector<16x16x48xf32> to vector<256x48xf32>
    %218 = arith.truncf %217 : vector<256x48xf32> to vector<256x48xbf16>
    %c3_126 = arith.constant 3 : index
    %c0_127 = arith.constant 0 : index
    %c0_128 = arith.constant 0 : index
    %219 = vector.load %arg11[%c3_126, %c0_127, %c0_128] : memref<9x48x64xbf16, #tpu.memory_space<vmem>>, vector<1x48x64xbf16>
    %220 = vector.shape_cast %219 : vector<1x48x64xbf16> to vector<48x64xbf16>
    %cst_129 = arith.constant dense<0.000000e+00> : vector<256x64xf32>
    %221 = tpu.matmul %218, %220, %cst_129 {dimension_numbers = #tpu.dot_dimension_numbers<[1], [0], [0], [1], [0, 0, 1, 1], [], []>} : vector<256x48xbf16>, vector<48x64xbf16>, vector<256x64xf32> -> vector<256x64xf32>
    %222 = arith.addf %215, %221 : vector<256x64xf32>
    %223 = vector.extract_strided_slice %195 {offsets = [1, 8, 0], sizes = [16, 16, 48], strides = [1, 1, 1]} : vector<18x32x48xf32> to vector<16x16x48xf32>
    %224 = vector.shape_cast %223 : vector<16x16x48xf32> to vector<256x48xf32>
    %225 = arith.truncf %224 : vector<256x48xf32> to vector<256x48xbf16>
    %c4_130 = arith.constant 4 : index
    %c0_131 = arith.constant 0 : index
    %c0_132 = arith.constant 0 : index
    %226 = vector.load %arg11[%c4_130, %c0_131, %c0_132] : memref<9x48x64xbf16, #tpu.memory_space<vmem>>, vector<1x48x64xbf16>
    %227 = vector.shape_cast %226 : vector<1x48x64xbf16> to vector<48x64xbf16>
    %cst_133 = arith.constant dense<0.000000e+00> : vector<256x64xf32>
    %228 = tpu.matmul %225, %227, %cst_133 {dimension_numbers = #tpu.dot_dimension_numbers<[1], [0], [0], [1], [0, 0, 1, 1], [], []>} : vector<256x48xbf16>, vector<48x64xbf16>, vector<256x64xf32> -> vector<256x64xf32>
    %229 = arith.addf %222, %228 : vector<256x64xf32>
    %230 = vector.extract_strided_slice %195 {offsets = [1, 9, 0], sizes = [16, 16, 48], strides = [1, 1, 1]} : vector<18x32x48xf32> to vector<16x16x48xf32>
    %231 = vector.shape_cast %230 : vector<16x16x48xf32> to vector<256x48xf32>
    %232 = arith.truncf %231 : vector<256x48xf32> to vector<256x48xbf16>
    %c5_134 = arith.constant 5 : index
    %c0_135 = arith.constant 0 : index
    %c0_136 = arith.constant 0 : index
    %233 = vector.load %arg11[%c5_134, %c0_135, %c0_136] : memref<9x48x64xbf16, #tpu.memory_space<vmem>>, vector<1x48x64xbf16>
    %234 = vector.shape_cast %233 : vector<1x48x64xbf16> to vector<48x64xbf16>
    %cst_137 = arith.constant dense<0.000000e+00> : vector<256x64xf32>
    %235 = tpu.matmul %232, %234, %cst_137 {dimension_numbers = #tpu.dot_dimension_numbers<[1], [0], [0], [1], [0, 0, 1, 1], [], []>} : vector<256x48xbf16>, vector<48x64xbf16>, vector<256x64xf32> -> vector<256x64xf32>
    %236 = arith.addf %229, %235 : vector<256x64xf32>
    %237 = vector.extract_strided_slice %195 {offsets = [2, 7, 0], sizes = [16, 16, 48], strides = [1, 1, 1]} : vector<18x32x48xf32> to vector<16x16x48xf32>
    %238 = vector.shape_cast %237 : vector<16x16x48xf32> to vector<256x48xf32>
    %239 = arith.truncf %238 : vector<256x48xf32> to vector<256x48xbf16>
    %c6_138 = arith.constant 6 : index
    %c0_139 = arith.constant 0 : index
    %c0_140 = arith.constant 0 : index
    %240 = vector.load %arg11[%c6_138, %c0_139, %c0_140] : memref<9x48x64xbf16, #tpu.memory_space<vmem>>, vector<1x48x64xbf16>
    %241 = vector.shape_cast %240 : vector<1x48x64xbf16> to vector<48x64xbf16>
    %cst_141 = arith.constant dense<0.000000e+00> : vector<256x64xf32>
    %242 = tpu.matmul %239, %241, %cst_141 {dimension_numbers = #tpu.dot_dimension_numbers<[1], [0], [0], [1], [0, 0, 1, 1], [], []>} : vector<256x48xbf16>, vector<48x64xbf16>, vector<256x64xf32> -> vector<256x64xf32>
    %243 = arith.addf %236, %242 : vector<256x64xf32>
    %244 = vector.extract_strided_slice %195 {offsets = [2, 8, 0], sizes = [16, 16, 48], strides = [1, 1, 1]} : vector<18x32x48xf32> to vector<16x16x48xf32>
    %245 = vector.shape_cast %244 : vector<16x16x48xf32> to vector<256x48xf32>
    %246 = arith.truncf %245 : vector<256x48xf32> to vector<256x48xbf16>
    %c7_142 = arith.constant 7 : index
    %c0_143 = arith.constant 0 : index
    %c0_144 = arith.constant 0 : index
    %247 = vector.load %arg11[%c7_142, %c0_143, %c0_144] : memref<9x48x64xbf16, #tpu.memory_space<vmem>>, vector<1x48x64xbf16>
    %248 = vector.shape_cast %247 : vector<1x48x64xbf16> to vector<48x64xbf16>
    %cst_145 = arith.constant dense<0.000000e+00> : vector<256x64xf32>
    %249 = tpu.matmul %246, %248, %cst_145 {dimension_numbers = #tpu.dot_dimension_numbers<[1], [0], [0], [1], [0, 0, 1, 1], [], []>} : vector<256x48xbf16>, vector<48x64xbf16>, vector<256x64xf32> -> vector<256x64xf32>
    %250 = arith.addf %243, %249 : vector<256x64xf32>
    %251 = vector.extract_strided_slice %195 {offsets = [2, 9, 0], sizes = [16, 16, 48], strides = [1, 1, 1]} : vector<18x32x48xf32> to vector<16x16x48xf32>
    %252 = vector.shape_cast %251 : vector<16x16x48xf32> to vector<256x48xf32>
    %253 = arith.truncf %252 : vector<256x48xf32> to vector<256x48xbf16>
    %c8_146 = arith.constant 8 : index
    %c0_147 = arith.constant 0 : index
    %c0_148 = arith.constant 0 : index
    %254 = vector.load %arg11[%c8_146, %c0_147, %c0_148] : memref<9x48x64xbf16, #tpu.memory_space<vmem>>, vector<1x48x64xbf16>
    %255 = vector.shape_cast %254 : vector<1x48x64xbf16> to vector<48x64xbf16>
    %cst_149 = arith.constant dense<0.000000e+00> : vector<256x64xf32>
    %256 = tpu.matmul %253, %255, %cst_149 {dimension_numbers = #tpu.dot_dimension_numbers<[1], [0], [0], [1], [0, 0, 1, 1], [], []>} : vector<256x48xbf16>, vector<48x64xbf16>, vector<256x64xf32> -> vector<256x64xf32>
    %257 = arith.addf %250, %256 : vector<256x64xf32>
    %c0_150 = arith.constant 0 : index
    %c0_151 = arith.constant 0 : index
    %258 = vector.load %arg12[%c0_150, %c0_151] : memref<1x64xf32, #tpu.memory_space<vmem>>, vector<1x64xf32>
    %259 = vector.broadcast %258 : vector<1x64xf32> to vector<256x64xf32>
    %260 = arith.mulf %257, %259 : vector<256x64xf32>
    %c0_152 = arith.constant 0 : index
    %c0_153 = arith.constant 0 : index
    %261 = vector.load %arg13[%c0_152, %c0_153] : memref<1x64xf32, #tpu.memory_space<vmem>>, vector<1x64xf32>
    %262 = vector.broadcast %261 : vector<1x64xf32> to vector<256x64xf32>
    %263 = arith.addf %260, %262 : vector<256x64xf32>
    %cst_154 = arith.constant 0.000000e+00 : f32
    %264 = vector.broadcast %cst_154 : f32 to vector<256x64xf32>
    %265 = arith.maximumf %263, %264 : vector<256x64xf32>
    %266 = arith.truncf %14 : vector<256x32xf32> to vector<256x32xbf16>
    %c0_155 = arith.constant 0 : index
    %c0_156 = arith.constant 0 : index
    %267 = vector.load %arg14[%c0_155, %c0_156] : memref<128x384xbf16, #tpu.memory_space<vmem>>, vector<32x384xbf16>
    %cst_157 = arith.constant dense<0.000000e+00> : vector<256x384xf32>
    %268 = tpu.matmul %266, %267, %cst_157 {dimension_numbers = #tpu.dot_dimension_numbers<[1], [0], [0], [1], [0, 0, 1, 1], [], []>} : vector<256x32xbf16>, vector<32x384xbf16>, vector<256x384xf32> -> vector<256x384xf32>
    %269 = arith.truncf %115 : vector<256x32xf32> to vector<256x32xbf16>
    %c32 = arith.constant 32 : index
    %c0_158 = arith.constant 0 : index
    %270 = vector.load %arg14[%c32, %c0_158] : memref<128x384xbf16, #tpu.memory_space<vmem>>, vector<32x384xbf16>
    %cst_159 = arith.constant dense<0.000000e+00> : vector<256x384xf32>
    %271 = tpu.matmul %269, %270, %cst_159 {dimension_numbers = #tpu.dot_dimension_numbers<[1], [0], [0], [1], [0, 0, 1, 1], [], []>} : vector<256x32xbf16>, vector<32x384xbf16>, vector<256x384xf32> -> vector<256x384xf32>
    %272 = arith.addf %268, %271 : vector<256x384xf32>
    %273 = arith.truncf %265 : vector<256x64xf32> to vector<256x64xbf16>
    %c64 = arith.constant 64 : index
    %c0_160 = arith.constant 0 : index
    %274 = vector.load %arg14[%c64, %c0_160] : memref<128x384xbf16, #tpu.memory_space<vmem>>, vector<64x384xbf16>
    %cst_161 = arith.constant dense<0.000000e+00> : vector<256x384xf32>
    %275 = tpu.matmul %273, %274, %cst_161 {dimension_numbers = #tpu.dot_dimension_numbers<[1], [0], [0], [1], [0, 0, 1, 1], [], []>} : vector<256x64xbf16>, vector<64x384xbf16>, vector<256x384xf32> -> vector<256x384xf32>
    %276 = arith.addf %272, %275 : vector<256x384xf32>
    %c0_162 = arith.constant 0 : index
    %c0_163 = arith.constant 0 : index
    %277 = vector.load %arg15[%c0_162, %c0_163] : memref<4x384xbf16, #tpu.memory_space<vmem>>, vector<4x384xbf16>
    %cst_164 = arith.constant dense<0.000000e+00> : vector<256x384xf32>
    %278 = tpu.matmul %1, %277, %cst_164 {dimension_numbers = #tpu.dot_dimension_numbers<[1], [0], [0], [1], [0, 0, 1, 1], [], []>} : vector<256x4xbf16>, vector<4x384xbf16>, vector<256x384xf32> -> vector<256x384xf32>
    %279 = arith.addf %276, %278 : vector<256x384xf32>
    %c0_165 = arith.constant 0 : index
    %c0_166 = arith.constant 0 : index
    %280 = vector.load %arg16[%c0_165, %c0_166] : memref<1x384xf32, #tpu.memory_space<vmem>>, vector<1x384xf32>
    %281 = vector.broadcast %280 : vector<1x384xf32> to vector<256x384xf32>
    %282 = arith.mulf %279, %281 : vector<256x384xf32>
    %c0_167 = arith.constant 0 : index
    %c0_168 = arith.constant 0 : index
    %283 = vector.load %arg17[%c0_167, %c0_168] : memref<1x384xf32, #tpu.memory_space<vmem>>, vector<1x384xf32>
    %284 = vector.broadcast %283 : vector<1x384xf32> to vector<256x384xf32>
    %285 = arith.addf %282, %284 : vector<256x384xf32>
    %cst_169 = arith.constant 0.000000e+00 : f32
    %286 = vector.broadcast %cst_169 : f32 to vector<256x384xf32>
    %287 = arith.maximumf %285, %286 : vector<256x384xf32>
    %288 = vector.shape_cast %287 : vector<256x384xf32> to vector<1x256x384xf32>
    %c0_170 = arith.constant 0 : index
    %c0_171 = arith.constant 0 : index
    %c0_172 = arith.constant 0 : index
    %289 = vector.load %arg18[%c0_170, %c0_171, %c0_172] : memref<1x256x384xf32, #tpu.memory_space<vmem>>, vector<1x256x384xf32>
    tpu.vector_store %arg18[%c0_170, %c0_171, %c0_172], %288 {strides = array<i32>} : memref<1x256x384xf32, #tpu.memory_space<vmem>>, vector<1x256x384xf32>,
    return
  }
  func.func @transform_0(%arg0: i32) -> (i32, i32, i32) {
    %c0_i32 = arith.constant 0 : i32
    %c0_i32_0 = arith.constant 0 : i32
    %c0_i32_1 = arith.constant 0 : i32
    return %arg0, %c0_i32, %c0_i32_0 : i32, i32, i32
  }
  func.func @transform_1(%arg0: i32) -> (i32, i32, i32) {
    %c0_i32 = arith.constant 0 : i32
    %c0_i32_0 = arith.constant 0 : i32
    %c0_i32_1 = arith.constant 0 : i32
    %c0_i32_2 = arith.constant 0 : i32
    return %c0_i32, %c0_i32_0, %c0_i32_1 : i32, i32, i32
  }
  func.func @transform_2(%arg0: i32) -> (i32, i32, i32) {
    %c0_i32 = arith.constant 0 : i32
    %c0_i32_0 = arith.constant 0 : i32
    %c0_i32_1 = arith.constant 0 : i32
    %c0_i32_2 = arith.constant 0 : i32
    return %c0_i32, %c0_i32_0, %c0_i32_1 : i32, i32, i32
  }
  func.func @transform_3(%arg0: i32) -> (i32, i32, i32) {
    %c0_i32 = arith.constant 0 : i32
    %c0_i32_0 = arith.constant 0 : i32
    %c0_i32_1 = arith.constant 0 : i32
    %c0_i32_2 = arith.constant 0 : i32
    return %c0_i32, %c0_i32_0, %c0_i32_1 : i32, i32, i32
  }
  func.func @transform_4(%arg0: i32) -> (i32, i32, i32) {
    %c0_i32 = arith.constant 0 : i32
    %c0_i32_0 = arith.constant 0 : i32
    %c0_i32_1 = arith.constant 0 : i32
    %c0_i32_2 = arith.constant 0 : i32
    return %c0_i32, %c0_i32_0, %c0_i32_1 : i32, i32, i32
  }
  func.func @transform_5(%arg0: i32) -> (i32, i32) {
    %c0_i32 = arith.constant 0 : i32
    %c0_i32_0 = arith.constant 0 : i32
    %c0_i32_1 = arith.constant 0 : i32
    return %c0_i32, %c0_i32_0 : i32, i32
  }
  func.func @transform_6(%arg0: i32) -> (i32, i32) {
    %c0_i32 = arith.constant 0 : i32
    %c0_i32_0 = arith.constant 0 : i32
    %c0_i32_1 = arith.constant 0 : i32
    return %c0_i32, %c0_i32_0 : i32, i32
  }
  func.func @transform_7(%arg0: i32) -> (i32, i32, i32) {
    %c0_i32 = arith.constant 0 : i32
    %c0_i32_0 = arith.constant 0 : i32
    %c0_i32_1 = arith.constant 0 : i32
    %c0_i32_2 = arith.constant 0 : i32
    return %c0_i32, %c0_i32_0, %c0_i32_1 : i32, i32, i32
  }
  func.func @transform_8(%arg0: i32) -> (i32, i32) {
    %c0_i32 = arith.constant 0 : i32
    %c0_i32_0 = arith.constant 0 : i32
    %c0_i32_1 = arith.constant 0 : i32
    return %c0_i32, %c0_i32_0 : i32, i32
  }
  func.func @transform_9(%arg0: i32) -> (i32, i32) {
    %c0_i32 = arith.constant 0 : i32
    %c0_i32_0 = arith.constant 0 : i32
    %c0_i32_1 = arith.constant 0 : i32
    return %c0_i32, %c0_i32_0 : i32, i32
  }
  func.func @transform_10(%arg0: i32) -> (i32, i32, i32) {
    %c0_i32 = arith.constant 0 : i32
    %c0_i32_0 = arith.constant 0 : i32
    %c0_i32_1 = arith.constant 0 : i32
    %c0_i32_2 = arith.constant 0 : i32
    return %c0_i32, %c0_i32_0, %c0_i32_1 : i32, i32, i32
  }
  func.func @transform_11(%arg0: i32) -> (i32, i32) {
    %c0_i32 = arith.constant 0 : i32
    %c0_i32_0 = arith.constant 0 : i32
    %c0_i32_1 = arith.constant 0 : i32
    return %c0_i32, %c0_i32_0 : i32, i32
  }
  func.func @transform_12(%arg0: i32) -> (i32, i32) {
    %c0_i32 = arith.constant 0 : i32
    %c0_i32_0 = arith.constant 0 : i32
    %c0_i32_1 = arith.constant 0 : i32
    return %c0_i32, %c0_i32_0 : i32, i32
  }
  func.func @transform_13(%arg0: i32) -> (i32, i32) {
    %c0_i32 = arith.constant 0 : i32
    %c0_i32_0 = arith.constant 0 : i32
    %c0_i32_1 = arith.constant 0 : i32
    return %c0_i32, %c0_i32_0 : i32, i32
  }
  func.func @transform_14(%arg0: i32) -> (i32, i32) {
    %c0_i32 = arith.constant 0 : i32
    %c0_i32_0 = arith.constant 0 : i32
    %c0_i32_1 = arith.constant 0 : i32
    return %c0_i32, %c0_i32_0 : i32, i32
  }
  func.func @transform_15(%arg0: i32) -> (i32, i32) {
    %c0_i32 = arith.constant 0 : i32
    %c0_i32_0 = arith.constant 0 : i32
    %c0_i32_1 = arith.constant 0 : i32
    return %c0_i32, %c0_i32_0 : i32, i32
  }
  func.func @transform_16(%arg0: i32) -> (i32, i32) {
    %c0_i32 = arith.constant 0 : i32
    %c0_i32_0 = arith.constant 0 : i32
    %c0_i32_1 = arith.constant 0 : i32
    return %c0_i32, %c0_i32_0 : i32, i32
  }
  func.func @transform_17(%arg0: i32) -> (i32, i32, i32) {
    %c0_i32 = arith.constant 0 : i32
    %c0_i32_0 = arith.constant 0 : i32
    %c0_i32_1 = arith.constant 0 : i32
    return %arg0, %c0_i32, %c0_i32_0 : i32, i32, i32
  }
}

</mosaic_0001>

<llo_original>
// kernel: inception_resnet_a_forward.1
$region0: #{inception_resnet_a_forward.1}
  #allocation0 [shape = 'u32[]', space=smem, size = 0x4, offset = 0x4, fixed_abs, tag = 'smem constant byte address 0x4 - core index']
  #allocation1 [shape = 'u32[144,128]{1,0:T(1,128)}', space=vmem, size = 0x12000, scoped, tag = 'internal scratch']
  %s0 = inlined_call_operand.vmem [shape: bf16[2,256,4], index: 0, kind: input, shape index: {}]
  %s1 = inlined_call_operand.vmem [shape: bf16[3,4,32], index: 1, kind: input, shape index: {}]
  %s2 = inlined_call_operand.vmem [shape: f32[3,1,32], index: 2, kind: input, shape index: {}]
  %s3 = inlined_call_operand.vmem [shape: f32[3,1,32], index: 3, kind: input, shape index: {}]
  %s4 = inlined_call_operand.vmem [shape: bf16[9,32,32], index: 4, kind: input, shape index: {}]
  %s5 = inlined_call_operand.vmem [shape: f32[1,32], index: 5, kind: input, shape index: {}]
  %s6 = inlined_call_operand.vmem [shape: f32[1,32], index: 6, kind: input, shape index: {}]
  %s7 = inlined_call_operand.vmem [shape: bf16[9,32,48], index: 7, kind: input, shape index: {}]
  %s8 = inlined_call_operand.vmem [shape: f32[1,48], index: 8, kind: input, shape index: {}]
  %s9 = inlined_call_operand.vmem [shape: f32[1,48], index: 9, kind: input, shape index: {}]
  %s10 = inlined_call_operand.vmem [shape: bf16[9,48,64], index: 10, kind: input, shape index: {}]
  %s11 = inlined_call_operand.vmem [shape: f32[1,64], index: 11, kind: input, shape index: {}]
  %s12 = inlined_call_operand.vmem [shape: f32[1,64], index: 12, kind: input, shape index: {}]
  %s13 = inlined_call_operand.vmem [shape: bf16[128,384], index: 13, kind: input, shape index: {}]
  %s14 = inlined_call_operand.vmem [shape: bf16[4,384], index: 14, kind: input, shape index: {}]
  %s15 = inlined_call_operand.vmem [shape: f32[1,384], index: 15, kind: input, shape index: {}]
  %s16 = inlined_call_operand.vmem [shape: f32[1,384], index: 16, kind: input, shape index: {}]
  %s17 = inlined_call_operand.hbm [shape: f32[2,256,384], index: 17, kind: output, shape index: {}]
  %s18 = sld [smem:[#allocation0]]
  $region101: #{inception_resnet_a_forward.1} parent=0
    _
  %s20 = ssub.s32 1, %s18
  %s21 = scalar_select 0, %s20, %s18
  $region1: #{inception_resnet_a_forward.1} parent=0
    #allocation2 [shape = 'u8[786432]{0}', space=vmem, size = 0xc0000, scoped, tag = 'output window, operand 0']
    #allocation3 [shape = 's32[2]{0}', space=sflag, size = 0x8, scoped, tag = 'scoped memory for inception_resnet_a_forward.1']
    %22 = vsyncpa [#allocation3], 0
    %s23 = scalar_lea.sflag [#allocation3], 1
    %24 = vsyncpa %s23, 0
    loop: start=0, step=1, limit=4
    $region2: #{inception_resnet_a_forward.1} parent=1 // loop_pre_header
      _
    $region3: #{inception_resnet_a_forward.1} parent=1 // loop_header
      %s26 = sphi 0, %s30
      %p27 = scmp.ge.s32.totalorder %s26, 4
      %s36 = sphi 0, %s38
      %s39 = sphi 0, %s36
      %s40 = sphi 0, %s39
      %s56 = sphi 0, %s40
      %s60 = sphi 0, %s60
      %s62 = sphi 0, %s60
      %s63 = sphi 0, %s62
      %s77 = sphi 0, %s63
      %s81 = sphi 0, %s81
      %s83 = sphi 0, %s81
      %s84 = sphi 0, %s83
      %s98 = sphi 0, %s84
      %s102 = sphi 0, %s102
      %s104 = sphi 0, %s102
      %s105 = sphi 0, %s104
      %s119 = sphi 0, %s105
      %s123 = sphi 0, %s123
      %s125 = sphi 0, %s123
      %s126 = sphi 0, %s125
      %s140 = sphi 0, %s126
      %s144 = sphi 0, %s144
      %s146 = sphi 0, %s144
      %s147 = sphi 0, %s146
      %s161 = sphi 0, %s147
      %s165 = sphi 0, %s165
      %s167 = sphi 0, %s165
      %s168 = sphi 0, %s167
      %s182 = sphi 0, %s168
      %s186 = sphi 0, %s186
      %s188 = sphi 0, %s186
      %s189 = sphi 0, %s188
      %s203 = sphi 0, %s189
      %s207 = sphi 0, %s207
      %s209 = sphi 0, %s207
      %s210 = sphi 0, %s209
      %s224 = sphi 0, %s210
      %s228 = sphi 0, %s228
      %s230 = sphi 0, %s228
      %s231 = sphi 0, %s230
      %s245 = sphi 0, %s231
      %s249 = sphi 0, %s249
      %s251 = sphi 0, %s249
      %s252 = sphi 0, %s251
      %s266 = sphi 0, %s252
      %s270 = sphi 0, %s270
      %s272 = sphi 0, %s270
      %s273 = sphi 0, %s272
      %s287 = sphi 0, %s273
      %s291 = sphi 0, %s291
      %s293 = sphi 0, %s291
      %s294 = sphi 0, %s293
      %s308 = sphi 0, %s294
      %s312 = sphi 0, %s312
      %s314 = sphi 0, %s312
      %s315 = sphi 0, %s314
      %s329 = sphi 0, %s315
      %s333 = sphi 0, %s333
      %s335 = sphi 0, %s333
      %s336 = sphi 0, %s335
      %s350 = sphi 0, %s336
      %s354 = sphi 0, %s354
      %s356 = sphi 0, %s354
      %s357 = sphi 0, %s356
      %s371 = sphi 0, %s357
      %s375 = sphi 0, %s375
      %s377 = sphi 0, %s375
      %s378 = sphi 0, %s377
      %s392 = sphi 0, %s378
      %s398 = sphi 0, %s400
      %s401 = sphi 0, %s398
      %s402 = sphi 0, %s401
      %s418 = sphi 0, %s402
    $region4: #{inception_resnet_a_forward.1} parent=1 // loop_header_branch
      %29 = sbr.rel (%p27) target = $region8
    $region5: #{inception_resnet_a_forward.1} parent=1 // loop_body
      %s31 = ssub.s32 %s26, 1
      %s32 = ssub.s32 %s26, 2
      %s33 = sadd.s32 %s26, 1
      %s34 = ssub.s32 %s26, %s33
      %p35 = scmp.eq.s32.totalorder %s34, 0
      %s37 = sadd.s32 %s36, 1
      %s38 = scalar_select %p35, %s36, %s37
      %p41 = pneg %p35
      %p42 = scmp.eq.s32.totalorder %s26, 1
      %p43 = por %p41, %p42
      %p44 = scmp.ne.s32.totalorder %s36, %s39
      %p45 = scmp.eq.s32.totalorder %s26, 0
      %p46 = por %p44, %p45
      %p47 = scmp.ne.s32.totalorder %s36, %s39
      %p48 = scmp.eq.s32.totalorder %s31, 1
      %p49 = por %p47, %p48
      %p50 = scmp.ne.s32.totalorder %s39, %s40
      %p51 = scmp.eq.s32.totalorder %s31, 0
      %p52 = por %p50, %p51
      %p53 = scmp.ne.s32.totalorder %s39, %s40
      %p54 = scmp.eq.s32.totalorder %s32, 1
      %p55 = por %p53, %p54
      %p57 = scmp.ne.s32.totalorder %s40, %s56
      %p58 = scmp.eq.s32.totalorder %s32, 0
      %p59 = por %p57, %p58
      %s61 = sadd.s32 %s60, 1
      %p64 = scmp.eq.s32.totalorder %s26, 1
      %p65 = scmp.ne.s32.totalorder %s60, %s62
      %p66 = scmp.eq.s32.totalorder %s26, 0
      %p67 = por %p65, %p66
      %p68 = scmp.ne.s32.totalorder %s60, %s62
      %p69 = scmp.eq.s32.totalorder %s31, 1
      %p70 = por %p68, %p69
      %p71 = scmp.ne.s32.totalorder %s62, %s63
      %p72 = scmp.eq.s32.totalorder %s31, 0
      %p73 = por %p71, %p72
      %p74 = scmp.ne.s32.totalorder %s62, %s63
      %p75 = scmp.eq.s32.totalorder %s32, 1
      %p76 = por %p74, %p75
      %p78 = scmp.ne.s32.totalorder %s63, %s77
      %p79 = scmp.eq.s32.totalorder %s32, 0
      %p80 = por %p78, %p79
      %s82 = sadd.s32 %s81, 1
      %p85 = scmp.eq.s32.totalorder %s26, 1
      %p86 = scmp.ne.s32.totalorder %s81, %s83
      %p87 = scmp.eq.s32.totalorder %s26, 0
      %p88 = por %p86, %p87
      %p89 = scmp.ne.s32.totalorder %s81, %s83
      %p90 = scmp.eq.s32.totalorder %s31, 1
      %p91 = por %p89, %p90
      %p92 = scmp.ne.s32.totalorder %s83, %s84
      %p93 = scmp.eq.s32.totalorder %s31, 0
      %p94 = por %p92, %p93
      %p95 = scmp.ne.s32.totalorder %s83, %s84
      %p96 = scmp.eq.s32.totalorder %s32, 1
      %p97 = por %p95, %p96
      %p99 = scmp.ne.s32.totalorder %s84, %s98
      %p100 = scmp.eq.s32.totalorder %s32, 0
      %p101 = por %p99, %p100
      %s103 = sadd.s32 %s102, 1
      %p106 = scmp.eq.s32.totalorder %s26, 1
      %p107 = scmp.ne.s32.totalorder %s102, %s104
      %p108 = scmp.eq.s32.totalorder %s26, 0
      %p109 = por %p107, %p108
      %p110 = scmp.ne.s32.totalorder %s102, %s104
      %p111 = scmp.eq.s32.totalorder %s31, 1
      %p112 = por %p110, %p111
      %p113 = scmp.ne.s32.totalorder %s104, %s105
      %p114 = scmp.eq.s32.totalorder %s31, 0
      %p115 = por %p113, %p114
      %p116 = scmp.ne.s32.totalorder %s104, %s105
      %p117 = scmp.eq.s32.totalorder %s32, 1
      %p118 = por %p116, %p117
      %p120 = scmp.ne.s32.totalorder %s105, %s119
      %p121 = scmp.eq.s32.totalorder %s32, 0
      %p122 = por %p120, %p121
      %s124 = sadd.s32 %s123, 1
      %p127 = scmp.eq.s32.totalorder %s26, 1
      %p128 = scmp.ne.s32.totalorder %s123, %s125
      %p129 = scmp.eq.s32.totalorder %s26, 0
      %p130 = por %p128, %p129
      %p131 = scmp.ne.s32.totalorder %s123, %s125
      %p132 = scmp.eq.s32.totalorder %s31, 1
      %p133 = por %p131, %p132
      %p134 = scmp.ne.s32.totalorder %s125, %s126
      %p135 = scmp.eq.s32.totalorder %s31, 0
      %p136 = por %p134, %p135
      %p137 = scmp.ne.s32.totalorder %s125, %s126
      %p138 = scmp.eq.s32.totalorder %s32, 1
      %p139 = por %p137, %p138
      %p141 = scmp.ne.s32.totalorder %s126, %s140
      %p142 = scmp.eq.s32.totalorder %s32, 0
      %p143 = por %p141, %p142
      %s145 = sadd.s32 %s144, 1
      %p148 = scmp.eq.s32.totalorder %s26, 1
      %p149 = scmp.ne.s32.totalorder %s144, %s146
      %p150 = scmp.eq.s32.totalorder %s26, 0
      %p151 = por %p149, %p150
      %p152 = scmp.ne.s32.totalorder %s144, %s146
      %p153 = scmp.eq.s32.totalorder %s31, 1
      %p154 = por %p152, %p153
      %p155 = scmp.ne.s32.totalorder %s146, %s147
      %p156 = scmp.eq.s32.totalorder %s31, 0
      %p157 = por %p155, %p156
      %p158 = scmp.ne.s32.totalorder %s146, %s147
      %p159 = scmp.eq.s32.totalorder %s32, 1
      %p160 = por %p158, %p159
      %p162 = scmp.ne.s32.totalorder %s147, %s161
      %p163 = scmp.eq.s32.totalorder %s32, 0
      %p164 = por %p162, %p163
      %s166 = sadd.s32 %s165, 1
      %p169 = scmp.eq.s32.totalorder %s26, 1
      %p170 = scmp.ne.s32.totalorder %s165, %s167
      %p171 = scmp.eq.s32.totalorder %s26, 0
      %p172 = por %p170, %p171
      %p173 = scmp.ne.s32.totalorder %s165, %s167
      %p174 = scmp.eq.s32.totalorder %s31, 1
      %p175 = por %p173, %p174
      %p176 = scmp.ne.s32.totalorder %s167, %s168
      %p177 = scmp.eq.s32.totalorder %s31, 0
      %p178 = por %p176, %p177
      %p179 = scmp.ne.s32.totalorder %s167, %s168
      %p180 = scmp.eq.s32.totalorder %s32, 1
      %p181 = por %p179, %p180
      %p183 = scmp.ne.s32.totalorder %s168, %s182
      %p184 = scmp.eq.s32.totalorder %s32, 0
      %p185 = por %p183, %p184
      %s187 = sadd.s32 %s186, 1
      %p190 = scmp.eq.s32.totalorder %s26, 1
      %p191 = scmp.ne.s32.totalorder %s186, %s188
      %p192 = scmp.eq.s32.totalorder %s26, 0
      %p193 = por %p191, %p192
      %p194 = scmp.ne.s32.totalorder %s186, %s188
      %p195 = scmp.eq.s32.totalorder %s31, 1
      %p196 = por %p194, %p195
      %p197 = scmp.ne.s32.totalorder %s188, %s189
      %p198 = scmp.eq.s32.totalorder %s31, 0
      %p199 = por %p197, %p198
      %p200 = scmp.ne.s32.totalorder %s188, %s189
      %p201 = scmp.eq.s32.totalorder %s32, 1
      %p202 = por %p200, %p201
      %p204 = scmp.ne.s32.totalorder %s189, %s203
      %p205 = scmp.eq.s32.totalorder %s32, 0
      %p206 = por %p204, %p205
      %s208 = sadd.s32 %s207, 1
      %p211 = scmp.eq.s32.totalorder %s26, 1
      %p212 = scmp.ne.s32.totalorder %s207, %s209
      %p213 = scmp.eq.s32.totalorder %s26, 0
      %p214 = por %p212, %p213
      %p215 = scmp.ne.s32.totalorder %s207, %s209
      %p216 = scmp.eq.s32.totalorder %s31, 1
      %p217 = por %p215, %p216
      %p218 = scmp.ne.s32.totalorder %s209, %s210
      %p219 = scmp.eq.s32.totalorder %s31, 0
      %p220 = por %p218, %p219
      %p221 = scmp.ne.s32.totalorder %s209, %s210
      %p222 = scmp.eq.s32.totalorder %s32, 1
      %p223 = por %p221, %p222
      %p225 = scmp.ne.s32.totalorder %s210, %s224
      %p226 = scmp.eq.s32.totalorder %s32, 0
      %p227 = por %p225, %p226
      %s229 = sadd.s32 %s228, 1
      %p232 = scmp.eq.s32.totalorder %s26, 1
      %p233 = scmp.ne.s32.totalorder %s228, %s230
      %p234 = scmp.eq.s32.totalorder %s26, 0
      %p235 = por %p233, %p234
      %p236 = scmp.ne.s32.totalorder %s228, %s230
      %p237 = scmp.eq.s32.totalorder %s31, 1
      %p238 = por %p236, %p237
      %p239 = scmp.ne.s32.totalorder %s230, %s231
      %p240 = scmp.eq.s32.totalorder %s31, 0
      %p241 = por %p239, %p240
      %p242 = scmp.ne.s32.totalorder %s230, %s231
      %p243 = scmp.eq.s32.totalorder %s32, 1
      %p244 = por %p242, %p243
      %p246 = scmp.ne.s32.totalorder %s231, %s245
      %p247 = scmp.eq.s32.totalorder %s32, 0
      %p248 = por %p246, %p247
      %s250 = sadd.s32 %s249, 1
      %p253 = scmp.eq.s32.totalorder %s26, 1
      %p254 = scmp.ne.s32.totalorder %s249, %s251
      %p255 = scmp.eq.s32.totalorder %s26, 0
      %p256 = por %p254, %p255
      %p257 = scmp.ne.s32.totalorder %s249, %s251
      %p258 = scmp.eq.s32.totalorder %s31, 1
      %p259 = por %p257, %p258
      %p260 = scmp.ne.s32.totalorder %s251, %s252
      %p261 = scmp.eq.s32.totalorder %s31, 0
      %p262 = por %p260, %p261
      %p263 = scmp.ne.s32.totalorder %s251, %s252
      %p264 = scmp.eq.s32.totalorder %s32, 1
      %p265 = por %p263, %p264
      %p267 = scmp.ne.s32.totalorder %s252, %s266
      %p268 = scmp.eq.s32.totalorder %s32, 0
      %p269 = por %p267, %p268
      %s271 = sadd.s32 %s270, 1
      %p274 = scmp.eq.s32.totalorder %s26, 1
      %p275 = scmp.ne.s32.totalorder %s270, %s272
      %p276 = scmp.eq.s32.totalorder %s26, 0
      %p277 = por %p275, %p276
      %p278 = scmp.ne.s32.totalorder %s270, %s272
      %p279 = scmp.eq.s32.totalorder %s31, 1
      %p280 = por %p278, %p279
      %p281 = scmp.ne.s32.totalorder %s272, %s273
      %p282 = scmp.eq.s32.totalorder %s31, 0
      %p283 = por %p281, %p282
      %p284 = scmp.ne.s32.totalorder %s272, %s273
      %p285 = scmp.eq.s32.totalorder %s32, 1
      %p286 = por %p284, %p285
      %p288 = scmp.ne.s32.totalorder %s273, %s287
      %p289 = scmp.eq.s32.totalorder %s32, 0
      %p290 = por %p288, %p289
      %s292 = sadd.s32 %s291, 1
      %p295 = scmp.eq.s32.totalorder %s26, 1
      %p296 = scmp.ne.s32.totalorder %s291, %s293
      %p297 = scmp.eq.s32.totalorder %s26, 0
      %p298 = por %p296, %p297
      %p299 = scmp.ne.s32.totalorder %s291, %s293
      %p300 = scmp.eq.s32.totalorder %s31, 1
      %p301 = por %p299, %p300
      %p302 = scmp.ne.s32.totalorder %s293, %s294
      %p303 = scmp.eq.s32.totalorder %s31, 0
      %p304 = por %p302, %p303
      %p305 = scmp.ne.s32.totalorder %s293, %s294
      %p306 = scmp.eq.s32.totalorder %s32, 1
      %p307 = por %p305, %p306
      %p309 = scmp.ne.s32.totalorder %s294, %s308
      %p310 = scmp.eq.s32.totalorder %s32, 0
      %p311 = por %p309, %p310
      %s313 = sadd.s32 %s312, 1
      %p316 = scmp.eq.s32.totalorder %s26, 1
      %p317 = scmp.ne.s32.totalorder %s312, %s314
      %p318 = scmp.eq.s32.totalorder %s26, 0
      %p319 = por %p317, %p318
      %p320 = scmp.ne.s32.totalorder %s312, %s314
      %p321 = scmp.eq.s32.totalorder %s31, 1
      %p322 = por %p320, %p321
      %p323 = scmp.ne.s32.totalorder %s314, %s315
      %p324 = scmp.eq.s32.totalorder %s31, 0
      %p325 = por %p323, %p324
      %p326 = scmp.ne.s32.totalorder %s314, %s315
      %p327 = scmp.eq.s32.totalorder %s32, 1
      %p328 = por %p326, %p327
      %p330 = scmp.ne.s32.totalorder %s315, %s329
      %p331 = scmp.eq.s32.totalorder %s32, 0
      %p332 = por %p330, %p331
      %s334 = sadd.s32 %s333, 1
      %p337 = scmp.eq.s32.totalorder %s26, 1
      %p338 = scmp.ne.s32.totalorder %s333, %s335
      %p339 = scmp.eq.s32.totalorder %s26, 0
      %p340 = por %p338, %p339
      %p341 = scmp.ne.s32.totalorder %s333, %s335
      %p342 = scmp.eq.s32.totalorder %s31, 1
      %p343 = por %p341, %p342
      %p344 = scmp.ne.s32.totalorder %s335, %s336
      %p345 = scmp.eq.s32.totalorder %s31, 0
      %p346 = por %p344, %p345
      %p347 = scmp.ne.s32.totalorder %s335, %s336
      %p348 = scmp.eq.s32.totalorder %s32, 1
      %p349 = por %p347, %p348
      %p351 = scmp.ne.s32.totalorder %s336, %s350
      %p352 = scmp.eq.s32.totalorder %s32, 0
      %p353 = por %p351, %p352
      %s355 = sadd.s32 %s354, 1
      %p358 = scmp.eq.s32.totalorder %s26, 1
      %p359 = scmp.ne.s32.totalorder %s354, %s356
      %p360 = scmp.eq.s32.totalorder %s26, 0
      %p361 = por %p359, %p360
      %p362 = scmp.ne.s32.totalorder %s354, %s356
      %p363 = scmp.eq.s32.totalorder %s31, 1
      %p364 = por %p362, %p363
      %p365 = scmp.ne.s32.totalorder %s356, %s357
      %p366 = scmp.eq.s32.totalorder %s31, 0
      %p367 = por %p365, %p366
      %p368 = scmp.ne.s32.totalorder %s356, %s357
      %p369 = scmp.eq.s32.totalorder %s32, 1
      %p370 = por %p368, %p369
      %p372 = scmp.ne.s32.totalorder %s357, %s371
      %p373 = scmp.eq.s32.totalorder %s32, 0
      %p374 = por %p372, %p373
      %s376 = sadd.s32 %s375, 1
      %p379 = scmp.eq.s32.totalorder %s26, 1
      %p380 = scmp.ne.s32.totalorder %s375, %s377
      %p381 = scmp.eq.s32.totalorder %s26, 0
      %p382 = por %p380, %p381
      %p383 = scmp.ne.s32.totalorder %s375, %s377
      %p384 = scmp.eq.s32.totalorder %s31, 1
      %p385 = por %p383, %p384
      %p386 = scmp.ne.s32.totalorder %s377, %s378
      %p387 = scmp.eq.s32.totalorder %s31, 0
      %p388 = por %p386, %p387
      %p389 = scmp.ne.s32.totalorder %s377, %s378
      %p390 = scmp.eq.s32.totalorder %s32, 1
      %p391 = por %p389, %p390
      %p393 = scmp.ne.s32.totalorder %s378, %s392
      %p394 = scmp.eq.s32.totalorder %s32, 0
      %p395 = por %p393, %p394
      %s396 = ssub.s32 %s26, %s33
      %p397 = scmp.eq.s32.totalorder %s396, 0
      %s399 = sadd.s32 %s398, 1
      %s400 = scalar_select %p397, %s398, %s399
      %p403 = pneg %p397
      %p404 = scmp.eq.s32.totalorder %s26, 1
      %p405 = por %p403, %p404
      %p406 = scmp.ne.s32.totalorder %s398, %s401
      %p407 = scmp.eq.s32.totalorder %s26, 0
      %p408 = por %p406, %p407
      %p409 = scmp.ne.s32.totalorder %s398, %s401
      %p410 = scmp.eq.s32.totalorder %s31, 1
      %p411 = por %p409, %p410
      %p412 = scmp.ne.s32.totalorder %s401, %s402
      %p413 = scmp.eq.s32.totalorder %s31, 0
      %p414 = por %p412, %p413
      %p415 = scmp.ne.s32.totalorder %s401, %s402
      %p416 = scmp.eq.s32.totalorder %s32, 1
      %p417 = por %p415, %p416
      %p419 = scmp.ne.s32.totalorder %s402, %s418
      %p420 = scmp.eq.s32.totalorder %s32, 0
      %p421 = por %p419, %p420
      %p422 = scmp.le.s32.totalorder 1, %s26
      %p423 = scmp.lt.s32.totalorder %s26, 3
      %p424 = pnand %p422, %p423
      %p425 = pneg %p424
      // Predicated region
      $region9: #{inception_resnet_a_forward.1} parent=5 // pred_check
        _
      $region10: #{inception_resnet_a_forward.1} parent=5 // pred_check_branch
        %427 = sbr.rel (%p424) target = $region12
      $region11: #{inception_resnet_a_forward.1} parent=5 // pred_region
        %s428 = ssub.s32 %s26, 1
        // Predicated region
        $region13: #{inception_resnet_a_forward.1} parent=11 // pred_check
          %p429 = pneg %p73
        $region14: #{inception_resnet_a_forward.1} parent=11 // pred_check_branch
          %431 = sbr.rel (%p429) target = $region16
        $region15: #{inception_resnet_a_forward.1} parent=11 // pred_region
          _
        $region16: #{inception_resnet_a_forward.1} parent=11 // pred_fallthru
          _
        // Predicated region
        $region17: #{inception_resnet_a_forward.1} parent=11 // pred_check
          %p432 = pneg %p94
        $region18: #{inception_resnet_a_forward.1} parent=11 // pred_check_branch
          %434 = sbr.rel (%p432) target = $region20
        $region19: #{inception_resnet_a_forward.1} parent=11 // pred_region
          _
        $region20: #{inception_resnet_a_forward.1} parent=11 // pred_fallthru
          _
        // Predicated region
        $region21: #{inception_resnet_a_forward.1} parent=11 // pred_check
          %p435 = pneg %p115
        $region22: #{inception_resnet_a_forward.1} parent=11 // pred_check_branch
          %437 = sbr.rel (%p435) target = $region24
        $region23: #{inception_resnet_a_forward.1} parent=11 // pred_region
          _
        $region24: #{inception_resnet_a_forward.1} parent=11 // pred_fallthru
          _
        // Predicated region
        $region25: #{inception_resnet_a_forward.1} parent=11 // pred_check
          %p438 = pneg %p136
        $region26: #{inception_resnet_a_forward.1} parent=11 // pred_check_branch
          %440 = sbr.rel (%p438) target = $region28
        $region27: #{inception_resnet_a_forward.1} parent=11 // pred_region
          _
        $region28: #{inception_resnet_a_forward.1} parent=11 // pred_fallthru
          _
        // Predicated region
        $region29: #{inception_resnet_a_forward.1} parent=11 // pred_check
          %p441 = pneg %p157
        $region30: #{inception_resnet_a_forward.1} parent=11 // pred_check_branch
          %443 = sbr.rel (%p441) target = $region32
        $region31: #{inception_resnet_a_forward.1} parent=11 // pred_region
          _
        $region32: #{inception_resnet_a_forward.1} parent=11 // pred_fallthru
          _
        // Predicated region
        $region33: #{inception_resnet_a_forward.1} parent=11 // pred_check
          %p444 = pneg %p178
        $region34: #{inception_resnet_a_forward.1} parent=11 // pred_check_branch
          %446 = sbr.rel (%p444) target = $region36
        $region35: #{inception_resnet_a_forward.1} parent=11 // pred_region
          _
        $region36: #{inception_resnet_a_forward.1} parent=11 // pred_fallthru
          _
        // Predicated region
        $region37: #{inception_resnet_a_forward.1} parent=11 // pred_check
          %p447 = pneg %p199
        $region38: #{inception_resnet_a_forward.1} parent=11 // pred_check_branch
          %449 = sbr.rel (%p447) target = $region40
        $region39: #{inception_resnet_a_forward.1} parent=11 // pred_region
          _
        $region40: #{inception_resnet_a_forward.1} parent=11 // pred_fallthru
          _
        // Predicated region
        $region41: #{inception_resnet_a_forward.1} parent=11 // pred_check
          %p450 = pneg %p220
        $region42: #{inception_resnet_a_forward.1} parent=11 // pred_check_branch
          %452 = sbr.rel (%p450) target = $region44
        $region43: #{inception_resnet_a_forward.1} parent=11 // pred_region
          _
        $region44: #{inception_resnet_a_forward.1} parent=11 // pred_fallthru
          _
        // Predicated region
        $region45: #{inception_resnet_a_forward.1} parent=11 // pred_check
          %p453 = pneg %p241
        $region46: #{inception_resnet_a_forward.1} parent=11 // pred_check_branch
          %455 = sbr.rel (%p453) target = $region48
        $region47: #{inception_resnet_a_forward.1} parent=11 // pred_region
          _
        $region48: #{inception_resnet_a_forward.1} parent=11 // pred_fallthru
          _
        // Predicated region
        $region49: #{inception_resnet_a_forward.1} parent=11 // pred_check
          %p456 = pneg %p262
        $region50: #{inception_resnet_a_forward.1} parent=11 // pred_check_branch
          %458 = sbr.rel (%p456) target = $region52
        $region51: #{inception_resnet_a_forward.1} parent=11 // pred_region
          _
        $region52: #{inception_resnet_a_forward.1} parent=11 // pred_fallthru
          _
        // Predicated region
        $region53: #{inception_resnet_a_forward.1} parent=11 // pred_check
          %p459 = pneg %p283
        $region54: #{inception_resnet_a_forward.1} parent=11 // pred_check_branch
          %461 = sbr.rel (%p459) target = $region56
        $region55: #{inception_resnet_a_forward.1} parent=11 // pred_region
          _
        $region56: #{inception_resnet_a_forward.1} parent=11 // pred_fallthru
          _
        // Predicated region
        $region57: #{inception_resnet_a_forward.1} parent=11 // pred_check
          %p462 = pneg %p304
        $region58: #{inception_resnet_a_forward.1} parent=11 // pred_check_branch
          %464 = sbr.rel (%p462) target = $region60
        $region59: #{inception_resnet_a_forward.1} parent=11 // pred_region
          _
        $region60: #{inception_resnet_a_forward.1} parent=11 // pred_fallthru
          _
        // Predicated region
        $region61: #{inception_resnet_a_forward.1} parent=11 // pred_check
          %p465 = pneg %p325
        $region62: #{inception_resnet_a_forward.1} parent=11 // pred_check_branch
          %467 = sbr.rel (%p465) target = $region64
        $region63: #{inception_resnet_a_forward.1} parent=11 // pred_region
          _
        $region64: #{inception_resnet_a_forward.1} parent=11 // pred_fallthru
          _
        // Predicated region
        $region65: #{inception_resnet_a_forward.1} parent=11 // pred_check
          %p468 = pneg %p346
        $region66: #{inception_resnet_a_forward.1} parent=11 // pred_check_branch
          %470 = sbr.rel (%p468) target = $region68
        $region67: #{inception_resnet_a_forward.1} parent=11 // pred_region
          _
        $region68: #{inception_resnet_a_forward.1} parent=11 // pred_fallthru
          _
        // Predicated region
        $region69: #{inception_resnet_a_forward.1} parent=11 // pred_check
          %p471 = pneg %p367
        $region70: #{inception_resnet_a_forward.1} parent=11 // pred_check_branch
          %473 = sbr.rel (%p471) target = $region72
        $region71: #{inception_resnet_a_forward.1} parent=11 // pred_region
          _
        $region72: #{inception_resnet_a_forward.1} parent=11 // pred_fallthru
          _
        // Predicated region
        $region73: #{inception_resnet_a_forward.1} parent=11 // pred_check
          %p474 = pneg %p388
        $region74: #{inception_resnet_a_forward.1} parent=11 // pred_check_branch
          %476 = sbr.rel (%p474) target = $region76
        $region75: #{inception_resnet_a_forward.1} parent=11 // pred_region
          _
        $region76: #{inception_resnet_a_forward.1} parent=11 // pred_fallthru
          _
      $region12: #{inception_resnet_a_forward.1} parent=5 // pred_fallthru
        _
      %p477 = scmp.lt.s32.totalorder %s26, 2
      // Predicated region
      $region77: #{inception_resnet_a_forward.1} parent=5 // pred_check
        %p478 = pneg %p477
      $region78: #{inception_resnet_a_forward.1} parent=5 // pred_check_branch
        %480 = sbr.rel (%p478) target = $region80
      $region79: #{inception_resnet_a_forward.1} parent=5 // pred_region
        // Predicated region
        $region81: #{inception_resnet_a_forward.1} parent=79 // pred_check
          %p481 = pneg %p46
        $region82: #{inception_resnet_a_forward.1} parent=79 // pred_check_branch
          %483 = sbr.rel (%p481) target = $region84
        $region83: #{inception_resnet_a_forward.1} parent=79 // pred_region
          %p484 = scmp.lt.s32.totalorder %s26, 1
          %s485 = scalar_select %p484, %s26, 1
          %s486 = smul.addr %s485, 32
          %s487 = smul.addr %s486, 4
          %s488 = scalar_lea.vmem %s0, %s487
        $region84: #{inception_resnet_a_forward.1} parent=79 // pred_fallthru
          _
      $region80: #{inception_resnet_a_forward.1} parent=5 // pred_fallthru
        _
      %p489 = scmp.le.s32.totalorder 1, %s26
      %p490 = scmp.lt.s32.totalorder %s26, 3
      %p491 = pnand %p489, %p490
      %p492 = pneg %p491
      // Predicated region
      $region85: #{inception_resnet_a_forward.1} parent=5 // pred_check
        _
      $region86: #{inception_resnet_a_forward.1} parent=5 // pred_check_branch
        %494 = sbr.rel (%p491) target = $region88
      $region87: #{inception_resnet_a_forward.1} parent=5 // pred_region
        %s495 = ssub.s32 %s26, 1
        %p496 = scmp.lt.s32.totalorder %s31, 1
        %s497 = scalar_select %p496, %s31, 1
        %s498 = smul.addr %s497, 32
        %s499 = smul.addr %s498, 4
        %s500 = scalar_lea.vmem %s0, %s499
        %p501 = pneg %p52
        %p502 = pneg %p49
        %p503 = pneg %p73
        %p504 = pneg %p70
        %p505 = pneg %p94
        %p506 = pneg %p91
        %p507 = pneg %p115
        %p508 = pneg %p112
        %p509 = pneg %p136
        %p510 = pneg %p133
        %p511 = pneg %p157
        %p512 = pneg %p154
        %p513 = pneg %p178
        %p514 = pneg %p175
        %p515 = pneg %p199
        %p516 = pneg %p196
        %p517 = pneg %p220
        %p518 = pneg %p217
        %p519 = pneg %p241
        %p520 = pneg %p238
        %p521 = pneg %p262
        %p522 = pneg %p259
        %p523 = pneg %p283
        %p524 = pneg %p280
        %p525 = pneg %p304
        %p526 = pneg %p301
        %p527 = pneg %p325
        %p528 = pneg %p322
        %p529 = pneg %p346
        %p530 = pneg %p343
        %p531 = pneg %p367
        %p532 = pneg %p364
        %p533 = pneg %p388
        %p534 = pneg %p385
        %p535 = pneg %p414
        %p536 = pneg %p411
        %s537 = sand.u32 %s401, 1
        %s538 = scalar_lea.sflag [#allocation3], %s537
        %s539 = sand.u32 %s401, 1
        %s540 = smul.addr %s539, 768
        %s541 = scalar_lea.vmem [#allocation2], %s540
        %p542 = scmp.lt.s32.totalorder %s31, 1
        %s543 = scalar_select %p542, %s31, 1
        %s544 = smul.addr %s543, 32
        %s545 = smul.addr %s544, 4
        %s546 = scalar_lea.vmem %s0, %s545
        %v548 = vld [vmem:[%s546] sm:$0xf]
        %v549 = vld [vmem:[%s546 + $0x4] sm:$0xf]
        %v550 = vld [vmem:[%s546 + $0x8] sm:$0xf]
        %v551 = vld [vmem:[%s546 + $0xc] sm:$0xf]
        %v552 = vld [vmem:[%s546 + $0x10] sm:$0xf]
        %v553 = vld [vmem:[%s546 + $0x14] sm:$0xf]
        %v554 = vld [vmem:[%s546 + $0x18] sm:$0xf]
        %v555 = vld [vmem:[%s546 + $0x1c] sm:$0xf]
        %v556 = vld [vmem:[%s546 + $0x20] sm:$0xf]
        %v557 = vld [vmem:[%s546 + $0x24] sm:$0xf]
        %v558 = vld [vmem:[%s546 + $0x28] sm:$0xf]
        %v559 = vld [vmem:[%s546 + $0x2c] sm:$0xf]
        %v560 = vld [vmem:[%s546 + $0x30] sm:$0xf]
        %v561 = vld [vmem:[%s546 + $0x34] sm:$0xf]
        %v562 = vld [vmem:[%s546 + $0x38] sm:$0xf]
        %v563 = vld [vmem:[%s546 + $0x3c] sm:$0xf]
        %v564 = vld [vmem:[%s546 + $0x40] sm:$0xf]
        %v565 = vld [vmem:[%s546 + $0x44] sm:$0xf]
        %v566 = vld [vmem:[%s546 + $0x48] sm:$0xf]
        %v567 = vld [vmem:[%s546 + $0x4c] sm:$0xf]
        %v568 = vld [vmem:[%s546 + $0x50] sm:$0xf]
        %v569 = vld [vmem:[%s546 + $0x54] sm:$0xf]
        %v570 = vld [vmem:[%s546 + $0x58] sm:$0xf]
        %v571 = vld [vmem:[%s546 + $0x5c] sm:$0xf]
        %v572 = vld [vmem:[%s546 + $0x60] sm:$0xf]
        %v573 = vld [vmem:[%s546 + $0x64] sm:$0xf]
        %v574 = vld [vmem:[%s546 + $0x68] sm:$0xf]
        %v575 = vld [vmem:[%s546 + $0x6c] sm:$0xf]
        %v576 = vld [vmem:[%s546 + $0x70] sm:$0xf]
        %v577 = vld [vmem:[%s546 + $0x74] sm:$0xf]
        %v578 = vld [vmem:[%s546 + $0x78] sm:$0xf]
        %v579 = vld [vmem:[%s546 + $0x7c] sm:$0xf]
        %v580 = vld [vmem:[%s1] sm:$0x3]
        %v613 = vunpack.c.l.b16 %v548
        %v614 = vunpack.c.l.b16 %v549
        %v615 = vunpack.c.l.b16 %v550
        %v616 = vunpack.c.l.b16 %v551
        %v617 = vunpack.c.l.b16 %v552
        %v618 = vunpack.c.l.b16 %v553
        %v619 = vunpack.c.l.b16 %v554
        %v620 = vunpack.c.l.b16 %v555
        %v621 = vunpack.c.l.b16 %v556
        %v622 = vunpack.c.l.b16 %v557
        %v623 = vunpack.c.l.b16 %v558
        %v624 = vunpack.c.l.b16 %v559
        %v625 = vunpack.c.l.b16 %v560
        %v626 = vunpack.c.l.b16 %v561
        %v627 = vunpack.c.l.b16 %v562
        %v628 = vunpack.c.l.b16 %v563
        %v629 = vunpack.c.l.b16 %v564
        %v630 = vunpack.c.l.b16 %v565
        %v631 = vunpack.c.l.b16 %v566
        %v632 = vunpack.c.l.b16 %v567
        %v633 = vunpack.c.l.b16 %v568
        %v634 = vunpack.c.l.b16 %v569
        %v635 = vunpack.c.l.b16 %v570
        %v636 = vunpack.c.l.b16 %v571
        %v637 = vunpack.c.l.b16 %v572
        %v638 = vunpack.c.l.b16 %v573
        %v639 = vunpack.c.l.b16 %v574
        %v640 = vunpack.c.l.b16 %v575
        %v641 = vunpack.c.l.b16 %v576
        %v642 = vunpack.c.l.b16 %v577
        %v643 = vunpack.c.l.b16 %v578
        %v644 = vunpack.c.l.b16 %v579
        %v645 = vpack.c.b16 %v614, %v613
        %v646 = vpack.c.b16 %v616, %v615
        %v647 = vpack.c.b16 %v618, %v617
        %v648 = vpack.c.b16 %v620, %v619
        %v649 = vpack.c.b16 %v622, %v621
        %v650 = vpack.c.b16 %v624, %v623
        %v651 = vpack.c.b16 %v626, %v625
        %v652 = vpack.c.b16 %v628, %v627
        %v653 = vpack.c.b16 %v630, %v629
        %v654 = vpack.c.b16 %v632, %v631
        %v655 = vpack.c.b16 %v634, %v633
        %v656 = vpack.c.b16 %v636, %v635
        %v657 = vpack.c.b16 %v638, %v637
        %v658 = vpack.c.b16 %v640, %v639
        %v659 = vpack.c.b16 %v642, %v641
        %v660 = vpack.c.b16 %v644, %v643
        %vm661 = vcmask 31744
        %v663 = vsel %vm661, %v645, 0
        %v666 = vsel %vm661, %v646, 0
        %v669 = vsel %vm661, %v647, 0
        %v672 = vsel %vm661, %v648, 0
        %v675 = vsel %vm661, %v649, 0
        %v678 = vsel %vm661, %v650, 0
        %v681 = vsel %vm661, %v651, 0
        %v684 = vsel %vm661, %v652, 0
        %v687 = vsel %vm661, %v653, 0
        %v690 = vsel %vm661, %v654, 0
        %v693 = vsel %vm661, %v655, 0
        %v696 = vsel %vm661, %v656, 0
        %v699 = vsel %vm661, %v657, 0
        %v702 = vsel %vm661, %v658, 0
        %v705 = vsel %vm661, %v659, 0
        %v708 = vsel %vm661, %v660, 0
        %vm710 = vcmask 1041408
        %v712 = vsel %vm710, %v580, 0
        %714 = vmatprep.subr.bf16.mxu0 0
        %715 = vmatpush1.bf16.msra.mxu0 0
        %716 = vmatprep.subr.bf16.mxu0 0
        %717 = vmatpush1.bf16.msra.mxu0 0
        %718 = vmatprep.subr.bf16.mxu0 0
        %719 = vmatpush1.bf16.msra.mxu0 0
        %720 = vmatprep.subr.bf16.mxu0 0
        %721 = vmatpush1.bf16.msra.mxu0 0
        %722 = vmatprep.subr.bf16.mxu0 0
        %723 = vmatpush1.bf16.msra.mxu0 0
        %724 = vmatprep.subr.bf16.mxu0 0
        %725 = vmatpush1.bf16.msra.mxu0 0
        %726 = vmatprep.subr.bf16.mxu0 0
        %727 = vmatpush1.bf16.msra.mxu0 0
        %728 = vmatprep.subr.bf16.mxu0 0
        %729 = vmatpush1.bf16.msra.mxu0 %v712
        %730 = vmatprep.subr.bf16.mxu0 0
        %731 = vmatpush2.bf16.msra.mxu0 0
        %732 = vmatprep.subr.bf16.mxu0 0
        %733 = vmatpush2.bf16.msra.mxu0 0
        %734 = vmatprep.subr.bf16.mxu0 0
        %735 = vmatpush2.bf16.msra.mxu0 0
        %736 = vmatprep.subr.bf16.mxu0 0
        %737 = vmatpush2.bf16.msra.mxu0 0
        %738 = vmatprep.subr.bf16.mxu0 0
        %739 = vmatpush2.bf16.msra.mxu0 0
        %740 = vmatprep.subr.bf16.mxu0 0
        %741 = vmatpush2.bf16.msra.mxu0 0
        %742 = vmatprep.subr.bf16.mxu0 0
        %743 = vmatpush2.bf16.msra.mxu0 0
        %744 = vmatprep.subr.bf16.mxu0 0
        %745 = vmatpush2.bf16.msra.mxu0 0
        %746 = vmatprep.mubr.bf16.mxu0 0
        %747 = vmatmul.mubr.bf16.gmra.mxu0 %v663
        %v748 = vpop.f32.mrf.mxu0
        %v749 = vadd.f32 0.0, %v748
        %v750 = vpop.f32.mrf.mxu0
        %v751 = vpop.f32.mrf.mxu0
        %v752 = vadd.f32 0.0, %v751
        %v753 = vpop.f32.mrf.mxu0
        %754 = vmatprep.mubr.bf16.mxu0 0
        %755 = vmatmul.mubr.bf16.gmra.mxu0 %v666
        %v756 = vpop.f32.mrf.mxu0
        %v757 = vadd.f32 0.0, %v756
        %v758 = vpop.f32.mrf.mxu0
        %v759 = vpop.f32.mrf.mxu0
        %v760 = vadd.f32 0.0, %v759
        %v761 = vpop.f32.mrf.mxu0
        %762 = vmatprep.mubr.bf16.mxu0 0
        %763 = vmatmul.mubr.bf16.gmra.mxu0 %v669
        %v764 = vpop.f32.mrf.mxu0
        %v765 = vadd.f32 0.0, %v764
        %v766 = vpop.f32.mrf.mxu0
        %v767 = vpop.f32.mrf.mxu0
        %v768 = vadd.f32 0.0, %v767
        %v769 = vpop.f32.mrf.mxu0
        %770 = vmatprep.mubr.bf16.mxu0 0
        %771 = vmatmul.mubr.bf16.gmra.mxu0 %v672
        %v772 = vpop.f32.mrf.mxu0
        %v773 = vadd.f32 0.0, %v772
        %v774 = vpop.f32.mrf.mxu0
        %v775 = vpop.f32.mrf.mxu0
        %v776 = vadd.f32 0.0, %v775
        %v777 = vpop.f32.mrf.mxu0
        %778 = vmatprep.mubr.bf16.mxu0 0
        %779 = vmatmul.mubr.bf16.gmra.mxu0 %v675
        %v780 = vpop.f32.mrf.mxu0
        %v781 = vadd.f32 0.0, %v780
        %v782 = vpop.f32.mrf.mxu0
        %v783 = vpop.f32.mrf.mxu0
        %v784 = vadd.f32 0.0, %v783
        %v785 = vpop.f32.mrf.mxu0
        %786 = vmatprep.mubr.bf16.mxu0 0
        %787 = vmatmul.mubr.bf16.gmra.mxu0 %v678
        %v788 = vpop.f32.mrf.mxu0
        %v789 = vadd.f32 0.0, %v788
        %v790 = vpop.f32.mrf.mxu0
        %v791 = vpop.f32.mrf.mxu0
        %v792 = vadd.f32 0.0, %v791
        %v793 = vpop.f32.mrf.mxu0
        %794 = vmatprep.mubr.bf16.mxu0 0
        %795 = vmatmul.mubr.bf16.gmra.mxu0 %v681
        %v796 = vpop.f32.mrf.mxu0
        %v797 = vadd.f32 0.0, %v796
        %v798 = vpop.f32.mrf.mxu0
        %v799 = vpop.f32.mrf.mxu0
        %v800 = vadd.f32 0.0, %v799
        %v801 = vpop.f32.mrf.mxu0
        %802 = vmatprep.mubr.bf16.mxu0 0
        %803 = vmatmul.mubr.bf16.gmra.mxu0 %v684
        %v804 = vpop.f32.mrf.mxu0
        %v805 = vadd.f32 0.0, %v804
        %v806 = vpop.f32.mrf.mxu0
        %v807 = vpop.f32.mrf.mxu0
        %v808 = vadd.f32 0.0, %v807
        %v809 = vpop.f32.mrf.mxu0
        %810 = vmatprep.mubr.bf16.mxu0 0
        %811 = vmatmul.mubr.bf16.gmra.mxu0 %v687
        %v812 = vpop.f32.mrf.mxu0
        %v813 = vadd.f32 0.0, %v812
        %v814 = vpop.f32.mrf.mxu0
        %v815 = vpop.f32.mrf.mxu0
        %v816 = vadd.f32 0.0, %v815
        %v817 = vpop.f32.mrf.mxu0
        %818 = vmatprep.mubr.bf16.mxu0 0
        %819 = vmatmul.mubr.bf16.gmra.mxu0 %v690
        %v820 = vpop.f32.mrf.mxu0
        %v821 = vadd.f32 0.0, %v820
        %v822 = vpop.f32.mrf.mxu0
        %v823 = vpop.f32.mrf.mxu0
        %v824 = vadd.f32 0.0, %v823
        %v825 = vpop.f32.mrf.mxu0
        %826 = vmatprep.mubr.bf16.mxu0 0
        %827 = vmatmul.mubr.bf16.gmra.mxu0 %v693
        %v828 = vpop.f32.mrf.mxu0
        %v829 = vadd.f32 0.0, %v828
        %v830 = vpop.f32.mrf.mxu0
        %v831 = vpop.f32.mrf.mxu0
        %v832 = vadd.f32 0.0, %v831
        %v833 = vpop.f32.mrf.mxu0
        %834 = vmatprep.mubr.bf16.mxu0 0
        %835 = vmatmul.mubr.bf16.gmra.mxu0 %v696
        %v836 = vpop.f32.mrf.mxu0
        %v837 = vadd.f32 0.0, %v836
        %v838 = vpop.f32.mrf.mxu0
        %v839 = vpop.f32.mrf.mxu0
        %v840 = vadd.f32 0.0, %v839
        %v841 = vpop.f32.mrf.mxu0
        %842 = vmatprep.mubr.bf16.mxu0 0
        %843 = vmatmul.mubr.bf16.gmra.mxu0 %v699
        %v844 = vpop.f32.mrf.mxu0
        %v845 = vadd.f32 0.0, %v844
        %v846 = vpop.f32.mrf.mxu0
        %v847 = vpop.f32.mrf.mxu0
        %v848 = vadd.f32 0.0, %v847
        %v849 = vpop.f32.mrf.mxu0
        %850 = vmatprep.mubr.bf16.mxu0 0
        %851 = vmatmul.mubr.bf16.gmra.mxu0 %v702
        %v852 = vpop.f32.mrf.mxu0
        %v853 = vadd.f32 0.0, %v852
        %v854 = vpop.f32.mrf.mxu0
        %v855 = vpop.f32.mrf.mxu0
        %v856 = vadd.f32 0.0, %v855
        %v857 = vpop.f32.mrf.mxu0
        %858 = vmatprep.mubr.bf16.mxu0 0
        %859 = vmatmul.mubr.bf16.gmra.mxu0 %v705
        %v860 = vpop.f32.mrf.mxu0
        %v861 = vadd.f32 0.0, %v860
        %v862 = vpop.f32.mrf.mxu0
        %v863 = vpop.f32.mrf.mxu0
        %v864 = vadd.f32 0.0, %v863
        %v865 = vpop.f32.mrf.mxu0
        %866 = vmatprep.mubr.bf16.mxu0 0
        %867 = vmatmul.mubr.bf16.gmra.mxu0 %v708
        %v868 = vpop.f32.mrf.mxu0
        %v869 = vadd.f32 0.0, %v868
        %v870 = vpop.f32.mrf.mxu0
        %v871 = vpop.f32.mrf.mxu0
        %v872 = vadd.f32 0.0, %v871
        %v873 = vpop.f32.mrf.mxu0
        %874 = vdwg.mxu0
        %v875 = vld [vmem:[%s2] sm:$0x1]
        %v877 = vlaneseq
        %v878 = vshrl.u32 %v877, 7
        %v879 = vsub.s32 0, %v878
        %v880 = vrot.slane %v875, %v879
        %v882 = vmul.f32 %v749, %v880
        %v883 = vmul.f32 %v752, %v880
        %v884 = vmul.f32 %v757, %v880
        %v885 = vmul.f32 %v760, %v880
        %v886 = vmul.f32 %v765, %v880
        %v887 = vmul.f32 %v768, %v880
        %v888 = vmul.f32 %v773, %v880
        %v889 = vmul.f32 %v776, %v880
        %v890 = vmul.f32 %v781, %v880
        %v891 = vmul.f32 %v784, %v880
        %v892 = vmul.f32 %v789, %v880
        %v893 = vmul.f32 %v792, %v880
        %v894 = vmul.f32 %v797, %v880
        %v895 = vmul.f32 %v800, %v880
        %v896 = vmul.f32 %v805, %v880
        %v897 = vmul.f32 %v808, %v880
        %v898 = vmul.f32 %v813, %v880
        %v899 = vmul.f32 %v816, %v880
        %v900 = vmul.f32 %v821, %v880
        %v901 = vmul.f32 %v824, %v880
        %v902 = vmul.f32 %v829, %v880
        %v903 = vmul.f32 %v832, %v880
        %v904 = vmul.f32 %v837, %v880
        %v905 = vmul.f32 %v840, %v880
        %v906 = vmul.f32 %v845, %v880
        %v907 = vmul.f32 %v848, %v880
        %v908 = vmul.f32 %v853, %v880
        %v909 = vmul.f32 %v856, %v880
        %v910 = vmul.f32 %v861, %v880
        %v911 = vmul.f32 %v864, %v880
        %v912 = vmul.f32 %v869, %v880
        %v913 = vmul.f32 %v872, %v880
        %v914 = vld [vmem:[%s3] sm:$0x1]
        %v916 = vlaneseq
        %v917 = vshrl.u32 %v916, 7
        %v918 = vsub.s32 0, %v917
        %v919 = vrot.slane %v914, %v918
        %v921 = vadd.f32 %v882, %v919
        %v922 = vadd.f32 %v883, %v919
        %v923 = vadd.f32 %v884, %v919
        %v924 = vadd.f32 %v885, %v919
        %v925 = vadd.f32 %v886, %v919
        %v926 = vadd.f32 %v887, %v919
        %v927 = vadd.f32 %v888, %v919
        %v928 = vadd.f32 %v889, %v919
        %v929 = vadd.f32 %v890, %v919
        %v930 = vadd.f32 %v891, %v919
        %v931 = vadd.f32 %v892, %v919
        %v932 = vadd.f32 %v893, %v919
        %v933 = vadd.f32 %v894, %v919
        %v934 = vadd.f32 %v895, %v919
        %v935 = vadd.f32 %v896, %v919
        %v936 = vadd.f32 %v897, %v919
        %v937 = vadd.f32 %v898, %v919
        %v938 = vadd.f32 %v899, %v919
        %v939 = vadd.f32 %v900, %v919
        %v940 = vadd.f32 %v901, %v919
        %v941 = vadd.f32 %v902, %v919
        %v942 = vadd.f32 %v903, %v919
        %v943 = vadd.f32 %v904, %v919
        %v944 = vadd.f32 %v905, %v919
        %v945 = vadd.f32 %v906, %v919
        %v946 = vadd.f32 %v907, %v919
        %v947 = vadd.f32 %v908, %v919
        %v948 = vadd.f32 %v909, %v919
        %v949 = vadd.f32 %v910, %v919
        %v950 = vadd.f32 %v911, %v919
        %v951 = vadd.f32 %v912, %v919
        %v952 = vadd.f32 %v913, %v919
        %v953 = vmax.f32 %v921, 0.0
        %v954 = vmax.f32 %v922, 0.0
        %v955 = vmax.f32 %v923, 0.0
        %v956 = vmax.f32 %v924, 0.0
        %v957 = vmax.f32 %v925, 0.0
        %v958 = vmax.f32 %v926, 0.0
        %v959 = vmax.f32 %v927, 0.0
        %v960 = vmax.f32 %v928, 0.0
        %v961 = vmax.f32 %v929, 0.0
        %v962 = vmax.f32 %v930, 0.0
        %v963 = vmax.f32 %v931, 0.0
        %v964 = vmax.f32 %v932, 0.0
        %v965 = vmax.f32 %v933, 0.0
        %v966 = vmax.f32 %v934, 0.0
        %v967 = vmax.f32 %v935, 0.0
        %v968 = vmax.f32 %v936, 0.0
        %v969 = vmax.f32 %v937, 0.0
        %v970 = vmax.f32 %v938, 0.0
        %v971 = vmax.f32 %v939, 0.0
        %v972 = vmax.f32 %v940, 0.0
        %v973 = vmax.f32 %v941, 0.0
        %v974 = vmax.f32 %v942, 0.0
        %v975 = vmax.f32 %v943, 0.0
        %v976 = vmax.f32 %v944, 0.0
        %v977 = vmax.f32 %v945, 0.0
        %v978 = vmax.f32 %v946, 0.0
        %v979 = vmax.f32 %v947, 0.0
        %v980 = vmax.f32 %v948, 0.0
        %v981 = vmax.f32 %v949, 0.0
        %v982 = vmax.f32 %v950, 0.0
        %v983 = vmax.f32 %v951, 0.0
        %v984 = vmax.f32 %v952, 0.0
        %s985 = scalar_lea.vmem %s1, 2
        %v986 = vld [vmem:[%s985] sm:$0x3]
        %v988 = vsel %vm710, %v986, 0
        %990 = vmatprep.subr.bf16.mxu0 0
        %991 = vmatpush1.bf16.msra.mxu0 0
        %992 = vmatprep.subr.bf16.mxu0 0
        %993 = vmatpush1.bf16.msra.mxu0 0
        %994 = vmatprep.subr.bf16.mxu0 0
        %995 = vmatpush1.bf16.msra.mxu0 0
        %996 = vmatprep.subr.bf16.mxu0 0
        %997 = vmatpush1.bf16.msra.mxu0 0
        %998 = vmatprep.subr.bf16.mxu0 0
        %999 = vmatpush1.bf16.msra.mxu0 0
        %1000 = vmatprep.subr.bf16.mxu0 0
        %1001 = vmatpush1.bf16.msra.mxu0 0
        %1002 = vmatprep.subr.bf16.mxu0 0
        %1003 = vmatpush1.bf16.msra.mxu0 0
        %1004 = vmatprep.subr.bf16.mxu0 0
        %1005 = vmatpush1.bf16.msra.mxu0 %v988
        %1006 = vmatprep.subr.bf16.mxu0 0
        %1007 = vmatpush2.bf16.msra.mxu0 0
        %1008 = vmatprep.subr.bf16.mxu0 0
        %1009 = vmatpush2.bf16.msra.mxu0 0
        %1010 = vmatprep.subr.bf16.mxu0 0
        %1011 = vmatpush2.bf16.msra.mxu0 0
        %1012 = vmatprep.subr.bf16.mxu0 0
        %1013 = vmatpush2.bf16.msra.mxu0 0
        %1014 = vmatprep.subr.bf16.mxu0 0
        %1015 = vmatpush2.bf16.msra.mxu0 0
        %1016 = vmatprep.subr.bf16.mxu0 0
        %1017 = vmatpush2.bf16.msra.mxu0 0
        %1018 = vmatprep.subr.bf16.mxu0 0
        %1019 = vmatpush2.bf16.msra.mxu0 0
        %1020 = vmatprep.subr.bf16.mxu0 0
        %1021 = vmatpush2.bf16.msra.mxu0 0
        %1022 = vmatprep.mubr.bf16.mxu0 0
        %1023 = vmatmul.mubr.bf16.gmra.mxu0 %v663
        %v1024 = vpop.f32.mrf.mxu0
        %v1025 = vadd.f32 0.0, %v1024
        %v1026 = vpop.f32.mrf.mxu0
        %v1027 = vpop.f32.mrf.mxu0
        %v1028 = vadd.f32 0.0, %v1027
        %v1029 = vpop.f32.mrf.mxu0
        %1030 = vmatprep.mubr.bf16.mxu0 0
        %1031 = vmatmul.mubr.bf16.gmra.mxu0 %v666
        %v1032 = vpop.f32.mrf.mxu0
        %v1033 = vadd.f32 0.0, %v1032
        %v1034 = vpop.f32.mrf.mxu0
        %v1035 = vpop.f32.mrf.mxu0
        %v1036 = vadd.f32 0.0, %v1035
        %v1037 = vpop.f32.mrf.mxu0
        %1038 = vmatprep.mubr.bf16.mxu0 0
        %1039 = vmatmul.mubr.bf16.gmra.mxu0 %v669
        %v1040 = vpop.f32.mrf.mxu0
        %v1041 = vadd.f32 0.0, %v1040
        %v1042 = vpop.f32.mrf.mxu0
        %v1043 = vpop.f32.mrf.mxu0
        %v1044 = vadd.f32 0.0, %v1043
        %v1045 = vpop.f32.mrf.mxu0
        %1046 = vmatprep.mubr.bf16.mxu0 0
        %1047 = vmatmul.mubr.bf16.gmra.mxu0 %v672
        %v1048 = vpop.f32.mrf.mxu0
        %v1049 = vadd.f32 0.0, %v1048
        %v1050 = vpop.f32.mrf.mxu0
        %v1051 = vpop.f32.mrf.mxu0
        %v1052 = vadd.f32 0.0, %v1051
        %v1053 = vpop.f32.mrf.mxu0
        %1054 = vmatprep.mubr.bf16.mxu0 0
        %1055 = vmatmul.mubr.bf16.gmra.mxu0 %v675
        %v1056 = vpop.f32.mrf.mxu0
        %v1057 = vadd.f32 0.0, %v1056
        %v1058 = vpop.f32.mrf.mxu0
        %v1059 = vpop.f32.mrf.mxu0
        %v1060 = vadd.f32 0.0, %v1059
        %v1061 = vpop.f32.mrf.mxu0
        %1062 = vmatprep.mubr.bf16.mxu0 0
        %1063 = vmatmul.mubr.bf16.gmra.mxu0 %v678
        %v1064 = vpop.f32.mrf.mxu0
        %v1065 = vadd.f32 0.0, %v1064
        %v1066 = vpop.f32.mrf.mxu0
        %v1067 = vpop.f32.mrf.mxu0
        %v1068 = vadd.f32 0.0, %v1067
        %v1069 = vpop.f32.mrf.mxu0
        %1070 = vmatprep.mubr.bf16.mxu0 0
        %1071 = vmatmul.mubr.bf16.gmra.mxu0 %v681
        %v1072 = vpop.f32.mrf.mxu0
        %v1073 = vadd.f32 0.0, %v1072
        %v1074 = vpop.f32.mrf.mxu0
        %v1075 = vpop.f32.mrf.mxu0
        %v1076 = vadd.f32 0.0, %v1075
        %v1077 = vpop.f32.mrf.mxu0
        %1078 = vmatprep.mubr.bf16.mxu0 0
        %1079 = vmatmul.mubr.bf16.gmra.mxu0 %v684
        %v1080 = vpop.f32.mrf.mxu0
        %v1081 = vadd.f32 0.0, %v1080
        %v1082 = vpop.f32.mrf.mxu0
        %v1083 = vpop.f32.mrf.mxu0
        %v1084 = vadd.f32 0.0, %v1083
        %v1085 = vpop.f32.mrf.mxu0
        %1086 = vmatprep.mubr.bf16.mxu0 0
        %1087 = vmatmul.mubr.bf16.gmra.mxu0 %v687
        %v1088 = vpop.f32.mrf.mxu0
        %v1089 = vadd.f32 0.0, %v1088
        %v1090 = vpop.f32.mrf.mxu0
        %v1091 = vpop.f32.mrf.mxu0
        %v1092 = vadd.f32 0.0, %v1091
        %v1093 = vpop.f32.mrf.mxu0
        %1094 = vmatprep.mubr.bf16.mxu0 0
        %1095 = vmatmul.mubr.bf16.gmra.mxu0 %v690
        %v1096 = vpop.f32.mrf.mxu0
        %v1097 = vadd.f32 0.0, %v1096
        %v1098 = vpop.f32.mrf.mxu0
        %v1099 = vpop.f32.mrf.mxu0
        %v1100 = vadd.f32 0.0, %v1099
        %v1101 = vpop.f32.mrf.mxu0
        %1102 = vmatprep.mubr.bf16.mxu0 0
        %1103 = vmatmul.mubr.bf16.gmra.mxu0 %v693
        %v1104 = vpop.f32.mrf.mxu0
        %v1105 = vadd.f32 0.0, %v1104
        %v1106 = vpop.f32.mrf.mxu0
        %v1107 = vpop.f32.mrf.mxu0
        %v1108 = vadd.f32 0.0, %v1107
        %v1109 = vpop.f32.mrf.mxu0
        %1110 = vmatprep.mubr.bf16.mxu0 0
        %1111 = vmatmul.mubr.bf16.gmra.mxu0 %v696
        %v1112 = vpop.f32.mrf.mxu0
        %v1113 = vadd.f32 0.0, %v1112
        %v1114 = vpop.f32.mrf.mxu0
        %v1115 = vpop.f32.mrf.mxu0
        %v1116 = vadd.f32 0.0, %v1115
        %v1117 = vpop.f32.mrf.mxu0
        %1118 = vmatprep.mubr.bf16.mxu0 0
        %1119 = vmatmul.mubr.bf16.gmra.mxu0 %v699
        %v1120 = vpop.f32.mrf.mxu0
        %v1121 = vadd.f32 0.0, %v1120
        %v1122 = vpop.f32.mrf.mxu0
        %v1123 = vpop.f32.mrf.mxu0
        %v1124 = vadd.f32 0.0, %v1123
        %v1125 = vpop.f32.mrf.mxu0
        %1126 = vmatprep.mubr.bf16.mxu0 0
        %1127 = vmatmul.mubr.bf16.gmra.mxu0 %v702
        %v1128 = vpop.f32.mrf.mxu0
        %v1129 = vadd.f32 0.0, %v1128
        %v1130 = vpop.f32.mrf.mxu0
        %v1131 = vpop.f32.mrf.mxu0
        %v1132 = vadd.f32 0.0, %v1131
        %v1133 = vpop.f32.mrf.mxu0
        %1134 = vmatprep.mubr.bf16.mxu0 0
        %1135 = vmatmul.mubr.bf16.gmra.mxu0 %v705
        %v1136 = vpop.f32.mrf.mxu0
        %v1137 = vadd.f32 0.0, %v1136
        %v1138 = vpop.f32.mrf.mxu0
        %v1139 = vpop.f32.mrf.mxu0
        %v1140 = vadd.f32 0.0, %v1139
        %v1141 = vpop.f32.mrf.mxu0
        %1142 = vmatprep.mubr.bf16.mxu0 0
        %1143 = vmatmul.mubr.bf16.gmra.mxu0 %v708
        %v1144 = vpop.f32.mrf.mxu0
        %v1145 = vadd.f32 0.0, %v1144
        %v1146 = vpop.f32.mrf.mxu0
        %v1147 = vpop.f32.mrf.mxu0
        %v1148 = vadd.f32 0.0, %v1147
        %v1149 = vpop.f32.mrf.mxu0
        %1150 = vdwg.mxu0
        %s1151 = scalar_lea.vmem %s2, 1
        %v1152 = vld [vmem:[%s1151] sm:$0x1]
        %v1154 = vlaneseq
        %v1155 = vshrl.u32 %v1154, 7
        %v1156 = vsub.s32 0, %v1155
        %v1157 = vrot.slane %v1152, %v1156
        %v1159 = vmul.f32 %v1025, %v1157
        %v1160 = vmul.f32 %v1028, %v1157
        %v1161 = vmul.f32 %v1033, %v1157
        %v1162 = vmul.f32 %v1036, %v1157
        %v1163 = vmul.f32 %v1041, %v1157
        %v1164 = vmul.f32 %v1044, %v1157
        %v1165 = vmul.f32 %v1049, %v1157
        %v1166 = vmul.f32 %v1052, %v1157
        %v1167 = vmul.f32 %v1057, %v1157
        %v1168 = vmul.f32 %v1060, %v1157
        %v1169 = vmul.f32 %v1065, %v1157
        %v1170 = vmul.f32 %v1068, %v1157
        %v1171 = vmul.f32 %v1073, %v1157
        %v1172 = vmul.f32 %v1076, %v1157
        %v1173 = vmul.f32 %v1081, %v1157
        %v1174 = vmul.f32 %v1084, %v1157
        %v1175 = vmul.f32 %v1089, %v1157
        %v1176 = vmul.f32 %v1092, %v1157
        %v1177 = vmul.f32 %v1097, %v1157
        %v1178 = vmul.f32 %v1100, %v1157
        %v1179 = vmul.f32 %v1105, %v1157
        %v1180 = vmul.f32 %v1108, %v1157
        %v1181 = vmul.f32 %v1113, %v1157
        %v1182 = vmul.f32 %v1116, %v1157
        %v1183 = vmul.f32 %v1121, %v1157
        %v1184 = vmul.f32 %v1124, %v1157
        %v1185 = vmul.f32 %v1129, %v1157
        %v1186 = vmul.f32 %v1132, %v1157
        %v1187 = vmul.f32 %v1137, %v1157
        %v1188 = vmul.f32 %v1140, %v1157
        %v1189 = vmul.f32 %v1145, %v1157
        %v1190 = vmul.f32 %v1148, %v1157
        %s1191 = scalar_lea.vmem %s3, 1
        %v1192 = vld [vmem:[%s1191] sm:$0x1]
        %v1194 = vlaneseq
        %v1195 = vshrl.u32 %v1194, 7
        %v1196 = vsub.s32 0, %v1195
        %v1197 = vrot.slane %v1192, %v1196
        %v1199 = vadd.f32 %v1159, %v1197
        %v1200 = vadd.f32 %v1160, %v1197
        %v1201 = vadd.f32 %v1161, %v1197
        %v1202 = vadd.f32 %v1162, %v1197
        %v1203 = vadd.f32 %v1163, %v1197
        %v1204 = vadd.f32 %v1164, %v1197
        %v1205 = vadd.f32 %v1165, %v1197
        %v1206 = vadd.f32 %v1166, %v1197
        %v1207 = vadd.f32 %v1167, %v1197
        %v1208 = vadd.f32 %v1168, %v1197
        %v1209 = vadd.f32 %v1169, %v1197
        %v1210 = vadd.f32 %v1170, %v1197
        %v1211 = vadd.f32 %v1171, %v1197
        %v1212 = vadd.f32 %v1172, %v1197
        %v1213 = vadd.f32 %v1173, %v1197
        %v1214 = vadd.f32 %v1174, %v1197
        %v1215 = vadd.f32 %v1175, %v1197
        %v1216 = vadd.f32 %v1176, %v1197
        %v1217 = vadd.f32 %v1177, %v1197
        %v1218 = vadd.f32 %v1178, %v1197
        %v1219 = vadd.f32 %v1179, %v1197
        %v1220 = vadd.f32 %v1180, %v1197
        %v1221 = vadd.f32 %v1181, %v1197
        %v1222 = vadd.f32 %v1182, %v1197
        %v1223 = vadd.f32 %v1183, %v1197
        %v1224 = vadd.f32 %v1184, %v1197
        %v1225 = vadd.f32 %v1185, %v1197
        %v1226 = vadd.f32 %v1186, %v1197
        %v1227 = vadd.f32 %v1187, %v1197
        %v1228 = vadd.f32 %v1188, %v1197
        %v1229 = vadd.f32 %v1189, %v1197
        %v1230 = vadd.f32 %v1190, %v1197
        %v1231 = vmax.f32 %v1199, 0.0
        %v1232 = vmax.f32 %v1200, 0.0
        %v1233 = vmax.f32 %v1201, 0.0
        %v1234 = vmax.f32 %v1202, 0.0
        %v1235 = vmax.f32 %v1203, 0.0
        %v1236 = vmax.f32 %v1204, 0.0
        %v1237 = vmax.f32 %v1205, 0.0
        %v1238 = vmax.f32 %v1206, 0.0
        %v1239 = vmax.f32 %v1207, 0.0
        %v1240 = vmax.f32 %v1208, 0.0
        %v1241 = vmax.f32 %v1209, 0.0
        %v1242 = vmax.f32 %v1210, 0.0
        %v1243 = vmax.f32 %v1211, 0.0
        %v1244 = vmax.f32 %v1212, 0.0
        %v1245 = vmax.f32 %v1213, 0.0
        %v1246 = vmax.f32 %v1214, 0.0
        %v1247 = vmax.f32 %v1215, 0.0
        %v1248 = vmax.f32 %v1216, 0.0
        %v1249 = vmax.f32 %v1217, 0.0
        %v1250 = vmax.f32 %v1218, 0.0
        %v1251 = vmax.f32 %v1219, 0.0
        %v1252 = vmax.f32 %v1220, 0.0
        %v1253 = vmax.f32 %v1221, 0.0
        %v1254 = vmax.f32 %v1222, 0.0
        %v1255 = vmax.f32 %v1223, 0.0
        %v1256 = vmax.f32 %v1224, 0.0
        %v1257 = vmax.f32 %v1225, 0.0
        %v1258 = vmax.f32 %v1226, 0.0
        %v1259 = vmax.f32 %v1227, 0.0
        %v1260 = vmax.f32 %v1228, 0.0
        %v1261 = vmax.f32 %v1229, 0.0
        %v1262 = vmax.f32 %v1230, 0.0
        %s1263 = scalar_lea.vmem %s1, 4
        %v1264 = vld [vmem:[%s1263] sm:$0x3]
        %v1266 = vsel %vm710, %v1264, 0
        %1268 = vmatprep.subr.bf16.mxu0 0
        %1269 = vmatpush1.bf16.msra.mxu0 0
        %1270 = vmatprep.subr.bf16.mxu0 0
        %1271 = vmatpush1.bf16.msra.mxu0 0
        %1272 = vmatprep.subr.bf16.mxu0 0
        %1273 = vmatpush1.bf16.msra.mxu0 0
        %1274 = vmatprep.subr.bf16.mxu0 0
        %1275 = vmatpush1.bf16.msra.mxu0 0
        %1276 = vmatprep.subr.bf16.mxu0 0
        %1277 = vmatpush1.bf16.msra.mxu0 0
        %1278 = vmatprep.subr.bf16.mxu0 0
        %1279 = vmatpush1.bf16.msra.mxu0 0
        %1280 = vmatprep.subr.bf16.mxu0 0
        %1281 = vmatpush1.bf16.msra.mxu0 0
        %1282 = vmatprep.subr.bf16.mxu0 0
        %1283 = vmatpush1.bf16.msra.mxu0 %v1266
        %1284 = vmatprep.subr.bf16.mxu0 0
        %1285 = vmatpush2.bf16.msra.mxu0 0
        %1286 = vmatprep.subr.bf16.mxu0 0
        %1287 = vmatpush2.bf16.msra.mxu0 0
        %1288 = vmatprep.subr.bf16.mxu0 0
        %1289 = vmatpush2.bf16.msra.mxu0 0
        %1290 = vmatprep.subr.bf16.mxu0 0
        %1291 = vmatpush2.bf16.msra.mxu0 0
        %1292 = vmatprep.subr.bf16.mxu0 0
        %1293 = vmatpush2.bf16.msra.mxu0 0
        %1294 = vmatprep.subr.bf16.mxu0 0
        %1295 = vmatpush2.bf16.msra.mxu0 0
        %1296 = vmatprep.subr.bf16.mxu0 0
        %1297 = vmatpush2.bf16.msra.mxu0 0
        %1298 = vmatprep.subr.bf16.mxu0 0
        %1299 = vmatpush2.bf16.msra.mxu0 0
        %1300 = vmatprep.mubr.bf16.mxu0 0
        %1301 = vmatmul.mubr.bf16.gmra.mxu0 %v663
        %v1302 = vpop.f32.mrf.mxu0
        %v1303 = vadd.f32 0.0, %v1302
        %v1304 = vpop.f32.mrf.mxu0
        %v1305 = vpop.f32.mrf.mxu0
        %v1306 = vadd.f32 0.0, %v1305
        %v1307 = vpop.f32.mrf.mxu0
        %1308 = vmatprep.mubr.bf16.mxu0 0
        %1309 = vmatmul.mubr.bf16.gmra.mxu0 %v666
        %v1310 = vpop.f32.mrf.mxu0
        %v1311 = vadd.f32 0.0, %v1310
        %v1312 = vpop.f32.mrf.mxu0
        %v1313 = vpop.f32.mrf.mxu0
        %v1314 = vadd.f32 0.0, %v1313
        %v1315 = vpop.f32.mrf.mxu0
        %1316 = vmatprep.mubr.bf16.mxu0 0
        %1317 = vmatmul.mubr.bf16.gmra.mxu0 %v669
        %v1318 = vpop.f32.mrf.mxu0
        %v1319 = vadd.f32 0.0, %v1318
        %v1320 = vpop.f32.mrf.mxu0
        %v1321 = vpop.f32.mrf.mxu0
        %v1322 = vadd.f32 0.0, %v1321
        %v1323 = vpop.f32.mrf.mxu0
        %1324 = vmatprep.mubr.bf16.mxu0 0
        %1325 = vmatmul.mubr.bf16.gmra.mxu0 %v672
        %v1326 = vpop.f32.mrf.mxu0
        %v1327 = vadd.f32 0.0, %v1326
        %v1328 = vpop.f32.mrf.mxu0
        %v1329 = vpop.f32.mrf.mxu0
        %v1330 = vadd.f32 0.0, %v1329
        %v1331 = vpop.f32.mrf.mxu0
        %1332 = vmatprep.mubr.bf16.mxu0 0
        %1333 = vmatmul.mubr.bf16.gmra.mxu0 %v675
        %v1334 = vpop.f32.mrf.mxu0
        %v1335 = vadd.f32 0.0, %v1334
        %v1336 = vpop.f32.mrf.mxu0
        %v1337 = vpop.f32.mrf.mxu0
        %v1338 = vadd.f32 0.0, %v1337
        %v1339 = vpop.f32.mrf.mxu0
        %1340 = vmatprep.mubr.bf16.mxu0 0
        %1341 = vmatmul.mubr.bf16.gmra.mxu0 %v678
        %v1342 = vpop.f32.mrf.mxu0
        %v1343 = vadd.f32 0.0, %v1342
        %v1344 = vpop.f32.mrf.mxu0
        %v1345 = vpop.f32.mrf.mxu0
        %v1346 = vadd.f32 0.0, %v1345
        %v1347 = vpop.f32.mrf.mxu0
        %1348 = vmatprep.mubr.bf16.mxu0 0
        %1349 = vmatmul.mubr.bf16.gmra.mxu0 %v681
        %v1350 = vpop.f32.mrf.mxu0
        %v1351 = vadd.f32 0.0, %v1350
        %v1352 = vpop.f32.mrf.mxu0
        %v1353 = vpop.f32.mrf.mxu0
        %v1354 = vadd.f32 0.0, %v1353
        %v1355 = vpop.f32.mrf.mxu0
        %1356 = vmatprep.mubr.bf16.mxu0 0
        %1357 = vmatmul.mubr.bf16.gmra.mxu0 %v684
        %v1358 = vpop.f32.mrf.mxu0
        %v1359 = vadd.f32 0.0, %v1358
        %v1360 = vpop.f32.mrf.mxu0
        %v1361 = vpop.f32.mrf.mxu0
        %v1362 = vadd.f32 0.0, %v1361
        %v1363 = vpop.f32.mrf.mxu0
        %1364 = vmatprep.mubr.bf16.mxu0 0
        %1365 = vmatmul.mubr.bf16.gmra.mxu0 %v687
        %v1366 = vpop.f32.mrf.mxu0
        %v1367 = vadd.f32 0.0, %v1366
        %v1368 = vpop.f32.mrf.mxu0
        %v1369 = vpop.f32.mrf.mxu0
        %v1370 = vadd.f32 0.0, %v1369
        %v1371 = vpop.f32.mrf.mxu0
        %1372 = vmatprep.mubr.bf16.mxu0 0
        %1373 = vmatmul.mubr.bf16.gmra.mxu0 %v690
        %v1374 = vpop.f32.mrf.mxu0
        %v1375 = vadd.f32 0.0, %v1374
        %v1376 = vpop.f32.mrf.mxu0
        %v1377 = vpop.f32.mrf.mxu0
        %v1378 = vadd.f32 0.0, %v1377
        %v1379 = vpop.f32.mrf.mxu0
        %1380 = vmatprep.mubr.bf16.mxu0 0
        %1381 = vmatmul.mubr.bf16.gmra.mxu0 %v693
        %v1382 = vpop.f32.mrf.mxu0
        %v1383 = vadd.f32 0.0, %v1382
        %v1384 = vpop.f32.mrf.mxu0
        %v1385 = vpop.f32.mrf.mxu0
        %v1386 = vadd.f32 0.0, %v1385
        %v1387 = vpop.f32.mrf.mxu0
        %1388 = vmatprep.mubr.bf16.mxu0 0
        %1389 = vmatmul.mubr.bf16.gmra.mxu0 %v696
        %v1390 = vpop.f32.mrf.mxu0
        %v1391 = vadd.f32 0.0, %v1390
        %v1392 = vpop.f32.mrf.mxu0
        %v1393 = vpop.f32.mrf.mxu0
        %v1394 = vadd.f32 0.0, %v1393
        %v1395 = vpop.f32.mrf.mxu0
        %1396 = vmatprep.mubr.bf16.mxu0 0
        %1397 = vmatmul.mubr.bf16.gmra.mxu0 %v699
        %v1398 = vpop.f32.mrf.mxu0
        %v1399 = vadd.f32 0.0, %v1398
        %v1400 = vpop.f32.mrf.mxu0
        %v1401 = vpop.f32.mrf.mxu0
        %v1402 = vadd.f32 0.0, %v1401
        %v1403 = vpop.f32.mrf.mxu0
        %1404 = vmatprep.mubr.bf16.mxu0 0
        %1405 = vmatmul.mubr.bf16.gmra.mxu0 %v702
        %v1406 = vpop.f32.mrf.mxu0
        %v1407 = vadd.f32 0.0, %v1406
        %v1408 = vpop.f32.mrf.mxu0
        %v1409 = vpop.f32.mrf.mxu0
        %v1410 = vadd.f32 0.0, %v1409
        %v1411 = vpop.f32.mrf.mxu0
        %1412 = vmatprep.mubr.bf16.mxu0 0
        %1413 = vmatmul.mubr.bf16.gmra.mxu0 %v705
        %v1414 = vpop.f32.mrf.mxu0
        %v1415 = vadd.f32 0.0, %v1414
        %v1416 = vpop.f32.mrf.mxu0
        %v1417 = vpop.f32.mrf.mxu0
        %v1418 = vadd.f32 0.0, %v1417
        %v1419 = vpop.f32.mrf.mxu0
        %1420 = vmatprep.mubr.bf16.mxu0 0
        %1421 = vmatmul.mubr.bf16.gmra.mxu0 %v708
        %v1422 = vpop.f32.mrf.mxu0
        %v1423 = vadd.f32 0.0, %v1422
        %v1424 = vpop.f32.mrf.mxu0
        %v1425 = vpop.f32.mrf.mxu0
        %v1426 = vadd.f32 0.0, %v1425
        %v1427 = vpop.f32.mrf.mxu0
        %1428 = vdwg.mxu0
        %s1429 = scalar_lea.vmem %s2, 2
        %v1430 = vld [vmem:[%s1429] sm:$0x1]
        %v1432 = vlaneseq
        %v1433 = vshrl.u32 %v1432, 7
        %v1434 = vsub.s32 0, %v1433
        %v1435 = vrot.slane %v1430, %v1434
        %v1437 = vmul.f32 %v1303, %v1435
        %v1438 = vmul.f32 %v1306, %v1435
        %v1439 = vmul.f32 %v1311, %v1435
        %v1440 = vmul.f32 %v1314, %v1435
        %v1441 = vmul.f32 %v1319, %v1435
        %v1442 = vmul.f32 %v1322, %v1435
        %v1443 = vmul.f32 %v1327, %v1435
        %v1444 = vmul.f32 %v1330, %v1435
        %v1445 = vmul.f32 %v1335, %v1435
        %v1446 = vmul.f32 %v1338, %v1435
        %v1447 = vmul.f32 %v1343, %v1435
        %v1448 = vmul.f32 %v1346, %v1435
        %v1449 = vmul.f32 %v1351, %v1435
        %v1450 = vmul.f32 %v1354, %v1435
        %v1451 = vmul.f32 %v1359, %v1435
        %v1452 = vmul.f32 %v1362, %v1435
        %v1453 = vmul.f32 %v1367, %v1435
        %v1454 = vmul.f32 %v1370, %v1435
        %v1455 = vmul.f32 %v1375, %v1435
        %v1456 = vmul.f32 %v1378, %v1435
        %v1457 = vmul.f32 %v1383, %v1435
        %v1458 = vmul.f32 %v1386, %v1435
        %v1459 = vmul.f32 %v1391, %v1435
        %v1460 = vmul.f32 %v1394, %v1435
        %v1461 = vmul.f32 %v1399, %v1435
        %v1462 = vmul.f32 %v1402, %v1435
        %v1463 = vmul.f32 %v1407, %v1435
        %v1464 = vmul.f32 %v1410, %v1435
        %v1465 = vmul.f32 %v1415, %v1435
        %v1466 = vmul.f32 %v1418, %v1435
        %v1467 = vmul.f32 %v1423, %v1435
        %v1468 = vmul.f32 %v1426, %v1435
        %s1469 = scalar_lea.vmem %s3, 2
        %v1470 = vld [vmem:[%s1469] sm:$0x1]
        %v1472 = vlaneseq
        %v1473 = vshrl.u32 %v1472, 7
        %v1474 = vsub.s32 0, %v1473
        %v1475 = vrot.slane %v1470, %v1474
        %v1477 = vadd.f32 %v1437, %v1475
        %v1478 = vadd.f32 %v1438, %v1475
        %v1479 = vadd.f32 %v1439, %v1475
        %v1480 = vadd.f32 %v1440, %v1475
        %v1481 = vadd.f32 %v1441, %v1475
        %v1482 = vadd.f32 %v1442, %v1475
        %v1483 = vadd.f32 %v1443, %v1475
        %v1484 = vadd.f32 %v1444, %v1475
        %v1485 = vadd.f32 %v1445, %v1475
        %v1486 = vadd.f32 %v1446, %v1475
        %v1487 = vadd.f32 %v1447, %v1475
        %v1488 = vadd.f32 %v1448, %v1475
        %v1489 = vadd.f32 %v1449, %v1475
        %v1490 = vadd.f32 %v1450, %v1475
        %v1491 = vadd.f32 %v1451, %v1475
        %v1492 = vadd.f32 %v1452, %v1475
        %v1493 = vadd.f32 %v1453, %v1475
        %v1494 = vadd.f32 %v1454, %v1475
        %v1495 = vadd.f32 %v1455, %v1475
        %v1496 = vadd.f32 %v1456, %v1475
        %v1497 = vadd.f32 %v1457, %v1475
        %v1498 = vadd.f32 %v1458, %v1475
        %v1499 = vadd.f32 %v1459, %v1475
        %v1500 = vadd.f32 %v1460, %v1475
        %v1501 = vadd.f32 %v1461, %v1475
        %v1502 = vadd.f32 %v1462, %v1475
        %v1503 = vadd.f32 %v1463, %v1475
        %v1504 = vadd.f32 %v1464, %v1475
        %v1505 = vadd.f32 %v1465, %v1475
        %v1506 = vadd.f32 %v1466, %v1475
        %v1507 = vadd.f32 %v1467, %v1475
        %v1508 = vadd.f32 %v1468, %v1475
        %v1509 = vmax.f32 %v1477, 0.0
        %v1510 = vmax.f32 %v1478, 0.0
        %v1511 = vmax.f32 %v1479, 0.0
        %v1512 = vmax.f32 %v1480, 0.0
        %v1513 = vmax.f32 %v1481, 0.0
        %v1514 = vmax.f32 %v1482, 0.0
        %v1515 = vmax.f32 %v1483, 0.0
        %v1516 = vmax.f32 %v1484, 0.0
        %v1517 = vmax.f32 %v1485, 0.0
        %v1518 = vmax.f32 %v1486, 0.0
        %v1519 = vmax.f32 %v1487, 0.0
        %v1520 = vmax.f32 %v1488, 0.0
        %v1521 = vmax.f32 %v1489, 0.0
        %v1522 = vmax.f32 %v1490, 0.0
        %v1523 = vmax.f32 %v1491, 0.0
        %v1524 = vmax.f32 %v1492, 0.0
        %v1525 = vmax.f32 %v1493, 0.0
        %v1526 = vmax.f32 %v1494, 0.0
        %v1527 = vmax.f32 %v1495, 0.0
        %v1528 = vmax.f32 %v1496, 0.0
        %v1529 = vmax.f32 %v1497, 0.0
        %v1530 = vmax.f32 %v1498, 0.0
        %v1531 = vmax.f32 %v1499, 0.0
        %v1532 = vmax.f32 %v1500, 0.0
        %v1533 = vmax.f32 %v1501, 0.0
        %v1534 = vmax.f32 %v1502, 0.0
        %v1535 = vmax.f32 %v1503, 0.0
        %v1536 = vmax.f32 %v1504, 0.0
        %v1537 = vmax.f32 %v1505, 0.0
        %v1538 = vmax.f32 %v1506, 0.0
        %v1539 = vmax.f32 %v1507, 0.0
        %v1540 = vmax.f32 %v1508, 0.0
        %vm1572 = vcmask 1040384
        %v1573 = vrot.slane 0.0, 7
        %v1574 = vsel %vm1572, %v1573, %v1573
        %v1575 = vrot.slane %v1231, 7
        %v1576 = vsel %vm1572, %v1573, %v1575
        %v1577 = vrot.slane %v1232, 7
        %v1578 = vsel %vm1572, %v1575, %v1577
        %v1579 = vrot.slane %v1233, 7
        %v1580 = vsel %vm1572, %v1573, %v1579
        %v1581 = vrot.slane %v1234, 7
        %v1582 = vsel %vm1572, %v1579, %v1581
        %v1583 = vrot.slane %v1235, 7
        %v1584 = vsel %vm1572, %v1573, %v1583
        %v1585 = vrot.slane %v1236, 7
        %v1586 = vsel %vm1572, %v1583, %v1585
        %v1587 = vrot.slane %v1237, 7
        %v1588 = vsel %vm1572, %v1573, %v1587
        %v1589 = vrot.slane %v1238, 7
        %v1590 = vsel %vm1572, %v1587, %v1589
        %v1591 = vrot.slane %v1239, 7
        %v1592 = vsel %vm1572, %v1573, %v1591
        %v1593 = vrot.slane %v1240, 7
        %v1594 = vsel %vm1572, %v1591, %v1593
        %v1595 = vrot.slane %v1241, 7
        %v1596 = vsel %vm1572, %v1573, %v1595
        %v1597 = vrot.slane %v1242, 7
        %v1598 = vsel %vm1572, %v1595, %v1597
        %v1599 = vrot.slane %v1243, 7
        %v1600 = vsel %vm1572, %v1573, %v1599
        %v1601 = vrot.slane %v1244, 7
        %v1602 = vsel %vm1572, %v1599, %v1601
        %v1603 = vrot.slane %v1245, 7
        %v1604 = vsel %vm1572, %v1573, %v1603
        %v1605 = vrot.slane %v1246, 7
        %v1606 = vsel %vm1572, %v1603, %v1605
        %v1607 = vrot.slane %v1247, 7
        %v1608 = vsel %vm1572, %v1573, %v1607
        %v1609 = vrot.slane %v1248, 7
        %v1610 = vsel %vm1572, %v1607, %v1609
        %v1611 = vrot.slane %v1249, 7
        %v1612 = vsel %vm1572, %v1573, %v1611
        %v1613 = vrot.slane %v1250, 7
        %v1614 = vsel %vm1572, %v1611, %v1613
        %v1615 = vrot.slane %v1251, 7
        %v1616 = vsel %vm1572, %v1573, %v1615
        %v1617 = vrot.slane %v1252, 7
        %v1618 = vsel %vm1572, %v1615, %v1617
        %v1619 = vrot.slane %v1253, 7
        %v1620 = vsel %vm1572, %v1573, %v1619
        %v1621 = vrot.slane %v1254, 7
        %v1622 = vsel %vm1572, %v1619, %v1621
        %v1623 = vrot.slane %v1255, 7
        %v1624 = vsel %vm1572, %v1573, %v1623
        %v1625 = vrot.slane %v1256, 7
        %v1626 = vsel %vm1572, %v1623, %v1625
        %v1627 = vrot.slane %v1257, 7
        %v1628 = vsel %vm1572, %v1573, %v1627
        %v1629 = vrot.slane %v1258, 7
        %v1630 = vsel %vm1572, %v1627, %v1629
        %v1631 = vrot.slane %v1259, 7
        %v1632 = vsel %vm1572, %v1573, %v1631
        %v1633 = vrot.slane %v1260, 7
        %v1634 = vsel %vm1572, %v1631, %v1633
        %v1666 = vpack.c.bf16 %v1574, %v1574
        %v1667 = vpack.c.bf16 %v1578, %v1576
        %v1668 = vpack.c.bf16 %v1582, %v1580
        %v1669 = vpack.c.bf16 %v1586, %v1584
        %v1670 = vpack.c.bf16 %v1590, %v1588
        %v1671 = vpack.c.bf16 %v1594, %v1592
        %v1672 = vpack.c.bf16 %v1598, %v1596
        %v1673 = vpack.c.bf16 %v1602, %v1600
        %v1674 = vpack.c.bf16 %v1606, %v1604
        %v1675 = vpack.c.bf16 %v1610, %v1608
        %v1676 = vpack.c.bf16 %v1614, %v1612
        %v1677 = vpack.c.bf16 %v1618, %v1616
        %v1678 = vpack.c.bf16 %v1622, %v1620
        %v1679 = vpack.c.bf16 %v1626, %v1624
        %v1680 = vpack.c.bf16 %v1630, %v1628
        %v1681 = vpack.c.bf16 %v1634, %v1632
        %v1682 = vld [vmem:[%s4] sm:$0xf]
        %v1683 = vld [vmem:[%s4 + $0x4] sm:$0xf]
        %v1684 = vld [vmem:[%s4 + $0x8] sm:$0xf]
        %v1685 = vld [vmem:[%s4 + $0xc] sm:$0xf]
        %v1686 = vpack.c.bf16 0.0, 0.0
        %v1687 = vpack.c.bf16 %v1232, %v1231
        %v1688 = vpack.c.bf16 %v1234, %v1233
        %v1689 = vpack.c.bf16 %v1236, %v1235
        %v1690 = vpack.c.bf16 %v1238, %v1237
        %v1691 = vpack.c.bf16 %v1240, %v1239
        %v1692 = vpack.c.bf16 %v1242, %v1241
        %v1693 = vpack.c.bf16 %v1244, %v1243
        %v1694 = vpack.c.bf16 %v1246, %v1245
        %v1695 = vpack.c.bf16 %v1248, %v1247
        %v1696 = vpack.c.bf16 %v1250, %v1249
        %v1697 = vpack.c.bf16 %v1252, %v1251
        %v1698 = vpack.c.bf16 %v1254, %v1253
        %v1699 = vpack.c.bf16 %v1256, %v1255
        %v1700 = vpack.c.bf16 %v1258, %v1257
        %v1701 = vpack.c.bf16 %v1260, %v1259
        %s1702 = scalar_lea.vmem %s4, 16
        %v1703 = vld [vmem:[%s1702] sm:$0xf]
        %v1704 = vld [vmem:[%s1702 + $0x4] sm:$0xf]
        %v1705 = vld [vmem:[%s1702 + $0x8] sm:$0xf]
        %v1706 = vld [vmem:[%s1702 + $0xc] sm:$0xf]
        %v1711 = vunpack.c.l.b16 %v1703
        %v1712 = vunpack.c.l.b16 %v1704
        %v1713 = vunpack.c.l.b16 %v1705
        %v1714 = vunpack.c.l.b16 %v1706
        %v1715 = vpack.c.b16 %v1712, %v1711
        %v1716 = vpack.c.b16 %v1714, %v1713
        %vm1719 = vcmask 261120
        %v1721 = vsel %vm1719, %v1686, 0
        %v1724 = vsel %vm1719, %v1687, 0
        %v1727 = vsel %vm1719, %v1688, 0
        %v1730 = vsel %vm1719, %v1689, 0
        %v1733 = vsel %vm1719, %v1690, 0
        %v1736 = vsel %vm1719, %v1691, 0
        %v1739 = vsel %vm1719, %v1692, 0
        %v1742 = vsel %vm1719, %v1693, 0
        %v1745 = vsel %vm1719, %v1694, 0
        %v1748 = vsel %vm1719, %v1695, 0
        %v1751 = vsel %vm1719, %v1696, 0
        %v1754 = vsel %vm1719, %v1697, 0
        %v1757 = vsel %vm1719, %v1698, 0
        %v1760 = vsel %vm1719, %v1699, 0
        %v1763 = vsel %vm1719, %v1700, 0
        %v1766 = vsel %vm1719, %v1701, 0
        %1768 = vmatprep.subr.bf16.mxu0 0
        %1769 = vmatpush1.bf16.msra.mxu0 0
        %1770 = vmatprep.subr.bf16.mxu0 0
        %1771 = vmatpush1.bf16.msra.mxu0 0
        %1772 = vmatprep.subr.bf16.mxu0 0
        %1773 = vmatpush1.bf16.msra.mxu0 0
        %1774 = vmatprep.subr.bf16.mxu0 0
        %1775 = vmatpush1.bf16.msra.mxu0 0
        %1776 = vmatprep.subr.bf16.mxu0 0
        %1777 = vmatpush1.bf16.msra.mxu0 0
        %1778 = vmatprep.subr.bf16.mxu0 0
        %1779 = vmatpush1.bf16.msra.mxu0 0
        %1780 = vmatprep.subr.bf16.mxu0 0
        %1781 = vmatpush1.bf16.msra.mxu0 %v1716
        %1782 = vmatprep.subr.bf16.mxu0 0
        %1783 = vmatpush1.bf16.msra.mxu0 %v1715
        %1784 = vmatprep.subr.bf16.mxu0 0
        %1785 = vmatpush2.bf16.msra.mxu0 0
        %1786 = vmatprep.subr.bf16.mxu0 0
        %1787 = vmatpush2.bf16.msra.mxu0 0
        %1788 = vmatprep.subr.bf16.mxu0 0
        %1789 = vmatpush2.bf16.msra.mxu0 0
        %1790 = vmatprep.subr.bf16.mxu0 0
        %1791 = vmatpush2.bf16.msra.mxu0 0
        %1792 = vmatprep.subr.bf16.mxu0 0
        %1793 = vmatpush2.bf16.msra.mxu0 0
        %1794 = vmatprep.subr.bf16.mxu0 0
        %1795 = vmatpush2.bf16.msra.mxu0 0
        %1796 = vmatprep.subr.bf16.mxu0 0
        %1797 = vmatpush2.bf16.msra.mxu0 0
        %1798 = vmatprep.subr.bf16.mxu0 0
        %1799 = vmatpush2.bf16.msra.mxu0 0
        %1800 = vmatprep.mubr.bf16.mxu0 0
        %1801 = vmatmul.mubr.bf16.gmra.mxu0 %v1721
        %v1802 = vpop.f32.mrf.mxu0
        %v1803 = vadd.f32 0.0, %v1802
        %v1804 = vpop.f32.mrf.mxu0
        %v1805 = vpop.f32.mrf.mxu0
        %v1806 = vadd.f32 0.0, %v1805
        %v1807 = vpop.f32.mrf.mxu0
        %1808 = vmatprep.mubr.bf16.mxu0 0
        %1809 = vmatmul.mubr.bf16.gmra.mxu0 %v1724
        %v1810 = vpop.f32.mrf.mxu0
        %v1811 = vadd.f32 0.0, %v1810
        %v1812 = vpop.f32.mrf.mxu0
        %v1813 = vpop.f32.mrf.mxu0
        %v1814 = vadd.f32 0.0, %v1813
        %v1815 = vpop.f32.mrf.mxu0
        %1816 = vmatprep.mubr.bf16.mxu0 0
        %1817 = vmatmul.mubr.bf16.gmra.mxu0 %v1727
        %v1818 = vpop.f32.mrf.mxu0
        %v1819 = vadd.f32 0.0, %v1818
        %v1820 = vpop.f32.mrf.mxu0
        %v1821 = vpop.f32.mrf.mxu0
        %v1822 = vadd.f32 0.0, %v1821
        %v1823 = vpop.f32.mrf.mxu0
        %1824 = vmatprep.mubr.bf16.mxu0 0
        %1825 = vmatmul.mubr.bf16.gmra.mxu0 %v1730
        %v1826 = vpop.f32.mrf.mxu0
        %v1827 = vadd.f32 0.0, %v1826
        %v1828 = vpop.f32.mrf.mxu0
        %v1829 = vpop.f32.mrf.mxu0
        %v1830 = vadd.f32 0.0, %v1829
        %v1831 = vpop.f32.mrf.mxu0
        %1832 = vmatprep.mubr.bf16.mxu0 0
        %1833 = vmatmul.mubr.bf16.gmra.mxu0 %v1733
        %v1834 = vpop.f32.mrf.mxu0
        %v1835 = vadd.f32 0.0, %v1834
        %v1836 = vpop.f32.mrf.mxu0
        %v1837 = vpop.f32.mrf.mxu0
        %v1838 = vadd.f32 0.0, %v1837
        %v1839 = vpop.f32.mrf.mxu0
        %1840 = vmatprep.mubr.bf16.mxu0 0
        %1841 = vmatmul.mubr.bf16.gmra.mxu0 %v1736
        %v1842 = vpop.f32.mrf.mxu0
        %v1843 = vadd.f32 0.0, %v1842
        %v1844 = vpop.f32.mrf.mxu0
        %v1845 = vpop.f32.mrf.mxu0
        %v1846 = vadd.f32 0.0, %v1845
        %v1847 = vpop.f32.mrf.mxu0
        %1848 = vmatprep.mubr.bf16.mxu0 0
        %1849 = vmatmul.mubr.bf16.gmra.mxu0 %v1739
        %v1850 = vpop.f32.mrf.mxu0
        %v1851 = vadd.f32 0.0, %v1850
        %v1852 = vpop.f32.mrf.mxu0
        %v1853 = vpop.f32.mrf.mxu0
        %v1854 = vadd.f32 0.0, %v1853
        %v1855 = vpop.f32.mrf.mxu0
        %1856 = vmatprep.mubr.bf16.mxu0 0
        %1857 = vmatmul.mubr.bf16.gmra.mxu0 %v1742
        %v1858 = vpop.f32.mrf.mxu0
        %v1859 = vadd.f32 0.0, %v1858
        %v1860 = vpop.f32.mrf.mxu0
        %v1861 = vpop.f32.mrf.mxu0
        %v1862 = vadd.f32 0.0, %v1861
        %v1863 = vpop.f32.mrf.mxu0
        %1864 = vmatprep.mubr.bf16.mxu0 0
        %1865 = vmatmul.mubr.bf16.gmra.mxu0 %v1745
        %v1866 = vpop.f32.mrf.mxu0
        %v1867 = vadd.f32 0.0, %v1866
        %v1868 = vpop.f32.mrf.mxu0
        %v1869 = vpop.f32.mrf.mxu0
        %v1870 = vadd.f32 0.0, %v1869
        %v1871 = vpop.f32.mrf.mxu0
        %1872 = vmatprep.mubr.bf16.mxu0 0
        %1873 = vmatmul.mubr.bf16.gmra.mxu0 %v1748
        %v1874 = vpop.f32.mrf.mxu0
        %v1875 = vadd.f32 0.0, %v1874
        %v1876 = vpop.f32.mrf.mxu0
        %v1877 = vpop.f32.mrf.mxu0
        %v1878 = vadd.f32 0.0, %v1877
        %v1879 = vpop.f32.mrf.mxu0
        %1880 = vmatprep.mubr.bf16.mxu0 0
        %1881 = vmatmul.mubr.bf16.gmra.mxu0 %v1751
        %v1882 = vpop.f32.mrf.mxu0
        %v1883 = vadd.f32 0.0, %v1882
        %v1884 = vpop.f32.mrf.mxu0
        %v1885 = vpop.f32.mrf.mxu0
        %v1886 = vadd.f32 0.0, %v1885
        %v1887 = vpop.f32.mrf.mxu0
        %1888 = vmatprep.mubr.bf16.mxu0 0
        %1889 = vmatmul.mubr.bf16.gmra.mxu0 %v1754
        %v1890 = vpop.f32.mrf.mxu0
        %v1891 = vadd.f32 0.0, %v1890
        %v1892 = vpop.f32.mrf.mxu0
        %v1893 = vpop.f32.mrf.mxu0
        %v1894 = vadd.f32 0.0, %v1893
        %v1895 = vpop.f32.mrf.mxu0
        %1896 = vmatprep.mubr.bf16.mxu0 0
        %1897 = vmatmul.mubr.bf16.gmra.mxu0 %v1757
        %v1898 = vpop.f32.mrf.mxu0
        %v1899 = vadd.f32 0.0, %v1898
        %v1900 = vpop.f32.mrf.mxu0
        %v1901 = vpop.f32.mrf.mxu0
        %v1902 = vadd.f32 0.0, %v1901
        %v1903 = vpop.f32.mrf.mxu0
        %1904 = vmatprep.mubr.bf16.mxu0 0
        %1905 = vmatmul.mubr.bf16.gmra.mxu0 %v1760
        %v1906 = vpop.f32.mrf.mxu0
        %v1907 = vadd.f32 0.0, %v1906
        %v1908 = vpop.f32.mrf.mxu0
        %v1909 = vpop.f32.mrf.mxu0
        %v1910 = vadd.f32 0.0, %v1909
        %v1911 = vpop.f32.mrf.mxu0
        %1912 = vmatprep.mubr.bf16.mxu0 0
        %1913 = vmatmul.mubr.bf16.gmra.mxu0 %v1763
        %v1914 = vpop.f32.mrf.mxu0
        %v1915 = vadd.f32 0.0, %v1914
        %v1916 = vpop.f32.mrf.mxu0
        %v1917 = vpop.f32.mrf.mxu0
        %v1918 = vadd.f32 0.0, %v1917
        %v1919 = vpop.f32.mrf.mxu0
        %1920 = vmatprep.mubr.bf16.mxu0 0
        %1921 = vmatmul.mubr.bf16.gmra.mxu0 %v1766
        %v1922 = vpop.f32.mrf.mxu0
        %v1923 = vadd.f32 0.0, %v1922
        %v1924 = vpop.f32.mrf.mxu0
        %v1925 = vpop.f32.mrf.mxu0
        %v1926 = vadd.f32 0.0, %v1925
        %v1927 = vpop.f32.mrf.mxu0
        %1928 = vdwg.mxu0
        %v1933 = vunpack.c.l.b16 %v1682
        %v1934 = vunpack.c.l.b16 %v1683
        %v1935 = vunpack.c.l.b16 %v1684
        %v1936 = vunpack.c.l.b16 %v1685
        %v1937 = vpack.c.b16 %v1934, %v1933
        %v1938 = vpack.c.b16 %v1936, %v1935
        %v1942 = vsel %vm1719, %v1666, 0
        %v1945 = vsel %vm1719, %v1667, 0
        %v1948 = vsel %vm1719, %v1668, 0
        %v1951 = vsel %vm1719, %v1669, 0
        %v1954 = vsel %vm1719, %v1670, 0
        %v1957 = vsel %vm1719, %v1671, 0
        %v1960 = vsel %vm1719, %v1672, 0
        %v1963 = vsel %vm1719, %v1673, 0
        %v1966 = vsel %vm1719, %v1674, 0
        %v1969 = vsel %vm1719, %v1675, 0
        %v1972 = vsel %vm1719, %v1676, 0
        %v1975 = vsel %vm1719, %v1677, 0
        %v1978 = vsel %vm1719, %v1678, 0
        %v1981 = vsel %vm1719, %v1679, 0
        %v1984 = vsel %vm1719, %v1680, 0
        %v1987 = vsel %vm1719, %v1681, 0
        %1989 = vmatprep.subr.bf16.mxu0 0
        %1990 = vmatpush1.bf16.msra.mxu0 0
        %1991 = vmatprep.subr.bf16.mxu0 0
        %1992 = vmatpush1.bf16.msra.mxu0 0
        %1993 = vmatprep.subr.bf16.mxu0 0
        %1994 = vmatpush1.bf16.msra.mxu0 0
        %1995 = vmatprep.subr.bf16.mxu0 0
        %1996 = vmatpush1.bf16.msra.mxu0 0
        %1997 = vmatprep.subr.bf16.mxu0 0
        %1998 = vmatpush1.bf16.msra.mxu0 0
        %1999 = vmatprep.subr.bf16.mxu0 0
        %2000 = vmatpush1.bf16.msra.mxu0 0
        %2001 = vmatprep.subr.bf16.mxu0 0
        %2002 = vmatpush1.bf16.msra.mxu0 %v1938
        %2003 = vmatprep.subr.bf16.mxu0 0
        %2004 = vmatpush1.bf16.msra.mxu0 %v1937
        %2005 = vmatprep.subr.bf16.mxu0 0
        %2006 = vmatpush2.bf16.msra.mxu0 0
        %2007 = vmatprep.subr.bf16.mxu0 0
        %2008 = vmatpush2.bf16.msra.mxu0 0
        %2009 = vmatprep.subr.bf16.mxu0 0
        %2010 = vmatpush2.bf16.msra.mxu0 0
        %2011 = vmatprep.subr.bf16.mxu0 0
        %2012 = vmatpush2.bf16.msra.mxu0 0
        %2013 = vmatprep.subr.bf16.mxu0 0
        %2014 = vmatpush2.bf16.msra.mxu0 0
        %2015 = vmatprep.subr.bf16.mxu0 0
        %2016 = vmatpush2.bf16.msra.mxu0 0
        %2017 = vmatprep.subr.bf16.mxu0 0
        %2018 = vmatpush2.bf16.msra.mxu0 0
        %2019 = vmatprep.subr.bf16.mxu0 0
        %2020 = vmatpush2.bf16.msra.mxu0 0
        %2021 = vmatprep.mubr.bf16.mxu0 0
        %2022 = vmatmul.mubr.bf16.gmra.mxu0 %v1942
        %v2023 = vpop.f32.mrf.mxu0
        %v2024 = vadd.f32 %v1803, %v2023
        %v2025 = vpop.f32.mrf.mxu0
        %v2026 = vpop.f32.mrf.mxu0
        %v2027 = vadd.f32 %v1806, %v2026
        %v2028 = vpop.f32.mrf.mxu0
        %2029 = vmatprep.mubr.bf16.mxu0 0
        %2030 = vmatmul.mubr.bf16.gmra.mxu0 %v1945
        %v2031 = vpop.f32.mrf.mxu0
        %v2032 = vadd.f32 %v1811, %v2031
        %v2033 = vpop.f32.mrf.mxu0
        %v2034 = vpop.f32.mrf.mxu0
        %v2035 = vadd.f32 %v1814, %v2034
        %v2036 = vpop.f32.mrf.mxu0
        %2037 = vmatprep.mubr.bf16.mxu0 0
        %2038 = vmatmul.mubr.bf16.gmra.mxu0 %v1948
        %v2039 = vpop.f32.mrf.mxu0
        %v2040 = vadd.f32 %v1819, %v2039
        %v2041 = vpop.f32.mrf.mxu0
        %v2042 = vpop.f32.mrf.mxu0
        %v2043 = vadd.f32 %v1822, %v2042
        %v2044 = vpop.f32.mrf.mxu0
        %2045 = vmatprep.mubr.bf16.mxu0 0
        %2046 = vmatmul.mubr.bf16.gmra.mxu0 %v1951
        %v2047 = vpop.f32.mrf.mxu0
        %v2048 = vadd.f32 %v1827, %v2047
        %v2049 = vpop.f32.mrf.mxu0
        %v2050 = vpop.f32.mrf.mxu0
        %v2051 = vadd.f32 %v1830, %v2050
        %v2052 = vpop.f32.mrf.mxu0
        %2053 = vmatprep.mubr.bf16.mxu0 0
        %2054 = vmatmul.mubr.bf16.gmra.mxu0 %v1954
        %v2055 = vpop.f32.mrf.mxu0
        %v2056 = vadd.f32 %v1835, %v2055
        %v2057 = vpop.f32.mrf.mxu0
        %v2058 = vpop.f32.mrf.mxu0
        %v2059 = vadd.f32 %v1838, %v2058
        %v2060 = vpop.f32.mrf.mxu0
        %2061 = vmatprep.mubr.bf16.mxu0 0
        %2062 = vmatmul.mubr.bf16.gmra.mxu0 %v1957
        %v2063 = vpop.f32.mrf.mxu0
        %v2064 = vadd.f32 %v1843, %v2063
        %v2065 = vpop.f32.mrf.mxu0
        %v2066 = vpop.f32.mrf.mxu0
        %v2067 = vadd.f32 %v1846, %v2066
        %v2068 = vpop.f32.mrf.mxu0
        %2069 = vmatprep.mubr.bf16.mxu0 0
        %2070 = vmatmul.mubr.bf16.gmra.mxu0 %v1960
        %v2071 = vpop.f32.mrf.mxu0
        %v2072 = vadd.f32 %v1851, %v2071
        %v2073 = vpop.f32.mrf.mxu0
        %v2074 = vpop.f32.mrf.mxu0
        %v2075 = vadd.f32 %v1854, %v2074
        %v2076 = vpop.f32.mrf.mxu0
        %2077 = vmatprep.mubr.bf16.mxu0 0
        %2078 = vmatmul.mubr.bf16.gmra.mxu0 %v1963
        %v2079 = vpop.f32.mrf.mxu0
        %v2080 = vadd.f32 %v1859, %v2079
        %v2081 = vpop.f32.mrf.mxu0
        %v2082 = vpop.f32.mrf.mxu0
        %v2083 = vadd.f32 %v1862, %v2082
        %v2084 = vpop.f32.mrf.mxu0
        %2085 = vmatprep.mubr.bf16.mxu0 0
        %2086 = vmatmul.mubr.bf16.gmra.mxu0 %v1966
        %v2087 = vpop.f32.mrf.mxu0
        %v2088 = vadd.f32 %v1867, %v2087
        %v2089 = vpop.f32.mrf.mxu0
        %v2090 = vpop.f32.mrf.mxu0
        %v2091 = vadd.f32 %v1870, %v2090
        %v2092 = vpop.f32.mrf.mxu0
        %2093 = vmatprep.mubr.bf16.mxu0 0
        %2094 = vmatmul.mubr.bf16.gmra.mxu0 %v1969
        %v2095 = vpop.f32.mrf.mxu0
        %v2096 = vadd.f32 %v1875, %v2095
        %v2097 = vpop.f32.mrf.mxu0
        %v2098 = vpop.f32.mrf.mxu0
        %v2099 = vadd.f32 %v1878, %v2098
        %v2100 = vpop.f32.mrf.mxu0
        %2101 = vmatprep.mubr.bf16.mxu0 0
        %2102 = vmatmul.mubr.bf16.gmra.mxu0 %v1972
        %v2103 = vpop.f32.mrf.mxu0
        %v2104 = vadd.f32 %v1883, %v2103
        %v2105 = vpop.f32.mrf.mxu0
        %v2106 = vpop.f32.mrf.mxu0
        %v2107 = vadd.f32 %v1886, %v2106
        %v2108 = vpop.f32.mrf.mxu0
        %2109 = vmatprep.mubr.bf16.mxu0 0
        %2110 = vmatmul.mubr.bf16.gmra.mxu0 %v1975
        %v2111 = vpop.f32.mrf.mxu0
        %v2112 = vadd.f32 %v1891, %v2111
        %v2113 = vpop.f32.mrf.mxu0
        %v2114 = vpop.f32.mrf.mxu0
        %v2115 = vadd.f32 %v1894, %v2114
        %v2116 = vpop.f32.mrf.mxu0
        %2117 = vmatprep.mubr.bf16.mxu0 0
        %2118 = vmatmul.mubr.bf16.gmra.mxu0 %v1978
        %v2119 = vpop.f32.mrf.mxu0
        %v2120 = vadd.f32 %v1899, %v2119
        %v2121 = vpop.f32.mrf.mxu0
        %v2122 = vpop.f32.mrf.mxu0
        %v2123 = vadd.f32 %v1902, %v2122
        %v2124 = vpop.f32.mrf.mxu0
        %2125 = vmatprep.mubr.bf16.mxu0 0
        %2126 = vmatmul.mubr.bf16.gmra.mxu0 %v1981
        %v2127 = vpop.f32.mrf.mxu0
        %v2128 = vadd.f32 %v1907, %v2127
        %v2129 = vpop.f32.mrf.mxu0
        %v2130 = vpop.f32.mrf.mxu0
        %v2131 = vadd.f32 %v1910, %v2130
        %v2132 = vpop.f32.mrf.mxu0
        %2133 = vmatprep.mubr.bf16.mxu0 0
        %2134 = vmatmul.mubr.bf16.gmra.mxu0 %v1984
        %v2135 = vpop.f32.mrf.mxu0
        %v2136 = vadd.f32 %v1915, %v2135
        %v2137 = vpop.f32.mrf.mxu0
        %v2138 = vpop.f32.mrf.mxu0
        %v2139 = vadd.f32 %v1918, %v2138
        %v2140 = vpop.f32.mrf.mxu0
        %2141 = vmatprep.mubr.bf16.mxu0 0
        %2142 = vmatmul.mubr.bf16.gmra.mxu0 %v1987
        %v2143 = vpop.f32.mrf.mxu0
        %v2144 = vadd.f32 %v1923, %v2143
        %v2145 = vpop.f32.mrf.mxu0
        %v2146 = vpop.f32.mrf.mxu0
        %v2147 = vadd.f32 %v1926, %v2146
        %v2148 = vpop.f32.mrf.mxu0
        %2149 = vdwg.mxu0
        %vm2150 = vcmask 1046528
        %v2151 = vrot.slane 0.0, 1
        %v2152 = vsel %vm2150, %v2151, %v2151
        %v2153 = vrot.slane %v1231, 1
        %v2154 = vrot.slane %v1232, 1
        %v2155 = vsel %vm2150, %v2153, %v2154
        %v2156 = vsel %vm2150, %v2154, %v2151
        %v2157 = vrot.slane %v1233, 1
        %v2158 = vrot.slane %v1234, 1
        %v2159 = vsel %vm2150, %v2157, %v2158
        %v2160 = vsel %vm2150, %v2158, %v2151
        %v2161 = vrot.slane %v1235, 1
        %v2162 = vrot.slane %v1236, 1
        %v2163 = vsel %vm2150, %v2161, %v2162
        %v2164 = vsel %vm2150, %v2162, %v2151
        %v2165 = vrot.slane %v1237, 1
        %v2166 = vrot.slane %v1238, 1
        %v2167 = vsel %vm2150, %v2165, %v2166
        %v2168 = vsel %vm2150, %v2166, %v2151
        %v2169 = vrot.slane %v1239, 1
        %v2170 = vrot.slane %v1240, 1
        %v2171 = vsel %vm2150, %v2169, %v2170
        %v2172 = vsel %vm2150, %v2170, %v2151
        %v2173 = vrot.slane %v1241, 1
        %v2174 = vrot.slane %v1242, 1
        %v2175 = vsel %vm2150, %v2173, %v2174
        %v2176 = vsel %vm2150, %v2174, %v2151
        %v2177 = vrot.slane %v1243, 1
        %v2178 = vrot.slane %v1244, 1
        %v2179 = vsel %vm2150, %v2177, %v2178
        %v2180 = vsel %vm2150, %v2178, %v2151
        %v2181 = vrot.slane %v1245, 1
        %v2182 = vrot.slane %v1246, 1
        %v2183 = vsel %vm2150, %v2181, %v2182
        %v2184 = vsel %vm2150, %v2182, %v2151
        %v2185 = vrot.slane %v1247, 1
        %v2186 = vrot.slane %v1248, 1
        %v2187 = vsel %vm2150, %v2185, %v2186
        %v2188 = vsel %vm2150, %v2186, %v2151
        %v2189 = vrot.slane %v1249, 1
        %v2190 = vrot.slane %v1250, 1
        %v2191 = vsel %vm2150, %v2189, %v2190
        %v2192 = vsel %vm2150, %v2190, %v2151
        %v2193 = vrot.slane %v1251, 1
        %v2194 = vrot.slane %v1252, 1
        %v2195 = vsel %vm2150, %v2193, %v2194
        %v2196 = vsel %vm2150, %v2194, %v2151
        %v2197 = vrot.slane %v1253, 1
        %v2198 = vrot.slane %v1254, 1
        %v2199 = vsel %vm2150, %v2197, %v2198
        %v2200 = vsel %vm2150, %v2198, %v2151
        %v2201 = vrot.slane %v1255, 1
        %v2202 = vrot.slane %v1256, 1
        %v2203 = vsel %vm2150, %v2201, %v2202
        %v2204 = vsel %vm2150, %v2202, %v2151
        %v2205 = vrot.slane %v1257, 1
        %v2206 = vrot.slane %v1258, 1
        %v2207 = vsel %vm2150, %v2205, %v2206
        %v2208 = vsel %vm2150, %v2206, %v2151
        %v2209 = vrot.slane %v1259, 1
        %v2210 = vrot.slane %v1260, 1
        %v2211 = vsel %vm2150, %v2209, %v2210
        %v2212 = vsel %vm2150, %v2210, %v2151
        %v2244 = vpack.c.bf16 %v2152, %v2152
        %v2245 = vpack.c.bf16 %v2156, %v2155
        %v2246 = vpack.c.bf16 %v2160, %v2159
        %v2247 = vpack.c.bf16 %v2164, %v2163
        %v2248 = vpack.c.bf16 %v2168, %v2167
        %v2249 = vpack.c.bf16 %v2172, %v2171
        %v2250 = vpack.c.bf16 %v2176, %v2175
        %v2251 = vpack.c.bf16 %v2180, %v2179
        %v2252 = vpack.c.bf16 %v2184, %v2183
        %v2253 = vpack.c.bf16 %v2188, %v2187
        %v2254 = vpack.c.bf16 %v2192, %v2191
        %v2255 = vpack.c.bf16 %v2196, %v2195
        %v2256 = vpack.c.bf16 %v2200, %v2199
        %v2257 = vpack.c.bf16 %v2204, %v2203
        %v2258 = vpack.c.bf16 %v2208, %v2207
        %v2259 = vpack.c.bf16 %v2212, %v2211
        %s2260 = scalar_lea.vmem %s4, 32
        %v2261 = vld [vmem:[%s2260] sm:$0xf]
        %v2262 = vld [vmem:[%s2260 + $0x4] sm:$0xf]
        %v2263 = vld [vmem:[%s2260 + $0x8] sm:$0xf]
        %v2264 = vld [vmem:[%s2260 + $0xc] sm:$0xf]
        %v2269 = vunpack.c.l.b16 %v2261
        %v2270 = vunpack.c.l.b16 %v2262
        %v2271 = vunpack.c.l.b16 %v2263
        %v2272 = vunpack.c.l.b16 %v2264
        %v2273 = vpack.c.b16 %v2270, %v2269
        %v2274 = vpack.c.b16 %v2272, %v2271
        %v2278 = vsel %vm1719, %v2244, 0
        %v2281 = vsel %vm1719, %v2245, 0
        %v2284 = vsel %vm1719, %v2246, 0
        %v2287 = vsel %vm1719, %v2247, 0
        %v2290 = vsel %vm1719, %v2248, 0
        %v2293 = vsel %vm1719, %v2249, 0
        %v2296 = vsel %vm1719, %v2250, 0
        %v2299 = vsel %vm1719, %v2251, 0
        %v2302 = vsel %vm1719, %v2252, 0
        %v2305 = vsel %vm1719, %v2253, 0
        %v2308 = vsel %vm1719, %v2254, 0
        %v2311 = vsel %vm1719, %v2255, 0
        %v2314 = vsel %vm1719, %v2256, 0
        %v2317 = vsel %vm1719, %v2257, 0
        %v2320 = vsel %vm1719, %v2258, 0
        %v2323 = vsel %vm1719, %v2259, 0
        %2325 = vmatprep.subr.bf16.mxu0 0
        %2326 = vmatpush1.bf16.msra.mxu0 0
        %2327 = vmatprep.subr.bf16.mxu0 0
        %2328 = vmatpush1.bf16.msra.mxu0 0
        %2329 = vmatprep.subr.bf16.mxu0 0
        %2330 = vmatpush1.bf16.msra.mxu0 0
        %2331 = vmatprep.subr.bf16.mxu0 0
        %2332 = vmatpush1.bf16.msra.mxu0 0
        %2333 = vmatprep.subr.bf16.mxu0 0
        %2334 = vmatpush1.bf16.msra.mxu0 0
        %2335 = vmatprep.subr.bf16.mxu0 0
        %2336 = vmatpush1.bf16.msra.mxu0 0
        %2337 = vmatprep.subr.bf16.mxu0 0
        %2338 = vmatpush1.bf16.msra.mxu0 %v2274
        %2339 = vmatprep.subr.bf16.mxu0 0
        %2340 = vmatpush1.bf16.msra.mxu0 %v2273
        %2341 = vmatprep.subr.bf16.mxu0 0
        %2342 = vmatpush2.bf16.msra.mxu0 0
        %2343 = vmatprep.subr.bf16.mxu0 0
        %2344 = vmatpush2.bf16.msra.mxu0 0
        %2345 = vmatprep.subr.bf16.mxu0 0
        %2346 = vmatpush2.bf16.msra.mxu0 0
        %2347 = vmatprep.subr.bf16.mxu0 0
        %2348 = vmatpush2.bf16.msra.mxu0 0
        %2349 = vmatprep.subr.bf16.mxu0 0
        %2350 = vmatpush2.bf16.msra.mxu0 0
        %2351 = vmatprep.subr.bf16.mxu0 0
        %2352 = vmatpush2.bf16.msra.mxu0 0
        %2353 = vmatprep.subr.bf16.mxu0 0
        %2354 = vmatpush2.bf16.msra.mxu0 0
        %2355 = vmatprep.subr.bf16.mxu0 0
        %2356 = vmatpush2.bf16.msra.mxu0 0
        %2357 = vmatprep.mubr.bf16.mxu0 0
        %2358 = vmatmul.mubr.bf16.gmra.mxu0 %v2278
        %v2359 = vpop.f32.mrf.mxu0
        %v2360 = vadd.f32 0.0, %v2359
        %v2361 = vpop.f32.mrf.mxu0
        %v2362 = vpop.f32.mrf.mxu0
        %v2363 = vadd.f32 0.0, %v2362
        %v2364 = vpop.f32.mrf.mxu0
        %2365 = vmatprep.mubr.bf16.mxu0 0
        %2366 = vmatmul.mubr.bf16.gmra.mxu0 %v2281
        %v2367 = vpop.f32.mrf.mxu0
        %v2368 = vadd.f32 0.0, %v2367
        %v2369 = vpop.f32.mrf.mxu0
        %v2370 = vpop.f32.mrf.mxu0
        %v2371 = vadd.f32 0.0, %v2370
        %v2372 = vpop.f32.mrf.mxu0
        %2373 = vmatprep.mubr.bf16.mxu0 0
        %2374 = vmatmul.mubr.bf16.gmra.mxu0 %v2284
        %v2375 = vpop.f32.mrf.mxu0
        %v2376 = vadd.f32 0.0, %v2375
        %v2377 = vpop.f32.mrf.mxu0
        %v2378 = vpop.f32.mrf.mxu0
        %v2379 = vadd.f32 0.0, %v2378
        %v2380 = vpop.f32.mrf.mxu0
        %2381 = vmatprep.mubr.bf16.mxu0 0
        %2382 = vmatmul.mubr.bf16.gmra.mxu0 %v2287
        %v2383 = vpop.f32.mrf.mxu0
        %v2384 = vadd.f32 0.0, %v2383
        %v2385 = vpop.f32.mrf.mxu0
        %v2386 = vpop.f32.mrf.mxu0
        %v2387 = vadd.f32 0.0, %v2386
        %v2388 = vpop.f32.mrf.mxu0
        %2389 = vmatprep.mubr.bf16.mxu0 0
        %2390 = vmatmul.mubr.bf16.gmra.mxu0 %v2290
        %v2391 = vpop.f32.mrf.mxu0
        %v2392 = vadd.f32 0.0, %v2391
        %v2393 = vpop.f32.mrf.mxu0
        %v2394 = vpop.f32.mrf.mxu0
        %v2395 = vadd.f32 0.0, %v2394
        %v2396 = vpop.f32.mrf.mxu0
        %2397 = vmatprep.mubr.bf16.mxu0 0
        %2398 = vmatmul.mubr.bf16.gmra.mxu0 %v2293
        %v2399 = vpop.f32.mrf.mxu0
        %v2400 = vadd.f32 0.0, %v2399
        %v2401 = vpop.f32.mrf.mxu0
        %v2402 = vpop.f32.mrf.mxu0
        %v2403 = vadd.f32 0.0, %v2402
        %v2404 = vpop.f32.mrf.mxu0
        %2405 = vmatprep.mubr.bf16.mxu0 0
        %2406 = vmatmul.mubr.bf16.gmra.mxu0 %v2296
        %v2407 = vpop.f32.mrf.mxu0
        %v2408 = vadd.f32 0.0, %v2407
        %v2409 = vpop.f32.mrf.mxu0
        %v2410 = vpop.f32.mrf.mxu0
        %v2411 = vadd.f32 0.0, %v2410
        %v2412 = vpop.f32.mrf.mxu0
        %2413 = vmatprep.mubr.bf16.mxu0 0
        %2414 = vmatmul.mubr.bf16.gmra.mxu0 %v2299
        %v2415 = vpop.f32.mrf.mxu0
        %v2416 = vadd.f32 0.0, %v2415
        %v2417 = vpop.f32.mrf.mxu0
        %v2418 = vpop.f32.mrf.mxu0
        %v2419 = vadd.f32 0.0, %v2418
        %v2420 = vpop.f32.mrf.mxu0
        %2421 = vmatprep.mubr.bf16.mxu0 0
        %2422 = vmatmul.mubr.bf16.gmra.mxu0 %v2302
        %v2423 = vpop.f32.mrf.mxu0
        %v2424 = vadd.f32 0.0, %v2423
        %v2425 = vpop.f32.mrf.mxu0
        %v2426 = vpop.f32.mrf.mxu0
        %v2427 = vadd.f32 0.0, %v2426
        %v2428 = vpop.f32.mrf.mxu0
        %2429 = vmatprep.mubr.bf16.mxu0 0
        %2430 = vmatmul.mubr.bf16.gmra.mxu0 %v2305
        %v2431 = vpop.f32.mrf.mxu0
        %v2432 = vadd.f32 0.0, %v2431
        %v2433 = vpop.f32.mrf.mxu0
        %v2434 = vpop.f32.mrf.mxu0
        %v2435 = vadd.f32 0.0, %v2434
        %v2436 = vpop.f32.mrf.mxu0
        %2437 = vmatprep.mubr.bf16.mxu0 0
        %2438 = vmatmul.mubr.bf16.gmra.mxu0 %v2308
        %v2439 = vpop.f32.mrf.mxu0
        %v2440 = vadd.f32 0.0, %v2439
        %v2441 = vpop.f32.mrf.mxu0
        %v2442 = vpop.f32.mrf.mxu0
        %v2443 = vadd.f32 0.0, %v2442
        %v2444 = vpop.f32.mrf.mxu0
        %2445 = vmatprep.mubr.bf16.mxu0 0
        %2446 = vmatmul.mubr.bf16.gmra.mxu0 %v2311
        %v2447 = vpop.f32.mrf.mxu0
        %v2448 = vadd.f32 0.0, %v2447
        %v2449 = vpop.f32.mrf.mxu0
        %v2450 = vpop.f32.mrf.mxu0
        %v2451 = vadd.f32 0.0, %v2450
        %v2452 = vpop.f32.mrf.mxu0
        %2453 = vmatprep.mubr.bf16.mxu0 0
        %2454 = vmatmul.mubr.bf16.gmra.mxu0 %v2314
        %v2455 = vpop.f32.mrf.mxu0
        %v2456 = vadd.f32 0.0, %v2455
        %v2457 = vpop.f32.mrf.mxu0
        %v2458 = vpop.f32.mrf.mxu0
        %v2459 = vadd.f32 0.0, %v2458
        %v2460 = vpop.f32.mrf.mxu0
        %2461 = vmatprep.mubr.bf16.mxu0 0
        %2462 = vmatmul.mubr.bf16.gmra.mxu0 %v2317
        %v2463 = vpop.f32.mrf.mxu0
        %v2464 = vadd.f32 0.0, %v2463
        %v2465 = vpop.f32.mrf.mxu0
        %v2466 = vpop.f32.mrf.mxu0
        %v2467 = vadd.f32 0.0, %v2466
        %v2468 = vpop.f32.mrf.mxu0
        %2469 = vmatprep.mubr.bf16.mxu0 0
        %2470 = vmatmul.mubr.bf16.gmra.mxu0 %v2320
        %v2471 = vpop.f32.mrf.mxu0
        %v2472 = vadd.f32 0.0, %v2471
        %v2473 = vpop.f32.mrf.mxu0
        %v2474 = vpop.f32.mrf.mxu0
        %v2475 = vadd.f32 0.0, %v2474
        %v2476 = vpop.f32.mrf.mxu0
        %2477 = vmatprep.mubr.bf16.mxu0 0
        %2478 = vmatmul.mubr.bf16.gmra.mxu0 %v2323
        %v2479 = vpop.f32.mrf.mxu0
        %v2480 = vadd.f32 0.0, %v2479
        %v2481 = vpop.f32.mrf.mxu0
        %v2482 = vpop.f32.mrf.mxu0
        %v2483 = vadd.f32 0.0, %v2482
        %v2484 = vpop.f32.mrf.mxu0
        %2485 = vdwg.mxu0
        %v2486 = vadd.f32 %v2024, %v2360
        %v2487 = vadd.f32 %v2027, %v2363
        %v2488 = vadd.f32 %v2032, %v2368
        %v2489 = vadd.f32 %v2035, %v2371
        %v2490 = vadd.f32 %v2040, %v2376
        %v2491 = vadd.f32 %v2043, %v2379
        %v2492 = vadd.f32 %v2048, %v2384
        %v2493 = vadd.f32 %v2051, %v2387
        %v2494 = vadd.f32 %v2056, %v2392
        %v2495 = vadd.f32 %v2059, %v2395
        %v2496 = vadd.f32 %v2064, %v2400
        %v2497 = vadd.f32 %v2067, %v2403
        %v2498 = vadd.f32 %v2072, %v2408
        %v2499 = vadd.f32 %v2075, %v2411
        %v2500 = vadd.f32 %v2080, %v2416
        %v2501 = vadd.f32 %v2083, %v2419
        %v2502 = vadd.f32 %v2088, %v2424
        %v2503 = vadd.f32 %v2091, %v2427
        %v2504 = vadd.f32 %v2096, %v2432
        %v2505 = vadd.f32 %v2099, %v2435
        %v2506 = vadd.f32 %v2104, %v2440
        %v2507 = vadd.f32 %v2107, %v2443
        %v2508 = vadd.f32 %v2112, %v2448
        %v2509 = vadd.f32 %v2115, %v2451
        %v2510 = vadd.f32 %v2120, %v2456
        %v2511 = vadd.f32 %v2123, %v2459
        %v2512 = vadd.f32 %v2128, %v2464
        %v2513 = vadd.f32 %v2131, %v2467
        %v2514 = vadd.f32 %v2136, %v2472
        %v2515 = vadd.f32 %v2139, %v2475
        %v2516 = vadd.f32 %v2144, %v2480
        %v2517 = vadd.f32 %v2147, %v2483
        %v2520 = vrot.slane %v1261, 7
        %v2521 = vsel %vm1572, %v1573, %v2520
        %v2522 = vrot.slane %v1262, 7
        %v2523 = vsel %vm1572, %v2520, %v2522
        %v2526 = vpack.c.bf16 %v2523, %v2521
        %s2527 = scalar_lea.vmem %s4, 48
        %v2528 = vld [vmem:[%s2527] sm:$0xf]
        %v2529 = vld [vmem:[%s2527 + $0x4] sm:$0xf]
        %v2530 = vld [vmem:[%s2527 + $0x8] sm:$0xf]
        %v2531 = vld [vmem:[%s2527 + $0xc] sm:$0xf]
        %v2536 = vunpack.c.l.b16 %v2528
        %v2537 = vunpack.c.l.b16 %v2529
        %v2538 = vunpack.c.l.b16 %v2530
        %v2539 = vunpack.c.l.b16 %v2531
        %v2540 = vpack.c.b16 %v2537, %v2536
        %v2541 = vpack.c.b16 %v2539, %v2538
        %v2545 = vsel %vm1719, %v2526, 0
        %2547 = vmatprep.subr.bf16.mxu0 0
        %2548 = vmatpush1.bf16.msra.mxu0 0
        %2549 = vmatprep.subr.bf16.mxu0 0
        %2550 = vmatpush1.bf16.msra.mxu0 0
        %2551 = vmatprep.subr.bf16.mxu0 0
        %2552 = vmatpush1.bf16.msra.mxu0 0
        %2553 = vmatprep.subr.bf16.mxu0 0
        %2554 = vmatpush1.bf16.msra.mxu0 0
        %2555 = vmatprep.subr.bf16.mxu0 0
        %2556 = vmatpush1.bf16.msra.mxu0 0
        %2557 = vmatprep.subr.bf16.mxu0 0
        %2558 = vmatpush1.bf16.msra.mxu0 0
        %2559 = vmatprep.subr.bf16.mxu0 0
        %2560 = vmatpush1.bf16.msra.mxu0 %v2541
        %2561 = vmatprep.subr.bf16.mxu0 0
        %2562 = vmatpush1.bf16.msra.mxu0 %v2540
        %2563 = vmatprep.subr.bf16.mxu0 0
        %2564 = vmatpush2.bf16.msra.mxu0 0
        %2565 = vmatprep.subr.bf16.mxu0 0
        %2566 = vmatpush2.bf16.msra.mxu0 0
        %2567 = vmatprep.subr.bf16.mxu0 0
        %2568 = vmatpush2.bf16.msra.mxu0 0
        %2569 = vmatprep.subr.bf16.mxu0 0
        %2570 = vmatpush2.bf16.msra.mxu0 0
        %2571 = vmatprep.subr.bf16.mxu0 0
        %2572 = vmatpush2.bf16.msra.mxu0 0
        %2573 = vmatprep.subr.bf16.mxu0 0
        %2574 = vmatpush2.bf16.msra.mxu0 0
        %2575 = vmatprep.subr.bf16.mxu0 0
        %2576 = vmatpush2.bf16.msra.mxu0 0
        %2577 = vmatprep.subr.bf16.mxu0 0
        %2578 = vmatpush2.bf16.msra.mxu0 0
        %2579 = vmatprep.mubr.bf16.mxu0 0
        %2580 = vmatmul.mubr.bf16.gmra.mxu0 %v1945
        %v2581 = vpop.f32.mrf.mxu0
        %v2582 = vadd.f32 0.0, %v2581
        %v2583 = vpop.f32.mrf.mxu0
        %v2584 = vpop.f32.mrf.mxu0
        %v2585 = vadd.f32 0.0, %v2584
        %v2586 = vpop.f32.mrf.mxu0
        %2587 = vmatprep.mubr.bf16.mxu0 0
        %2588 = vmatmul.mubr.bf16.gmra.mxu0 %v1948
        %v2589 = vpop.f32.mrf.mxu0
        %v2590 = vadd.f32 0.0, %v2589
        %v2591 = vpop.f32.mrf.mxu0
        %v2592 = vpop.f32.mrf.mxu0
        %v2593 = vadd.f32 0.0, %v2592
        %v2594 = vpop.f32.mrf.mxu0
        %2595 = vmatprep.mubr.bf16.mxu0 0
        %2596 = vmatmul.mubr.bf16.gmra.mxu0 %v1951
        %v2597 = vpop.f32.mrf.mxu0
        %v2598 = vadd.f32 0.0, %v2597
        %v2599 = vpop.f32.mrf.mxu0
        %v2600 = vpop.f32.mrf.mxu0
        %v2601 = vadd.f32 0.0, %v2600
        %v2602 = vpop.f32.mrf.mxu0
        %2603 = vmatprep.mubr.bf16.mxu0 0
        %2604 = vmatmul.mubr.bf16.gmra.mxu0 %v1954
        %v2605 = vpop.f32.mrf.mxu0
        %v2606 = vadd.f32 0.0, %v2605
        %v2607 = vpop.f32.mrf.mxu0
        %v2608 = vpop.f32.mrf.mxu0
        %v2609 = vadd.f32 0.0, %v2608
        %v2610 = vpop.f32.mrf.mxu0
        %2611 = vmatprep.mubr.bf16.mxu0 0
        %2612 = vmatmul.mubr.bf16.gmra.mxu0 %v1957
        %v2613 = vpop.f32.mrf.mxu0
        %v2614 = vadd.f32 0.0, %v2613
        %v2615 = vpop.f32.mrf.mxu0
        %v2616 = vpop.f32.mrf.mxu0
        %v2617 = vadd.f32 0.0, %v2616
        %v2618 = vpop.f32.mrf.mxu0
        %2619 = vmatprep.mubr.bf16.mxu0 0
        %2620 = vmatmul.mubr.bf16.gmra.mxu0 %v1960
        %v2621 = vpop.f32.mrf.mxu0
        %v2622 = vadd.f32 0.0, %v2621
        %v2623 = vpop.f32.mrf.mxu0
        %v2624 = vpop.f32.mrf.mxu0
        %v2625 = vadd.f32 0.0, %v2624
        %v2626 = vpop.f32.mrf.mxu0
        %2627 = vmatprep.mubr.bf16.mxu0 0
        %2628 = vmatmul.mubr.bf16.gmra.mxu0 %v1963
        %v2629 = vpop.f32.mrf.mxu0
        %v2630 = vadd.f32 0.0, %v2629
        %v2631 = vpop.f32.mrf.mxu0
        %v2632 = vpop.f32.mrf.mxu0
        %v2633 = vadd.f32 0.0, %v2632
        %v2634 = vpop.f32.mrf.mxu0
        %2635 = vmatprep.mubr.bf16.mxu0 0
        %2636 = vmatmul.mubr.bf16.gmra.mxu0 %v1966
        %v2637 = vpop.f32.mrf.mxu0
        %v2638 = vadd.f32 0.0, %v2637
        %v2639 = vpop.f32.mrf.mxu0
        %v2640 = vpop.f32.mrf.mxu0
        %v2641 = vadd.f32 0.0, %v2640
        %v2642 = vpop.f32.mrf.mxu0
        %2643 = vmatprep.mubr.bf16.mxu0 0
        %2644 = vmatmul.mubr.bf16.gmra.mxu0 %v1969
        %v2645 = vpop.f32.mrf.mxu0
        %v2646 = vadd.f32 0.0, %v2645
        %v2647 = vpop.f32.mrf.mxu0
        %v2648 = vpop.f32.mrf.mxu0
        %v2649 = vadd.f32 0.0, %v2648
        %v2650 = vpop.f32.mrf.mxu0
        %2651 = vmatprep.mubr.bf16.mxu0 0
        %2652 = vmatmul.mubr.bf16.gmra.mxu0 %v1972
        %v2653 = vpop.f32.mrf.mxu0
        %v2654 = vadd.f32 0.0, %v2653
        %v2655 = vpop.f32.mrf.mxu0
        %v2656 = vpop.f32.mrf.mxu0
        %v2657 = vadd.f32 0.0, %v2656
        %v2658 = vpop.f32.mrf.mxu0
        %2659 = vmatprep.mubr.bf16.mxu0 0
        %2660 = vmatmul.mubr.bf16.gmra.mxu0 %v1975
        %v2661 = vpop.f32.mrf.mxu0
        %v2662 = vadd.f32 0.0, %v2661
        %v2663 = vpop.f32.mrf.mxu0
        %v2664 = vpop.f32.mrf.mxu0
        %v2665 = vadd.f32 0.0, %v2664
        %v2666 = vpop.f32.mrf.mxu0
        %2667 = vmatprep.mubr.bf16.mxu0 0
        %2668 = vmatmul.mubr.bf16.gmra.mxu0 %v1978
        %v2669 = vpop.f32.mrf.mxu0
        %v2670 = vadd.f32 0.0, %v2669
        %v2671 = vpop.f32.mrf.mxu0
        %v2672 = vpop.f32.mrf.mxu0
        %v2673 = vadd.f32 0.0, %v2672
        %v2674 = vpop.f32.mrf.mxu0
        %2675 = vmatprep.mubr.bf16.mxu0 0
        %2676 = vmatmul.mubr.bf16.gmra.mxu0 %v1981
        %v2677 = vpop.f32.mrf.mxu0
        %v2678 = vadd.f32 0.0, %v2677
        %v2679 = vpop.f32.mrf.mxu0
        %v2680 = vpop.f32.mrf.mxu0
        %v2681 = vadd.f32 0.0, %v2680
        %v2682 = vpop.f32.mrf.mxu0
        %2683 = vmatprep.mubr.bf16.mxu0 0
        %2684 = vmatmul.mubr.bf16.gmra.mxu0 %v1984
        %v2685 = vpop.f32.mrf.mxu0
        %v2686 = vadd.f32 0.0, %v2685
        %v2687 = vpop.f32.mrf.mxu0
        %v2688 = vpop.f32.mrf.mxu0
        %v2689 = vadd.f32 0.0, %v2688
        %v2690 = vpop.f32.mrf.mxu0
        %2691 = vmatprep.mubr.bf16.mxu0 0
        %2692 = vmatmul.mubr.bf16.gmra.mxu0 %v1987
        %v2693 = vpop.f32.mrf.mxu0
        %v2694 = vadd.f32 0.0, %v2693
        %v2695 = vpop.f32.mrf.mxu0
        %v2696 = vpop.f32.mrf.mxu0
        %v2697 = vadd.f32 0.0, %v2696
        %v2698 = vpop.f32.mrf.mxu0
        %2699 = vmatprep.mubr.bf16.mxu0 0
        %2700 = vmatmul.mubr.bf16.gmra.mxu0 %v2545
        %v2701 = vpop.f32.mrf.mxu0
        %v2702 = vadd.f32 0.0, %v2701
        %v2703 = vpop.f32.mrf.mxu0
        %v2704 = vpop.f32.mrf.mxu0
        %v2705 = vadd.f32 0.0, %v2704
        %v2706 = vpop.f32.mrf.mxu0
        %2707 = vdwg.mxu0
        %v2708 = vadd.f32 %v2486, %v2582
        %v2709 = vadd.f32 %v2487, %v2585
        %v2710 = vadd.f32 %v2488, %v2590
        %v2711 = vadd.f32 %v2489, %v2593
        %v2712 = vadd.f32 %v2490, %v2598
        %v2713 = vadd.f32 %v2491, %v2601
        %v2714 = vadd.f32 %v2492, %v2606
        %v2715 = vadd.f32 %v2493, %v2609
        %v2716 = vadd.f32 %v2494, %v2614
        %v2717 = vadd.f32 %v2495, %v2617
        %v2718 = vadd.f32 %v2496, %v2622
        %v2719 = vadd.f32 %v2497, %v2625
        %v2720 = vadd.f32 %v2498, %v2630
        %v2721 = vadd.f32 %v2499, %v2633
        %v2722 = vadd.f32 %v2500, %v2638
        %v2723 = vadd.f32 %v2501, %v2641
        %v2724 = vadd.f32 %v2502, %v2646
        %v2725 = vadd.f32 %v2503, %v2649
        %v2726 = vadd.f32 %v2504, %v2654
        %v2727 = vadd.f32 %v2505, %v2657
        %v2728 = vadd.f32 %v2506, %v2662
        %v2729 = vadd.f32 %v2507, %v2665
        %v2730 = vadd.f32 %v2508, %v2670
        %v2731 = vadd.f32 %v2509, %v2673
        %v2732 = vadd.f32 %v2510, %v2678
        %v2733 = vadd.f32 %v2511, %v2681
        %v2734 = vadd.f32 %v2512, %v2686
        %v2735 = vadd.f32 %v2513, %v2689
        %v2736 = vadd.f32 %v2514, %v2694
        %v2737 = vadd.f32 %v2515, %v2697
        %v2738 = vadd.f32 %v2516, %v2702
        %v2739 = vadd.f32 %v2517, %v2705
        %v2740 = vpack.c.bf16 %v1262, %v1261
        %s2741 = scalar_lea.vmem %s4, 64
        %v2742 = vld [vmem:[%s2741] sm:$0xf]
        %v2743 = vld [vmem:[%s2741 + $0x4] sm:$0xf]
        %v2744 = vld [vmem:[%s2741 + $0x8] sm:$0xf]
        %v2745 = vld [vmem:[%s2741 + $0xc] sm:$0xf]
        %v2750 = vunpack.c.l.b16 %v2742
        %v2751 = vunpack.c.l.b16 %v2743
        %v2752 = vunpack.c.l.b16 %v2744
        %v2753 = vunpack.c.l.b16 %v2745
        %v2754 = vpack.c.b16 %v2751, %v2750
        %v2755 = vpack.c.b16 %v2753, %v2752
        %v2759 = vsel %vm1719, %v2740, 0
        %2761 = vmatprep.subr.bf16.mxu0 0
        %2762 = vmatpush1.bf16.msra.mxu0 0
        %2763 = vmatprep.subr.bf16.mxu0 0
        %2764 = vmatpush1.bf16.msra.mxu0 0
        %2765 = vmatprep.subr.bf16.mxu0 0
        %2766 = vmatpush1.bf16.msra.mxu0 0
        %2767 = vmatprep.subr.bf16.mxu0 0
        %2768 = vmatpush1.bf16.msra.mxu0 0
        %2769 = vmatprep.subr.bf16.mxu0 0
        %2770 = vmatpush1.bf16.msra.mxu0 0
        %2771 = vmatprep.subr.bf16.mxu0 0
        %2772 = vmatpush1.bf16.msra.mxu0 0
        %2773 = vmatprep.subr.bf16.mxu0 0
        %2774 = vmatpush1.bf16.msra.mxu0 %v2755
        %2775 = vmatprep.subr.bf16.mxu0 0
        %2776 = vmatpush1.bf16.msra.mxu0 %v2754
        %2777 = vmatprep.subr.bf16.mxu0 0
        %2778 = vmatpush2.bf16.msra.mxu0 0
        %2779 = vmatprep.subr.bf16.mxu0 0
        %2780 = vmatpush2.bf16.msra.mxu0 0
        %2781 = vmatprep.subr.bf16.mxu0 0
        %2782 = vmatpush2.bf16.msra.mxu0 0
        %2783 = vmatprep.subr.bf16.mxu0 0
        %2784 = vmatpush2.bf16.msra.mxu0 0
        %2785 = vmatprep.subr.bf16.mxu0 0
        %2786 = vmatpush2.bf16.msra.mxu0 0
        %2787 = vmatprep.subr.bf16.mxu0 0
        %2788 = vmatpush2.bf16.msra.mxu0 0
        %2789 = vmatprep.subr.bf16.mxu0 0
        %2790 = vmatpush2.bf16.msra.mxu0 0
        %2791 = vmatprep.subr.bf16.mxu0 0
        %2792 = vmatpush2.bf16.msra.mxu0 0
        %2793 = vmatprep.mubr.bf16.mxu0 0
        %2794 = vmatmul.mubr.bf16.gmra.mxu0 %v1724
        %v2795 = vpop.f32.mrf.mxu0
        %v2796 = vadd.f32 0.0, %v2795
        %v2797 = vpop.f32.mrf.mxu0
        %v2798 = vpop.f32.mrf.mxu0
        %v2799 = vadd.f32 0.0, %v2798
        %v2800 = vpop.f32.mrf.mxu0
        %2801 = vmatprep.mubr.bf16.mxu0 0
        %2802 = vmatmul.mubr.bf16.gmra.mxu0 %v1727
        %v2803 = vpop.f32.mrf.mxu0
        %v2804 = vadd.f32 0.0, %v2803
        %v2805 = vpop.f32.mrf.mxu0
        %v2806 = vpop.f32.mrf.mxu0
        %v2807 = vadd.f32 0.0, %v2806
        %v2808 = vpop.f32.mrf.mxu0
        %2809 = vmatprep.mubr.bf16.mxu0 0
        %2810 = vmatmul.mubr.bf16.gmra.mxu0 %v1730
        %v2811 = vpop.f32.mrf.mxu0
        %v2812 = vadd.f32 0.0, %v2811
        %v2813 = vpop.f32.mrf.mxu0
        %v2814 = vpop.f32.mrf.mxu0
        %v2815 = vadd.f32 0.0, %v2814
        %v2816 = vpop.f32.mrf.mxu0
        %2817 = vmatprep.mubr.bf16.mxu0 0
        %2818 = vmatmul.mubr.bf16.gmra.mxu0 %v1733
        %v2819 = vpop.f32.mrf.mxu0
        %v2820 = vadd.f32 0.0, %v2819
        %v2821 = vpop.f32.mrf.mxu0
        %v2822 = vpop.f32.mrf.mxu0
        %v2823 = vadd.f32 0.0, %v2822
        %v2824 = vpop.f32.mrf.mxu0
        %2825 = vmatprep.mubr.bf16.mxu0 0
        %2826 = vmatmul.mubr.bf16.gmra.mxu0 %v1736
        %v2827 = vpop.f32.mrf.mxu0
        %v2828 = vadd.f32 0.0, %v2827
        %v2829 = vpop.f32.mrf.mxu0
        %v2830 = vpop.f32.mrf.mxu0
        %v2831 = vadd.f32 0.0, %v2830
        %v2832 = vpop.f32.mrf.mxu0
        %2833 = vmatprep.mubr.bf16.mxu0 0
        %2834 = vmatmul.mubr.bf16.gmra.mxu0 %v1739
        %v2835 = vpop.f32.mrf.mxu0
        %v2836 = vadd.f32 0.0, %v2835
        %v2837 = vpop.f32.mrf.mxu0
        %v2838 = vpop.f32.mrf.mxu0
        %v2839 = vadd.f32 0.0, %v2838
        %v2840 = vpop.f32.mrf.mxu0
        %2841 = vmatprep.mubr.bf16.mxu0 0
        %2842 = vmatmul.mubr.bf16.gmra.mxu0 %v1742
        %v2843 = vpop.f32.mrf.mxu0
        %v2844 = vadd.f32 0.0, %v2843
        %v2845 = vpop.f32.mrf.mxu0
        %v2846 = vpop.f32.mrf.mxu0
        %v2847 = vadd.f32 0.0, %v2846
        %v2848 = vpop.f32.mrf.mxu0
        %2849 = vmatprep.mubr.bf16.mxu0 0
        %2850 = vmatmul.mubr.bf16.gmra.mxu0 %v1745
        %v2851 = vpop.f32.mrf.mxu0
        %v2852 = vadd.f32 0.0, %v2851
        %v2853 = vpop.f32.mrf.mxu0
        %v2854 = vpop.f32.mrf.mxu0
        %v2855 = vadd.f32 0.0, %v2854
        %v2856 = vpop.f32.mrf.mxu0
        %2857 = vmatprep.mubr.bf16.mxu0 0
        %2858 = vmatmul.mubr.bf16.gmra.mxu0 %v1748
        %v2859 = vpop.f32.mrf.mxu0
        %v2860 = vadd.f32 0.0, %v2859
        %v2861 = vpop.f32.mrf.mxu0
        %v2862 = vpop.f32.mrf.mxu0
        %v2863 = vadd.f32 0.0, %v2862
        %v2864 = vpop.f32.mrf.mxu0
        %2865 = vmatprep.mubr.bf16.mxu0 0
        %2866 = vmatmul.mubr.bf16.gmra.mxu0 %v1751
        %v2867 = vpop.f32.mrf.mxu0
        %v2868 = vadd.f32 0.0, %v2867
        %v2869 = vpop.f32.mrf.mxu0
        %v2870 = vpop.f32.mrf.mxu0
        %v2871 = vadd.f32 0.0, %v2870
        %v2872 = vpop.f32.mrf.mxu0
        %2873 = vmatprep.mubr.bf16.mxu0 0
        %2874 = vmatmul.mubr.bf16.gmra.mxu0 %v1754
        %v2875 = vpop.f32.mrf.mxu0
        %v2876 = vadd.f32 0.0, %v2875
        %v2877 = vpop.f32.mrf.mxu0
        %v2878 = vpop.f32.mrf.mxu0
        %v2879 = vadd.f32 0.0, %v2878
        %v2880 = vpop.f32.mrf.mxu0
        %2881 = vmatprep.mubr.bf16.mxu0 0
        %2882 = vmatmul.mubr.bf16.gmra.mxu0 %v1757
        %v2883 = vpop.f32.mrf.mxu0
        %v2884 = vadd.f32 0.0, %v2883
        %v2885 = vpop.f32.mrf.mxu0
        %v2886 = vpop.f32.mrf.mxu0
        %v2887 = vadd.f32 0.0, %v2886
        %v2888 = vpop.f32.mrf.mxu0
        %2889 = vmatprep.mubr.bf16.mxu0 0
        %2890 = vmatmul.mubr.bf16.gmra.mxu0 %v1760
        %v2891 = vpop.f32.mrf.mxu0
        %v2892 = vadd.f32 0.0, %v2891
        %v2893 = vpop.f32.mrf.mxu0
        %v2894 = vpop.f32.mrf.mxu0
        %v2895 = vadd.f32 0.0, %v2894
        %v2896 = vpop.f32.mrf.mxu0
        %2897 = vmatprep.mubr.bf16.mxu0 0
        %2898 = vmatmul.mubr.bf16.gmra.mxu0 %v1763
        %v2899 = vpop.f32.mrf.mxu0
        %v2900 = vadd.f32 0.0, %v2899
        %v2901 = vpop.f32.mrf.mxu0
        %v2902 = vpop.f32.mrf.mxu0
        %v2903 = vadd.f32 0.0, %v2902
        %v2904 = vpop.f32.mrf.mxu0
        %2905 = vmatprep.mubr.bf16.mxu0 0
        %2906 = vmatmul.mubr.bf16.gmra.mxu0 %v1766
        %v2907 = vpop.f32.mrf.mxu0
        %v2908 = vadd.f32 0.0, %v2907
        %v2909 = vpop.f32.mrf.mxu0
        %v2910 = vpop.f32.mrf.mxu0
        %v2911 = vadd.f32 0.0, %v2910
        %v2912 = vpop.f32.mrf.mxu0
        %2913 = vmatprep.mubr.bf16.mxu0 0
        %2914 = vmatmul.mubr.bf16.gmra.mxu0 %v2759
        %v2915 = vpop.f32.mrf.mxu0
        %v2916 = vadd.f32 0.0, %v2915
        %v2917 = vpop.f32.mrf.mxu0
        %v2918 = vpop.f32.mrf.mxu0
        %v2919 = vadd.f32 0.0, %v2918
        %v2920 = vpop.f32.mrf.mxu0
        %2921 = vdwg.mxu0
        %v2922 = vadd.f32 %v2708, %v2796
        %v2923 = vadd.f32 %v2709, %v2799
        %v2924 = vadd.f32 %v2710, %v2804
        %v2925 = vadd.f32 %v2711, %v2807
        %v2926 = vadd.f32 %v2712, %v2812
        %v2927 = vadd.f32 %v2713, %v2815
        %v2928 = vadd.f32 %v2714, %v2820
        %v2929 = vadd.f32 %v2715, %v2823
        %v2930 = vadd.f32 %v2716, %v2828
        %v2931 = vadd.f32 %v2717, %v2831
        %v2932 = vadd.f32 %v2718, %v2836
        %v2933 = vadd.f32 %v2719, %v2839
        %v2934 = vadd.f32 %v2720, %v2844
        %v2935 = vadd.f32 %v2721, %v2847
        %v2936 = vadd.f32 %v2722, %v2852
        %v2937 = vadd.f32 %v2723, %v2855
        %v2938 = vadd.f32 %v2724, %v2860
        %v2939 = vadd.f32 %v2725, %v2863
        %v2940 = vadd.f32 %v2726, %v2868
        %v2941 = vadd.f32 %v2727, %v2871
        %v2942 = vadd.f32 %v2728, %v2876
        %v2943 = vadd.f32 %v2729, %v2879
        %v2944 = vadd.f32 %v2730, %v2884
        %v2945 = vadd.f32 %v2731, %v2887
        %v2946 = vadd.f32 %v2732, %v2892
        %v2947 = vadd.f32 %v2733, %v2895
        %v2948 = vadd.f32 %v2734, %v2900
        %v2949 = vadd.f32 %v2735, %v2903
        %v2950 = vadd.f32 %v2736, %v2908
        %v2951 = vadd.f32 %v2737, %v2911
        %v2952 = vadd.f32 %v2738, %v2916
        %v2953 = vadd.f32 %v2739, %v2919
        %v2954 = vrot.slane %v1261, 1
        %v2955 = vrot.slane %v1262, 1
        %v2956 = vsel %vm2150, %v2954, %v2955
        %v2957 = vsel %vm2150, %v2955, %v2151
        %v2960 = vpack.c.bf16 %v2957, %v2956
        %s2961 = scalar_lea.vmem %s4, 80
        %v2962 = vld [vmem:[%s2961] sm:$0xf]
        %v2963 = vld [vmem:[%s2961 + $0x4] sm:$0xf]
        %v2964 = vld [vmem:[%s2961 + $0x8] sm:$0xf]
        %v2965 = vld [vmem:[%s2961 + $0xc] sm:$0xf]
        %v2970 = vunpack.c.l.b16 %v2962
        %v2971 = vunpack.c.l.b16 %v2963
        %v2972 = vunpack.c.l.b16 %v2964
        %v2973 = vunpack.c.l.b16 %v2965
        %v2974 = vpack.c.b16 %v2971, %v2970
        %v2975 = vpack.c.b16 %v2973, %v2972
        %v2979 = vsel %vm1719, %v2960, 0
        %2981 = vmatprep.subr.bf16.mxu0 0
        %2982 = vmatpush1.bf16.msra.mxu0 0
        %2983 = vmatprep.subr.bf16.mxu0 0
        %2984 = vmatpush1.bf16.msra.mxu0 0
        %2985 = vmatprep.subr.bf16.mxu0 0
        %2986 = vmatpush1.bf16.msra.mxu0 0
        %2987 = vmatprep.subr.bf16.mxu0 0
        %2988 = vmatpush1.bf16.msra.mxu0 0
        %2989 = vmatprep.subr.bf16.mxu0 0
        %2990 = vmatpush1.bf16.msra.mxu0 0
        %2991 = vmatprep.subr.bf16.mxu0 0
        %2992 = vmatpush1.bf16.msra.mxu0 0
        %2993 = vmatprep.subr.bf16.mxu0 0
        %2994 = vmatpush1.bf16.msra.mxu0 %v2975
        %2995 = vmatprep.subr.bf16.mxu0 0
        %2996 = vmatpush1.bf16.msra.mxu0 %v2974
        %2997 = vmatprep.subr.bf16.mxu0 0
        %2998 = vmatpush2.bf16.msra.mxu0 0
        %2999 = vmatprep.subr.bf16.mxu0 0
        %3000 = vmatpush2.bf16.msra.mxu0 0
        %3001 = vmatprep.subr.bf16.mxu0 0
        %3002 = vmatpush2.bf16.msra.mxu0 0
        %3003 = vmatprep.subr.bf16.mxu0 0
        %3004 = vmatpush2.bf16.msra.mxu0 0
        %3005 = vmatprep.subr.bf16.mxu0 0
        %3006 = vmatpush2.bf16.msra.mxu0 0
        %3007 = vmatprep.subr.bf16.mxu0 0
        %3008 = vmatpush2.bf16.msra.mxu0 0
        %3009 = vmatprep.subr.bf16.mxu0 0
        %3010 = vmatpush2.bf16.msra.mxu0 0
        %3011 = vmatprep.subr.bf16.mxu0 0
        %3012 = vmatpush2.bf16.msra.mxu0 0
        %3013 = vmatprep.mubr.bf16.mxu0 0
        %3014 = vmatmul.mubr.bf16.gmra.mxu0 %v2281
        %v3015 = vpop.f32.mrf.mxu0
        %v3016 = vadd.f32 0.0, %v3015
        %v3017 = vpop.f32.mrf.mxu0
        %v3018 = vpop.f32.mrf.mxu0
        %v3019 = vadd.f32 0.0, %v3018
        %v3020 = vpop.f32.mrf.mxu0
        %3021 = vmatprep.mubr.bf16.mxu0 0
        %3022 = vmatmul.mubr.bf16.gmra.mxu0 %v2284
        %v3023 = vpop.f32.mrf.mxu0
        %v3024 = vadd.f32 0.0, %v3023
        %v3025 = vpop.f32.mrf.mxu0
        %v3026 = vpop.f32.mrf.mxu0
        %v3027 = vadd.f32 0.0, %v3026
        %v3028 = vpop.f32.mrf.mxu0
        %3029 = vmatprep.mubr.bf16.mxu0 0
        %3030 = vmatmul.mubr.bf16.gmra.mxu0 %v2287
        %v3031 = vpop.f32.mrf.mxu0
        %v3032 = vadd.f32 0.0, %v3031
        %v3033 = vpop.f32.mrf.mxu0
        %v3034 = vpop.f32.mrf.mxu0
        %v3035 = vadd.f32 0.0, %v3034
        %v3036 = vpop.f32.mrf.mxu0
        %3037 = vmatprep.mubr.bf16.mxu0 0
        %3038 = vmatmul.mubr.bf16.gmra.mxu0 %v2290
        %v3039 = vpop.f32.mrf.mxu0
        %v3040 = vadd.f32 0.0, %v3039
        %v3041 = vpop.f32.mrf.mxu0
        %v3042 = vpop.f32.mrf.mxu0
        %v3043 = vadd.f32 0.0, %v3042
        %v3044 = vpop.f32.mrf.mxu0
        %3045 = vmatprep.mubr.bf16.mxu0 0
        %3046 = vmatmul.mubr.bf16.gmra.mxu0 %v2293
        %v3047 = vpop.f32.mrf.mxu0
        %v3048 = vadd.f32 0.0, %v3047
        %v3049 = vpop.f32.mrf.mxu0
        %v3050 = vpop.f32.mrf.mxu0
        %v3051 = vadd.f32 0.0, %v3050
        %v3052 = vpop.f32.mrf.mxu0
        %3053 = vmatprep.mubr.bf16.mxu0 0
        %3054 = vmatmul.mubr.bf16.gmra.mxu0 %v2296
        %v3055 = vpop.f32.mrf.mxu0
        %v3056 = vadd.f32 0.0, %v3055
        %v3057 = vpop.f32.mrf.mxu0
        %v3058 = vpop.f32.mrf.mxu0
        %v3059 = vadd.f32 0.0, %v3058
        %v3060 = vpop.f32.mrf.mxu0
        %3061 = vmatprep.mubr.bf16.mxu0 0
        %3062 = vmatmul.mubr.bf16.gmra.mxu0 %v2299
        %v3063 = vpop.f32.mrf.mxu0
        %v3064 = vadd.f32 0.0, %v3063
        %v3065 = vpop.f32.mrf.mxu0
        %v3066 = vpop.f32.mrf.mxu0
        %v3067 = vadd.f32 0.0, %v3066
        %v3068 = vpop.f32.mrf.mxu0
        %3069 = vmatprep.mubr.bf16.mxu0 0
        %3070 = vmatmul.mubr.bf16.gmra.mxu0 %v2302
        %v3071 = vpop.f32.mrf.mxu0
        %v3072 = vadd.f32 0.0, %v3071
        %v3073 = vpop.f32.mrf.mxu0
        %v3074 = vpop.f32.mrf.mxu0
        %v3075 = vadd.f32 0.0, %v3074
        %v3076 = vpop.f32.mrf.mxu0
        %3077 = vmatprep.mubr.bf16.mxu0 0
        %3078 = vmatmul.mubr.bf16.gmra.mxu0 %v2305
        %v3079 = vpop.f32.mrf.mxu0
        %v3080 = vadd.f32 0.0, %v3079
        %v3081 = vpop.f32.mrf.mxu0
        %v3082 = vpop.f32.mrf.mxu0
        %v3083 = vadd.f32 0.0, %v3082
        %v3084 = vpop.f32.mrf.mxu0
        %3085 = vmatprep.mubr.bf16.mxu0 0
        %3086 = vmatmul.mubr.bf16.gmra.mxu0 %v2308
        %v3087 = vpop.f32.mrf.mxu0
        %v3088 = vadd.f32 0.0, %v3087
        %v3089 = vpop.f32.mrf.mxu0
        %v3090 = vpop.f32.mrf.mxu0
        %v3091 = vadd.f32 0.0, %v3090
        %v3092 = vpop.f32.mrf.mxu0
        %3093 = vmatprep.mubr.bf16.mxu0 0
        %3094 = vmatmul.mubr.bf16.gmra.mxu0 %v2311
        %v3095 = vpop.f32.mrf.mxu0
        %v3096 = vadd.f32 0.0, %v3095
        %v3097 = vpop.f32.mrf.mxu0
        %v3098 = vpop.f32.mrf.mxu0
        %v3099 = vadd.f32 0.0, %v3098
        %v3100 = vpop.f32.mrf.mxu0
        %3101 = vmatprep.mubr.bf16.mxu0 0
        %3102 = vmatmul.mubr.bf16.gmra.mxu0 %v2314
        %v3103 = vpop.f32.mrf.mxu0
        %v3104 = vadd.f32 0.0, %v3103
        %v3105 = vpop.f32.mrf.mxu0
        %v3106 = vpop.f32.mrf.mxu0
        %v3107 = vadd.f32 0.0, %v3106
        %v3108 = vpop.f32.mrf.mxu0
        %3109 = vmatprep.mubr.bf16.mxu0 0
        %3110 = vmatmul.mubr.bf16.gmra.mxu0 %v2317
        %v3111 = vpop.f32.mrf.mxu0
        %v3112 = vadd.f32 0.0, %v3111
        %v3113 = vpop.f32.mrf.mxu0
        %v3114 = vpop.f32.mrf.mxu0
        %v3115 = vadd.f32 0.0, %v3114
        %v3116 = vpop.f32.mrf.mxu0
        %3117 = vmatprep.mubr.bf16.mxu0 0
        %3118 = vmatmul.mubr.bf16.gmra.mxu0 %v2320
        %v3119 = vpop.f32.mrf.mxu0
        %v3120 = vadd.f32 0.0, %v3119
        %v3121 = vpop.f32.mrf.mxu0
        %v3122 = vpop.f32.mrf.mxu0
        %v3123 = vadd.f32 0.0, %v3122
        %v3124 = vpop.f32.mrf.mxu0
        %3125 = vmatprep.mubr.bf16.mxu0 0
        %3126 = vmatmul.mubr.bf16.gmra.mxu0 %v2323
        %v3127 = vpop.f32.mrf.mxu0
        %v3128 = vadd.f32 0.0, %v3127
        %v3129 = vpop.f32.mrf.mxu0
        %v3130 = vpop.f32.mrf.mxu0
        %v3131 = vadd.f32 0.0, %v3130
        %v3132 = vpop.f32.mrf.mxu0
        %3133 = vmatprep.mubr.bf16.mxu0 0
        %3134 = vmatmul.mubr.bf16.gmra.mxu0 %v2979
        %v3135 = vpop.f32.mrf.mxu0
        %v3136 = vadd.f32 0.0, %v3135
        %v3137 = vpop.f32.mrf.mxu0
        %v3138 = vpop.f32.mrf.mxu0
        %v3139 = vadd.f32 0.0, %v3138
        %v3140 = vpop.f32.mrf.mxu0
        %3141 = vdwg.mxu0
        %v3142 = vadd.f32 %v2922, %v3016
        %v3143 = vadd.f32 %v2923, %v3019
        %v3144 = vadd.f32 %v2924, %v3024
        %v3145 = vadd.f32 %v2925, %v3027
        %v3146 = vadd.f32 %v2926, %v3032
        %v3147 = vadd.f32 %v2927, %v3035
        %v3148 = vadd.f32 %v2928, %v3040
        %v3149 = vadd.f32 %v2929, %v3043
        %v3150 = vadd.f32 %v2930, %v3048
        %v3151 = vadd.f32 %v2931, %v3051
        %v3152 = vadd.f32 %v2932, %v3056
        %v3153 = vadd.f32 %v2933, %v3059
        %v3154 = vadd.f32 %v2934, %v3064
        %v3155 = vadd.f32 %v2935, %v3067
        %v3156 = vadd.f32 %v2936, %v3072
        %v3157 = vadd.f32 %v2937, %v3075
        %v3158 = vadd.f32 %v2938, %v3080
        %v3159 = vadd.f32 %v2939, %v3083
        %v3160 = vadd.f32 %v2940, %v3088
        %v3161 = vadd.f32 %v2941, %v3091
        %v3162 = vadd.f32 %v2942, %v3096
        %v3163 = vadd.f32 %v2943, %v3099
        %v3164 = vadd.f32 %v2944, %v3104
        %v3165 = vadd.f32 %v2945, %v3107
        %v3166 = vadd.f32 %v2946, %v3112
        %v3167 = vadd.f32 %v2947, %v3115
        %v3168 = vadd.f32 %v2948, %v3120
        %v3169 = vadd.f32 %v2949, %v3123
        %v3170 = vadd.f32 %v2950, %v3128
        %v3171 = vadd.f32 %v2951, %v3131
        %v3172 = vadd.f32 %v2952, %v3136
        %v3173 = vadd.f32 %v2953, %v3139
        %s3174 = scalar_lea.vmem %s4, 96
        %v3175 = vld [vmem:[%s3174] sm:$0xf]
        %v3176 = vld [vmem:[%s3174 + $0x4] sm:$0xf]
        %v3177 = vld [vmem:[%s3174 + $0x8] sm:$0xf]
        %v3178 = vld [vmem:[%s3174 + $0xc] sm:$0xf]
        %v3183 = vunpack.c.l.b16 %v3175
        %v3184 = vunpack.c.l.b16 %v3176
        %v3185 = vunpack.c.l.b16 %v3177
        %v3186 = vunpack.c.l.b16 %v3178
        %v3187 = vpack.c.b16 %v3184, %v3183
        %v3188 = vpack.c.b16 %v3186, %v3185
        %3191 = vmatprep.subr.bf16.mxu0 0
        %3192 = vmatpush1.bf16.msra.mxu0 0
        %3193 = vmatprep.subr.bf16.mxu0 0
        %3194 = vmatpush1.bf16.msra.mxu0 0
        %3195 = vmatprep.subr.bf16.mxu0 0
        %3196 = vmatpush1.bf16.msra.mxu0 0
        %3197 = vmatprep.subr.bf16.mxu0 0
        %3198 = vmatpush1.bf16.msra.mxu0 0
        %3199 = vmatprep.subr.bf16.mxu0 0
        %3200 = vmatpush1.bf16.msra.mxu0 0
        %3201 = vmatprep.subr.bf16.mxu0 0
        %3202 = vmatpush1.bf16.msra.mxu0 0
        %3203 = vmatprep.subr.bf16.mxu0 0
        %3204 = vmatpush1.bf16.msra.mxu0 %v3188
        %3205 = vmatprep.subr.bf16.mxu0 0
        %3206 = vmatpush1.bf16.msra.mxu0 %v3187
        %3207 = vmatprep.subr.bf16.mxu0 0
        %3208 = vmatpush2.bf16.msra.mxu0 0
        %3209 = vmatprep.subr.bf16.mxu0 0
        %3210 = vmatpush2.bf16.msra.mxu0 0
        %3211 = vmatprep.subr.bf16.mxu0 0
        %3212 = vmatpush2.bf16.msra.mxu0 0
        %3213 = vmatprep.subr.bf16.mxu0 0
        %3214 = vmatpush2.bf16.msra.mxu0 0
        %3215 = vmatprep.subr.bf16.mxu0 0
        %3216 = vmatpush2.bf16.msra.mxu0 0
        %3217 = vmatprep.subr.bf16.mxu0 0
        %3218 = vmatpush2.bf16.msra.mxu0 0
        %3219 = vmatprep.subr.bf16.mxu0 0
        %3220 = vmatpush2.bf16.msra.mxu0 0
        %3221 = vmatprep.subr.bf16.mxu0 0
        %3222 = vmatpush2.bf16.msra.mxu0 0
        %3223 = vmatprep.mubr.bf16.mxu0 0
        %3224 = vmatmul.mubr.bf16.gmra.mxu0 %v1948
        %v3225 = vpop.f32.mrf.mxu0
        %v3226 = vadd.f32 0.0, %v3225
        %v3227 = vpop.f32.mrf.mxu0
        %v3228 = vpop.f32.mrf.mxu0
        %v3229 = vadd.f32 0.0, %v3228
        %v3230 = vpop.f32.mrf.mxu0
        %3231 = vmatprep.mubr.bf16.mxu0 0
        %3232 = vmatmul.mubr.bf16.gmra.mxu0 %v1951
        %v3233 = vpop.f32.mrf.mxu0
        %v3234 = vadd.f32 0.0, %v3233
        %v3235 = vpop.f32.mrf.mxu0
        %v3236 = vpop.f32.mrf.mxu0
        %v3237 = vadd.f32 0.0, %v3236
        %v3238 = vpop.f32.mrf.mxu0
        %3239 = vmatprep.mubr.bf16.mxu0 0
        %3240 = vmatmul.mubr.bf16.gmra.mxu0 %v1954
        %v3241 = vpop.f32.mrf.mxu0
        %v3242 = vadd.f32 0.0, %v3241
        %v3243 = vpop.f32.mrf.mxu0
        %v3244 = vpop.f32.mrf.mxu0
        %v3245 = vadd.f32 0.0, %v3244
        %v3246 = vpop.f32.mrf.mxu0
        %3247 = vmatprep.mubr.bf16.mxu0 0
        %3248 = vmatmul.mubr.bf16.gmra.mxu0 %v1957
        %v3249 = vpop.f32.mrf.mxu0
        %v3250 = vadd.f32 0.0, %v3249
        %v3251 = vpop.f32.mrf.mxu0
        %v3252 = vpop.f32.mrf.mxu0
        %v3253 = vadd.f32 0.0, %v3252
        %v3254 = vpop.f32.mrf.mxu0
        %3255 = vmatprep.mubr.bf16.mxu0 0
        %3256 = vmatmul.mubr.bf16.gmra.mxu0 %v1960
        %v3257 = vpop.f32.mrf.mxu0
        %v3258 = vadd.f32 0.0, %v3257
        %v3259 = vpop.f32.mrf.mxu0
        %v3260 = vpop.f32.mrf.mxu0
        %v3261 = vadd.f32 0.0, %v3260
        %v3262 = vpop.f32.mrf.mxu0
        %3263 = vmatprep.mubr.bf16.mxu0 0
        %3264 = vmatmul.mubr.bf16.gmra.mxu0 %v1963
        %v3265 = vpop.f32.mrf.mxu0
        %v3266 = vadd.f32 0.0, %v3265
        %v3267 = vpop.f32.mrf.mxu0
        %v3268 = vpop.f32.mrf.mxu0
        %v3269 = vadd.f32 0.0, %v3268
        %v3270 = vpop.f32.mrf.mxu0
        %3271 = vmatprep.mubr.bf16.mxu0 0
        %3272 = vmatmul.mubr.bf16.gmra.mxu0 %v1966
        %v3273 = vpop.f32.mrf.mxu0
        %v3274 = vadd.f32 0.0, %v3273
        %v3275 = vpop.f32.mrf.mxu0
        %v3276 = vpop.f32.mrf.mxu0
        %v3277 = vadd.f32 0.0, %v3276
        %v3278 = vpop.f32.mrf.mxu0
        %3279 = vmatprep.mubr.bf16.mxu0 0
        %3280 = vmatmul.mubr.bf16.gmra.mxu0 %v1969
        %v3281 = vpop.f32.mrf.mxu0
        %v3282 = vadd.f32 0.0, %v3281
        %v3283 = vpop.f32.mrf.mxu0
        %v3284 = vpop.f32.mrf.mxu0
        %v3285 = vadd.f32 0.0, %v3284
        %v3286 = vpop.f32.mrf.mxu0
        %3287 = vmatprep.mubr.bf16.mxu0 0
        %3288 = vmatmul.mubr.bf16.gmra.mxu0 %v1972
        %v3289 = vpop.f32.mrf.mxu0
        %v3290 = vadd.f32 0.0, %v3289
        %v3291 = vpop.f32.mrf.mxu0
        %v3292 = vpop.f32.mrf.mxu0
        %v3293 = vadd.f32 0.0, %v3292
        %v3294 = vpop.f32.mrf.mxu0
        %3295 = vmatprep.mubr.bf16.mxu0 0
        %3296 = vmatmul.mubr.bf16.gmra.mxu0 %v1975
        %v3297 = vpop.f32.mrf.mxu0
        %v3298 = vadd.f32 0.0, %v3297
        %v3299 = vpop.f32.mrf.mxu0
        %v3300 = vpop.f32.mrf.mxu0
        %v3301 = vadd.f32 0.0, %v3300
        %v3302 = vpop.f32.mrf.mxu0
        %3303 = vmatprep.mubr.bf16.mxu0 0
        %3304 = vmatmul.mubr.bf16.gmra.mxu0 %v1978
        %v3305 = vpop.f32.mrf.mxu0
        %v3306 = vadd.f32 0.0, %v3305
        %v3307 = vpop.f32.mrf.mxu0
        %v3308 = vpop.f32.mrf.mxu0
        %v3309 = vadd.f32 0.0, %v3308
        %v3310 = vpop.f32.mrf.mxu0
        %3311 = vmatprep.mubr.bf16.mxu0 0
        %3312 = vmatmul.mubr.bf16.gmra.mxu0 %v1981
        %v3313 = vpop.f32.mrf.mxu0
        %v3314 = vadd.f32 0.0, %v3313
        %v3315 = vpop.f32.mrf.mxu0
        %v3316 = vpop.f32.mrf.mxu0
        %v3317 = vadd.f32 0.0, %v3316
        %v3318 = vpop.f32.mrf.mxu0
        %3319 = vmatprep.mubr.bf16.mxu0 0
        %3320 = vmatmul.mubr.bf16.gmra.mxu0 %v1984
        %v3321 = vpop.f32.mrf.mxu0
        %v3322 = vadd.f32 0.0, %v3321
        %v3323 = vpop.f32.mrf.mxu0
        %v3324 = vpop.f32.mrf.mxu0
        %v3325 = vadd.f32 0.0, %v3324
        %v3326 = vpop.f32.mrf.mxu0
        %3327 = vmatprep.mubr.bf16.mxu0 0
        %3328 = vmatmul.mubr.bf16.gmra.mxu0 %v1987
        %v3329 = vpop.f32.mrf.mxu0
        %v3330 = vadd.f32 0.0, %v3329
        %v3331 = vpop.f32.mrf.mxu0
        %v3332 = vpop.f32.mrf.mxu0
        %v3333 = vadd.f32 0.0, %v3332
        %v3334 = vpop.f32.mrf.mxu0
        %3335 = vmatprep.mubr.bf16.mxu0 0
        %3336 = vmatmul.mubr.bf16.gmra.mxu0 %v2545
        %v3337 = vpop.f32.mrf.mxu0
        %v3338 = vadd.f32 0.0, %v3337
        %v3339 = vpop.f32.mrf.mxu0
        %v3340 = vpop.f32.mrf.mxu0
        %v3341 = vadd.f32 0.0, %v3340
        %v3342 = vpop.f32.mrf.mxu0
        %3343 = vmatprep.mubr.bf16.mxu0 0
        %3344 = vmatmul.mubr.bf16.gmra.mxu0 %v1942
        %v3345 = vpop.f32.mrf.mxu0
        %v3346 = vadd.f32 0.0, %v3345
        %v3347 = vpop.f32.mrf.mxu0
        %v3348 = vpop.f32.mrf.mxu0
        %v3349 = vadd.f32 0.0, %v3348
        %v3350 = vpop.f32.mrf.mxu0
        %3351 = vdwg.mxu0
        %v3352 = vadd.f32 %v3142, %v3226
        %v3353 = vadd.f32 %v3143, %v3229
        %v3354 = vadd.f32 %v3144, %v3234
        %v3355 = vadd.f32 %v3145, %v3237
        %v3356 = vadd.f32 %v3146, %v3242
        %v3357 = vadd.f32 %v3147, %v3245
        %v3358 = vadd.f32 %v3148, %v3250
        %v3359 = vadd.f32 %v3149, %v3253
        %v3360 = vadd.f32 %v3150, %v3258
        %v3361 = vadd.f32 %v3151, %v3261
        %v3362 = vadd.f32 %v3152, %v3266
        %v3363 = vadd.f32 %v3153, %v3269
        %v3364 = vadd.f32 %v3154, %v3274
        %v3365 = vadd.f32 %v3155, %v3277
        %v3366 = vadd.f32 %v3156, %v3282
        %v3367 = vadd.f32 %v3157, %v3285
        %v3368 = vadd.f32 %v3158, %v3290
        %v3369 = vadd.f32 %v3159, %v3293
        %v3370 = vadd.f32 %v3160, %v3298
        %v3371 = vadd.f32 %v3161, %v3301
        %v3372 = vadd.f32 %v3162, %v3306
        %v3373 = vadd.f32 %v3163, %v3309
        %v3374 = vadd.f32 %v3164, %v3314
        %v3375 = vadd.f32 %v3165, %v3317
        %v3376 = vadd.f32 %v3166, %v3322
        %v3377 = vadd.f32 %v3167, %v3325
        %v3378 = vadd.f32 %v3168, %v3330
        %v3379 = vadd.f32 %v3169, %v3333
        %v3380 = vadd.f32 %v3170, %v3338
        %v3381 = vadd.f32 %v3171, %v3341
        %v3382 = vadd.f32 %v3172, %v3346
        %v3383 = vadd.f32 %v3173, %v3349
        %s3384 = scalar_lea.vmem %s4, 112
        %v3385 = vld [vmem:[%s3384] sm:$0xf]
        %v3386 = vld [vmem:[%s3384 + $0x4] sm:$0xf]
        %v3387 = vld [vmem:[%s3384 + $0x8] sm:$0xf]
        %v3388 = vld [vmem:[%s3384 + $0xc] sm:$0xf]
        %v3393 = vunpack.c.l.b16 %v3385
        %v3394 = vunpack.c.l.b16 %v3386
        %v3395 = vunpack.c.l.b16 %v3387
        %v3396 = vunpack.c.l.b16 %v3388
        %v3397 = vpack.c.b16 %v3394, %v3393
        %v3398 = vpack.c.b16 %v3396, %v3395
        %3401 = vmatprep.subr.bf16.mxu0 0
        %3402 = vmatpush1.bf16.msra.mxu0 0
        %3403 = vmatprep.subr.bf16.mxu0 0
        %3404 = vmatpush1.bf16.msra.mxu0 0
        %3405 = vmatprep.subr.bf16.mxu0 0
        %3406 = vmatpush1.bf16.msra.mxu0 0
        %3407 = vmatprep.subr.bf16.mxu0 0
        %3408 = vmatpush1.bf16.msra.mxu0 0
        %3409 = vmatprep.subr.bf16.mxu0 0
        %3410 = vmatpush1.bf16.msra.mxu0 0
        %3411 = vmatprep.subr.bf16.mxu0 0
        %3412 = vmatpush1.bf16.msra.mxu0 0
        %3413 = vmatprep.subr.bf16.mxu0 0
        %3414 = vmatpush1.bf16.msra.mxu0 %v3398
        %3415 = vmatprep.subr.bf16.mxu0 0
        %3416 = vmatpush1.bf16.msra.mxu0 %v3397
        %3417 = vmatprep.subr.bf16.mxu0 0
        %3418 = vmatpush2.bf16.msra.mxu0 0
        %3419 = vmatprep.subr.bf16.mxu0 0
        %3420 = vmatpush2.bf16.msra.mxu0 0
        %3421 = vmatprep.subr.bf16.mxu0 0
        %3422 = vmatpush2.bf16.msra.mxu0 0
        %3423 = vmatprep.subr.bf16.mxu0 0
        %3424 = vmatpush2.bf16.msra.mxu0 0
        %3425 = vmatprep.subr.bf16.mxu0 0
        %3426 = vmatpush2.bf16.msra.mxu0 0
        %3427 = vmatprep.subr.bf16.mxu0 0
        %3428 = vmatpush2.bf16.msra.mxu0 0
        %3429 = vmatprep.subr.bf16.mxu0 0
        %3430 = vmatpush2.bf16.msra.mxu0 0
        %3431 = vmatprep.subr.bf16.mxu0 0
        %3432 = vmatpush2.bf16.msra.mxu0 0
        %3433 = vmatprep.mubr.bf16.mxu0 0
        %3434 = vmatmul.mubr.bf16.gmra.mxu0 %v1727
        %v3435 = vpop.f32.mrf.mxu0
        %v3436 = vadd.f32 0.0, %v3435
        %v3437 = vpop.f32.mrf.mxu0
        %v3438 = vpop.f32.mrf.mxu0
        %v3439 = vadd.f32 0.0, %v3438
        %v3440 = vpop.f32.mrf.mxu0
        %3441 = vmatprep.mubr.bf16.mxu0 0
        %3442 = vmatmul.mubr.bf16.gmra.mxu0 %v1730
        %v3443 = vpop.f32.mrf.mxu0
        %v3444 = vadd.f32 0.0, %v3443
        %v3445 = vpop.f32.mrf.mxu0
        %v3446 = vpop.f32.mrf.mxu0
        %v3447 = vadd.f32 0.0, %v3446
        %v3448 = vpop.f32.mrf.mxu0
        %3449 = vmatprep.mubr.bf16.mxu0 0
        %3450 = vmatmul.mubr.bf16.gmra.mxu0 %v1733
        %v3451 = vpop.f32.mrf.mxu0
        %v3452 = vadd.f32 0.0, %v3451
        %v3453 = vpop.f32.mrf.mxu0
        %v3454 = vpop.f32.mrf.mxu0
        %v3455 = vadd.f32 0.0, %v3454
        %v3456 = vpop.f32.mrf.mxu0
        %3457 = vmatprep.mubr.bf16.mxu0 0
        %3458 = vmatmul.mubr.bf16.gmra.mxu0 %v1736
        %v3459 = vpop.f32.mrf.mxu0
        %v3460 = vadd.f32 0.0, %v3459
        %v3461 = vpop.f32.mrf.mxu0
        %v3462 = vpop.f32.mrf.mxu0
        %v3463 = vadd.f32 0.0, %v3462
        %v3464 = vpop.f32.mrf.mxu0
        %3465 = vmatprep.mubr.bf16.mxu0 0
        %3466 = vmatmul.mubr.bf16.gmra.mxu0 %v1739
        %v3467 = vpop.f32.mrf.mxu0
        %v3468 = vadd.f32 0.0, %v3467
        %v3469 = vpop.f32.mrf.mxu0
        %v3470 = vpop.f32.mrf.mxu0
        %v3471 = vadd.f32 0.0, %v3470
        %v3472 = vpop.f32.mrf.mxu0
        %3473 = vmatprep.mubr.bf16.mxu0 0
        %3474 = vmatmul.mubr.bf16.gmra.mxu0 %v1742
        %v3475 = vpop.f32.mrf.mxu0
        %v3476 = vadd.f32 0.0, %v3475
        %v3477 = vpop.f32.mrf.mxu0
        %v3478 = vpop.f32.mrf.mxu0
        %v3479 = vadd.f32 0.0, %v3478
        %v3480 = vpop.f32.mrf.mxu0
        %3481 = vmatprep.mubr.bf16.mxu0 0
        %3482 = vmatmul.mubr.bf16.gmra.mxu0 %v1745
        %v3483 = vpop.f32.mrf.mxu0
        %v3484 = vadd.f32 0.0, %v3483
        %v3485 = vpop.f32.mrf.mxu0
        %v3486 = vpop.f32.mrf.mxu0
        %v3487 = vadd.f32 0.0, %v3486
        %v3488 = vpop.f32.mrf.mxu0
        %3489 = vmatprep.mubr.bf16.mxu0 0
        %3490 = vmatmul.mubr.bf16.gmra.mxu0 %v1748
        %v3491 = vpop.f32.mrf.mxu0
        %v3492 = vadd.f32 0.0, %v3491
        %v3493 = vpop.f32.mrf.mxu0
        %v3494 = vpop.f32.mrf.mxu0
        %v3495 = vadd.f32 0.0, %v3494
        %v3496 = vpop.f32.mrf.mxu0
        %3497 = vmatprep.mubr.bf16.mxu0 0
        %3498 = vmatmul.mubr.bf16.gmra.mxu0 %v1751
        %v3499 = vpop.f32.mrf.mxu0
        %v3500 = vadd.f32 0.0, %v3499
        %v3501 = vpop.f32.mrf.mxu0
        %v3502 = vpop.f32.mrf.mxu0
        %v3503 = vadd.f32 0.0, %v3502
        %v3504 = vpop.f32.mrf.mxu0
        %3505 = vmatprep.mubr.bf16.mxu0 0
        %3506 = vmatmul.mubr.bf16.gmra.mxu0 %v1754
        %v3507 = vpop.f32.mrf.mxu0
        %v3508 = vadd.f32 0.0, %v3507
        %v3509 = vpop.f32.mrf.mxu0
        %v3510 = vpop.f32.mrf.mxu0
        %v3511 = vadd.f32 0.0, %v3510
        %v3512 = vpop.f32.mrf.mxu0
        %3513 = vmatprep.mubr.bf16.mxu0 0
        %3514 = vmatmul.mubr.bf16.gmra.mxu0 %v1757
        %v3515 = vpop.f32.mrf.mxu0
        %v3516 = vadd.f32 0.0, %v3515
        %v3517 = vpop.f32.mrf.mxu0
        %v3518 = vpop.f32.mrf.mxu0
        %v3519 = vadd.f32 0.0, %v3518
        %v3520 = vpop.f32.mrf.mxu0
        %3521 = vmatprep.mubr.bf16.mxu0 0
        %3522 = vmatmul.mubr.bf16.gmra.mxu0 %v1760
        %v3523 = vpop.f32.mrf.mxu0
        %v3524 = vadd.f32 0.0, %v3523
        %v3525 = vpop.f32.mrf.mxu0
        %v3526 = vpop.f32.mrf.mxu0
        %v3527 = vadd.f32 0.0, %v3526
        %v3528 = vpop.f32.mrf.mxu0
        %3529 = vmatprep.mubr.bf16.mxu0 0
        %3530 = vmatmul.mubr.bf16.gmra.mxu0 %v1763
        %v3531 = vpop.f32.mrf.mxu0
        %v3532 = vadd.f32 0.0, %v3531
        %v3533 = vpop.f32.mrf.mxu0
        %v3534 = vpop.f32.mrf.mxu0
        %v3535 = vadd.f32 0.0, %v3534
        %v3536 = vpop.f32.mrf.mxu0
        %3537 = vmatprep.mubr.bf16.mxu0 0
        %3538 = vmatmul.mubr.bf16.gmra.mxu0 %v1766
        %v3539 = vpop.f32.mrf.mxu0
        %v3540 = vadd.f32 0.0, %v3539
        %v3541 = vpop.f32.mrf.mxu0
        %v3542 = vpop.f32.mrf.mxu0
        %v3543 = vadd.f32 0.0, %v3542
        %v3544 = vpop.f32.mrf.mxu0
        %3545 = vmatprep.mubr.bf16.mxu0 0
        %3546 = vmatmul.mubr.bf16.gmra.mxu0 %v2759
        %v3547 = vpop.f32.mrf.mxu0
        %v3548 = vadd.f32 0.0, %v3547
        %v3549 = vpop.f32.mrf.mxu0
        %v3550 = vpop.f32.mrf.mxu0
        %v3551 = vadd.f32 0.0, %v3550
        %v3552 = vpop.f32.mrf.mxu0
        %3553 = vmatprep.mubr.bf16.mxu0 0
        %3554 = vmatmul.mubr.bf16.gmra.mxu0 %v1721
        %v3555 = vpop.f32.mrf.mxu0
        %v3556 = vadd.f32 0.0, %v3555
        %v3557 = vpop.f32.mrf.mxu0
        %v3558 = vpop.f32.mrf.mxu0
        %v3559 = vadd.f32 0.0, %v3558
        %v3560 = vpop.f32.mrf.mxu0
        %3561 = vdwg.mxu0
        %v3562 = vadd.f32 %v3352, %v3436
        %v3563 = vadd.f32 %v3353, %v3439
        %v3564 = vadd.f32 %v3354, %v3444
        %v3565 = vadd.f32 %v3355, %v3447
        %v3566 = vadd.f32 %v3356, %v3452
        %v3567 = vadd.f32 %v3357, %v3455
        %v3568 = vadd.f32 %v3358, %v3460
        %v3569 = vadd.f32 %v3359, %v3463
        %v3570 = vadd.f32 %v3360, %v3468
        %v3571 = vadd.f32 %v3361, %v3471
        %v3572 = vadd.f32 %v3362, %v3476
        %v3573 = vadd.f32 %v3363, %v3479
        %v3574 = vadd.f32 %v3364, %v3484
        %v3575 = vadd.f32 %v3365, %v3487
        %v3576 = vadd.f32 %v3366, %v3492
        %v3577 = vadd.f32 %v3367, %v3495
        %v3578 = vadd.f32 %v3368, %v3500
        %v3579 = vadd.f32 %v3369, %v3503
        %v3580 = vadd.f32 %v3370, %v3508
        %v3581 = vadd.f32 %v3371, %v3511
        %v3582 = vadd.f32 %v3372, %v3516
        %v3583 = vadd.f32 %v3373, %v3519
        %v3584 = vadd.f32 %v3374, %v3524
        %v3585 = vadd.f32 %v3375, %v3527
        %v3586 = vadd.f32 %v3376, %v3532
        %v3587 = vadd.f32 %v3377, %v3535
        %v3588 = vadd.f32 %v3378, %v3540
        %v3589 = vadd.f32 %v3379, %v3543
        %v3590 = vadd.f32 %v3380, %v3548
        %v3591 = vadd.f32 %v3381, %v3551
        %v3592 = vadd.f32 %v3382, %v3556
        %v3593 = vadd.f32 %v3383, %v3559
        %s3594 = scalar_lea.vmem %s4, 128
        %v3595 = vld [vmem:[%s3594] sm:$0xf]
        %v3596 = vld [vmem:[%s3594 + $0x4] sm:$0xf]
        %v3597 = vld [vmem:[%s3594 + $0x8] sm:$0xf]
        %v3598 = vld [vmem:[%s3594 + $0xc] sm:$0xf]
        %v3603 = vunpack.c.l.b16 %v3595
        %v3604 = vunpack.c.l.b16 %v3596
        %v3605 = vunpack.c.l.b16 %v3597
        %v3606 = vunpack.c.l.b16 %v3598
        %v3607 = vpack.c.b16 %v3604, %v3603
        %v3608 = vpack.c.b16 %v3606, %v3605
        %3611 = vmatprep.subr.bf16.mxu0 0
        %3612 = vmatpush1.bf16.msra.mxu0 0
        %3613 = vmatprep.subr.bf16.mxu0 0
        %3614 = vmatpush1.bf16.msra.mxu0 0
        %3615 = vmatprep.subr.bf16.mxu0 0
        %3616 = vmatpush1.bf16.msra.mxu0 0
        %3617 = vmatprep.subr.bf16.mxu0 0
        %3618 = vmatpush1.bf16.msra.mxu0 0
        %3619 = vmatprep.subr.bf16.mxu0 0
        %3620 = vmatpush1.bf16.msra.mxu0 0
        %3621 = vmatprep.subr.bf16.mxu0 0
        %3622 = vmatpush1.bf16.msra.mxu0 0
        %3623 = vmatprep.subr.bf16.mxu0 0
        %3624 = vmatpush1.bf16.msra.mxu0 %v3608
        %3625 = vmatprep.subr.bf16.mxu0 0
        %3626 = vmatpush1.bf16.msra.mxu0 %v3607
        %3627 = vmatprep.subr.bf16.mxu0 0
        %3628 = vmatpush2.bf16.msra.mxu0 0
        %3629 = vmatprep.subr.bf16.mxu0 0
        %3630 = vmatpush2.bf16.msra.mxu0 0
        %3631 = vmatprep.subr.bf16.mxu0 0
        %3632 = vmatpush2.bf16.msra.mxu0 0
        %3633 = vmatprep.subr.bf16.mxu0 0
        %3634 = vmatpush2.bf16.msra.mxu0 0
        %3635 = vmatprep.subr.bf16.mxu0 0
        %3636 = vmatpush2.bf16.msra.mxu0 0
        %3637 = vmatprep.subr.bf16.mxu0 0
        %3638 = vmatpush2.bf16.msra.mxu0 0
        %3639 = vmatprep.subr.bf16.mxu0 0
        %3640 = vmatpush2.bf16.msra.mxu0 0
        %3641 = vmatprep.subr.bf16.mxu0 0
        %3642 = vmatpush2.bf16.msra.mxu0 0
        %3643 = vmatprep.mubr.bf16.mxu0 0
        %3644 = vmatmul.mubr.bf16.gmra.mxu0 %v2284
        %v3645 = vpop.f32.mrf.mxu0
        %v3646 = vadd.f32 0.0, %v3645
        %v3647 = vpop.f32.mrf.mxu0
        %v3648 = vpop.f32.mrf.mxu0
        %v3649 = vadd.f32 0.0, %v3648
        %v3650 = vpop.f32.mrf.mxu0
        %3651 = vmatprep.mubr.bf16.mxu0 0
        %3652 = vmatmul.mubr.bf16.gmra.mxu0 %v2287
        %v3653 = vpop.f32.mrf.mxu0
        %v3654 = vadd.f32 0.0, %v3653
        %v3655 = vpop.f32.mrf.mxu0
        %v3656 = vpop.f32.mrf.mxu0
        %v3657 = vadd.f32 0.0, %v3656
        %v3658 = vpop.f32.mrf.mxu0
        %3659 = vmatprep.mubr.bf16.mxu0 0
        %3660 = vmatmul.mubr.bf16.gmra.mxu0 %v2290
        %v3661 = vpop.f32.mrf.mxu0
        %v3662 = vadd.f32 0.0, %v3661
        %v3663 = vpop.f32.mrf.mxu0
        %v3664 = vpop.f32.mrf.mxu0
        %v3665 = vadd.f32 0.0, %v3664
        %v3666 = vpop.f32.mrf.mxu0
        %3667 = vmatprep.mubr.bf16.mxu0 0
        %3668 = vmatmul.mubr.bf16.gmra.mxu0 %v2293
        %v3669 = vpop.f32.mrf.mxu0
        %v3670 = vadd.f32 0.0, %v3669
        %v3671 = vpop.f32.mrf.mxu0
        %v3672 = vpop.f32.mrf.mxu0
        %v3673 = vadd.f32 0.0, %v3672
        %v3674 = vpop.f32.mrf.mxu0
        %3675 = vmatprep.mubr.bf16.mxu0 0
        %3676 = vmatmul.mubr.bf16.gmra.mxu0 %v2296
        %v3677 = vpop.f32.mrf.mxu0
        %v3678 = vadd.f32 0.0, %v3677
        %v3679 = vpop.f32.mrf.mxu0
        %v3680 = vpop.f32.mrf.mxu0
        %v3681 = vadd.f32 0.0, %v3680
        %v3682 = vpop.f32.mrf.mxu0
        %3683 = vmatprep.mubr.bf16.mxu0 0
        %3684 = vmatmul.mubr.bf16.gmra.mxu0 %v2299
        %v3685 = vpop.f32.mrf.mxu0
        %v3686 = vadd.f32 0.0, %v3685
        %v3687 = vpop.f32.mrf.mxu0
        %v3688 = vpop.f32.mrf.mxu0
        %v3689 = vadd.f32 0.0, %v3688
        %v3690 = vpop.f32.mrf.mxu0
        %3691 = vmatprep.mubr.bf16.mxu0 0
        %3692 = vmatmul.mubr.bf16.gmra.mxu0 %v2302
        %v3693 = vpop.f32.mrf.mxu0
        %v3694 = vadd.f32 0.0, %v3693
        %v3695 = vpop.f32.mrf.mxu0
        %v3696 = vpop.f32.mrf.mxu0
        %v3697 = vadd.f32 0.0, %v3696
        %v3698 = vpop.f32.mrf.mxu0
        %3699 = vmatprep.mubr.bf16.mxu0 0
        %3700 = vmatmul.mubr.bf16.gmra.mxu0 %v2305
        %v3701 = vpop.f32.mrf.mxu0
        %v3702 = vadd.f32 0.0, %v3701
        %v3703 = vpop.f32.mrf.mxu0
        %v3704 = vpop.f32.mrf.mxu0
        %v3705 = vadd.f32 0.0, %v3704
        %v3706 = vpop.f32.mrf.mxu0
        %3707 = vmatprep.mubr.bf16.mxu0 0
        %3708 = vmatmul.mubr.bf16.gmra.mxu0 %v2308
        %v3709 = vpop.f32.mrf.mxu0
        %v3710 = vadd.f32 0.0, %v3709
        %v3711 = vpop.f32.mrf.mxu0
        %v3712 = vpop.f32.mrf.mxu0
        %v3713 = vadd.f32 0.0, %v3712
        %v3714 = vpop.f32.mrf.mxu0
        %3715 = vmatprep.mubr.bf16.mxu0 0
        %3716 = vmatmul.mubr.bf16.gmra.mxu0 %v2311
        %v3717 = vpop.f32.mrf.mxu0
        %v3718 = vadd.f32 0.0, %v3717
        %v3719 = vpop.f32.mrf.mxu0
        %v3720 = vpop.f32.mrf.mxu0
        %v3721 = vadd.f32 0.0, %v3720
        %v3722 = vpop.f32.mrf.mxu0
        %3723 = vmatprep.mubr.bf16.mxu0 0
        %3724 = vmatmul.mubr.bf16.gmra.mxu0 %v2314
        %v3725 = vpop.f32.mrf.mxu0
        %v3726 = vadd.f32 0.0, %v3725
        %v3727 = vpop.f32.mrf.mxu0
        %v3728 = vpop.f32.mrf.mxu0
        %v3729 = vadd.f32 0.0, %v3728
        %v3730 = vpop.f32.mrf.mxu0
        %3731 = vmatprep.mubr.bf16.mxu0 0
        %3732 = vmatmul.mubr.bf16.gmra.mxu0 %v2317
        %v3733 = vpop.f32.mrf.mxu0
        %v3734 = vadd.f32 0.0, %v3733
        %v3735 = vpop.f32.mrf.mxu0
        %v3736 = vpop.f32.mrf.mxu0
        %v3737 = vadd.f32 0.0, %v3736
        %v3738 = vpop.f32.mrf.mxu0
        %3739 = vmatprep.mubr.bf16.mxu0 0
        %3740 = vmatmul.mubr.bf16.gmra.mxu0 %v2320
        %v3741 = vpop.f32.mrf.mxu0
        %v3742 = vadd.f32 0.0, %v3741
        %v3743 = vpop.f32.mrf.mxu0
        %v3744 = vpop.f32.mrf.mxu0
        %v3745 = vadd.f32 0.0, %v3744
        %v3746 = vpop.f32.mrf.mxu0
        %3747 = vmatprep.mubr.bf16.mxu0 0
        %3748 = vmatmul.mubr.bf16.gmra.mxu0 %v2323
        %v3749 = vpop.f32.mrf.mxu0
        %v3750 = vadd.f32 0.0, %v3749
        %v3751 = vpop.f32.mrf.mxu0
        %v3752 = vpop.f32.mrf.mxu0
        %v3753 = vadd.f32 0.0, %v3752
        %v3754 = vpop.f32.mrf.mxu0
        %3755 = vmatprep.mubr.bf16.mxu0 0
        %3756 = vmatmul.mubr.bf16.gmra.mxu0 %v2979
        %v3757 = vpop.f32.mrf.mxu0
        %v3758 = vadd.f32 0.0, %v3757
        %v3759 = vpop.f32.mrf.mxu0
        %v3760 = vpop.f32.mrf.mxu0
        %v3761 = vadd.f32 0.0, %v3760
        %v3762 = vpop.f32.mrf.mxu0
        %3763 = vmatprep.mubr.bf16.mxu0 0
        %3764 = vmatmul.mubr.bf16.gmra.mxu0 %v2278
        %v3765 = vpop.f32.mrf.mxu0
        %v3766 = vadd.f32 0.0, %v3765
        %v3767 = vpop.f32.mrf.mxu0
        %v3768 = vpop.f32.mrf.mxu0
        %v3769 = vadd.f32 0.0, %v3768
        %v3770 = vpop.f32.mrf.mxu0
        %3771 = vdwg.mxu0
        %v3772 = vadd.f32 %v3562, %v3646
        %v3773 = vadd.f32 %v3563, %v3649
        %v3774 = vadd.f32 %v3564, %v3654
        %v3775 = vadd.f32 %v3565, %v3657
        %v3776 = vadd.f32 %v3566, %v3662
        %v3777 = vadd.f32 %v3567, %v3665
        %v3778 = vadd.f32 %v3568, %v3670
        %v3779 = vadd.f32 %v3569, %v3673
        %v3780 = vadd.f32 %v3570, %v3678
        %v3781 = vadd.f32 %v3571, %v3681
        %v3782 = vadd.f32 %v3572, %v3686
        %v3783 = vadd.f32 %v3573, %v3689
        %v3784 = vadd.f32 %v3574, %v3694
        %v3785 = vadd.f32 %v3575, %v3697
        %v3786 = vadd.f32 %v3576, %v3702
        %v3787 = vadd.f32 %v3577, %v3705
        %v3788 = vadd.f32 %v3578, %v3710
        %v3789 = vadd.f32 %v3579, %v3713
        %v3790 = vadd.f32 %v3580, %v3718
        %v3791 = vadd.f32 %v3581, %v3721
        %v3792 = vadd.f32 %v3582, %v3726
        %v3793 = vadd.f32 %v3583, %v3729
        %v3794 = vadd.f32 %v3584, %v3734
        %v3795 = vadd.f32 %v3585, %v3737
        %v3796 = vadd.f32 %v3586, %v3742
        %v3797 = vadd.f32 %v3587, %v3745
        %v3798 = vadd.f32 %v3588, %v3750
        %v3799 = vadd.f32 %v3589, %v3753
        %v3800 = vadd.f32 %v3590, %v3758
        %v3801 = vadd.f32 %v3591, %v3761
        %v3802 = vadd.f32 %v3592, %v3766
        %v3803 = vadd.f32 %v3593, %v3769
        %v3804 = vld [vmem:[%s5] sm:$0x1]
        %v3806 = vlaneseq
        %v3807 = vshrl.u32 %v3806, 7
        %v3808 = vsub.s32 0, %v3807
        %v3809 = vrot.slane %v3804, %v3808
        %v3811 = vmul.f32 %v3772, %v3809
        %v3812 = vmul.f32 %v3773, %v3809
        %v3813 = vmul.f32 %v3774, %v3809
        %v3814 = vmul.f32 %v3775, %v3809
        %v3815 = vmul.f32 %v3776, %v3809
        %v3816 = vmul.f32 %v3777, %v3809
        %v3817 = vmul.f32 %v3778, %v3809
        %v3818 = vmul.f32 %v3779, %v3809
        %v3819 = vmul.f32 %v3780, %v3809
        %v3820 = vmul.f32 %v3781, %v3809
        %v3821 = vmul.f32 %v3782, %v3809
        %v3822 = vmul.f32 %v3783, %v3809
        %v3823 = vmul.f32 %v3784, %v3809
        %v3824 = vmul.f32 %v3785, %v3809
        %v3825 = vmul.f32 %v3786, %v3809
        %v3826 = vmul.f32 %v3787, %v3809
        %v3827 = vmul.f32 %v3788, %v3809
        %v3828 = vmul.f32 %v3789, %v3809
        %v3829 = vmul.f32 %v3790, %v3809
        %v3830 = vmul.f32 %v3791, %v3809
        %v3831 = vmul.f32 %v3792, %v3809
        %v3832 = vmul.f32 %v3793, %v3809
        %v3833 = vmul.f32 %v3794, %v3809
        %v3834 = vmul.f32 %v3795, %v3809
        %v3835 = vmul.f32 %v3796, %v3809
        %v3836 = vmul.f32 %v3797, %v3809
        %v3837 = vmul.f32 %v3798, %v3809
        %v3838 = vmul.f32 %v3799, %v3809
        %v3839 = vmul.f32 %v3800, %v3809
        %v3840 = vmul.f32 %v3801, %v3809
        %v3841 = vmul.f32 %v3802, %v3809
        %v3842 = vmul.f32 %v3803, %v3809
        %v3843 = vld [vmem:[%s6] sm:$0x1]
        %v3845 = vlaneseq
        %v3846 = vshrl.u32 %v3845, 7
        %v3847 = vsub.s32 0, %v3846
        %v3848 = vrot.slane %v3843, %v3847
        %v3850 = vadd.f32 %v3811, %v3848
        %v3851 = vadd.f32 %v3812, %v3848
        %v3852 = vadd.f32 %v3813, %v3848
        %v3853 = vadd.f32 %v3814, %v3848
        %v3854 = vadd.f32 %v3815, %v3848
        %v3855 = vadd.f32 %v3816, %v3848
        %v3856 = vadd.f32 %v3817, %v3848
        %v3857 = vadd.f32 %v3818, %v3848
        %v3858 = vadd.f32 %v3819, %v3848
        %v3859 = vadd.f32 %v3820, %v3848
        %v3860 = vadd.f32 %v3821, %v3848
        %v3861 = vadd.f32 %v3822, %v3848
        %v3862 = vadd.f32 %v3823, %v3848
        %v3863 = vadd.f32 %v3824, %v3848
        %v3864 = vadd.f32 %v3825, %v3848
        %v3865 = vadd.f32 %v3826, %v3848
        %v3866 = vadd.f32 %v3827, %v3848
        %v3867 = vadd.f32 %v3828, %v3848
        %v3868 = vadd.f32 %v3829, %v3848
        %v3869 = vadd.f32 %v3830, %v3848
        %v3870 = vadd.f32 %v3831, %v3848
        %v3871 = vadd.f32 %v3832, %v3848
        %v3872 = vadd.f32 %v3833, %v3848
        %v3873 = vadd.f32 %v3834, %v3848
        %v3874 = vadd.f32 %v3835, %v3848
        %v3875 = vadd.f32 %v3836, %v3848
        %v3876 = vadd.f32 %v3837, %v3848
        %v3877 = vadd.f32 %v3838, %v3848
        %v3878 = vadd.f32 %v3839, %v3848
        %v3879 = vadd.f32 %v3840, %v3848
        %v3880 = vadd.f32 %v3841, %v3848
        %v3881 = vadd.f32 %v3842, %v3848
        %v3882 = vmax.f32 %v3850, 0.0
        %v3883 = vmax.f32 %v3851, 0.0
        %v3884 = vmax.f32 %v3852, 0.0
        %v3885 = vmax.f32 %v3853, 0.0
        %v3886 = vmax.f32 %v3854, 0.0
        %v3887 = vmax.f32 %v3855, 0.0
        %v3888 = vmax.f32 %v3856, 0.0
        %v3889 = vmax.f32 %v3857, 0.0
        %v3890 = vmax.f32 %v3858, 0.0
        %v3891 = vmax.f32 %v3859, 0.0
        %v3892 = vmax.f32 %v3860, 0.0
        %v3893 = vmax.f32 %v3861, 0.0
        %v3894 = vmax.f32 %v3862, 0.0
        %v3895 = vmax.f32 %v3863, 0.0
        %v3896 = vmax.f32 %v3864, 0.0
        %v3897 = vmax.f32 %v3865, 0.0
        %v3898 = vmax.f32 %v3866, 0.0
        %v3899 = vmax.f32 %v3867, 0.0
        %v3900 = vmax.f32 %v3868, 0.0
        %v3901 = vmax.f32 %v3869, 0.0
        %v3902 = vmax.f32 %v3870, 0.0
        %v3903 = vmax.f32 %v3871, 0.0
        %v3904 = vmax.f32 %v3872, 0.0
        %v3905 = vmax.f32 %v3873, 0.0
        %v3906 = vmax.f32 %v3874, 0.0
        %v3907 = vmax.f32 %v3875, 0.0
        %v3908 = vmax.f32 %v3876, 0.0
        %v3909 = vmax.f32 %v3877, 0.0
        %v3910 = vmax.f32 %v3878, 0.0
        %v3911 = vmax.f32 %v3879, 0.0
        %v3912 = vmax.f32 %v3880, 0.0
        %v3913 = vmax.f32 %v3881, 0.0
        %v3944 = vrot.slane %v1509, 7
        %v3945 = vsel %vm1572, %v1573, %v3944
        %v3946 = vrot.slane %v1510, 7
        %v3947 = vsel %vm1572, %v3944, %v3946
        %v3948 = vrot.slane %v1511, 7
        %v3949 = vsel %vm1572, %v1573, %v3948
        %v3950 = vrot.slane %v1512, 7
        %v3951 = vsel %vm1572, %v3948, %v3950
        %v3952 = vrot.slane %v1513, 7
        %v3953 = vsel %vm1572, %v1573, %v3952
        %v3954 = vrot.slane %v1514, 7
        %v3955 = vsel %vm1572, %v3952, %v3954
        %v3956 = vrot.slane %v1515, 7
        %v3957 = vsel %vm1572, %v1573, %v3956
        %v3958 = vrot.slane %v1516, 7
        %v3959 = vsel %vm1572, %v3956, %v3958
        %v3960 = vrot.slane %v1517, 7
        %v3961 = vsel %vm1572, %v1573, %v3960
        %v3962 = vrot.slane %v1518, 7
        %v3963 = vsel %vm1572, %v3960, %v3962
        %v3964 = vrot.slane %v1519, 7
        %v3965 = vsel %vm1572, %v1573, %v3964
        %v3966 = vrot.slane %v1520, 7
        %v3967 = vsel %vm1572, %v3964, %v3966
        %v3968 = vrot.slane %v1521, 7
        %v3969 = vsel %vm1572, %v1573, %v3968
        %v3970 = vrot.slane %v1522, 7
        %v3971 = vsel %vm1572, %v3968, %v3970
        %v3972 = vrot.slane %v1523, 7
        %v3973 = vsel %vm1572, %v1573, %v3972
        %v3974 = vrot.slane %v1524, 7
        %v3975 = vsel %vm1572, %v3972, %v3974
        %v3976 = vrot.slane %v1525, 7
        %v3977 = vsel %vm1572, %v1573, %v3976
        %v3978 = vrot.slane %v1526, 7
        %v3979 = vsel %vm1572, %v3976, %v3978
        %v3980 = vrot.slane %v1527, 7
        %v3981 = vsel %vm1572, %v1573, %v3980
        %v3982 = vrot.slane %v1528, 7
        %v3983 = vsel %vm1572, %v3980, %v3982
        %v3984 = vrot.slane %v1529, 7
        %v3985 = vsel %vm1572, %v1573, %v3984
        %v3986 = vrot.slane %v1530, 7
        %v3987 = vsel %vm1572, %v3984, %v3986
        %v3988 = vrot.slane %v1531, 7
        %v3989 = vsel %vm1572, %v1573, %v3988
        %v3990 = vrot.slane %v1532, 7
        %v3991 = vsel %vm1572, %v3988, %v3990
        %v3992 = vrot.slane %v1533, 7
        %v3993 = vsel %vm1572, %v1573, %v3992
        %v3994 = vrot.slane %v1534, 7
        %v3995 = vsel %vm1572, %v3992, %v3994
        %v3996 = vrot.slane %v1535, 7
        %v3997 = vsel %vm1572, %v1573, %v3996
        %v3998 = vrot.slane %v1536, 7
        %v3999 = vsel %vm1572, %v3996, %v3998
        %v4000 = vrot.slane %v1537, 7
        %v4001 = vsel %vm1572, %v1573, %v4000
        %v4002 = vrot.slane %v1538, 7
        %v4003 = vsel %vm1572, %v4000, %v4002
        %v4034 = vpack.c.bf16 %v3947, %v3945
        %v4035 = vpack.c.bf16 %v3951, %v3949
        %v4036 = vpack.c.bf16 %v3955, %v3953
        %v4037 = vpack.c.bf16 %v3959, %v3957
        %v4038 = vpack.c.bf16 %v3963, %v3961
        %v4039 = vpack.c.bf16 %v3967, %v3965
        %v4040 = vpack.c.bf16 %v3971, %v3969
        %v4041 = vpack.c.bf16 %v3975, %v3973
        %v4042 = vpack.c.bf16 %v3979, %v3977
        %v4043 = vpack.c.bf16 %v3983, %v3981
        %v4044 = vpack.c.bf16 %v3987, %v3985
        %v4045 = vpack.c.bf16 %v3991, %v3989
        %v4046 = vpack.c.bf16 %v3995, %v3993
        %v4047 = vpack.c.bf16 %v3999, %v3997
        %v4048 = vpack.c.bf16 %v4003, %v4001
        %v4049 = vld [vmem:[%s7] sm:$0xf]
        %v4050 = vld [vmem:[%s7 + $0x4] sm:$0xf]
        %v4051 = vld [vmem:[%s7 + $0x8] sm:$0xf]
        %v4052 = vld [vmem:[%s7 + $0xc] sm:$0xf]
        %v4053 = vpack.c.bf16 %v1510, %v1509
        %v4054 = vpack.c.bf16 %v1512, %v1511
        %v4055 = vpack.c.bf16 %v1514, %v1513
        %v4056 = vpack.c.bf16 %v1516, %v1515
        %v4057 = vpack.c.bf16 %v1518, %v1517
        %v4058 = vpack.c.bf16 %v1520, %v1519
        %v4059 = vpack.c.bf16 %v1522, %v1521
        %v4060 = vpack.c.bf16 %v1524, %v1523
        %v4061 = vpack.c.bf16 %v1526, %v1525
        %v4062 = vpack.c.bf16 %v1528, %v1527
        %v4063 = vpack.c.bf16 %v1530, %v1529
        %v4064 = vpack.c.bf16 %v1532, %v1531
        %v4065 = vpack.c.bf16 %v1534, %v1533
        %v4066 = vpack.c.bf16 %v1536, %v1535
        %v4067 = vpack.c.bf16 %v1538, %v1537
        %s4068 = scalar_lea.vmem %s7, 16
        %v4069 = vld [vmem:[%s4068] sm:$0xf]
        %v4070 = vld [vmem:[%s4068 + $0x4] sm:$0xf]
        %v4071 = vld [vmem:[%s4068 + $0x8] sm:$0xf]
        %v4072 = vld [vmem:[%s4068 + $0xc] sm:$0xf]
        %v4077 = vunpack.c.l.b16 %v4069
        %v4078 = vunpack.c.l.b16 %v4070
        %v4079 = vunpack.c.l.b16 %v4071
        %v4080 = vunpack.c.l.b16 %v4072
        %v4081 = vpack.c.b16 %v4078, %v4077
        %v4082 = vpack.c.b16 %v4080, %v4079
        %v4086 = vsel %vm1719, %v4053, 0
        %v4089 = vsel %vm1719, %v4054, 0
        %v4092 = vsel %vm1719, %v4055, 0
        %v4095 = vsel %vm1719, %v4056, 0
        %v4098 = vsel %vm1719, %v4057, 0
        %v4101 = vsel %vm1719, %v4058, 0
        %v4104 = vsel %vm1719, %v4059, 0
        %v4107 = vsel %vm1719, %v4060, 0
        %v4110 = vsel %vm1719, %v4061, 0
        %v4113 = vsel %vm1719, %v4062, 0
        %v4116 = vsel %vm1719, %v4063, 0
        %v4119 = vsel %vm1719, %v4064, 0
        %v4122 = vsel %vm1719, %v4065, 0
        %v4125 = vsel %vm1719, %v4066, 0
        %v4128 = vsel %vm1719, %v4067, 0
        %4130 = vmatprep.subr.bf16.mxu0 0
        %4131 = vmatpush1.bf16.msra.mxu0 0
        %4132 = vmatprep.subr.bf16.mxu0 0
        %4133 = vmatpush1.bf16.msra.mxu0 0
        %4134 = vmatprep.subr.bf16.mxu0 0
        %4135 = vmatpush1.bf16.msra.mxu0 0
        %4136 = vmatprep.subr.bf16.mxu0 0
        %4137 = vmatpush1.bf16.msra.mxu0 0
        %4138 = vmatprep.subr.bf16.mxu0 0
        %4139 = vmatpush1.bf16.msra.mxu0 0
        %4140 = vmatprep.subr.bf16.mxu0 0
        %4141 = vmatpush1.bf16.msra.mxu0 0
        %4142 = vmatprep.subr.bf16.mxu0 0
        %4143 = vmatpush1.bf16.msra.mxu0 %v4082
        %4144 = vmatprep.subr.bf16.mxu0 0
        %4145 = vmatpush1.bf16.msra.mxu0 %v4081
        %4146 = vmatprep.subr.bf16.mxu0 0
        %4147 = vmatpush2.bf16.msra.mxu0 0
        %4148 = vmatprep.subr.bf16.mxu0 0
        %4149 = vmatpush2.bf16.msra.mxu0 0
        %4150 = vmatprep.subr.bf16.mxu0 0
        %4151 = vmatpush2.bf16.msra.mxu0 0
        %4152 = vmatprep.subr.bf16.mxu0 0
        %4153 = vmatpush2.bf16.msra.mxu0 0
        %4154 = vmatprep.subr.bf16.mxu0 0
        %4155 = vmatpush2.bf16.msra.mxu0 0
        %4156 = vmatprep.subr.bf16.mxu0 0
        %4157 = vmatpush2.bf16.msra.mxu0 0
        %4158 = vmatprep.subr.bf16.mxu0 0
        %4159 = vmatpush2.bf16.msra.mxu0 0
        %4160 = vmatprep.subr.bf16.mxu0 0
        %4161 = vmatpush2.bf16.msra.mxu0 0
        %4162 = vmatprep.mubr.bf16.mxu0 0
        %4163 = vmatmul.mubr.bf16.gmra.mxu0 %v1721
        %v4164 = vpop.f32.mrf.mxu0
        %v4165 = vadd.f32 0.0, %v4164
        %v4166 = vpop.f32.mrf.mxu0
        %v4167 = vpop.f32.mrf.mxu0
        %v4168 = vadd.f32 0.0, %v4167
        %v4169 = vpop.f32.mrf.mxu0
        %4170 = vmatprep.mubr.bf16.mxu0 0
        %4171 = vmatmul.mubr.bf16.gmra.mxu0 %v4086
        %v4172 = vpop.f32.mrf.mxu0
        %v4173 = vadd.f32 0.0, %v4172
        %v4174 = vpop.f32.mrf.mxu0
        %v4175 = vpop.f32.mrf.mxu0
        %v4176 = vadd.f32 0.0, %v4175
        %v4177 = vpop.f32.mrf.mxu0
        %4178 = vmatprep.mubr.bf16.mxu0 0
        %4179 = vmatmul.mubr.bf16.gmra.mxu0 %v4089
        %v4180 = vpop.f32.mrf.mxu0
        %v4181 = vadd.f32 0.0, %v4180
        %v4182 = vpop.f32.mrf.mxu0
        %v4183 = vpop.f32.mrf.mxu0
        %v4184 = vadd.f32 0.0, %v4183
        %v4185 = vpop.f32.mrf.mxu0
        %4186 = vmatprep.mubr.bf16.mxu0 0
        %4187 = vmatmul.mubr.bf16.gmra.mxu0 %v4092
        %v4188 = vpop.f32.mrf.mxu0
        %v4189 = vadd.f32 0.0, %v4188
        %v4190 = vpop.f32.mrf.mxu0
        %v4191 = vpop.f32.mrf.mxu0
        %v4192 = vadd.f32 0.0, %v4191
        %v4193 = vpop.f32.mrf.mxu0
        %4194 = vmatprep.mubr.bf16.mxu0 0
        %4195 = vmatmul.mubr.bf16.gmra.mxu0 %v4095
        %v4196 = vpop.f32.mrf.mxu0
        %v4197 = vadd.f32 0.0, %v4196
        %v4198 = vpop.f32.mrf.mxu0
        %v4199 = vpop.f32.mrf.mxu0
        %v4200 = vadd.f32 0.0, %v4199
        %v4201 = vpop.f32.mrf.mxu0
        %4202 = vmatprep.mubr.bf16.mxu0 0
        %4203 = vmatmul.mubr.bf16.gmra.mxu0 %v4098
        %v4204 = vpop.f32.mrf.mxu0
        %v4205 = vadd.f32 0.0, %v4204
        %v4206 = vpop.f32.mrf.mxu0
        %v4207 = vpop.f32.mrf.mxu0
        %v4208 = vadd.f32 0.0, %v4207
        %v4209 = vpop.f32.mrf.mxu0
        %4210 = vmatprep.mubr.bf16.mxu0 0
        %4211 = vmatmul.mubr.bf16.gmra.mxu0 %v4101
        %v4212 = vpop.f32.mrf.mxu0
        %v4213 = vadd.f32 0.0, %v4212
        %v4214 = vpop.f32.mrf.mxu0
        %v4215 = vpop.f32.mrf.mxu0
        %v4216 = vadd.f32 0.0, %v4215
        %v4217 = vpop.f32.mrf.mxu0
        %4218 = vmatprep.mubr.bf16.mxu0 0
        %4219 = vmatmul.mubr.bf16.gmra.mxu0 %v4104
        %v4220 = vpop.f32.mrf.mxu0
        %v4221 = vadd.f32 0.0, %v4220
        %v4222 = vpop.f32.mrf.mxu0
        %v4223 = vpop.f32.mrf.mxu0
        %v4224 = vadd.f32 0.0, %v4223
        %v4225 = vpop.f32.mrf.mxu0
        %4226 = vmatprep.mubr.bf16.mxu0 0
        %4227 = vmatmul.mubr.bf16.gmra.mxu0 %v4107
        %v4228 = vpop.f32.mrf.mxu0
        %v4229 = vadd.f32 0.0, %v4228
        %v4230 = vpop.f32.mrf.mxu0
        %v4231 = vpop.f32.mrf.mxu0
        %v4232 = vadd.f32 0.0, %v4231
        %v4233 = vpop.f32.mrf.mxu0
        %4234 = vmatprep.mubr.bf16.mxu0 0
        %4235 = vmatmul.mubr.bf16.gmra.mxu0 %v4110
        %v4236 = vpop.f32.mrf.mxu0
        %v4237 = vadd.f32 0.0, %v4236
        %v4238 = vpop.f32.mrf.mxu0
        %v4239 = vpop.f32.mrf.mxu0
        %v4240 = vadd.f32 0.0, %v4239
        %v4241 = vpop.f32.mrf.mxu0
        %4242 = vmatprep.mubr.bf16.mxu0 0
        %4243 = vmatmul.mubr.bf16.gmra.mxu0 %v4113
        %v4244 = vpop.f32.mrf.mxu0
        %v4245 = vadd.f32 0.0, %v4244
        %v4246 = vpop.f32.mrf.mxu0
        %v4247 = vpop.f32.mrf.mxu0
        %v4248 = vadd.f32 0.0, %v4247
        %v4249 = vpop.f32.mrf.mxu0
        %4250 = vmatprep.mubr.bf16.mxu0 0
        %4251 = vmatmul.mubr.bf16.gmra.mxu0 %v4116
        %v4252 = vpop.f32.mrf.mxu0
        %v4253 = vadd.f32 0.0, %v4252
        %v4254 = vpop.f32.mrf.mxu0
        %v4255 = vpop.f32.mrf.mxu0
        %v4256 = vadd.f32 0.0, %v4255
        %v4257 = vpop.f32.mrf.mxu0
        %4258 = vmatprep.mubr.bf16.mxu0 0
        %4259 = vmatmul.mubr.bf16.gmra.mxu0 %v4119
        %v4260 = vpop.f32.mrf.mxu0
        %v4261 = vadd.f32 0.0, %v4260
        %v4262 = vpop.f32.mrf.mxu0
        %v4263 = vpop.f32.mrf.mxu0
        %v4264 = vadd.f32 0.0, %v4263
        %v4265 = vpop.f32.mrf.mxu0
        %4266 = vmatprep.mubr.bf16.mxu0 0
        %4267 = vmatmul.mubr.bf16.gmra.mxu0 %v4122
        %v4268 = vpop.f32.mrf.mxu0
        %v4269 = vadd.f32 0.0, %v4268
        %v4270 = vpop.f32.mrf.mxu0
        %v4271 = vpop.f32.mrf.mxu0
        %v4272 = vadd.f32 0.0, %v4271
        %v4273 = vpop.f32.mrf.mxu0
        %4274 = vmatprep.mubr.bf16.mxu0 0
        %4275 = vmatmul.mubr.bf16.gmra.mxu0 %v4125
        %v4276 = vpop.f32.mrf.mxu0
        %v4277 = vadd.f32 0.0, %v4276
        %v4278 = vpop.f32.mrf.mxu0
        %v4279 = vpop.f32.mrf.mxu0
        %v4280 = vadd.f32 0.0, %v4279
        %v4281 = vpop.f32.mrf.mxu0
        %4282 = vmatprep.mubr.bf16.mxu0 0
        %4283 = vmatmul.mubr.bf16.gmra.mxu0 %v4128
        %v4284 = vpop.f32.mrf.mxu0
        %v4285 = vadd.f32 0.0, %v4284
        %v4286 = vpop.f32.mrf.mxu0
        %v4287 = vpop.f32.mrf.mxu0
        %v4288 = vadd.f32 0.0, %v4287
        %v4289 = vpop.f32.mrf.mxu0
        %4290 = vdwg.mxu0
        %v4295 = vunpack.c.l.b16 %v4049
        %v4296 = vunpack.c.l.b16 %v4050
        %v4297 = vunpack.c.l.b16 %v4051
        %v4298 = vunpack.c.l.b16 %v4052
        %v4299 = vpack.c.b16 %v4296, %v4295
        %v4300 = vpack.c.b16 %v4298, %v4297
        %v4304 = vsel %vm1719, %v4034, 0
        %v4307 = vsel %vm1719, %v4035, 0
        %v4310 = vsel %vm1719, %v4036, 0
        %v4313 = vsel %vm1719, %v4037, 0
        %v4316 = vsel %vm1719, %v4038, 0
        %v4319 = vsel %vm1719, %v4039, 0
        %v4322 = vsel %vm1719, %v4040, 0
        %v4325 = vsel %vm1719, %v4041, 0
        %v4328 = vsel %vm1719, %v4042, 0
        %v4331 = vsel %vm1719, %v4043, 0
        %v4334 = vsel %vm1719, %v4044, 0
        %v4337 = vsel %vm1719, %v4045, 0
        %v4340 = vsel %vm1719, %v4046, 0
        %v4343 = vsel %vm1719, %v4047, 0
        %v4346 = vsel %vm1719, %v4048, 0
        %4348 = vmatprep.subr.bf16.mxu0 0
        %4349 = vmatpush1.bf16.msra.mxu0 0
        %4350 = vmatprep.subr.bf16.mxu0 0
        %4351 = vmatpush1.bf16.msra.mxu0 0
        %4352 = vmatprep.subr.bf16.mxu0 0
        %4353 = vmatpush1.bf16.msra.mxu0 0
        %4354 = vmatprep.subr.bf16.mxu0 0
        %4355 = vmatpush1.bf16.msra.mxu0 0
        %4356 = vmatprep.subr.bf16.mxu0 0
        %4357 = vmatpush1.bf16.msra.mxu0 0
        %4358 = vmatprep.subr.bf16.mxu0 0
        %4359 = vmatpush1.bf16.msra.mxu0 0
        %4360 = vmatprep.subr.bf16.mxu0 0
        %4361 = vmatpush1.bf16.msra.mxu0 %v4300
        %4362 = vmatprep.subr.bf16.mxu0 0
        %4363 = vmatpush1.bf16.msra.mxu0 %v4299
        %4364 = vmatprep.subr.bf16.mxu0 0
        %4365 = vmatpush2.bf16.msra.mxu0 0
        %4366 = vmatprep.subr.bf16.mxu0 0
        %4367 = vmatpush2.bf16.msra.mxu0 0
        %4368 = vmatprep.subr.bf16.mxu0 0
        %4369 = vmatpush2.bf16.msra.mxu0 0
        %4370 = vmatprep.subr.bf16.mxu0 0
        %4371 = vmatpush2.bf16.msra.mxu0 0
        %4372 = vmatprep.subr.bf16.mxu0 0
        %4373 = vmatpush2.bf16.msra.mxu0 0
        %4374 = vmatprep.subr.bf16.mxu0 0
        %4375 = vmatpush2.bf16.msra.mxu0 0
        %4376 = vmatprep.subr.bf16.mxu0 0
        %4377 = vmatpush2.bf16.msra.mxu0 0
        %4378 = vmatprep.subr.bf16.mxu0 0
        %4379 = vmatpush2.bf16.msra.mxu0 0
        %4380 = vmatprep.mubr.bf16.mxu0 0
        %4381 = vmatmul.mubr.bf16.gmra.mxu0 %v1942
        %v4382 = vpop.f32.mrf.mxu0
        %v4383 = vadd.f32 %v4165, %v4382
        %v4384 = vpop.f32.mrf.mxu0
        %v4385 = vpop.f32.mrf.mxu0
        %v4386 = vadd.f32 %v4168, %v4385
        %v4387 = vpop.f32.mrf.mxu0
        %4388 = vmatprep.mubr.bf16.mxu0 0
        %4389 = vmatmul.mubr.bf16.gmra.mxu0 %v4304
        %v4390 = vpop.f32.mrf.mxu0
        %v4391 = vadd.f32 %v4173, %v4390
        %v4392 = vpop.f32.mrf.mxu0
        %v4393 = vpop.f32.mrf.mxu0
        %v4394 = vadd.f32 %v4176, %v4393
        %v4395 = vpop.f32.mrf.mxu0
        %4396 = vmatprep.mubr.bf16.mxu0 0
        %4397 = vmatmul.mubr.bf16.gmra.mxu0 %v4307
        %v4398 = vpop.f32.mrf.mxu0
        %v4399 = vadd.f32 %v4181, %v4398
        %v4400 = vpop.f32.mrf.mxu0
        %v4401 = vpop.f32.mrf.mxu0
        %v4402 = vadd.f32 %v4184, %v4401
        %v4403 = vpop.f32.mrf.mxu0
        %4404 = vmatprep.mubr.bf16.mxu0 0
        %4405 = vmatmul.mubr.bf16.gmra.mxu0 %v4310
        %v4406 = vpop.f32.mrf.mxu0
        %v4407 = vadd.f32 %v4189, %v4406
        %v4408 = vpop.f32.mrf.mxu0
        %v4409 = vpop.f32.mrf.mxu0
        %v4410 = vadd.f32 %v4192, %v4409
        %v4411 = vpop.f32.mrf.mxu0
        %4412 = vmatprep.mubr.bf16.mxu0 0
        %4413 = vmatmul.mubr.bf16.gmra.mxu0 %v4313
        %v4414 = vpop.f32.mrf.mxu0
        %v4415 = vadd.f32 %v4197, %v4414
        %v4416 = vpop.f32.mrf.mxu0
        %v4417 = vpop.f32.mrf.mxu0
        %v4418 = vadd.f32 %v4200, %v4417
        %v4419 = vpop.f32.mrf.mxu0
        %4420 = vmatprep.mubr.bf16.mxu0 0
        %4421 = vmatmul.mubr.bf16.gmra.mxu0 %v4316
        %v4422 = vpop.f32.mrf.mxu0
        %v4423 = vadd.f32 %v4205, %v4422
        %v4424 = vpop.f32.mrf.mxu0
        %v4425 = vpop.f32.mrf.mxu0
        %v4426 = vadd.f32 %v4208, %v4425
        %v4427 = vpop.f32.mrf.mxu0
        %4428 = vmatprep.mubr.bf16.mxu0 0
        %4429 = vmatmul.mubr.bf16.gmra.mxu0 %v4319
        %v4430 = vpop.f32.mrf.mxu0
        %v4431 = vadd.f32 %v4213, %v4430
        %v4432 = vpop.f32.mrf.mxu0
        %v4433 = vpop.f32.mrf.mxu0
        %v4434 = vadd.f32 %v4216, %v4433
        %v4435 = vpop.f32.mrf.mxu0
        %4436 = vmatprep.mubr.bf16.mxu0 0
        %4437 = vmatmul.mubr.bf16.gmra.mxu0 %v4322
        %v4438 = vpop.f32.mrf.mxu0
        %v4439 = vadd.f32 %v4221, %v4438
        %v4440 = vpop.f32.mrf.mxu0
        %v4441 = vpop.f32.mrf.mxu0
        %v4442 = vadd.f32 %v4224, %v4441
        %v4443 = vpop.f32.mrf.mxu0
        %4444 = vmatprep.mubr.bf16.mxu0 0
        %4445 = vmatmul.mubr.bf16.gmra.mxu0 %v4325
        %v4446 = vpop.f32.mrf.mxu0
        %v4447 = vadd.f32 %v4229, %v4446
        %v4448 = vpop.f32.mrf.mxu0
        %v4449 = vpop.f32.mrf.mxu0
        %v4450 = vadd.f32 %v4232, %v4449
        %v4451 = vpop.f32.mrf.mxu0
        %4452 = vmatprep.mubr.bf16.mxu0 0
        %4453 = vmatmul.mubr.bf16.gmra.mxu0 %v4328
        %v4454 = vpop.f32.mrf.mxu0
        %v4455 = vadd.f32 %v4237, %v4454
        %v4456 = vpop.f32.mrf.mxu0
        %v4457 = vpop.f32.mrf.mxu0
        %v4458 = vadd.f32 %v4240, %v4457
        %v4459 = vpop.f32.mrf.mxu0
        %4460 = vmatprep.mubr.bf16.mxu0 0
        %4461 = vmatmul.mubr.bf16.gmra.mxu0 %v4331
        %v4462 = vpop.f32.mrf.mxu0
        %v4463 = vadd.f32 %v4245, %v4462
        %v4464 = vpop.f32.mrf.mxu0
        %v4465 = vpop.f32.mrf.mxu0
        %v4466 = vadd.f32 %v4248, %v4465
        %v4467 = vpop.f32.mrf.mxu0
        %4468 = vmatprep.mubr.bf16.mxu0 0
        %4469 = vmatmul.mubr.bf16.gmra.mxu0 %v4334
        %v4470 = vpop.f32.mrf.mxu0
        %v4471 = vadd.f32 %v4253, %v4470
        %v4472 = vpop.f32.mrf.mxu0
        %v4473 = vpop.f32.mrf.mxu0
        %v4474 = vadd.f32 %v4256, %v4473
        %v4475 = vpop.f32.mrf.mxu0
        %4476 = vmatprep.mubr.bf16.mxu0 0
        %4477 = vmatmul.mubr.bf16.gmra.mxu0 %v4337
        %v4478 = vpop.f32.mrf.mxu0
        %v4479 = vadd.f32 %v4261, %v4478
        %v4480 = vpop.f32.mrf.mxu0
        %v4481 = vpop.f32.mrf.mxu0
        %v4482 = vadd.f32 %v4264, %v4481
        %v4483 = vpop.f32.mrf.mxu0
        %4484 = vmatprep.mubr.bf16.mxu0 0
        %4485 = vmatmul.mubr.bf16.gmra.mxu0 %v4340
        %v4486 = vpop.f32.mrf.mxu0
        %v4487 = vadd.f32 %v4269, %v4486
        %v4488 = vpop.f32.mrf.mxu0
        %v4489 = vpop.f32.mrf.mxu0
        %v4490 = vadd.f32 %v4272, %v4489
        %v4491 = vpop.f32.mrf.mxu0
        %4492 = vmatprep.mubr.bf16.mxu0 0
        %4493 = vmatmul.mubr.bf16.gmra.mxu0 %v4343
        %v4494 = vpop.f32.mrf.mxu0
        %v4495 = vadd.f32 %v4277, %v4494
        %v4496 = vpop.f32.mrf.mxu0
        %v4497 = vpop.f32.mrf.mxu0
        %v4498 = vadd.f32 %v4280, %v4497
        %v4499 = vpop.f32.mrf.mxu0
        %4500 = vmatprep.mubr.bf16.mxu0 0
        %4501 = vmatmul.mubr.bf16.gmra.mxu0 %v4346
        %v4502 = vpop.f32.mrf.mxu0
        %v4503 = vadd.f32 %v4285, %v4502
        %v4504 = vpop.f32.mrf.mxu0
        %v4505 = vpop.f32.mrf.mxu0
        %v4506 = vadd.f32 %v4288, %v4505
        %v4507 = vpop.f32.mrf.mxu0
        %4508 = vdwg.mxu0
        %v4509 = vrot.slane %v1509, 1
        %v4510 = vrot.slane %v1510, 1
        %v4511 = vsel %vm2150, %v4509, %v4510
        %v4512 = vsel %vm2150, %v4510, %v2151
        %v4513 = vrot.slane %v1511, 1
        %v4514 = vrot.slane %v1512, 1
        %v4515 = vsel %vm2150, %v4513, %v4514
        %v4516 = vsel %vm2150, %v4514, %v2151
        %v4517 = vrot.slane %v1513, 1
        %v4518 = vrot.slane %v1514, 1
        %v4519 = vsel %vm2150, %v4517, %v4518
        %v4520 = vsel %vm2150, %v4518, %v2151
        %v4521 = vrot.slane %v1515, 1
        %v4522 = vrot.slane %v1516, 1
        %v4523 = vsel %vm2150, %v4521, %v4522
        %v4524 = vsel %vm2150, %v4522, %v2151
        %v4525 = vrot.slane %v1517, 1
        %v4526 = vrot.slane %v1518, 1
        %v4527 = vsel %vm2150, %v4525, %v4526
        %v4528 = vsel %vm2150, %v4526, %v2151
        %v4529 = vrot.slane %v1519, 1
        %v4530 = vrot.slane %v1520, 1
        %v4531 = vsel %vm2150, %v4529, %v4530
        %v4532 = vsel %vm2150, %v4530, %v2151
        %v4533 = vrot.slane %v1521, 1
        %v4534 = vrot.slane %v1522, 1
        %v4535 = vsel %vm2150, %v4533, %v4534
        %v4536 = vsel %vm2150, %v4534, %v2151
        %v4537 = vrot.slane %v1523, 1
        %v4538 = vrot.slane %v1524, 1
        %v4539 = vsel %vm2150, %v4537, %v4538
        %v4540 = vsel %vm2150, %v4538, %v2151
        %v4541 = vrot.slane %v1525, 1
        %v4542 = vrot.slane %v1526, 1
        %v4543 = vsel %vm2150, %v4541, %v4542
        %v4544 = vsel %vm2150, %v4542, %v2151
        %v4545 = vrot.slane %v1527, 1
        %v4546 = vrot.slane %v1528, 1
        %v4547 = vsel %vm2150, %v4545, %v4546
        %v4548 = vsel %vm2150, %v4546, %v2151
        %v4549 = vrot.slane %v1529, 1
        %v4550 = vrot.slane %v1530, 1
        %v4551 = vsel %vm2150, %v4549, %v4550
        %v4552 = vsel %vm2150, %v4550, %v2151
        %v4553 = vrot.slane %v1531, 1
        %v4554 = vrot.slane %v1532, 1
        %v4555 = vsel %vm2150, %v4553, %v4554
        %v4556 = vsel %vm2150, %v4554, %v2151
        %v4557 = vrot.slane %v1533, 1
        %v4558 = vrot.slane %v1534, 1
        %v4559 = vsel %vm2150, %v4557, %v4558
        %v4560 = vsel %vm2150, %v4558, %v2151
        %v4561 = vrot.slane %v1535, 1
        %v4562 = vrot.slane %v1536, 1
        %v4563 = vsel %vm2150, %v4561, %v4562
        %v4564 = vsel %vm2150, %v4562, %v2151
        %v4565 = vrot.slane %v1537, 1
        %v4566 = vrot.slane %v1538, 1
        %v4567 = vsel %vm2150, %v4565, %v4566
        %v4568 = vsel %vm2150, %v4566, %v2151
        %v4599 = vpack.c.bf16 %v4512, %v4511
        %v4600 = vpack.c.bf16 %v4516, %v4515
        %v4601 = vpack.c.bf16 %v4520, %v4519
        %v4602 = vpack.c.bf16 %v4524, %v4523
        %v4603 = vpack.c.bf16 %v4528, %v4527
        %v4604 = vpack.c.bf16 %v4532, %v4531
        %v4605 = vpack.c.bf16 %v4536, %v4535
        %v4606 = vpack.c.bf16 %v4540, %v4539
        %v4607 = vpack.c.bf16 %v4544, %v4543
        %v4608 = vpack.c.bf16 %v4548, %v4547
        %v4609 = vpack.c.bf16 %v4552, %v4551
        %v4610 = vpack.c.bf16 %v4556, %v4555
        %v4611 = vpack.c.bf16 %v4560, %v4559
        %v4612 = vpack.c.bf16 %v4564, %v4563
        %v4613 = vpack.c.bf16 %v4568, %v4567
        %s4614 = scalar_lea.vmem %s7, 32
        %v4615 = vld [vmem:[%s4614] sm:$0xf]
        %v4616 = vld [vmem:[%s4614 + $0x4] sm:$0xf]
        %v4617 = vld [vmem:[%s4614 + $0x8] sm:$0xf]
        %v4618 = vld [vmem:[%s4614 + $0xc] sm:$0xf]
        %v4623 = vunpack.c.l.b16 %v4615
        %v4624 = vunpack.c.l.b16 %v4616
        %v4625 = vunpack.c.l.b16 %v4617
        %v4626 = vunpack.c.l.b16 %v4618
        %v4627 = vpack.c.b16 %v4624, %v4623
        %v4628 = vpack.c.b16 %v4626, %v4625
        %v4632 = vsel %vm1719, %v4599, 0
        %v4635 = vsel %vm1719, %v4600, 0
        %v4638 = vsel %vm1719, %v4601, 0
        %v4641 = vsel %vm1719, %v4602, 0
        %v4644 = vsel %vm1719, %v4603, 0
        %v4647 = vsel %vm1719, %v4604, 0
        %v4650 = vsel %vm1719, %v4605, 0
        %v4653 = vsel %vm1719, %v4606, 0
        %v4656 = vsel %vm1719, %v4607, 0
        %v4659 = vsel %vm1719, %v4608, 0
        %v4662 = vsel %vm1719, %v4609, 0
        %v4665 = vsel %vm1719, %v4610, 0
        %v4668 = vsel %vm1719, %v4611, 0
        %v4671 = vsel %vm1719, %v4612, 0
        %v4674 = vsel %vm1719, %v4613, 0
        %4676 = vmatprep.subr.bf16.mxu0 0
        %4677 = vmatpush1.bf16.msra.mxu0 0
        %4678 = vmatprep.subr.bf16.mxu0 0
        %4679 = vmatpush1.bf16.msra.mxu0 0
        %4680 = vmatprep.subr.bf16.mxu0 0
        %4681 = vmatpush1.bf16.msra.mxu0 0
        %4682 = vmatprep.subr.bf16.mxu0 0
        %4683 = vmatpush1.bf16.msra.mxu0 0
        %4684 = vmatprep.subr.bf16.mxu0 0
        %4685 = vmatpush1.bf16.msra.mxu0 0
        %4686 = vmatprep.subr.bf16.mxu0 0
        %4687 = vmatpush1.bf16.msra.mxu0 0
        %4688 = vmatprep.subr.bf16.mxu0 0
        %4689 = vmatpush1.bf16.msra.mxu0 %v4628
        %4690 = vmatprep.subr.bf16.mxu0 0
        %4691 = vmatpush1.bf16.msra.mxu0 %v4627
        %4692 = vmatprep.subr.bf16.mxu0 0
        %4693 = vmatpush2.bf16.msra.mxu0 0
        %4694 = vmatprep.subr.bf16.mxu0 0
        %4695 = vmatpush2.bf16.msra.mxu0 0
        %4696 = vmatprep.subr.bf16.mxu0 0
        %4697 = vmatpush2.bf16.msra.mxu0 0
        %4698 = vmatprep.subr.bf16.mxu0 0
        %4699 = vmatpush2.bf16.msra.mxu0 0
        %4700 = vmatprep.subr.bf16.mxu0 0
        %4701 = vmatpush2.bf16.msra.mxu0 0
        %4702 = vmatprep.subr.bf16.mxu0 0
        %4703 = vmatpush2.bf16.msra.mxu0 0
        %4704 = vmatprep.subr.bf16.mxu0 0
        %4705 = vmatpush2.bf16.msra.mxu0 0
        %4706 = vmatprep.subr.bf16.mxu0 0
        %4707 = vmatpush2.bf16.msra.mxu0 0
        %4708 = vmatprep.mubr.bf16.mxu0 0
        %4709 = vmatmul.mubr.bf16.gmra.mxu0 %v2278
        %v4710 = vpop.f32.mrf.mxu0
        %v4711 = vadd.f32 0.0, %v4710
        %v4712 = vpop.f32.mrf.mxu0
        %v4713 = vpop.f32.mrf.mxu0
        %v4714 = vadd.f32 0.0, %v4713
        %v4715 = vpop.f32.mrf.mxu0
        %4716 = vmatprep.mubr.bf16.mxu0 0
        %4717 = vmatmul.mubr.bf16.gmra.mxu0 %v4632
        %v4718 = vpop.f32.mrf.mxu0
        %v4719 = vadd.f32 0.0, %v4718
        %v4720 = vpop.f32.mrf.mxu0
        %v4721 = vpop.f32.mrf.mxu0
        %v4722 = vadd.f32 0.0, %v4721
        %v4723 = vpop.f32.mrf.mxu0
        %4724 = vmatprep.mubr.bf16.mxu0 0
        %4725 = vmatmul.mubr.bf16.gmra.mxu0 %v4635
        %v4726 = vpop.f32.mrf.mxu0
        %v4727 = vadd.f32 0.0, %v4726
        %v4728 = vpop.f32.mrf.mxu0
        %v4729 = vpop.f32.mrf.mxu0
        %v4730 = vadd.f32 0.0, %v4729
        %v4731 = vpop.f32.mrf.mxu0
        %4732 = vmatprep.mubr.bf16.mxu0 0
        %4733 = vmatmul.mubr.bf16.gmra.mxu0 %v4638
        %v4734 = vpop.f32.mrf.mxu0
        %v4735 = vadd.f32 0.0, %v4734
        %v4736 = vpop.f32.mrf.mxu0
        %v4737 = vpop.f32.mrf.mxu0
        %v4738 = vadd.f32 0.0, %v4737
        %v4739 = vpop.f32.mrf.mxu0
        %4740 = vmatprep.mubr.bf16.mxu0 0
        %4741 = vmatmul.mubr.bf16.gmra.mxu0 %v4641
        %v4742 = vpop.f32.mrf.mxu0
        %v4743 = vadd.f32 0.0, %v4742
        %v4744 = vpop.f32.mrf.mxu0
        %v4745 = vpop.f32.mrf.mxu0
        %v4746 = vadd.f32 0.0, %v4745
        %v4747 = vpop.f32.mrf.mxu0
        %4748 = vmatprep.mubr.bf16.mxu0 0
        %4749 = vmatmul.mubr.bf16.gmra.mxu0 %v4644
        %v4750 = vpop.f32.mrf.mxu0
        %v4751 = vadd.f32 0.0, %v4750
        %v4752 = vpop.f32.mrf.mxu0
        %v4753 = vpop.f32.mrf.mxu0
        %v4754 = vadd.f32 0.0, %v4753
        %v4755 = vpop.f32.mrf.mxu0
        %4756 = vmatprep.mubr.bf16.mxu0 0
        %4757 = vmatmul.mubr.bf16.gmra.mxu0 %v4647
        %v4758 = vpop.f32.mrf.mxu0
        %v4759 = vadd.f32 0.0, %v4758
        %v4760 = vpop.f32.mrf.mxu0
        %v4761 = vpop.f32.mrf.mxu0
        %v4762 = vadd.f32 0.0, %v4761
        %v4763 = vpop.f32.mrf.mxu0
        %4764 = vmatprep.mubr.bf16.mxu0 0
        %4765 = vmatmul.mubr.bf16.gmra.mxu0 %v4650
        %v4766 = vpop.f32.mrf.mxu0
        %v4767 = vadd.f32 0.0, %v4766
        %v4768 = vpop.f32.mrf.mxu0
        %v4769 = vpop.f32.mrf.mxu0
        %v4770 = vadd.f32 0.0, %v4769
        %v4771 = vpop.f32.mrf.mxu0
        %4772 = vmatprep.mubr.bf16.mxu0 0
        %4773 = vmatmul.mubr.bf16.gmra.mxu0 %v4653
        %v4774 = vpop.f32.mrf.mxu0
        %v4775 = vadd.f32 0.0, %v4774
        %v4776 = vpop.f32.mrf.mxu0
        %v4777 = vpop.f32.mrf.mxu0
        %v4778 = vadd.f32 0.0, %v4777
        %v4779 = vpop.f32.mrf.mxu0
        %4780 = vmatprep.mubr.bf16.mxu0 0
        %4781 = vmatmul.mubr.bf16.gmra.mxu0 %v4656
        %v4782 = vpop.f32.mrf.mxu0
        %v4783 = vadd.f32 0.0, %v4782
        %v4784 = vpop.f32.mrf.mxu0
        %v4785 = vpop.f32.mrf.mxu0
        %v4786 = vadd.f32 0.0, %v4785
        %v4787 = vpop.f32.mrf.mxu0
        %4788 = vmatprep.mubr.bf16.mxu0 0
        %4789 = vmatmul.mubr.bf16.gmra.mxu0 %v4659
        %v4790 = vpop.f32.mrf.mxu0
        %v4791 = vadd.f32 0.0, %v4790
        %v4792 = vpop.f32.mrf.mxu0
        %v4793 = vpop.f32.mrf.mxu0
        %v4794 = vadd.f32 0.0, %v4793
        %v4795 = vpop.f32.mrf.mxu0
        %4796 = vmatprep.mubr.bf16.mxu0 0
        %4797 = vmatmul.mubr.bf16.gmra.mxu0 %v4662
        %v4798 = vpop.f32.mrf.mxu0
        %v4799 = vadd.f32 0.0, %v4798
        %v4800 = vpop.f32.mrf.mxu0
        %v4801 = vpop.f32.mrf.mxu0
        %v4802 = vadd.f32 0.0, %v4801
        %v4803 = vpop.f32.mrf.mxu0
        %4804 = vmatprep.mubr.bf16.mxu0 0
        %4805 = vmatmul.mubr.bf16.gmra.mxu0 %v4665
        %v4806 = vpop.f32.mrf.mxu0
        %v4807 = vadd.f32 0.0, %v4806
        %v4808 = vpop.f32.mrf.mxu0
        %v4809 = vpop.f32.mrf.mxu0
        %v4810 = vadd.f32 0.0, %v4809
        %v4811 = vpop.f32.mrf.mxu0
        %4812 = vmatprep.mubr.bf16.mxu0 0
        %4813 = vmatmul.mubr.bf16.gmra.mxu0 %v4668
        %v4814 = vpop.f32.mrf.mxu0
        %v4815 = vadd.f32 0.0, %v4814
        %v4816 = vpop.f32.mrf.mxu0
        %v4817 = vpop.f32.mrf.mxu0
        %v4818 = vadd.f32 0.0, %v4817
        %v4819 = vpop.f32.mrf.mxu0
        %4820 = vmatprep.mubr.bf16.mxu0 0
        %4821 = vmatmul.mubr.bf16.gmra.mxu0 %v4671
        %v4822 = vpop.f32.mrf.mxu0
        %v4823 = vadd.f32 0.0, %v4822
        %v4824 = vpop.f32.mrf.mxu0
        %v4825 = vpop.f32.mrf.mxu0
        %v4826 = vadd.f32 0.0, %v4825
        %v4827 = vpop.f32.mrf.mxu0
        %4828 = vmatprep.mubr.bf16.mxu0 0
        %4829 = vmatmul.mubr.bf16.gmra.mxu0 %v4674
        %v4830 = vpop.f32.mrf.mxu0
        %v4831 = vadd.f32 0.0, %v4830
        %v4832 = vpop.f32.mrf.mxu0
        %v4833 = vpop.f32.mrf.mxu0
        %v4834 = vadd.f32 0.0, %v4833
        %v4835 = vpop.f32.mrf.mxu0
        %4836 = vdwg.mxu0
        %v4837 = vadd.f32 %v4383, %v4711
        %v4838 = vadd.f32 %v4386, %v4714
        %v4839 = vadd.f32 %v4391, %v4719
        %v4840 = vadd.f32 %v4394, %v4722
        %v4841 = vadd.f32 %v4399, %v4727
        %v4842 = vadd.f32 %v4402, %v4730
        %v4843 = vadd.f32 %v4407, %v4735
        %v4844 = vadd.f32 %v4410, %v4738
        %v4845 = vadd.f32 %v4415, %v4743
        %v4846 = vadd.f32 %v4418, %v4746
        %v4847 = vadd.f32 %v4423, %v4751
        %v4848 = vadd.f32 %v4426, %v4754
        %v4849 = vadd.f32 %v4431, %v4759
        %v4850 = vadd.f32 %v4434, %v4762
        %v4851 = vadd.f32 %v4439, %v4767
        %v4852 = vadd.f32 %v4442, %v4770
        %v4853 = vadd.f32 %v4447, %v4775
        %v4854 = vadd.f32 %v4450, %v4778
        %v4855 = vadd.f32 %v4455, %v4783
        %v4856 = vadd.f32 %v4458, %v4786
        %v4857 = vadd.f32 %v4463, %v4791
        %v4858 = vadd.f32 %v4466, %v4794
        %v4859 = vadd.f32 %v4471, %v4799
        %v4860 = vadd.f32 %v4474, %v4802
        %v4861 = vadd.f32 %v4479, %v4807
        %v4862 = vadd.f32 %v4482, %v4810
        %v4863 = vadd.f32 %v4487, %v4815
        %v4864 = vadd.f32 %v4490, %v4818
        %v4865 = vadd.f32 %v4495, %v4823
        %v4866 = vadd.f32 %v4498, %v4826
        %v4867 = vadd.f32 %v4503, %v4831
        %v4868 = vadd.f32 %v4506, %v4834
        %v4871 = vrot.slane %v1539, 7
        %v4872 = vsel %vm1572, %v1573, %v4871
        %v4873 = vrot.slane %v1540, 7
        %v4874 = vsel %vm1572, %v4871, %v4873
        %v4877 = vpack.c.bf16 %v4874, %v4872
        %s4878 = scalar_lea.vmem %s7, 48
        %v4879 = vld [vmem:[%s4878] sm:$0xf]
        %v4880 = vld [vmem:[%s4878 + $0x4] sm:$0xf]
        %v4881 = vld [vmem:[%s4878 + $0x8] sm:$0xf]
        %v4882 = vld [vmem:[%s4878 + $0xc] sm:$0xf]
        %v4887 = vunpack.c.l.b16 %v4879
        %v4888 = vunpack.c.l.b16 %v4880
        %v4889 = vunpack.c.l.b16 %v4881
        %v4890 = vunpack.c.l.b16 %v4882
        %v4891 = vpack.c.b16 %v4888, %v4887
        %v4892 = vpack.c.b16 %v4890, %v4889
        %v4896 = vsel %vm1719, %v4877, 0
        %4898 = vmatprep.subr.bf16.mxu0 0
        %4899 = vmatpush1.bf16.msra.mxu0 0
        %4900 = vmatprep.subr.bf16.mxu0 0
        %4901 = vmatpush1.bf16.msra.mxu0 0
        %4902 = vmatprep.subr.bf16.mxu0 0
        %4903 = vmatpush1.bf16.msra.mxu0 0
        %4904 = vmatprep.subr.bf16.mxu0 0
        %4905 = vmatpush1.bf16.msra.mxu0 0
        %4906 = vmatprep.subr.bf16.mxu0 0
        %4907 = vmatpush1.bf16.msra.mxu0 0
        %4908 = vmatprep.subr.bf16.mxu0 0
        %4909 = vmatpush1.bf16.msra.mxu0 0
        %4910 = vmatprep.subr.bf16.mxu0 0
        %4911 = vmatpush1.bf16.msra.mxu0 %v4892
        %4912 = vmatprep.subr.bf16.mxu0 0
        %4913 = vmatpush1.bf16.msra.mxu0 %v4891
        %4914 = vmatprep.subr.bf16.mxu0 0
        %4915 = vmatpush2.bf16.msra.mxu0 0
        %4916 = vmatprep.subr.bf16.mxu0 0
        %4917 = vmatpush2.bf16.msra.mxu0 0
        %4918 = vmatprep.subr.bf16.mxu0 0
        %4919 = vmatpush2.bf16.msra.mxu0 0
        %4920 = vmatprep.subr.bf16.mxu0 0
        %4921 = vmatpush2.bf16.msra.mxu0 0
        %4922 = vmatprep.subr.bf16.mxu0 0
        %4923 = vmatpush2.bf16.msra.mxu0 0
        %4924 = vmatprep.subr.bf16.mxu0 0
        %4925 = vmatpush2.bf16.msra.mxu0 0
        %4926 = vmatprep.subr.bf16.mxu0 0
        %4927 = vmatpush2.bf16.msra.mxu0 0
        %4928 = vmatprep.subr.bf16.mxu0 0
        %4929 = vmatpush2.bf16.msra.mxu0 0
        %4930 = vmatprep.mubr.bf16.mxu0 0
        %4931 = vmatmul.mubr.bf16.gmra.mxu0 %v4304
        %v4932 = vpop.f32.mrf.mxu0
        %v4933 = vadd.f32 0.0, %v4932
        %v4934 = vpop.f32.mrf.mxu0
        %v4935 = vpop.f32.mrf.mxu0
        %v4936 = vadd.f32 0.0, %v4935
        %v4937 = vpop.f32.mrf.mxu0
        %4938 = vmatprep.mubr.bf16.mxu0 0
        %4939 = vmatmul.mubr.bf16.gmra.mxu0 %v4307
        %v4940 = vpop.f32.mrf.mxu0
        %v4941 = vadd.f32 0.0, %v4940
        %v4942 = vpop.f32.mrf.mxu0
        %v4943 = vpop.f32.mrf.mxu0
        %v4944 = vadd.f32 0.0, %v4943
        %v4945 = vpop.f32.mrf.mxu0
        %4946 = vmatprep.mubr.bf16.mxu0 0
        %4947 = vmatmul.mubr.bf16.gmra.mxu0 %v4310
        %v4948 = vpop.f32.mrf.mxu0
        %v4949 = vadd.f32 0.0, %v4948
        %v4950 = vpop.f32.mrf.mxu0
        %v4951 = vpop.f32.mrf.mxu0
        %v4952 = vadd.f32 0.0, %v4951
        %v4953 = vpop.f32.mrf.mxu0
        %4954 = vmatprep.mubr.bf16.mxu0 0
        %4955 = vmatmul.mubr.bf16.gmra.mxu0 %v4313
        %v4956 = vpop.f32.mrf.mxu0
        %v4957 = vadd.f32 0.0, %v4956
        %v4958 = vpop.f32.mrf.mxu0
        %v4959 = vpop.f32.mrf.mxu0
        %v4960 = vadd.f32 0.0, %v4959
        %v4961 = vpop.f32.mrf.mxu0
        %4962 = vmatprep.mubr.bf16.mxu0 0
        %4963 = vmatmul.mubr.bf16.gmra.mxu0 %v4316
        %v4964 = vpop.f32.mrf.mxu0
        %v4965 = vadd.f32 0.0, %v4964
        %v4966 = vpop.f32.mrf.mxu0
        %v4967 = vpop.f32.mrf.mxu0
        %v4968 = vadd.f32 0.0, %v4967
        %v4969 = vpop.f32.mrf.mxu0
        %4970 = vmatprep.mubr.bf16.mxu0 0
        %4971 = vmatmul.mubr.bf16.gmra.mxu0 %v4319
        %v4972 = vpop.f32.mrf.mxu0
        %v4973 = vadd.f32 0.0, %v4972
        %v4974 = vpop.f32.mrf.mxu0
        %v4975 = vpop.f32.mrf.mxu0
        %v4976 = vadd.f32 0.0, %v4975
        %v4977 = vpop.f32.mrf.mxu0
        %4978 = vmatprep.mubr.bf16.mxu0 0
        %4979 = vmatmul.mubr.bf16.gmra.mxu0 %v4322
        %v4980 = vpop.f32.mrf.mxu0
        %v4981 = vadd.f32 0.0, %v4980
        %v4982 = vpop.f32.mrf.mxu0
        %v4983 = vpop.f32.mrf.mxu0
        %v4984 = vadd.f32 0.0, %v4983
        %v4985 = vpop.f32.mrf.mxu0
        %4986 = vmatprep.mubr.bf16.mxu0 0
        %4987 = vmatmul.mubr.bf16.gmra.mxu0 %v4325
        %v4988 = vpop.f32.mrf.mxu0
        %v4989 = vadd.f32 0.0, %v4988
        %v4990 = vpop.f32.mrf.mxu0
        %v4991 = vpop.f32.mrf.mxu0
        %v4992 = vadd.f32 0.0, %v4991
        %v4993 = vpop.f32.mrf.mxu0
        %4994 = vmatprep.mubr.bf16.mxu0 0
        %4995 = vmatmul.mubr.bf16.gmra.mxu0 %v4328
        %v4996 = vpop.f32.mrf.mxu0
        %v4997 = vadd.f32 0.0, %v4996
        %v4998 = vpop.f32.mrf.mxu0
        %v4999 = vpop.f32.mrf.mxu0
        %v5000 = vadd.f32 0.0, %v4999
        %v5001 = vpop.f32.mrf.mxu0
        %5002 = vmatprep.mubr.bf16.mxu0 0
        %5003 = vmatmul.mubr.bf16.gmra.mxu0 %v4331
        %v5004 = vpop.f32.mrf.mxu0
        %v5005 = vadd.f32 0.0, %v5004
        %v5006 = vpop.f32.mrf.mxu0
        %v5007 = vpop.f32.mrf.mxu0
        %v5008 = vadd.f32 0.0, %v5007
        %v5009 = vpop.f32.mrf.mxu0
        %5010 = vmatprep.mubr.bf16.mxu0 0
        %5011 = vmatmul.mubr.bf16.gmra.mxu0 %v4334
        %v5012 = vpop.f32.mrf.mxu0
        %v5013 = vadd.f32 0.0, %v5012
        %v5014 = vpop.f32.mrf.mxu0
        %v5015 = vpop.f32.mrf.mxu0
        %v5016 = vadd.f32 0.0, %v5015
        %v5017 = vpop.f32.mrf.mxu0
        %5018 = vmatprep.mubr.bf16.mxu0 0
        %5019 = vmatmul.mubr.bf16.gmra.mxu0 %v4337
        %v5020 = vpop.f32.mrf.mxu0
        %v5021 = vadd.f32 0.0, %v5020
        %v5022 = vpop.f32.mrf.mxu0
        %v5023 = vpop.f32.mrf.mxu0
        %v5024 = vadd.f32 0.0, %v5023
        %v5025 = vpop.f32.mrf.mxu0
        %5026 = vmatprep.mubr.bf16.mxu0 0
        %5027 = vmatmul.mubr.bf16.gmra.mxu0 %v4340
        %v5028 = vpop.f32.mrf.mxu0
        %v5029 = vadd.f32 0.0, %v5028
        %v5030 = vpop.f32.mrf.mxu0
        %v5031 = vpop.f32.mrf.mxu0
        %v5032 = vadd.f32 0.0, %v5031
        %v5033 = vpop.f32.mrf.mxu0
        %5034 = vmatprep.mubr.bf16.mxu0 0
        %5035 = vmatmul.mubr.bf16.gmra.mxu0 %v4343
        %v5036 = vpop.f32.mrf.mxu0
        %v5037 = vadd.f32 0.0, %v5036
        %v5038 = vpop.f32.mrf.mxu0
        %v5039 = vpop.f32.mrf.mxu0
        %v5040 = vadd.f32 0.0, %v5039
        %v5041 = vpop.f32.mrf.mxu0
        %5042 = vmatprep.mubr.bf16.mxu0 0
        %5043 = vmatmul.mubr.bf16.gmra.mxu0 %v4346
        %v5044 = vpop.f32.mrf.mxu0
        %v5045 = vadd.f32 0.0, %v5044
        %v5046 = vpop.f32.mrf.mxu0
        %v5047 = vpop.f32.mrf.mxu0
        %v5048 = vadd.f32 0.0, %v5047
        %v5049 = vpop.f32.mrf.mxu0
        %5050 = vmatprep.mubr.bf16.mxu0 0
        %5051 = vmatmul.mubr.bf16.gmra.mxu0 %v4896
        %v5052 = vpop.f32.mrf.mxu0
        %v5053 = vadd.f32 0.0, %v5052
        %v5054 = vpop.f32.mrf.mxu0
        %v5055 = vpop.f32.mrf.mxu0
        %v5056 = vadd.f32 0.0, %v5055
        %v5057 = vpop.f32.mrf.mxu0
        %5058 = vdwg.mxu0
        %v5059 = vadd.f32 %v4837, %v4933
        %v5060 = vadd.f32 %v4838, %v4936
        %v5061 = vadd.f32 %v4839, %v4941
        %v5062 = vadd.f32 %v4840, %v4944
        %v5063 = vadd.f32 %v4841, %v4949
        %v5064 = vadd.f32 %v4842, %v4952
        %v5065 = vadd.f32 %v4843, %v4957
        %v5066 = vadd.f32 %v4844, %v4960
        %v5067 = vadd.f32 %v4845, %v4965
        %v5068 = vadd.f32 %v4846, %v4968
        %v5069 = vadd.f32 %v4847, %v4973
        %v5070 = vadd.f32 %v4848, %v4976
        %v5071 = vadd.f32 %v4849, %v4981
        %v5072 = vadd.f32 %v4850, %v4984
        %v5073 = vadd.f32 %v4851, %v4989
        %v5074 = vadd.f32 %v4852, %v4992
        %v5075 = vadd.f32 %v4853, %v4997
        %v5076 = vadd.f32 %v4854, %v5000
        %v5077 = vadd.f32 %v4855, %v5005
        %v5078 = vadd.f32 %v4856, %v5008
        %v5079 = vadd.f32 %v4857, %v5013
        %v5080 = vadd.f32 %v4858, %v5016
        %v5081 = vadd.f32 %v4859, %v5021
        %v5082 = vadd.f32 %v4860, %v5024
        %v5083 = vadd.f32 %v4861, %v5029
        %v5084 = vadd.f32 %v4862, %v5032
        %v5085 = vadd.f32 %v4863, %v5037
        %v5086 = vadd.f32 %v4864, %v5040
        %v5087 = vadd.f32 %v4865, %v5045
        %v5088 = vadd.f32 %v4866, %v5048
        %v5089 = vadd.f32 %v4867, %v5053
        %v5090 = vadd.f32 %v4868, %v5056
        %v5091 = vpack.c.bf16 %v1540, %v1539
        %s5092 = scalar_lea.vmem %s7, 64
        %v5093 = vld [vmem:[%s5092] sm:$0xf]
        %v5094 = vld [vmem:[%s5092 + $0x4] sm:$0xf]
        %v5095 = vld [vmem:[%s5092 + $0x8] sm:$0xf]
        %v5096 = vld [vmem:[%s5092 + $0xc] sm:$0xf]
        %v5101 = vunpack.c.l.b16 %v5093
        %v5102 = vunpack.c.l.b16 %v5094
        %v5103 = vunpack.c.l.b16 %v5095
        %v5104 = vunpack.c.l.b16 %v5096
        %v5105 = vpack.c.b16 %v5102, %v5101
        %v5106 = vpack.c.b16 %v5104, %v5103
        %v5110 = vsel %vm1719, %v5091, 0
        %5112 = vmatprep.subr.bf16.mxu0 0
        %5113 = vmatpush1.bf16.msra.mxu0 0
        %5114 = vmatprep.subr.bf16.mxu0 0
        %5115 = vmatpush1.bf16.msra.mxu0 0
        %5116 = vmatprep.subr.bf16.mxu0 0
        %5117 = vmatpush1.bf16.msra.mxu0 0
        %5118 = vmatprep.subr.bf16.mxu0 0
        %5119 = vmatpush1.bf16.msra.mxu0 0
        %5120 = vmatprep.subr.bf16.mxu0 0
        %5121 = vmatpush1.bf16.msra.mxu0 0
        %5122 = vmatprep.subr.bf16.mxu0 0
        %5123 = vmatpush1.bf16.msra.mxu0 0
        %5124 = vmatprep.subr.bf16.mxu0 0
        %5125 = vmatpush1.bf16.msra.mxu0 %v5106
        %5126 = vmatprep.subr.bf16.mxu0 0
        %5127 = vmatpush1.bf16.msra.mxu0 %v5105
        %5128 = vmatprep.subr.bf16.mxu0 0
        %5129 = vmatpush2.bf16.msra.mxu0 0
        %5130 = vmatprep.subr.bf16.mxu0 0
        %5131 = vmatpush2.bf16.msra.mxu0 0
        %5132 = vmatprep.subr.bf16.mxu0 0
        %5133 = vmatpush2.bf16.msra.mxu0 0
        %5134 = vmatprep.subr.bf16.mxu0 0
        %5135 = vmatpush2.bf16.msra.mxu0 0
        %5136 = vmatprep.subr.bf16.mxu0 0
        %5137 = vmatpush2.bf16.msra.mxu0 0
        %5138 = vmatprep.subr.bf16.mxu0 0
        %5139 = vmatpush2.bf16.msra.mxu0 0
        %5140 = vmatprep.subr.bf16.mxu0 0
        %5141 = vmatpush2.bf16.msra.mxu0 0
        %5142 = vmatprep.subr.bf16.mxu0 0
        %5143 = vmatpush2.bf16.msra.mxu0 0
        %5144 = vmatprep.mubr.bf16.mxu0 0
        %5145 = vmatmul.mubr.bf16.gmra.mxu0 %v4086
        %v5146 = vpop.f32.mrf.mxu0
        %v5147 = vadd.f32 0.0, %v5146
        %v5148 = vpop.f32.mrf.mxu0
        %v5149 = vpop.f32.mrf.mxu0
        %v5150 = vadd.f32 0.0, %v5149
        %v5151 = vpop.f32.mrf.mxu0
        %5152 = vmatprep.mubr.bf16.mxu0 0
        %5153 = vmatmul.mubr.bf16.gmra.mxu0 %v4089
        %v5154 = vpop.f32.mrf.mxu0
        %v5155 = vadd.f32 0.0, %v5154
        %v5156 = vpop.f32.mrf.mxu0
        %v5157 = vpop.f32.mrf.mxu0
        %v5158 = vadd.f32 0.0, %v5157
        %v5159 = vpop.f32.mrf.mxu0
        %5160 = vmatprep.mubr.bf16.mxu0 0
        %5161 = vmatmul.mubr.bf16.gmra.mxu0 %v4092
        %v5162 = vpop.f32.mrf.mxu0
        %v5163 = vadd.f32 0.0, %v5162
        %v5164 = vpop.f32.mrf.mxu0
        %v5165 = vpop.f32.mrf.mxu0
        %v5166 = vadd.f32 0.0, %v5165
        %v5167 = vpop.f32.mrf.mxu0
        %5168 = vmatprep.mubr.bf16.mxu0 0
        %5169 = vmatmul.mubr.bf16.gmra.mxu0 %v4095
        %v5170 = vpop.f32.mrf.mxu0
        %v5171 = vadd.f32 0.0, %v5170
        %v5172 = vpop.f32.mrf.mxu0
        %v5173 = vpop.f32.mrf.mxu0
        %v5174 = vadd.f32 0.0, %v5173
        %v5175 = vpop.f32.mrf.mxu0
        %5176 = vmatprep.mubr.bf16.mxu0 0
        %5177 = vmatmul.mubr.bf16.gmra.mxu0 %v4098
        %v5178 = vpop.f32.mrf.mxu0
        %v5179 = vadd.f32 0.0, %v5178
        %v5180 = vpop.f32.mrf.mxu0
        %v5181 = vpop.f32.mrf.mxu0
        %v5182 = vadd.f32 0.0, %v5181
        %v5183 = vpop.f32.mrf.mxu0
        %5184 = vmatprep.mubr.bf16.mxu0 0
        %5185 = vmatmul.mubr.bf16.gmra.mxu0 %v4101
        %v5186 = vpop.f32.mrf.mxu0
        %v5187 = vadd.f32 0.0, %v5186
        %v5188 = vpop.f32.mrf.mxu0
        %v5189 = vpop.f32.mrf.mxu0
        %v5190 = vadd.f32 0.0, %v5189
        %v5191 = vpop.f32.mrf.mxu0
        %5192 = vmatprep.mubr.bf16.mxu0 0
        %5193 = vmatmul.mubr.bf16.gmra.mxu0 %v4104
        %v5194 = vpop.f32.mrf.mxu0
        %v5195 = vadd.f32 0.0, %v5194
        %v5196 = vpop.f32.mrf.mxu0
        %v5197 = vpop.f32.mrf.mxu0
        %v5198 = vadd.f32 0.0, %v5197
        %v5199 = vpop.f32.mrf.mxu0
        %5200 = vmatprep.mubr.bf16.mxu0 0
        %5201 = vmatmul.mubr.bf16.gmra.mxu0 %v4107
        %v5202 = vpop.f32.mrf.mxu0
        %v5203 = vadd.f32 0.0, %v5202
        %v5204 = vpop.f32.mrf.mxu0
        %v5205 = vpop.f32.mrf.mxu0
        %v5206 = vadd.f32 0.0, %v5205
        %v5207 = vpop.f32.mrf.mxu0
        %5208 = vmatprep.mubr.bf16.mxu0 0
        %5209 = vmatmul.mubr.bf16.gmra.mxu0 %v4110
        %v5210 = vpop.f32.mrf.mxu0
        %v5211 = vadd.f32 0.0, %v5210
        %v5212 = vpop.f32.mrf.mxu0
        %v5213 = vpop.f32.mrf.mxu0
        %v5214 = vadd.f32 0.0, %v5213
        %v5215 = vpop.f32.mrf.mxu0
        %5216 = vmatprep.mubr.bf16.mxu0 0
        %5217 = vmatmul.mubr.bf16.gmra.mxu0 %v4113
        %v5218 = vpop.f32.mrf.mxu0
        %v5219 = vadd.f32 0.0, %v5218
        %v5220 = vpop.f32.mrf.mxu0
        %v5221 = vpop.f32.mrf.mxu0
        %v5222 = vadd.f32 0.0, %v5221
        %v5223 = vpop.f32.mrf.mxu0
        %5224 = vmatprep.mubr.bf16.mxu0 0
        %5225 = vmatmul.mubr.bf16.gmra.mxu0 %v4116
        %v5226 = vpop.f32.mrf.mxu0
        %v5227 = vadd.f32 0.0, %v5226
        %v5228 = vpop.f32.mrf.mxu0
        %v5229 = vpop.f32.mrf.mxu0
        %v5230 = vadd.f32 0.0, %v5229
        %v5231 = vpop.f32.mrf.mxu0
        %5232 = vmatprep.mubr.bf16.mxu0 0
        %5233 = vmatmul.mubr.bf16.gmra.mxu0 %v4119
        %v5234 = vpop.f32.mrf.mxu0
        %v5235 = vadd.f32 0.0, %v5234
        %v5236 = vpop.f32.mrf.mxu0
        %v5237 = vpop.f32.mrf.mxu0
        %v5238 = vadd.f32 0.0, %v5237
        %v5239 = vpop.f32.mrf.mxu0
        %5240 = vmatprep.mubr.bf16.mxu0 0
        %5241 = vmatmul.mubr.bf16.gmra.mxu0 %v4122
        %v5242 = vpop.f32.mrf.mxu0
        %v5243 = vadd.f32 0.0, %v5242
        %v5244 = vpop.f32.mrf.mxu0
        %v5245 = vpop.f32.mrf.mxu0
        %v5246 = vadd.f32 0.0, %v5245
        %v5247 = vpop.f32.mrf.mxu0
        %5248 = vmatprep.mubr.bf16.mxu0 0
        %5249 = vmatmul.mubr.bf16.gmra.mxu0 %v4125
        %v5250 = vpop.f32.mrf.mxu0
        %v5251 = vadd.f32 0.0, %v5250
        %v5252 = vpop.f32.mrf.mxu0
        %v5253 = vpop.f32.mrf.mxu0
        %v5254 = vadd.f32 0.0, %v5253
        %v5255 = vpop.f32.mrf.mxu0
        %5256 = vmatprep.mubr.bf16.mxu0 0
        %5257 = vmatmul.mubr.bf16.gmra.mxu0 %v4128
        %v5258 = vpop.f32.mrf.mxu0
        %v5259 = vadd.f32 0.0, %v5258
        %v5260 = vpop.f32.mrf.mxu0
        %v5261 = vpop.f32.mrf.mxu0
        %v5262 = vadd.f32 0.0, %v5261
        %v5263 = vpop.f32.mrf.mxu0
        %5264 = vmatprep.mubr.bf16.mxu0 0
        %5265 = vmatmul.mubr.bf16.gmra.mxu0 %v5110
        %v5266 = vpop.f32.mrf.mxu0
        %v5267 = vadd.f32 0.0, %v5266
        %v5268 = vpop.f32.mrf.mxu0
        %v5269 = vpop.f32.mrf.mxu0
        %v5270 = vadd.f32 0.0, %v5269
        %v5271 = vpop.f32.mrf.mxu0
        %5272 = vdwg.mxu0
        %v5273 = vadd.f32 %v5059, %v5147
        %v5274 = vadd.f32 %v5060, %v5150
        %v5275 = vadd.f32 %v5061, %v5155
        %v5276 = vadd.f32 %v5062, %v5158
        %v5277 = vadd.f32 %v5063, %v5163
        %v5278 = vadd.f32 %v5064, %v5166
        %v5279 = vadd.f32 %v5065, %v5171
        %v5280 = vadd.f32 %v5066, %v5174
        %v5281 = vadd.f32 %v5067, %v5179
        %v5282 = vadd.f32 %v5068, %v5182
        %v5283 = vadd.f32 %v5069, %v5187
        %v5284 = vadd.f32 %v5070, %v5190
        %v5285 = vadd.f32 %v5071, %v5195
        %v5286 = vadd.f32 %v5072, %v5198
        %v5287 = vadd.f32 %v5073, %v5203
        %v5288 = vadd.f32 %v5074, %v5206
        %v5289 = vadd.f32 %v5075, %v5211
        %v5290 = vadd.f32 %v5076, %v5214
        %v5291 = vadd.f32 %v5077, %v5219
        %v5292 = vadd.f32 %v5078, %v5222
        %v5293 = vadd.f32 %v5079, %v5227
        %v5294 = vadd.f32 %v5080, %v5230
        %v5295 = vadd.f32 %v5081, %v5235
        %v5296 = vadd.f32 %v5082, %v5238
        %v5297 = vadd.f32 %v5083, %v5243
        %v5298 = vadd.f32 %v5084, %v5246
        %v5299 = vadd.f32 %v5085, %v5251
        %v5300 = vadd.f32 %v5086, %v5254
        %v5301 = vadd.f32 %v5087, %v5259
        %v5302 = vadd.f32 %v5088, %v5262
        %v5303 = vadd.f32 %v5089, %v5267
        %v5304 = vadd.f32 %v5090, %v5270
        %v5305 = vrot.slane %v1539, 1
        %v5306 = vrot.slane %v1540, 1
        %v5307 = vsel %vm2150, %v5305, %v5306
        %v5308 = vsel %vm2150, %v5306, %v2151
        %v5311 = vpack.c.bf16 %v5308, %v5307
        %s5312 = scalar_lea.vmem %s7, 80
        %v5313 = vld [vmem:[%s5312] sm:$0xf]
        %v5314 = vld [vmem:[%s5312 + $0x4] sm:$0xf]
        %v5315 = vld [vmem:[%s5312 + $0x8] sm:$0xf]
        %v5316 = vld [vmem:[%s5312 + $0xc] sm:$0xf]
        %v5321 = vunpack.c.l.b16 %v5313
        %v5322 = vunpack.c.l.b16 %v5314
        %v5323 = vunpack.c.l.b16 %v5315
        %v5324 = vunpack.c.l.b16 %v5316
        %v5325 = vpack.c.b16 %v5322, %v5321
        %v5326 = vpack.c.b16 %v5324, %v5323
        %v5330 = vsel %vm1719, %v5311, 0
        %5332 = vmatprep.subr.bf16.mxu0 0
        %5333 = vmatpush1.bf16.msra.mxu0 0
        %5334 = vmatprep.subr.bf16.mxu0 0
        %5335 = vmatpush1.bf16.msra.mxu0 0
        %5336 = vmatprep.subr.bf16.mxu0 0
        %5337 = vmatpush1.bf16.msra.mxu0 0
        %5338 = vmatprep.subr.bf16.mxu0 0
        %5339 = vmatpush1.bf16.msra.mxu0 0
        %5340 = vmatprep.subr.bf16.mxu0 0
        %5341 = vmatpush1.bf16.msra.mxu0 0
        %5342 = vmatprep.subr.bf16.mxu0 0
        %5343 = vmatpush1.bf16.msra.mxu0 0
        %5344 = vmatprep.subr.bf16.mxu0 0
        %5345 = vmatpush1.bf16.msra.mxu0 %v5326
        %5346 = vmatprep.subr.bf16.mxu0 0
        %5347 = vmatpush1.bf16.msra.mxu0 %v5325
        %5348 = vmatprep.subr.bf16.mxu0 0
        %5349 = vmatpush2.bf16.msra.mxu0 0
        %5350 = vmatprep.subr.bf16.mxu0 0
        %5351 = vmatpush2.bf16.msra.mxu0 0
        %5352 = vmatprep.subr.bf16.mxu0 0
        %5353 = vmatpush2.bf16.msra.mxu0 0
        %5354 = vmatprep.subr.bf16.mxu0 0
        %5355 = vmatpush2.bf16.msra.mxu0 0
        %5356 = vmatprep.subr.bf16.mxu0 0
        %5357 = vmatpush2.bf16.msra.mxu0 0
        %5358 = vmatprep.subr.bf16.mxu0 0
        %5359 = vmatpush2.bf16.msra.mxu0 0
        %5360 = vmatprep.subr.bf16.mxu0 0
        %5361 = vmatpush2.bf16.msra.mxu0 0
        %5362 = vmatprep.subr.bf16.mxu0 0
        %5363 = vmatpush2.bf16.msra.mxu0 0
        %5364 = vmatprep.mubr.bf16.mxu0 0
        %5365 = vmatmul.mubr.bf16.gmra.mxu0 %v4632
        %v5366 = vpop.f32.mrf.mxu0
        %v5367 = vadd.f32 0.0, %v5366
        %v5368 = vpop.f32.mrf.mxu0
        %v5369 = vpop.f32.mrf.mxu0
        %v5370 = vadd.f32 0.0, %v5369
        %v5371 = vpop.f32.mrf.mxu0
        %5372 = vmatprep.mubr.bf16.mxu0 0
        %5373 = vmatmul.mubr.bf16.gmra.mxu0 %v4635
        %v5374 = vpop.f32.mrf.mxu0
        %v5375 = vadd.f32 0.0, %v5374
        %v5376 = vpop.f32.mrf.mxu0
        %v5377 = vpop.f32.mrf.mxu0
        %v5378 = vadd.f32 0.0, %v5377
        %v5379 = vpop.f32.mrf.mxu0
        %5380 = vmatprep.mubr.bf16.mxu0 0
        %5381 = vmatmul.mubr.bf16.gmra.mxu0 %v4638
        %v5382 = vpop.f32.mrf.mxu0
        %v5383 = vadd.f32 0.0, %v5382
        %v5384 = vpop.f32.mrf.mxu0
        %v5385 = vpop.f32.mrf.mxu0
        %v5386 = vadd.f32 0.0, %v5385
        %v5387 = vpop.f32.mrf.mxu0
        %5388 = vmatprep.mubr.bf16.mxu0 0
        %5389 = vmatmul.mubr.bf16.gmra.mxu0 %v4641
        %v5390 = vpop.f32.mrf.mxu0
        %v5391 = vadd.f32 0.0, %v5390
        %v5392 = vpop.f32.mrf.mxu0
        %v5393 = vpop.f32.mrf.mxu0
        %v5394 = vadd.f32 0.0, %v5393
        %v5395 = vpop.f32.mrf.mxu0
        %5396 = vmatprep.mubr.bf16.mxu0 0
        %5397 = vmatmul.mubr.bf16.gmra.mxu0 %v4644
        %v5398 = vpop.f32.mrf.mxu0
        %v5399 = vadd.f32 0.0, %v5398
        %v5400 = vpop.f32.mrf.mxu0
        %v5401 = vpop.f32.mrf.mxu0
        %v5402 = vadd.f32 0.0, %v5401
        %v5403 = vpop.f32.mrf.mxu0
        %5404 = vmatprep.mubr.bf16.mxu0 0
        %5405 = vmatmul.mubr.bf16.gmra.mxu0 %v4647
        %v5406 = vpop.f32.mrf.mxu0
        %v5407 = vadd.f32 0.0, %v5406
        %v5408 = vpop.f32.mrf.mxu0
        %v5409 = vpop.f32.mrf.mxu0
        %v5410 = vadd.f32 0.0, %v5409
        %v5411 = vpop.f32.mrf.mxu0
        %5412 = vmatprep.mubr.bf16.mxu0 0
        %5413 = vmatmul.mubr.bf16.gmra.mxu0 %v4650
        %v5414 = vpop.f32.mrf.mxu0
        %v5415 = vadd.f32 0.0, %v5414
        %v5416 = vpop.f32.mrf.mxu0
        %v5417 = vpop.f32.mrf.mxu0
        %v5418 = vadd.f32 0.0, %v5417
        %v5419 = vpop.f32.mrf.mxu0
        %5420 = vmatprep.mubr.bf16.mxu0 0
        %5421 = vmatmul.mubr.bf16.gmra.mxu0 %v4653
        %v5422 = vpop.f32.mrf.mxu0
        %v5423 = vadd.f32 0.0, %v5422
        %v5424 = vpop.f32.mrf.mxu0
        %v5425 = vpop.f32.mrf.mxu0
        %v5426 = vadd.f32 0.0, %v5425
        %v5427 = vpop.f32.mrf.mxu0
        %5428 = vmatprep.mubr.bf16.mxu0 0
        %5429 = vmatmul.mubr.bf16.gmra.mxu0 %v4656
        %v5430 = vpop.f32.mrf.mxu0
        %v5431 = vadd.f32 0.0, %v5430
        %v5432 = vpop.f32.mrf.mxu0
        %v5433 = vpop.f32.mrf.mxu0
        %v5434 = vadd.f32 0.0, %v5433
        %v5435 = vpop.f32.mrf.mxu0
        %5436 = vmatprep.mubr.bf16.mxu0 0
        %5437 = vmatmul.mubr.bf16.gmra.mxu0 %v4659
        %v5438 = vpop.f32.mrf.mxu0
        %v5439 = vadd.f32 0.0, %v5438
        %v5440 = vpop.f32.mrf.mxu0
        %v5441 = vpop.f32.mrf.mxu0
        %v5442 = vadd.f32 0.0, %v5441
        %v5443 = vpop.f32.mrf.mxu0
        %5444 = vmatprep.mubr.bf16.mxu0 0
        %5445 = vmatmul.mubr.bf16.gmra.mxu0 %v4662
        %v5446 = vpop.f32.mrf.mxu0
        %v5447 = vadd.f32 0.0, %v5446
        %v5448 = vpop.f32.mrf.mxu0
        %v5449 = vpop.f32.mrf.mxu0
        %v5450 = vadd.f32 0.0, %v5449
        %v5451 = vpop.f32.mrf.mxu0
        %5452 = vmatprep.mubr.bf16.mxu0 0
        %5453 = vmatmul.mubr.bf16.gmra.mxu0 %v4665
        %v5454 = vpop.f32.mrf.mxu0
        %v5455 = vadd.f32 0.0, %v5454
        %v5456 = vpop.f32.mrf.mxu0
        %v5457 = vpop.f32.mrf.mxu0
        %v5458 = vadd.f32 0.0, %v5457
        %v5459 = vpop.f32.mrf.mxu0
        %5460 = vmatprep.mubr.bf16.mxu0 0
        %5461 = vmatmul.mubr.bf16.gmra.mxu0 %v4668
        %v5462 = vpop.f32.mrf.mxu0
        %v5463 = vadd.f32 0.0, %v5462
        %v5464 = vpop.f32.mrf.mxu0
        %v5465 = vpop.f32.mrf.mxu0
        %v5466 = vadd.f32 0.0, %v5465
        %v5467 = vpop.f32.mrf.mxu0
        %5468 = vmatprep.mubr.bf16.mxu0 0
        %5469 = vmatmul.mubr.bf16.gmra.mxu0 %v4671
        %v5470 = vpop.f32.mrf.mxu0
        %v5471 = vadd.f32 0.0, %v5470
        %v5472 = vpop.f32.mrf.mxu0
        %v5473 = vpop.f32.mrf.mxu0
        %v5474 = vadd.f32 0.0, %v5473
        %v5475 = vpop.f32.mrf.mxu0
        %5476 = vmatprep.mubr.bf16.mxu0 0
        %5477 = vmatmul.mubr.bf16.gmra.mxu0 %v4674
        %v5478 = vpop.f32.mrf.mxu0
        %v5479 = vadd.f32 0.0, %v5478
        %v5480 = vpop.f32.mrf.mxu0
        %v5481 = vpop.f32.mrf.mxu0
        %v5482 = vadd.f32 0.0, %v5481
        %v5483 = vpop.f32.mrf.mxu0
        %5484 = vmatprep.mubr.bf16.mxu0 0
        %5485 = vmatmul.mubr.bf16.gmra.mxu0 %v5330
        %v5486 = vpop.f32.mrf.mxu0
        %v5487 = vadd.f32 0.0, %v5486
        %v5488 = vpop.f32.mrf.mxu0
        %v5489 = vpop.f32.mrf.mxu0
        %v5490 = vadd.f32 0.0, %v5489
        %v5491 = vpop.f32.mrf.mxu0
        %5492 = vdwg.mxu0
        %v5493 = vadd.f32 %v5273, %v5367
        %v5494 = vadd.f32 %v5274, %v5370
        %v5495 = vadd.f32 %v5275, %v5375
        %v5496 = vadd.f32 %v5276, %v5378
        %v5497 = vadd.f32 %v5277, %v5383
        %v5498 = vadd.f32 %v5278, %v5386
        %v5499 = vadd.f32 %v5279, %v5391
        %v5500 = vadd.f32 %v5280, %v5394
        %v5501 = vadd.f32 %v5281, %v5399
        %v5502 = vadd.f32 %v5282, %v5402
        %v5503 = vadd.f32 %v5283, %v5407
        %v5504 = vadd.f32 %v5284, %v5410
        %v5505 = vadd.f32 %v5285, %v5415
        %v5506 = vadd.f32 %v5286, %v5418
        %v5507 = vadd.f32 %v5287, %v5423
        %v5508 = vadd.f32 %v5288, %v5426
        %v5509 = vadd.f32 %v5289, %v5431
        %v5510 = vadd.f32 %v5290, %v5434
        %v5511 = vadd.f32 %v5291, %v5439
        %v5512 = vadd.f32 %v5292, %v5442
        %v5513 = vadd.f32 %v5293, %v5447
        %v5514 = vadd.f32 %v5294, %v5450
        %v5515 = vadd.f32 %v5295, %v5455
        %v5516 = vadd.f32 %v5296, %v5458
        %v5517 = vadd.f32 %v5297, %v5463
        %v5518 = vadd.f32 %v5298, %v5466
        %v5519 = vadd.f32 %v5299, %v5471
        %v5520 = vadd.f32 %v5300, %v5474
        %v5521 = vadd.f32 %v5301, %v5479
        %v5522 = vadd.f32 %v5302, %v5482
        %v5523 = vadd.f32 %v5303, %v5487
        %v5524 = vadd.f32 %v5304, %v5490
        %s5525 = scalar_lea.vmem %s7, 96
        %v5526 = vld [vmem:[%s5525] sm:$0xf]
        %v5527 = vld [vmem:[%s5525 + $0x4] sm:$0xf]
        %v5528 = vld [vmem:[%s5525 + $0x8] sm:$0xf]
        %v5529 = vld [vmem:[%s5525 + $0xc] sm:$0xf]
        %v5534 = vunpack.c.l.b16 %v5526
        %v5535 = vunpack.c.l.b16 %v5527
        %v5536 = vunpack.c.l.b16 %v5528
        %v5537 = vunpack.c.l.b16 %v5529
        %v5538 = vpack.c.b16 %v5535, %v5534
        %v5539 = vpack.c.b16 %v5537, %v5536
        %5542 = vmatprep.subr.bf16.mxu0 0
        %5543 = vmatpush1.bf16.msra.mxu0 0
        %5544 = vmatprep.subr.bf16.mxu0 0
        %5545 = vmatpush1.bf16.msra.mxu0 0
        %5546 = vmatprep.subr.bf16.mxu0 0
        %5547 = vmatpush1.bf16.msra.mxu0 0
        %5548 = vmatprep.subr.bf16.mxu0 0
        %5549 = vmatpush1.bf16.msra.mxu0 0
        %5550 = vmatprep.subr.bf16.mxu0 0
        %5551 = vmatpush1.bf16.msra.mxu0 0
        %5552 = vmatprep.subr.bf16.mxu0 0
        %5553 = vmatpush1.bf16.msra.mxu0 0
        %5554 = vmatprep.subr.bf16.mxu0 0
        %5555 = vmatpush1.bf16.msra.mxu0 %v5539
        %5556 = vmatprep.subr.bf16.mxu0 0
        %5557 = vmatpush1.bf16.msra.mxu0 %v5538
        %5558 = vmatprep.subr.bf16.mxu0 0
        %5559 = vmatpush2.bf16.msra.mxu0 0
        %5560 = vmatprep.subr.bf16.mxu0 0
        %5561 = vmatpush2.bf16.msra.mxu0 0
        %5562 = vmatprep.subr.bf16.mxu0 0
        %5563 = vmatpush2.bf16.msra.mxu0 0
        %5564 = vmatprep.subr.bf16.mxu0 0
        %5565 = vmatpush2.bf16.msra.mxu0 0
        %5566 = vmatprep.subr.bf16.mxu0 0
        %5567 = vmatpush2.bf16.msra.mxu0 0
        %5568 = vmatprep.subr.bf16.mxu0 0
        %5569 = vmatpush2.bf16.msra.mxu0 0
        %5570 = vmatprep.subr.bf16.mxu0 0
        %5571 = vmatpush2.bf16.msra.mxu0 0
        %5572 = vmatprep.subr.bf16.mxu0 0
        %5573 = vmatpush2.bf16.msra.mxu0 0
        %5574 = vmatprep.mubr.bf16.mxu0 0
        %5575 = vmatmul.mubr.bf16.gmra.mxu0 %v4307
        %v5576 = vpop.f32.mrf.mxu0
        %v5577 = vadd.f32 0.0, %v5576
        %v5578 = vpop.f32.mrf.mxu0
        %v5579 = vpop.f32.mrf.mxu0
        %v5580 = vadd.f32 0.0, %v5579
        %v5581 = vpop.f32.mrf.mxu0
        %5582 = vmatprep.mubr.bf16.mxu0 0
        %5583 = vmatmul.mubr.bf16.gmra.mxu0 %v4310
        %v5584 = vpop.f32.mrf.mxu0
        %v5585 = vadd.f32 0.0, %v5584
        %v5586 = vpop.f32.mrf.mxu0
        %v5587 = vpop.f32.mrf.mxu0
        %v5588 = vadd.f32 0.0, %v5587
        %v5589 = vpop.f32.mrf.mxu0
        %5590 = vmatprep.mubr.bf16.mxu0 0
        %5591 = vmatmul.mubr.bf16.gmra.mxu0 %v4313
        %v5592 = vpop.f32.mrf.mxu0
        %v5593 = vadd.f32 0.0, %v5592
        %v5594 = vpop.f32.mrf.mxu0
        %v5595 = vpop.f32.mrf.mxu0
        %v5596 = vadd.f32 0.0, %v5595
        %v5597 = vpop.f32.mrf.mxu0
        %5598 = vmatprep.mubr.bf16.mxu0 0
        %5599 = vmatmul.mubr.bf16.gmra.mxu0 %v4316
        %v5600 = vpop.f32.mrf.mxu0
        %v5601 = vadd.f32 0.0, %v5600
        %v5602 = vpop.f32.mrf.mxu0
        %v5603 = vpop.f32.mrf.mxu0
        %v5604 = vadd.f32 0.0, %v5603
        %v5605 = vpop.f32.mrf.mxu0
        %5606 = vmatprep.mubr.bf16.mxu0 0
        %5607 = vmatmul.mubr.bf16.gmra.mxu0 %v4319
        %v5608 = vpop.f32.mrf.mxu0
        %v5609 = vadd.f32 0.0, %v5608
        %v5610 = vpop.f32.mrf.mxu0
        %v5611 = vpop.f32.mrf.mxu0
        %v5612 = vadd.f32 0.0, %v5611
        %v5613 = vpop.f32.mrf.mxu0
        %5614 = vmatprep.mubr.bf16.mxu0 0
        %5615 = vmatmul.mubr.bf16.gmra.mxu0 %v4322
        %v5616 = vpop.f32.mrf.mxu0
        %v5617 = vadd.f32 0.0, %v5616
        %v5618 = vpop.f32.mrf.mxu0
        %v5619 = vpop.f32.mrf.mxu0
        %v5620 = vadd.f32 0.0, %v5619
        %v5621 = vpop.f32.mrf.mxu0
        %5622 = vmatprep.mubr.bf16.mxu0 0
        %5623 = vmatmul.mubr.bf16.gmra.mxu0 %v4325
        %v5624 = vpop.f32.mrf.mxu0
        %v5625 = vadd.f32 0.0, %v5624
        %v5626 = vpop.f32.mrf.mxu0
        %v5627 = vpop.f32.mrf.mxu0
        %v5628 = vadd.f32 0.0, %v5627
        %v5629 = vpop.f32.mrf.mxu0
        %5630 = vmatprep.mubr.bf16.mxu0 0
        %5631 = vmatmul.mubr.bf16.gmra.mxu0 %v4328
        %v5632 = vpop.f32.mrf.mxu0
        %v5633 = vadd.f32 0.0, %v5632
        %v5634 = vpop.f32.mrf.mxu0
        %v5635 = vpop.f32.mrf.mxu0
        %v5636 = vadd.f32 0.0, %v5635
        %v5637 = vpop.f32.mrf.mxu0
        %5638 = vmatprep.mubr.bf16.mxu0 0
        %5639 = vmatmul.mubr.bf16.gmra.mxu0 %v4331
        %v5640 = vpop.f32.mrf.mxu0
        %v5641 = vadd.f32 0.0, %v5640
        %v5642 = vpop.f32.mrf.mxu0
        %v5643 = vpop.f32.mrf.mxu0
        %v5644 = vadd.f32 0.0, %v5643
        %v5645 = vpop.f32.mrf.mxu0
        %5646 = vmatprep.mubr.bf16.mxu0 0
        %5647 = vmatmul.mubr.bf16.gmra.mxu0 %v4334
        %v5648 = vpop.f32.mrf.mxu0
        %v5649 = vadd.f32 0.0, %v5648
        %v5650 = vpop.f32.mrf.mxu0
        %v5651 = vpop.f32.mrf.mxu0
        %v5652 = vadd.f32 0.0, %v5651
        %v5653 = vpop.f32.mrf.mxu0
        %5654 = vmatprep.mubr.bf16.mxu0 0
        %5655 = vmatmul.mubr.bf16.gmra.mxu0 %v4337
        %v5656 = vpop.f32.mrf.mxu0
        %v5657 = vadd.f32 0.0, %v5656
        %v5658 = vpop.f32.mrf.mxu0
        %v5659 = vpop.f32.mrf.mxu0
        %v5660 = vadd.f32 0.0, %v5659
        %v5661 = vpop.f32.mrf.mxu0
        %5662 = vmatprep.mubr.bf16.mxu0 0
        %5663 = vmatmul.mubr.bf16.gmra.mxu0 %v4340
        %v5664 = vpop.f32.mrf.mxu0
        %v5665 = vadd.f32 0.0, %v5664
        %v5666 = vpop.f32.mrf.mxu0
        %v5667 = vpop.f32.mrf.mxu0
        %v5668 = vadd.f32 0.0, %v5667
        %v5669 = vpop.f32.mrf.mxu0
        %5670 = vmatprep.mubr.bf16.mxu0 0
        %5671 = vmatmul.mubr.bf16.gmra.mxu0 %v4343
        %v5672 = vpop.f32.mrf.mxu0
        %v5673 = vadd.f32 0.0, %v5672
        %v5674 = vpop.f32.mrf.mxu0
        %v5675 = vpop.f32.mrf.mxu0
        %v5676 = vadd.f32 0.0, %v5675
        %v5677 = vpop.f32.mrf.mxu0
        %5678 = vmatprep.mubr.bf16.mxu0 0
        %5679 = vmatmul.mubr.bf16.gmra.mxu0 %v4346
        %v5680 = vpop.f32.mrf.mxu0
        %v5681 = vadd.f32 0.0, %v5680
        %v5682 = vpop.f32.mrf.mxu0
        %v5683 = vpop.f32.mrf.mxu0
        %v5684 = vadd.f32 0.0, %v5683
        %v5685 = vpop.f32.mrf.mxu0
        %5686 = vmatprep.mubr.bf16.mxu0 0
        %5687 = vmatmul.mubr.bf16.gmra.mxu0 %v4896
        %v5688 = vpop.f32.mrf.mxu0
        %v5689 = vadd.f32 0.0, %v5688
        %v5690 = vpop.f32.mrf.mxu0
        %v5691 = vpop.f32.mrf.mxu0
        %v5692 = vadd.f32 0.0, %v5691
        %v5693 = vpop.f32.mrf.mxu0
        %5694 = vmatprep.mubr.bf16.mxu0 0
        %5695 = vmatmul.mubr.bf16.gmra.mxu0 %v1942
        %v5696 = vpop.f32.mrf.mxu0
        %v5697 = vadd.f32 0.0, %v5696
        %v5698 = vpop.f32.mrf.mxu0
        %v5699 = vpop.f32.mrf.mxu0
        %v5700 = vadd.f32 0.0, %v5699
        %v5701 = vpop.f32.mrf.mxu0
        %5702 = vdwg.mxu0
        %v5703 = vadd.f32 %v5493, %v5577
        %v5704 = vadd.f32 %v5494, %v5580
        %v5705 = vadd.f32 %v5495, %v5585
        %v5706 = vadd.f32 %v5496, %v5588
        %v5707 = vadd.f32 %v5497, %v5593
        %v5708 = vadd.f32 %v5498, %v5596
        %v5709 = vadd.f32 %v5499, %v5601
        %v5710 = vadd.f32 %v5500, %v5604
        %v5711 = vadd.f32 %v5501, %v5609
        %v5712 = vadd.f32 %v5502, %v5612
        %v5713 = vadd.f32 %v5503, %v5617
        %v5714 = vadd.f32 %v5504, %v5620
        %v5715 = vadd.f32 %v5505, %v5625
        %v5716 = vadd.f32 %v5506, %v5628
        %v5717 = vadd.f32 %v5507, %v5633
        %v5718 = vadd.f32 %v5508, %v5636
        %v5719 = vadd.f32 %v5509, %v5641
        %v5720 = vadd.f32 %v5510, %v5644
        %v5721 = vadd.f32 %v5511, %v5649
        %v5722 = vadd.f32 %v5512, %v5652
        %v5723 = vadd.f32 %v5513, %v5657
        %v5724 = vadd.f32 %v5514, %v5660
        %v5725 = vadd.f32 %v5515, %v5665
        %v5726 = vadd.f32 %v5516, %v5668
        %v5727 = vadd.f32 %v5517, %v5673
        %v5728 = vadd.f32 %v5518, %v5676
        %v5729 = vadd.f32 %v5519, %v5681
        %v5730 = vadd.f32 %v5520, %v5684
        %v5731 = vadd.f32 %v5521, %v5689
        %v5732 = vadd.f32 %v5522, %v5692
        %v5733 = vadd.f32 %v5523, %v5697
        %v5734 = vadd.f32 %v5524, %v5700
        %s5735 = scalar_lea.vmem %s7, 112
        %v5736 = vld [vmem:[%s5735] sm:$0xf]
        %v5737 = vld [vmem:[%s5735 + $0x4] sm:$0xf]
        %v5738 = vld [vmem:[%s5735 + $0x8] sm:$0xf]
        %v5739 = vld [vmem:[%s5735 + $0xc] sm:$0xf]
        %v5744 = vunpack.c.l.b16 %v5736
        %v5745 = vunpack.c.l.b16 %v5737
        %v5746 = vunpack.c.l.b16 %v5738
        %v5747 = vunpack.c.l.b16 %v5739
        %v5748 = vpack.c.b16 %v5745, %v5744
        %v5749 = vpack.c.b16 %v5747, %v5746
        %5752 = vmatprep.subr.bf16.mxu0 0
        %5753 = vmatpush1.bf16.msra.mxu0 0
        %5754 = vmatprep.subr.bf16.mxu0 0
        %5755 = vmatpush1.bf16.msra.mxu0 0
        %5756 = vmatprep.subr.bf16.mxu0 0
        %5757 = vmatpush1.bf16.msra.mxu0 0
        %5758 = vmatprep.subr.bf16.mxu0 0
        %5759 = vmatpush1.bf16.msra.mxu0 0
        %5760 = vmatprep.subr.bf16.mxu0 0
        %5761 = vmatpush1.bf16.msra.mxu0 0
        %5762 = vmatprep.subr.bf16.mxu0 0
        %5763 = vmatpush1.bf16.msra.mxu0 0
        %5764 = vmatprep.subr.bf16.mxu0 0
        %5765 = vmatpush1.bf16.msra.mxu0 %v5749
        %5766 = vmatprep.subr.bf16.mxu0 0
        %5767 = vmatpush1.bf16.msra.mxu0 %v5748
        %5768 = vmatprep.subr.bf16.mxu0 0
        %5769 = vmatpush2.bf16.msra.mxu0 0
        %5770 = vmatprep.subr.bf16.mxu0 0
        %5771 = vmatpush2.bf16.msra.mxu0 0
        %5772 = vmatprep.subr.bf16.mxu0 0
        %5773 = vmatpush2.bf16.msra.mxu0 0
        %5774 = vmatprep.subr.bf16.mxu0 0
        %5775 = vmatpush2.bf16.msra.mxu0 0
        %5776 = vmatprep.subr.bf16.mxu0 0
        %5777 = vmatpush2.bf16.msra.mxu0 0
        %5778 = vmatprep.subr.bf16.mxu0 0
        %5779 = vmatpush2.bf16.msra.mxu0 0
        %5780 = vmatprep.subr.bf16.mxu0 0
        %5781 = vmatpush2.bf16.msra.mxu0 0
        %5782 = vmatprep.subr.bf16.mxu0 0
        %5783 = vmatpush2.bf16.msra.mxu0 0
        %5784 = vmatprep.mubr.bf16.mxu0 0
        %5785 = vmatmul.mubr.bf16.gmra.mxu0 %v4089
        %v5786 = vpop.f32.mrf.mxu0
        %v5787 = vadd.f32 0.0, %v5786
        %v5788 = vpop.f32.mrf.mxu0
        %v5789 = vpop.f32.mrf.mxu0
        %v5790 = vadd.f32 0.0, %v5789
        %v5791 = vpop.f32.mrf.mxu0
        %5792 = vmatprep.mubr.bf16.mxu0 0
        %5793 = vmatmul.mubr.bf16.gmra.mxu0 %v4092
        %v5794 = vpop.f32.mrf.mxu0
        %v5795 = vadd.f32 0.0, %v5794
        %v5796 = vpop.f32.mrf.mxu0
        %v5797 = vpop.f32.mrf.mxu0
        %v5798 = vadd.f32 0.0, %v5797
        %v5799 = vpop.f32.mrf.mxu0
        %5800 = vmatprep.mubr.bf16.mxu0 0
        %5801 = vmatmul.mubr.bf16.gmra.mxu0 %v4095
        %v5802 = vpop.f32.mrf.mxu0
        %v5803 = vadd.f32 0.0, %v5802
        %v5804 = vpop.f32.mrf.mxu0
        %v5805 = vpop.f32.mrf.mxu0
        %v5806 = vadd.f32 0.0, %v5805
        %v5807 = vpop.f32.mrf.mxu0
        %5808 = vmatprep.mubr.bf16.mxu0 0
        %5809 = vmatmul.mubr.bf16.gmra.mxu0 %v4098
        %v5810 = vpop.f32.mrf.mxu0
        %v5811 = vadd.f32 0.0, %v5810
        %v5812 = vpop.f32.mrf.mxu0
        %v5813 = vpop.f32.mrf.mxu0
        %v5814 = vadd.f32 0.0, %v5813
        %v5815 = vpop.f32.mrf.mxu0
        %5816 = vmatprep.mubr.bf16.mxu0 0
        %5817 = vmatmul.mubr.bf16.gmra.mxu0 %v4101
        %v5818 = vpop.f32.mrf.mxu0
        %v5819 = vadd.f32 0.0, %v5818
        %v5820 = vpop.f32.mrf.mxu0
        %v5821 = vpop.f32.mrf.mxu0
        %v5822 = vadd.f32 0.0, %v5821
        %v5823 = vpop.f32.mrf.mxu0
        %5824 = vmatprep.mubr.bf16.mxu0 0
        %5825 = vmatmul.mubr.bf16.gmra.mxu0 %v4104
        %v5826 = vpop.f32.mrf.mxu0
        %v5827 = vadd.f32 0.0, %v5826
        %v5828 = vpop.f32.mrf.mxu0
        %v5829 = vpop.f32.mrf.mxu0
        %v5830 = vadd.f32 0.0, %v5829
        %v5831 = vpop.f32.mrf.mxu0
        %5832 = vmatprep.mubr.bf16.mxu0 0
        %5833 = vmatmul.mubr.bf16.gmra.mxu0 %v4107
        %v5834 = vpop.f32.mrf.mxu0
        %v5835 = vadd.f32 0.0, %v5834
        %v5836 = vpop.f32.mrf.mxu0
        %v5837 = vpop.f32.mrf.mxu0
        %v5838 = vadd.f32 0.0, %v5837
        %v5839 = vpop.f32.mrf.mxu0
        %5840 = vmatprep.mubr.bf16.mxu0 0
        %5841 = vmatmul.mubr.bf16.gmra.mxu0 %v4110
        %v5842 = vpop.f32.mrf.mxu0
        %v5843 = vadd.f32 0.0, %v5842
        %v5844 = vpop.f32.mrf.mxu0
        %v5845 = vpop.f32.mrf.mxu0
        %v5846 = vadd.f32 0.0, %v5845
        %v5847 = vpop.f32.mrf.mxu0
        %5848 = vmatprep.mubr.bf16.mxu0 0
        %5849 = vmatmul.mubr.bf16.gmra.mxu0 %v4113
        %v5850 = vpop.f32.mrf.mxu0
        %v5851 = vadd.f32 0.0, %v5850
        %v5852 = vpop.f32.mrf.mxu0
        %v5853 = vpop.f32.mrf.mxu0
        %v5854 = vadd.f32 0.0, %v5853
        %v5855 = vpop.f32.mrf.mxu0
        %5856 = vmatprep.mubr.bf16.mxu0 0
        %5857 = vmatmul.mubr.bf16.gmra.mxu0 %v4116
        %v5858 = vpop.f32.mrf.mxu0
        %v5859 = vadd.f32 0.0, %v5858
        %v5860 = vpop.f32.mrf.mxu0
        %v5861 = vpop.f32.mrf.mxu0
        %v5862 = vadd.f32 0.0, %v5861
        %v5863 = vpop.f32.mrf.mxu0
        %5864 = vmatprep.mubr.bf16.mxu0 0
        %5865 = vmatmul.mubr.bf16.gmra.mxu0 %v4119
        %v5866 = vpop.f32.mrf.mxu0
        %v5867 = vadd.f32 0.0, %v5866
        %v5868 = vpop.f32.mrf.mxu0
        %v5869 = vpop.f32.mrf.mxu0
        %v5870 = vadd.f32 0.0, %v5869
        %v5871 = vpop.f32.mrf.mxu0
        %5872 = vmatprep.mubr.bf16.mxu0 0
        %5873 = vmatmul.mubr.bf16.gmra.mxu0 %v4122
        %v5874 = vpop.f32.mrf.mxu0
        %v5875 = vadd.f32 0.0, %v5874
        %v5876 = vpop.f32.mrf.mxu0
        %v5877 = vpop.f32.mrf.mxu0
        %v5878 = vadd.f32 0.0, %v5877
        %v5879 = vpop.f32.mrf.mxu0
        %5880 = vmatprep.mubr.bf16.mxu0 0
        %5881 = vmatmul.mubr.bf16.gmra.mxu0 %v4125
        %v5882 = vpop.f32.mrf.mxu0
        %v5883 = vadd.f32 0.0, %v5882
        %v5884 = vpop.f32.mrf.mxu0
        %v5885 = vpop.f32.mrf.mxu0
        %v5886 = vadd.f32 0.0, %v5885
        %v5887 = vpop.f32.mrf.mxu0
        %5888 = vmatprep.mubr.bf16.mxu0 0
        %5889 = vmatmul.mubr.bf16.gmra.mxu0 %v4128
        %v5890 = vpop.f32.mrf.mxu0
        %v5891 = vadd.f32 0.0, %v5890
        %v5892 = vpop.f32.mrf.mxu0
        %v5893 = vpop.f32.mrf.mxu0
        %v5894 = vadd.f32 0.0, %v5893
        %v5895 = vpop.f32.mrf.mxu0
        %5896 = vmatprep.mubr.bf16.mxu0 0
        %5897 = vmatmul.mubr.bf16.gmra.mxu0 %v5110
        %v5898 = vpop.f32.mrf.mxu0
        %v5899 = vadd.f32 0.0, %v5898
        %v5900 = vpop.f32.mrf.mxu0
        %v5901 = vpop.f32.mrf.mxu0
        %v5902 = vadd.f32 0.0, %v5901
        %v5903 = vpop.f32.mrf.mxu0
        %5904 = vmatprep.mubr.bf16.mxu0 0
        %5905 = vmatmul.mubr.bf16.gmra.mxu0 %v1721
        %v5906 = vpop.f32.mrf.mxu0
        %v5907 = vadd.f32 0.0, %v5906
        %v5908 = vpop.f32.mrf.mxu0
        %v5909 = vpop.f32.mrf.mxu0
        %v5910 = vadd.f32 0.0, %v5909
        %v5911 = vpop.f32.mrf.mxu0
        %5912 = vdwg.mxu0
        %v5913 = vadd.f32 %v5703, %v5787
        %v5914 = vadd.f32 %v5704, %v5790
        %v5915 = vadd.f32 %v5705, %v5795
        %v5916 = vadd.f32 %v5706, %v5798
        %v5917 = vadd.f32 %v5707, %v5803
        %v5918 = vadd.f32 %v5708, %v5806
        %v5919 = vadd.f32 %v5709, %v5811
        %v5920 = vadd.f32 %v5710, %v5814
        %v5921 = vadd.f32 %v5711, %v5819
        %v5922 = vadd.f32 %v5712, %v5822
        %v5923 = vadd.f32 %v5713, %v5827
        %v5924 = vadd.f32 %v5714, %v5830
        %v5925 = vadd.f32 %v5715, %v5835
        %v5926 = vadd.f32 %v5716, %v5838
        %v5927 = vadd.f32 %v5717, %v5843
        %v5928 = vadd.f32 %v5718, %v5846
        %v5929 = vadd.f32 %v5719, %v5851
        %v5930 = vadd.f32 %v5720, %v5854
        %v5931 = vadd.f32 %v5721, %v5859
        %v5932 = vadd.f32 %v5722, %v5862
        %v5933 = vadd.f32 %v5723, %v5867
        %v5934 = vadd.f32 %v5724, %v5870
        %v5935 = vadd.f32 %v5725, %v5875
        %v5936 = vadd.f32 %v5726, %v5878
        %v5937 = vadd.f32 %v5727, %v5883
        %v5938 = vadd.f32 %v5728, %v5886
        %v5939 = vadd.f32 %v5729, %v5891
        %v5940 = vadd.f32 %v5730, %v5894
        %v5941 = vadd.f32 %v5731, %v5899
        %v5942 = vadd.f32 %v5732, %v5902
        %v5943 = vadd.f32 %v5733, %v5907
        %v5944 = vadd.f32 %v5734, %v5910
        %s5945 = scalar_lea.vmem %s7, 128
        %v5946 = vld [vmem:[%s5945] sm:$0xf]
        %v5947 = vld [vmem:[%s5945 + $0x4] sm:$0xf]
        %v5948 = vld [vmem:[%s5945 + $0x8] sm:$0xf]
        %v5949 = vld [vmem:[%s5945 + $0xc] sm:$0xf]
        %v5954 = vunpack.c.l.b16 %v5946
        %v5955 = vunpack.c.l.b16 %v5947
        %v5956 = vunpack.c.l.b16 %v5948
        %v5957 = vunpack.c.l.b16 %v5949
        %v5958 = vpack.c.b16 %v5955, %v5954
        %v5959 = vpack.c.b16 %v5957, %v5956
        %5962 = vmatprep.subr.bf16.mxu0 0
        %5963 = vmatpush1.bf16.msra.mxu0 0
        %5964 = vmatprep.subr.bf16.mxu0 0
        %5965 = vmatpush1.bf16.msra.mxu0 0
        %5966 = vmatprep.subr.bf16.mxu0 0
        %5967 = vmatpush1.bf16.msra.mxu0 0
        %5968 = vmatprep.subr.bf16.mxu0 0
        %5969 = vmatpush1.bf16.msra.mxu0 0
        %5970 = vmatprep.subr.bf16.mxu0 0
        %5971 = vmatpush1.bf16.msra.mxu0 0
        %5972 = vmatprep.subr.bf16.mxu0 0
        %5973 = vmatpush1.bf16.msra.mxu0 0
        %5974 = vmatprep.subr.bf16.mxu0 0
        %5975 = vmatpush1.bf16.msra.mxu0 %v5959
        %5976 = vmatprep.subr.bf16.mxu0 0
        %5977 = vmatpush1.bf16.msra.mxu0 %v5958
        %5978 = vmatprep.subr.bf16.mxu0 0
        %5979 = vmatpush2.bf16.msra.mxu0 0
        %5980 = vmatprep.subr.bf16.mxu0 0
        %5981 = vmatpush2.bf16.msra.mxu0 0
        %5982 = vmatprep.subr.bf16.mxu0 0
        %5983 = vmatpush2.bf16.msra.mxu0 0
        %5984 = vmatprep.subr.bf16.mxu0 0
        %5985 = vmatpush2.bf16.msra.mxu0 0
        %5986 = vmatprep.subr.bf16.mxu0 0
        %5987 = vmatpush2.bf16.msra.mxu0 0
        %5988 = vmatprep.subr.bf16.mxu0 0
        %5989 = vmatpush2.bf16.msra.mxu0 0
        %5990 = vmatprep.subr.bf16.mxu0 0
        %5991 = vmatpush2.bf16.msra.mxu0 0
        %5992 = vmatprep.subr.bf16.mxu0 0
        %5993 = vmatpush2.bf16.msra.mxu0 0
        %5994 = vmatprep.mubr.bf16.mxu0 0
        %5995 = vmatmul.mubr.bf16.gmra.mxu0 %v4635
        %v5996 = vpop.f32.mrf.mxu0
        %v5997 = vadd.f32 0.0, %v5996
        %v5998 = vpop.f32.mrf.mxu0
        %v5999 = vpop.f32.mrf.mxu0
        %v6000 = vadd.f32 0.0, %v5999
        %v6001 = vpop.f32.mrf.mxu0
        %6002 = vmatprep.mubr.bf16.mxu0 0
        %6003 = vmatmul.mubr.bf16.gmra.mxu0 %v4638
        %v6004 = vpop.f32.mrf.mxu0
        %v6005 = vadd.f32 0.0, %v6004
        %v6006 = vpop.f32.mrf.mxu0
        %v6007 = vpop.f32.mrf.mxu0
        %v6008 = vadd.f32 0.0, %v6007
        %v6009 = vpop.f32.mrf.mxu0
        %6010 = vmatprep.mubr.bf16.mxu0 0
        %6011 = vmatmul.mubr.bf16.gmra.mxu0 %v4641
        %v6012 = vpop.f32.mrf.mxu0
        %v6013 = vadd.f32 0.0, %v6012
        %v6014 = vpop.f32.mrf.mxu0
        %v6015 = vpop.f32.mrf.mxu0
        %v6016 = vadd.f32 0.0, %v6015
        %v6017 = vpop.f32.mrf.mxu0
        %6018 = vmatprep.mubr.bf16.mxu0 0
        %6019 = vmatmul.mubr.bf16.gmra.mxu0 %v4644
        %v6020 = vpop.f32.mrf.mxu0
        %v6021 = vadd.f32 0.0, %v6020
        %v6022 = vpop.f32.mrf.mxu0
        %v6023 = vpop.f32.mrf.mxu0
        %v6024 = vadd.f32 0.0, %v6023
        %v6025 = vpop.f32.mrf.mxu0
        %6026 = vmatprep.mubr.bf16.mxu0 0
        %6027 = vmatmul.mubr.bf16.gmra.mxu0 %v4647
        %v6028 = vpop.f32.mrf.mxu0
        %v6029 = vadd.f32 0.0, %v6028
        %v6030 = vpop.f32.mrf.mxu0
        %v6031 = vpop.f32.mrf.mxu0
        %v6032 = vadd.f32 0.0, %v6031
        %v6033 = vpop.f32.mrf.mxu0
        %6034 = vmatprep.mubr.bf16.mxu0 0
        %6035 = vmatmul.mubr.bf16.gmra.mxu0 %v4650
        %v6036 = vpop.f32.mrf.mxu0
        %v6037 = vadd.f32 0.0, %v6036
        %v6038 = vpop.f32.mrf.mxu0
        %v6039 = vpop.f32.mrf.mxu0
        %v6040 = vadd.f32 0.0, %v6039
        %v6041 = vpop.f32.mrf.mxu0
        %6042 = vmatprep.mubr.bf16.mxu0 0
        %6043 = vmatmul.mubr.bf16.gmra.mxu0 %v4653
        %v6044 = vpop.f32.mrf.mxu0
        %v6045 = vadd.f32 0.0, %v6044
        %v6046 = vpop.f32.mrf.mxu0
        %v6047 = vpop.f32.mrf.mxu0
        %v6048 = vadd.f32 0.0, %v6047
        %v6049 = vpop.f32.mrf.mxu0
        %6050 = vmatprep.mubr.bf16.mxu0 0
        %6051 = vmatmul.mubr.bf16.gmra.mxu0 %v4656
        %v6052 = vpop.f32.mrf.mxu0
        %v6053 = vadd.f32 0.0, %v6052
        %v6054 = vpop.f32.mrf.mxu0
        %v6055 = vpop.f32.mrf.mxu0
        %v6056 = vadd.f32 0.0, %v6055
        %v6057 = vpop.f32.mrf.mxu0
        %6058 = vmatprep.mubr.bf16.mxu0 0
        %6059 = vmatmul.mubr.bf16.gmra.mxu0 %v4659
        %v6060 = vpop.f32.mrf.mxu0
        %v6061 = vadd.f32 0.0, %v6060
        %v6062 = vpop.f32.mrf.mxu0
        %v6063 = vpop.f32.mrf.mxu0
        %v6064 = vadd.f32 0.0, %v6063
        %v6065 = vpop.f32.mrf.mxu0
        %6066 = vmatprep.mubr.bf16.mxu0 0
        %6067 = vmatmul.mubr.bf16.gmra.mxu0 %v4662
        %v6068 = vpop.f32.mrf.mxu0
        %v6069 = vadd.f32 0.0, %v6068
        %v6070 = vpop.f32.mrf.mxu0
        %v6071 = vpop.f32.mrf.mxu0
        %v6072 = vadd.f32 0.0, %v6071
        %v6073 = vpop.f32.mrf.mxu0
        %6074 = vmatprep.mubr.bf16.mxu0 0
        %6075 = vmatmul.mubr.bf16.gmra.mxu0 %v4665
        %v6076 = vpop.f32.mrf.mxu0
        %v6077 = vadd.f32 0.0, %v6076
        %v6078 = vpop.f32.mrf.mxu0
        %v6079 = vpop.f32.mrf.mxu0
        %v6080 = vadd.f32 0.0, %v6079
        %v6081 = vpop.f32.mrf.mxu0
        %6082 = vmatprep.mubr.bf16.mxu0 0
        %6083 = vmatmul.mubr.bf16.gmra.mxu0 %v4668
        %v6084 = vpop.f32.mrf.mxu0
        %v6085 = vadd.f32 0.0, %v6084
        %v6086 = vpop.f32.mrf.mxu0
        %v6087 = vpop.f32.mrf.mxu0
        %v6088 = vadd.f32 0.0, %v6087
        %v6089 = vpop.f32.mrf.mxu0
        %6090 = vmatprep.mubr.bf16.mxu0 0
        %6091 = vmatmul.mubr.bf16.gmra.mxu0 %v4671
        %v6092 = vpop.f32.mrf.mxu0
        %v6093 = vadd.f32 0.0, %v6092
        %v6094 = vpop.f32.mrf.mxu0
        %v6095 = vpop.f32.mrf.mxu0
        %v6096 = vadd.f32 0.0, %v6095
        %v6097 = vpop.f32.mrf.mxu0
        %6098 = vmatprep.mubr.bf16.mxu0 0
        %6099 = vmatmul.mubr.bf16.gmra.mxu0 %v4674
        %v6100 = vpop.f32.mrf.mxu0
        %v6101 = vadd.f32 0.0, %v6100
        %v6102 = vpop.f32.mrf.mxu0
        %v6103 = vpop.f32.mrf.mxu0
        %v6104 = vadd.f32 0.0, %v6103
        %v6105 = vpop.f32.mrf.mxu0
        %6106 = vmatprep.mubr.bf16.mxu0 0
        %6107 = vmatmul.mubr.bf16.gmra.mxu0 %v5330
        %v6108 = vpop.f32.mrf.mxu0
        %v6109 = vadd.f32 0.0, %v6108
        %v6110 = vpop.f32.mrf.mxu0
        %v6111 = vpop.f32.mrf.mxu0
        %v6112 = vadd.f32 0.0, %v6111
        %v6113 = vpop.f32.mrf.mxu0
        %6114 = vmatprep.mubr.bf16.mxu0 0
        %6115 = vmatmul.mubr.bf16.gmra.mxu0 %v2278
        %v6116 = vpop.f32.mrf.mxu0
        %v6117 = vadd.f32 0.0, %v6116
        %v6118 = vpop.f32.mrf.mxu0
        %v6119 = vpop.f32.mrf.mxu0
        %v6120 = vadd.f32 0.0, %v6119
        %v6121 = vpop.f32.mrf.mxu0
        %6122 = vdwg.mxu0
        %v6123 = vadd.f32 %v5913, %v5997
        %v6124 = vadd.f32 %v5914, %v6000
        %v6125 = vadd.f32 %v5915, %v6005
        %v6126 = vadd.f32 %v5916, %v6008
        %v6127 = vadd.f32 %v5917, %v6013
        %v6128 = vadd.f32 %v5918, %v6016
        %v6129 = vadd.f32 %v5919, %v6021
        %v6130 = vadd.f32 %v5920, %v6024
        %v6131 = vadd.f32 %v5921, %v6029
        %v6132 = vadd.f32 %v5922, %v6032
        %v6133 = vadd.f32 %v5923, %v6037
        %v6134 = vadd.f32 %v5924, %v6040
        %v6135 = vadd.f32 %v5925, %v6045
        %v6136 = vadd.f32 %v5926, %v6048
        %v6137 = vadd.f32 %v5927, %v6053
        %v6138 = vadd.f32 %v5928, %v6056
        %v6139 = vadd.f32 %v5929, %v6061
        %v6140 = vadd.f32 %v5930, %v6064
        %v6141 = vadd.f32 %v5931, %v6069
        %v6142 = vadd.f32 %v5932, %v6072
        %v6143 = vadd.f32 %v5933, %v6077
        %v6144 = vadd.f32 %v5934, %v6080
        %v6145 = vadd.f32 %v5935, %v6085
        %v6146 = vadd.f32 %v5936, %v6088
        %v6147 = vadd.f32 %v5937, %v6093
        %v6148 = vadd.f32 %v5938, %v6096
        %v6149 = vadd.f32 %v5939, %v6101
        %v6150 = vadd.f32 %v5940, %v6104
        %v6151 = vadd.f32 %v5941, %v6109
        %v6152 = vadd.f32 %v5942, %v6112
        %v6153 = vadd.f32 %v5943, %v6117
        %v6154 = vadd.f32 %v5944, %v6120
        %v6155 = vld [vmem:[%s8] sm:$0x1]
        %v6157 = vlaneseq
        %v6158 = vshrl.u32 %v6157, 7
        %v6159 = vsub.s32 0, %v6158
        %v6160 = vrot.slane %v6155, %v6159
        %v6162 = vmul.f32 %v6123, %v6160
        %v6163 = vmul.f32 %v6124, %v6160
        %v6164 = vmul.f32 %v6125, %v6160
        %v6165 = vmul.f32 %v6126, %v6160
        %v6166 = vmul.f32 %v6127, %v6160
        %v6167 = vmul.f32 %v6128, %v6160
        %v6168 = vmul.f32 %v6129, %v6160
        %v6169 = vmul.f32 %v6130, %v6160
        %v6170 = vmul.f32 %v6131, %v6160
        %v6171 = vmul.f32 %v6132, %v6160
        %v6172 = vmul.f32 %v6133, %v6160
        %v6173 = vmul.f32 %v6134, %v6160
        %v6174 = vmul.f32 %v6135, %v6160
        %v6175 = vmul.f32 %v6136, %v6160
        %v6176 = vmul.f32 %v6137, %v6160
        %v6177 = vmul.f32 %v6138, %v6160
        %v6178 = vmul.f32 %v6139, %v6160
        %v6179 = vmul.f32 %v6140, %v6160
        %v6180 = vmul.f32 %v6141, %v6160
        %v6181 = vmul.f32 %v6142, %v6160
        %v6182 = vmul.f32 %v6143, %v6160
        %v6183 = vmul.f32 %v6144, %v6160
        %v6184 = vmul.f32 %v6145, %v6160
        %v6185 = vmul.f32 %v6146, %v6160
        %v6186 = vmul.f32 %v6147, %v6160
        %v6187 = vmul.f32 %v6148, %v6160
        %v6188 = vmul.f32 %v6149, %v6160
        %v6189 = vmul.f32 %v6150, %v6160
        %v6190 = vmul.f32 %v6151, %v6160
        %v6191 = vmul.f32 %v6152, %v6160
        %v6192 = vmul.f32 %v6153, %v6160
        %v6193 = vmul.f32 %v6154, %v6160
        %v6194 = vld [vmem:[%s9] sm:$0x1]
        %v6196 = vlaneseq
        %v6197 = vshrl.u32 %v6196, 7
        %v6198 = vsub.s32 0, %v6197
        %v6199 = vrot.slane %v6194, %v6198
        %v6201 = vadd.f32 %v6162, %v6199
        %v6202 = vadd.f32 %v6163, %v6199
        %v6203 = vadd.f32 %v6164, %v6199
        %v6204 = vadd.f32 %v6165, %v6199
        %v6205 = vadd.f32 %v6166, %v6199
        %v6206 = vadd.f32 %v6167, %v6199
        %v6207 = vadd.f32 %v6168, %v6199
        %v6208 = vadd.f32 %v6169, %v6199
        %v6209 = vadd.f32 %v6170, %v6199
        %v6210 = vadd.f32 %v6171, %v6199
        %v6211 = vadd.f32 %v6172, %v6199
        %v6212 = vadd.f32 %v6173, %v6199
        %v6213 = vadd.f32 %v6174, %v6199
        %v6214 = vadd.f32 %v6175, %v6199
        %v6215 = vadd.f32 %v6176, %v6199
        %v6216 = vadd.f32 %v6177, %v6199
        %v6217 = vadd.f32 %v6178, %v6199
        %v6218 = vadd.f32 %v6179, %v6199
        %v6219 = vadd.f32 %v6180, %v6199
        %v6220 = vadd.f32 %v6181, %v6199
        %v6221 = vadd.f32 %v6182, %v6199
        %v6222 = vadd.f32 %v6183, %v6199
        %v6223 = vadd.f32 %v6184, %v6199
        %v6224 = vadd.f32 %v6185, %v6199
        %v6225 = vadd.f32 %v6186, %v6199
        %v6226 = vadd.f32 %v6187, %v6199
        %v6227 = vadd.f32 %v6188, %v6199
        %v6228 = vadd.f32 %v6189, %v6199
        %v6229 = vadd.f32 %v6190, %v6199
        %v6230 = vadd.f32 %v6191, %v6199
        %v6231 = vadd.f32 %v6192, %v6199
        %v6232 = vadd.f32 %v6193, %v6199
        %v6233 = vmax.f32 %v6201, 0.0
        %v6234 = vmax.f32 %v6202, 0.0
        %v6235 = vmax.f32 %v6203, 0.0
        %v6236 = vmax.f32 %v6204, 0.0
        %v6237 = vmax.f32 %v6205, 0.0
        %v6238 = vmax.f32 %v6206, 0.0
        %v6239 = vmax.f32 %v6207, 0.0
        %v6240 = vmax.f32 %v6208, 0.0
        %v6241 = vmax.f32 %v6209, 0.0
        %v6242 = vmax.f32 %v6210, 0.0
        %v6243 = vmax.f32 %v6211, 0.0
        %v6244 = vmax.f32 %v6212, 0.0
        %v6245 = vmax.f32 %v6213, 0.0
        %v6246 = vmax.f32 %v6214, 0.0
        %v6247 = vmax.f32 %v6215, 0.0
        %v6248 = vmax.f32 %v6216, 0.0
        %v6249 = vmax.f32 %v6217, 0.0
        %v6250 = vmax.f32 %v6218, 0.0
        %v6251 = vmax.f32 %v6219, 0.0
        %v6252 = vmax.f32 %v6220, 0.0
        %v6253 = vmax.f32 %v6221, 0.0
        %v6254 = vmax.f32 %v6222, 0.0
        %v6255 = vmax.f32 %v6223, 0.0
        %v6256 = vmax.f32 %v6224, 0.0
        %v6257 = vmax.f32 %v6225, 0.0
        %v6258 = vmax.f32 %v6226, 0.0
        %v6259 = vmax.f32 %v6227, 0.0
        %v6260 = vmax.f32 %v6228, 0.0
        %v6261 = vmax.f32 %v6229, 0.0
        %v6262 = vmax.f32 %v6230, 0.0
        %v6263 = vmax.f32 %v6231, 0.0
        %v6264 = vmax.f32 %v6232, 0.0
        %v6295 = vrot.slane %v6233, 7
        %v6296 = vsel %vm1572, %v1573, %v6295
        %v6297 = vrot.slane %v6234, 7
        %v6298 = vsel %vm1572, %v6295, %v6297
        %v6299 = vrot.slane %v6235, 7
        %v6300 = vsel %vm1572, %v1573, %v6299
        %v6301 = vrot.slane %v6236, 7
        %v6302 = vsel %vm1572, %v6299, %v6301
        %v6303 = vrot.slane %v6237, 7
        %v6304 = vsel %vm1572, %v1573, %v6303
        %v6305 = vrot.slane %v6238, 7
        %v6306 = vsel %vm1572, %v6303, %v6305
        %v6307 = vrot.slane %v6239, 7
        %v6308 = vsel %vm1572, %v1573, %v6307
        %v6309 = vrot.slane %v6240, 7
        %v6310 = vsel %vm1572, %v6307, %v6309
        %v6311 = vrot.slane %v6241, 7
        %v6312 = vsel %vm1572, %v1573, %v6311
        %v6313 = vrot.slane %v6242, 7
        %v6314 = vsel %vm1572, %v6311, %v6313
        %v6315 = vrot.slane %v6243, 7
        %v6316 = vsel %vm1572, %v1573, %v6315
        %v6317 = vrot.slane %v6244, 7
        %v6318 = vsel %vm1572, %v6315, %v6317
        %v6319 = vrot.slane %v6245, 7
        %v6320 = vsel %vm1572, %v1573, %v6319
        %v6321 = vrot.slane %v6246, 7
        %v6322 = vsel %vm1572, %v6319, %v6321
        %v6323 = vrot.slane %v6247, 7
        %v6324 = vsel %vm1572, %v1573, %v6323
        %v6325 = vrot.slane %v6248, 7
        %v6326 = vsel %vm1572, %v6323, %v6325
        %v6327 = vrot.slane %v6249, 7
        %v6328 = vsel %vm1572, %v1573, %v6327
        %v6329 = vrot.slane %v6250, 7
        %v6330 = vsel %vm1572, %v6327, %v6329
        %v6331 = vrot.slane %v6251, 7
        %v6332 = vsel %vm1572, %v1573, %v6331
        %v6333 = vrot.slane %v6252, 7
        %v6334 = vsel %vm1572, %v6331, %v6333
        %v6335 = vrot.slane %v6253, 7
        %v6336 = vsel %vm1572, %v1573, %v6335
        %v6337 = vrot.slane %v6254, 7
        %v6338 = vsel %vm1572, %v6335, %v6337
        %v6339 = vrot.slane %v6255, 7
        %v6340 = vsel %vm1572, %v1573, %v6339
        %v6341 = vrot.slane %v6256, 7
        %v6342 = vsel %vm1572, %v6339, %v6341
        %v6343 = vrot.slane %v6257, 7
        %v6344 = vsel %vm1572, %v1573, %v6343
        %v6345 = vrot.slane %v6258, 7
        %v6346 = vsel %vm1572, %v6343, %v6345
        %v6347 = vrot.slane %v6259, 7
        %v6348 = vsel %vm1572, %v1573, %v6347
        %v6349 = vrot.slane %v6260, 7
        %v6350 = vsel %vm1572, %v6347, %v6349
        %v6351 = vrot.slane %v6261, 7
        %v6352 = vsel %vm1572, %v1573, %v6351
        %v6353 = vrot.slane %v6262, 7
        %v6354 = vsel %vm1572, %v6351, %v6353
        %v6385 = vpack.c.bf16 %v6298, %v6296
        %v6386 = vpack.c.bf16 %v6302, %v6300
        %v6387 = vpack.c.bf16 %v6306, %v6304
        %v6388 = vpack.c.bf16 %v6310, %v6308
        %v6389 = vpack.c.bf16 %v6314, %v6312
        %v6390 = vpack.c.bf16 %v6318, %v6316
        %v6391 = vpack.c.bf16 %v6322, %v6320
        %v6392 = vpack.c.bf16 %v6326, %v6324
        %v6393 = vpack.c.bf16 %v6330, %v6328
        %v6394 = vpack.c.bf16 %v6334, %v6332
        %v6395 = vpack.c.bf16 %v6338, %v6336
        %v6396 = vpack.c.bf16 %v6342, %v6340
        %v6397 = vpack.c.bf16 %v6346, %v6344
        %v6398 = vpack.c.bf16 %v6350, %v6348
        %v6399 = vpack.c.bf16 %v6354, %v6352
        %v6400 = vld [vmem:[%s10] sm:$0xf]
        %v6401 = vld [vmem:[%s10 + $0x4] sm:$0xf]
        %v6402 = vld [vmem:[%s10 + $0x8] sm:$0xf]
        %v6403 = vld [vmem:[%s10 + $0xc] sm:$0xf]
        %v6404 = vld [vmem:[%s10 + $0x10] sm:$0xf]
        %v6405 = vld [vmem:[%s10 + $0x14] sm:$0xf]
        %v6406 = vpack.c.bf16 %v6234, %v6233
        %v6407 = vpack.c.bf16 %v6236, %v6235
        %v6408 = vpack.c.bf16 %v6238, %v6237
        %v6409 = vpack.c.bf16 %v6240, %v6239
        %v6410 = vpack.c.bf16 %v6242, %v6241
        %v6411 = vpack.c.bf16 %v6244, %v6243
        %v6412 = vpack.c.bf16 %v6246, %v6245
        %v6413 = vpack.c.bf16 %v6248, %v6247
        %v6414 = vpack.c.bf16 %v6250, %v6249
        %v6415 = vpack.c.bf16 %v6252, %v6251
        %v6416 = vpack.c.bf16 %v6254, %v6253
        %v6417 = vpack.c.bf16 %v6256, %v6255
        %v6418 = vpack.c.bf16 %v6258, %v6257
        %v6419 = vpack.c.bf16 %v6260, %v6259
        %v6420 = vpack.c.bf16 %v6262, %v6261
        %s6421 = scalar_lea.vmem %s10, 24
        %v6422 = vld [vmem:[%s6421] sm:$0xf]
        %v6423 = vld [vmem:[%s6421 + $0x4] sm:$0xf]
        %v6424 = vld [vmem:[%s6421 + $0x8] sm:$0xf]
        %v6425 = vld [vmem:[%s6421 + $0xc] sm:$0xf]
        %v6426 = vld [vmem:[%s6421 + $0x10] sm:$0xf]
        %v6427 = vld [vmem:[%s6421 + $0x14] sm:$0xf]
        %v6434 = vunpack.c.l.b16 %v6422
        %v6435 = vunpack.c.l.b16 %v6423
        %v6436 = vunpack.c.l.b16 %v6424
        %v6437 = vunpack.c.l.b16 %v6425
        %v6438 = vunpack.c.l.b16 %v6426
        %v6439 = vunpack.c.l.b16 %v6427
        %v6440 = vpack.c.b16 %v6435, %v6434
        %v6441 = vpack.c.b16 %v6437, %v6436
        %v6442 = vpack.c.b16 %v6439, %v6438
        %vm6446 = vcmask 392192
        %v6447 = vsel %vm6446, %v1686, 0
        %v6450 = vsel %vm6446, %v6406, 0
        %v6453 = vsel %vm6446, %v6407, 0
        %v6456 = vsel %vm6446, %v6408, 0
        %v6459 = vsel %vm6446, %v6409, 0
        %v6462 = vsel %vm6446, %v6410, 0
        %v6465 = vsel %vm6446, %v6411, 0
        %v6468 = vsel %vm6446, %v6412, 0
        %v6471 = vsel %vm6446, %v6413, 0
        %v6474 = vsel %vm6446, %v6414, 0
        %v6477 = vsel %vm6446, %v6415, 0
        %v6480 = vsel %vm6446, %v6416, 0
        %v6483 = vsel %vm6446, %v6417, 0
        %v6486 = vsel %vm6446, %v6418, 0
        %v6489 = vsel %vm6446, %v6419, 0
        %v6492 = vsel %vm6446, %v6420, 0
        %6494 = vmatprep.subr.bf16.mxu0 0
        %6495 = vmatpush1.bf16.msra.mxu0 0
        %6496 = vmatprep.subr.bf16.mxu0 0
        %6497 = vmatpush1.bf16.msra.mxu0 0
        %6498 = vmatprep.subr.bf16.mxu0 0
        %6499 = vmatpush1.bf16.msra.mxu0 0
        %6500 = vmatprep.subr.bf16.mxu0 0
        %6501 = vmatpush1.bf16.msra.mxu0 0
        %6502 = vmatprep.subr.bf16.mxu0 0
        %6503 = vmatpush1.bf16.msra.mxu0 0
        %6504 = vmatprep.subr.bf16.mxu0 0
        %6505 = vmatpush1.bf16.msra.mxu0 %v6442
        %6506 = vmatprep.subr.bf16.mxu0 0
        %6507 = vmatpush1.bf16.msra.mxu0 %v6441
        %6508 = vmatprep.subr.bf16.mxu0 0
        %6509 = vmatpush1.bf16.msra.mxu0 %v6440
        %6510 = vmatprep.subr.bf16.mxu0 0
        %6511 = vmatpush2.bf16.msra.mxu0 0
        %6512 = vmatprep.subr.bf16.mxu0 0
        %6513 = vmatpush2.bf16.msra.mxu0 0
        %6514 = vmatprep.subr.bf16.mxu0 0
        %6515 = vmatpush2.bf16.msra.mxu0 0
        %6516 = vmatprep.subr.bf16.mxu0 0
        %6517 = vmatpush2.bf16.msra.mxu0 0
        %6518 = vmatprep.subr.bf16.mxu0 0
        %6519 = vmatpush2.bf16.msra.mxu0 0
        %6520 = vmatprep.subr.bf16.mxu0 0
        %6521 = vmatpush2.bf16.msra.mxu0 0
        %6522 = vmatprep.subr.bf16.mxu0 0
        %6523 = vmatpush2.bf16.msra.mxu0 0
        %6524 = vmatprep.subr.bf16.mxu0 0
        %6525 = vmatpush2.bf16.msra.mxu0 0
        %6526 = vmatprep.mubr.bf16.mxu0 0
        %6527 = vmatmul.mubr.bf16.gmra.mxu0 %v6447
        %v6528 = vpop.f32.mrf.mxu0
        %v6529 = vadd.f32 0.0, %v6528
        %v6530 = vpop.f32.mrf.mxu0
        %v6531 = vpop.f32.mrf.mxu0
        %v6532 = vadd.f32 0.0, %v6531
        %v6533 = vpop.f32.mrf.mxu0
        %6534 = vmatprep.mubr.bf16.mxu0 0
        %6535 = vmatmul.mubr.bf16.gmra.mxu0 %v6450
        %v6536 = vpop.f32.mrf.mxu0
        %v6537 = vadd.f32 0.0, %v6536
        %v6538 = vpop.f32.mrf.mxu0
        %v6539 = vpop.f32.mrf.mxu0
        %v6540 = vadd.f32 0.0, %v6539
        %v6541 = vpop.f32.mrf.mxu0
        %6542 = vmatprep.mubr.bf16.mxu0 0
        %6543 = vmatmul.mubr.bf16.gmra.mxu0 %v6453
        %v6544 = vpop.f32.mrf.mxu0
        %v6545 = vadd.f32 0.0, %v6544
        %v6546 = vpop.f32.mrf.mxu0
        %v6547 = vpop.f32.mrf.mxu0
        %v6548 = vadd.f32 0.0, %v6547
        %v6549 = vpop.f32.mrf.mxu0
        %6550 = vmatprep.mubr.bf16.mxu0 0
        %6551 = vmatmul.mubr.bf16.gmra.mxu0 %v6456
        %v6552 = vpop.f32.mrf.mxu0
        %v6553 = vadd.f32 0.0, %v6552
        %v6554 = vpop.f32.mrf.mxu0
        %v6555 = vpop.f32.mrf.mxu0
        %v6556 = vadd.f32 0.0, %v6555
        %v6557 = vpop.f32.mrf.mxu0
        %6558 = vmatprep.mubr.bf16.mxu0 0
        %6559 = vmatmul.mubr.bf16.gmra.mxu0 %v6459
        %v6560 = vpop.f32.mrf.mxu0
        %v6561 = vadd.f32 0.0, %v6560
        %v6562 = vpop.f32.mrf.mxu0
        %v6563 = vpop.f32.mrf.mxu0
        %v6564 = vadd.f32 0.0, %v6563
        %v6565 = vpop.f32.mrf.mxu0
        %6566 = vmatprep.mubr.bf16.mxu0 0
        %6567 = vmatmul.mubr.bf16.gmra.mxu0 %v6462
        %v6568 = vpop.f32.mrf.mxu0
        %v6569 = vadd.f32 0.0, %v6568
        %v6570 = vpop.f32.mrf.mxu0
        %v6571 = vpop.f32.mrf.mxu0
        %v6572 = vadd.f32 0.0, %v6571
        %v6573 = vpop.f32.mrf.mxu0
        %6574 = vmatprep.mubr.bf16.mxu0 0
        %6575 = vmatmul.mubr.bf16.gmra.mxu0 %v6465
        %v6576 = vpop.f32.mrf.mxu0
        %v6577 = vadd.f32 0.0, %v6576
        %v6578 = vpop.f32.mrf.mxu0
        %v6579 = vpop.f32.mrf.mxu0
        %v6580 = vadd.f32 0.0, %v6579
        %v6581 = vpop.f32.mrf.mxu0
        %6582 = vmatprep.mubr.bf16.mxu0 0
        %6583 = vmatmul.mubr.bf16.gmra.mxu0 %v6468
        %v6584 = vpop.f32.mrf.mxu0
        %v6585 = vadd.f32 0.0, %v6584
        %v6586 = vpop.f32.mrf.mxu0
        %v6587 = vpop.f32.mrf.mxu0
        %v6588 = vadd.f32 0.0, %v6587
        %v6589 = vpop.f32.mrf.mxu0
        %6590 = vmatprep.mubr.bf16.mxu0 0
        %6591 = vmatmul.mubr.bf16.gmra.mxu0 %v6471
        %v6592 = vpop.f32.mrf.mxu0
        %v6593 = vadd.f32 0.0, %v6592
        %v6594 = vpop.f32.mrf.mxu0
        %v6595 = vpop.f32.mrf.mxu0
        %v6596 = vadd.f32 0.0, %v6595
        %v6597 = vpop.f32.mrf.mxu0
        %6598 = vmatprep.mubr.bf16.mxu0 0
        %6599 = vmatmul.mubr.bf16.gmra.mxu0 %v6474
        %v6600 = vpop.f32.mrf.mxu0
        %v6601 = vadd.f32 0.0, %v6600
        %v6602 = vpop.f32.mrf.mxu0
        %v6603 = vpop.f32.mrf.mxu0
        %v6604 = vadd.f32 0.0, %v6603
        %v6605 = vpop.f32.mrf.mxu0
        %6606 = vmatprep.mubr.bf16.mxu0 0
        %6607 = vmatmul.mubr.bf16.gmra.mxu0 %v6477
        %v6608 = vpop.f32.mrf.mxu0
        %v6609 = vadd.f32 0.0, %v6608
        %v6610 = vpop.f32.mrf.mxu0
        %v6611 = vpop.f32.mrf.mxu0
        %v6612 = vadd.f32 0.0, %v6611
        %v6613 = vpop.f32.mrf.mxu0
        %6614 = vmatprep.mubr.bf16.mxu0 0
        %6615 = vmatmul.mubr.bf16.gmra.mxu0 %v6480
        %v6616 = vpop.f32.mrf.mxu0
        %v6617 = vadd.f32 0.0, %v6616
        %v6618 = vpop.f32.mrf.mxu0
        %v6619 = vpop.f32.mrf.mxu0
        %v6620 = vadd.f32 0.0, %v6619
        %v6621 = vpop.f32.mrf.mxu0
        %6622 = vmatprep.mubr.bf16.mxu0 0
        %6623 = vmatmul.mubr.bf16.gmra.mxu0 %v6483
        %v6624 = vpop.f32.mrf.mxu0
        %v6625 = vadd.f32 0.0, %v6624
        %v6626 = vpop.f32.mrf.mxu0
        %v6627 = vpop.f32.mrf.mxu0
        %v6628 = vadd.f32 0.0, %v6627
        %v6629 = vpop.f32.mrf.mxu0
        %6630 = vmatprep.mubr.bf16.mxu0 0
        %6631 = vmatmul.mubr.bf16.gmra.mxu0 %v6486
        %v6632 = vpop.f32.mrf.mxu0
        %v6633 = vadd.f32 0.0, %v6632
        %v6634 = vpop.f32.mrf.mxu0
        %v6635 = vpop.f32.mrf.mxu0
        %v6636 = vadd.f32 0.0, %v6635
        %v6637 = vpop.f32.mrf.mxu0
        %6638 = vmatprep.mubr.bf16.mxu0 0
        %6639 = vmatmul.mubr.bf16.gmra.mxu0 %v6489
        %v6640 = vpop.f32.mrf.mxu0
        %v6641 = vadd.f32 0.0, %v6640
        %v6642 = vpop.f32.mrf.mxu0
        %v6643 = vpop.f32.mrf.mxu0
        %v6644 = vadd.f32 0.0, %v6643
        %v6645 = vpop.f32.mrf.mxu0
        %6646 = vmatprep.mubr.bf16.mxu0 0
        %6647 = vmatmul.mubr.bf16.gmra.mxu0 %v6492
        %v6648 = vpop.f32.mrf.mxu0
        %v6649 = vadd.f32 0.0, %v6648
        %v6650 = vpop.f32.mrf.mxu0
        %v6651 = vpop.f32.mrf.mxu0
        %v6652 = vadd.f32 0.0, %v6651
        %v6653 = vpop.f32.mrf.mxu0
        %6654 = vdwg.mxu0
        %v6661 = vunpack.c.l.b16 %v6400
        %v6662 = vunpack.c.l.b16 %v6401
        %v6663 = vunpack.c.l.b16 %v6402
        %v6664 = vunpack.c.l.b16 %v6403
        %v6665 = vunpack.c.l.b16 %v6404
        %v6666 = vunpack.c.l.b16 %v6405
        %v6667 = vpack.c.b16 %v6662, %v6661
        %v6668 = vpack.c.b16 %v6664, %v6663
        %v6669 = vpack.c.b16 %v6666, %v6665
        %v6673 = vsel %vm6446, %v1666, 0
        %v6676 = vsel %vm6446, %v6385, 0
        %v6679 = vsel %vm6446, %v6386, 0
        %v6682 = vsel %vm6446, %v6387, 0
        %v6685 = vsel %vm6446, %v6388, 0
        %v6688 = vsel %vm6446, %v6389, 0
        %v6691 = vsel %vm6446, %v6390, 0
        %v6694 = vsel %vm6446, %v6391, 0
        %v6697 = vsel %vm6446, %v6392, 0
        %v6700 = vsel %vm6446, %v6393, 0
        %v6703 = vsel %vm6446, %v6394, 0
        %v6706 = vsel %vm6446, %v6395, 0
        %v6709 = vsel %vm6446, %v6396, 0
        %v6712 = vsel %vm6446, %v6397, 0
        %v6715 = vsel %vm6446, %v6398, 0
        %v6718 = vsel %vm6446, %v6399, 0
        %6720 = vmatprep.subr.bf16.mxu0 0
        %6721 = vmatpush1.bf16.msra.mxu0 0
        %6722 = vmatprep.subr.bf16.mxu0 0
        %6723 = vmatpush1.bf16.msra.mxu0 0
        %6724 = vmatprep.subr.bf16.mxu0 0
        %6725 = vmatpush1.bf16.msra.mxu0 0
        %6726 = vmatprep.subr.bf16.mxu0 0
        %6727 = vmatpush1.bf16.msra.mxu0 0
        %6728 = vmatprep.subr.bf16.mxu0 0
        %6729 = vmatpush1.bf16.msra.mxu0 0
        %6730 = vmatprep.subr.bf16.mxu0 0
        %6731 = vmatpush1.bf16.msra.mxu0 %v6669
        %6732 = vmatprep.subr.bf16.mxu0 0
        %6733 = vmatpush1.bf16.msra.mxu0 %v6668
        %6734 = vmatprep.subr.bf16.mxu0 0
        %6735 = vmatpush1.bf16.msra.mxu0 %v6667
        %6736 = vmatprep.subr.bf16.mxu0 0
        %6737 = vmatpush2.bf16.msra.mxu0 0
        %6738 = vmatprep.subr.bf16.mxu0 0
        %6739 = vmatpush2.bf16.msra.mxu0 0
        %6740 = vmatprep.subr.bf16.mxu0 0
        %6741 = vmatpush2.bf16.msra.mxu0 0
        %6742 = vmatprep.subr.bf16.mxu0 0
        %6743 = vmatpush2.bf16.msra.mxu0 0
        %6744 = vmatprep.subr.bf16.mxu0 0
        %6745 = vmatpush2.bf16.msra.mxu0 0
        %6746 = vmatprep.subr.bf16.mxu0 0
        %6747 = vmatpush2.bf16.msra.mxu0 0
        %6748 = vmatprep.subr.bf16.mxu0 0
        %6749 = vmatpush2.bf16.msra.mxu0 0
        %6750 = vmatprep.subr.bf16.mxu0 0
        %6751 = vmatpush2.bf16.msra.mxu0 0
        %6752 = vmatprep.mubr.bf16.mxu0 0
        %6753 = vmatmul.mubr.bf16.gmra.mxu0 %v6673
        %v6754 = vpop.f32.mrf.mxu0
        %v6755 = vadd.f32 %v6529, %v6754
        %v6756 = vpop.f32.mrf.mxu0
        %v6757 = vpop.f32.mrf.mxu0
        %v6758 = vadd.f32 %v6532, %v6757
        %v6759 = vpop.f32.mrf.mxu0
        %6760 = vmatprep.mubr.bf16.mxu0 0
        %6761 = vmatmul.mubr.bf16.gmra.mxu0 %v6676
        %v6762 = vpop.f32.mrf.mxu0
        %v6763 = vadd.f32 %v6537, %v6762
        %v6764 = vpop.f32.mrf.mxu0
        %v6765 = vpop.f32.mrf.mxu0
        %v6766 = vadd.f32 %v6540, %v6765
        %v6767 = vpop.f32.mrf.mxu0
        %6768 = vmatprep.mubr.bf16.mxu0 0
        %6769 = vmatmul.mubr.bf16.gmra.mxu0 %v6679
        %v6770 = vpop.f32.mrf.mxu0
        %v6771 = vadd.f32 %v6545, %v6770
        %v6772 = vpop.f32.mrf.mxu0
        %v6773 = vpop.f32.mrf.mxu0
        %v6774 = vadd.f32 %v6548, %v6773
        %v6775 = vpop.f32.mrf.mxu0
        %6776 = vmatprep.mubr.bf16.mxu0 0
        %6777 = vmatmul.mubr.bf16.gmra.mxu0 %v6682
        %v6778 = vpop.f32.mrf.mxu0
        %v6779 = vadd.f32 %v6553, %v6778
        %v6780 = vpop.f32.mrf.mxu0
        %v6781 = vpop.f32.mrf.mxu0
        %v6782 = vadd.f32 %v6556, %v6781
        %v6783 = vpop.f32.mrf.mxu0
        %6784 = vmatprep.mubr.bf16.mxu0 0
        %6785 = vmatmul.mubr.bf16.gmra.mxu0 %v6685
        %v6786 = vpop.f32.mrf.mxu0
        %v6787 = vadd.f32 %v6561, %v6786
        %v6788 = vpop.f32.mrf.mxu0
        %v6789 = vpop.f32.mrf.mxu0
        %v6790 = vadd.f32 %v6564, %v6789
        %v6791 = vpop.f32.mrf.mxu0
        %6792 = vmatprep.mubr.bf16.mxu0 0
        %6793 = vmatmul.mubr.bf16.gmra.mxu0 %v6688
        %v6794 = vpop.f32.mrf.mxu0
        %v6795 = vadd.f32 %v6569, %v6794
        %v6796 = vpop.f32.mrf.mxu0
        %v6797 = vpop.f32.mrf.mxu0
        %v6798 = vadd.f32 %v6572, %v6797
        %v6799 = vpop.f32.mrf.mxu0
        %6800 = vmatprep.mubr.bf16.mxu0 0
        %6801 = vmatmul.mubr.bf16.gmra.mxu0 %v6691
        %v6802 = vpop.f32.mrf.mxu0
        %v6803 = vadd.f32 %v6577, %v6802
        %v6804 = vpop.f32.mrf.mxu0
        %v6805 = vpop.f32.mrf.mxu0
        %v6806 = vadd.f32 %v6580, %v6805
        %v6807 = vpop.f32.mrf.mxu0
        %6808 = vmatprep.mubr.bf16.mxu0 0
        %6809 = vmatmul.mubr.bf16.gmra.mxu0 %v6694
        %v6810 = vpop.f32.mrf.mxu0
        %v6811 = vadd.f32 %v6585, %v6810
        %v6812 = vpop.f32.mrf.mxu0
        %v6813 = vpop.f32.mrf.mxu0
        %v6814 = vadd.f32 %v6588, %v6813
        %v6815 = vpop.f32.mrf.mxu0
        %6816 = vmatprep.mubr.bf16.mxu0 0
        %6817 = vmatmul.mubr.bf16.gmra.mxu0 %v6697
        %v6818 = vpop.f32.mrf.mxu0
        %v6819 = vadd.f32 %v6593, %v6818
        %v6820 = vpop.f32.mrf.mxu0
        %v6821 = vpop.f32.mrf.mxu0
        %v6822 = vadd.f32 %v6596, %v6821
        %v6823 = vpop.f32.mrf.mxu0
        %6824 = vmatprep.mubr.bf16.mxu0 0
        %6825 = vmatmul.mubr.bf16.gmra.mxu0 %v6700
        %v6826 = vpop.f32.mrf.mxu0
        %v6827 = vadd.f32 %v6601, %v6826
        %v6828 = vpop.f32.mrf.mxu0
        %v6829 = vpop.f32.mrf.mxu0
        %v6830 = vadd.f32 %v6604, %v6829
        %v6831 = vpop.f32.mrf.mxu0
        %6832 = vmatprep.mubr.bf16.mxu0 0
        %6833 = vmatmul.mubr.bf16.gmra.mxu0 %v6703
        %v6834 = vpop.f32.mrf.mxu0
        %v6835 = vadd.f32 %v6609, %v6834
        %v6836 = vpop.f32.mrf.mxu0
        %v6837 = vpop.f32.mrf.mxu0
        %v6838 = vadd.f32 %v6612, %v6837
        %v6839 = vpop.f32.mrf.mxu0
        %6840 = vmatprep.mubr.bf16.mxu0 0
        %6841 = vmatmul.mubr.bf16.gmra.mxu0 %v6706
        %v6842 = vpop.f32.mrf.mxu0
        %v6843 = vadd.f32 %v6617, %v6842
        %v6844 = vpop.f32.mrf.mxu0
        %v6845 = vpop.f32.mrf.mxu0
        %v6846 = vadd.f32 %v6620, %v6845
        %v6847 = vpop.f32.mrf.mxu0
        %6848 = vmatprep.mubr.bf16.mxu0 0
        %6849 = vmatmul.mubr.bf16.gmra.mxu0 %v6709
        %v6850 = vpop.f32.mrf.mxu0
        %v6851 = vadd.f32 %v6625, %v6850
        %v6852 = vpop.f32.mrf.mxu0
        %v6853 = vpop.f32.mrf.mxu0
        %v6854 = vadd.f32 %v6628, %v6853
        %v6855 = vpop.f32.mrf.mxu0
        %6856 = vmatprep.mubr.bf16.mxu0 0
        %6857 = vmatmul.mubr.bf16.gmra.mxu0 %v6712
        %v6858 = vpop.f32.mrf.mxu0
        %v6859 = vadd.f32 %v6633, %v6858
        %v6860 = vpop.f32.mrf.mxu0
        %v6861 = vpop.f32.mrf.mxu0
        %v6862 = vadd.f32 %v6636, %v6861
        %v6863 = vpop.f32.mrf.mxu0
        %6864 = vmatprep.mubr.bf16.mxu0 0
        %6865 = vmatmul.mubr.bf16.gmra.mxu0 %v6715
        %v6866 = vpop.f32.mrf.mxu0
        %v6867 = vadd.f32 %v6641, %v6866
        %v6868 = vpop.f32.mrf.mxu0
        %v6869 = vpop.f32.mrf.mxu0
        %v6870 = vadd.f32 %v6644, %v6869
        %v6871 = vpop.f32.mrf.mxu0
        %6872 = vmatprep.mubr.bf16.mxu0 0
        %6873 = vmatmul.mubr.bf16.gmra.mxu0 %v6718
        %v6874 = vpop.f32.mrf.mxu0
        %v6875 = vadd.f32 %v6649, %v6874
        %v6876 = vpop.f32.mrf.mxu0
        %v6877 = vpop.f32.mrf.mxu0
        %v6878 = vadd.f32 %v6652, %v6877
        %v6879 = vpop.f32.mrf.mxu0
        %6880 = vdwg.mxu0
        %v6881 = vrot.slane %v6233, 1
        %v6882 = vrot.slane %v6234, 1
        %v6883 = vsel %vm2150, %v6881, %v6882
        %v6884 = vsel %vm2150, %v6882, %v2151
        %v6885 = vrot.slane %v6235, 1
        %v6886 = vrot.slane %v6236, 1
        %v6887 = vsel %vm2150, %v6885, %v6886
        %v6888 = vsel %vm2150, %v6886, %v2151
        %v6889 = vrot.slane %v6237, 1
        %v6890 = vrot.slane %v6238, 1
        %v6891 = vsel %vm2150, %v6889, %v6890
        %v6892 = vsel %vm2150, %v6890, %v2151
        %v6893 = vrot.slane %v6239, 1
        %v6894 = vrot.slane %v6240, 1
        %v6895 = vsel %vm2150, %v6893, %v6894
        %v6896 = vsel %vm2150, %v6894, %v2151
        %v6897 = vrot.slane %v6241, 1
        %v6898 = vrot.slane %v6242, 1
        %v6899 = vsel %vm2150, %v6897, %v6898
        %v6900 = vsel %vm2150, %v6898, %v2151
        %v6901 = vrot.slane %v6243, 1
        %v6902 = vrot.slane %v6244, 1
        %v6903 = vsel %vm2150, %v6901, %v6902
        %v6904 = vsel %vm2150, %v6902, %v2151
        %v6905 = vrot.slane %v6245, 1
        %v6906 = vrot.slane %v6246, 1
        %v6907 = vsel %vm2150, %v6905, %v6906
        %v6908 = vsel %vm2150, %v6906, %v2151
        %v6909 = vrot.slane %v6247, 1
        %v6910 = vrot.slane %v6248, 1
        %v6911 = vsel %vm2150, %v6909, %v6910
        %v6912 = vsel %vm2150, %v6910, %v2151
        %v6913 = vrot.slane %v6249, 1
        %v6914 = vrot.slane %v6250, 1
        %v6915 = vsel %vm2150, %v6913, %v6914
        %v6916 = vsel %vm2150, %v6914, %v2151
        %v6917 = vrot.slane %v6251, 1
        %v6918 = vrot.slane %v6252, 1
        %v6919 = vsel %vm2150, %v6917, %v6918
        %v6920 = vsel %vm2150, %v6918, %v2151
        %v6921 = vrot.slane %v6253, 1
        %v6922 = vrot.slane %v6254, 1
        %v6923 = vsel %vm2150, %v6921, %v6922
        %v6924 = vsel %vm2150, %v6922, %v2151
        %v6925 = vrot.slane %v6255, 1
        %v6926 = vrot.slane %v6256, 1
        %v6927 = vsel %vm2150, %v6925, %v6926
        %v6928 = vsel %vm2150, %v6926, %v2151
        %v6929 = vrot.slane %v6257, 1
        %v6930 = vrot.slane %v6258, 1
        %v6931 = vsel %vm2150, %v6929, %v6930
        %v6932 = vsel %vm2150, %v6930, %v2151
        %v6933 = vrot.slane %v6259, 1
        %v6934 = vrot.slane %v6260, 1
        %v6935 = vsel %vm2150, %v6933, %v6934
        %v6936 = vsel %vm2150, %v6934, %v2151
        %v6937 = vrot.slane %v6261, 1
        %v6938 = vrot.slane %v6262, 1
        %v6939 = vsel %vm2150, %v6937, %v6938
        %v6940 = vsel %vm2150, %v6938, %v2151
        %v6971 = vpack.c.bf16 %v6884, %v6883
        %v6972 = vpack.c.bf16 %v6888, %v6887
        %v6973 = vpack.c.bf16 %v6892, %v6891
        %v6974 = vpack.c.bf16 %v6896, %v6895
        %v6975 = vpack.c.bf16 %v6900, %v6899
        %v6976 = vpack.c.bf16 %v6904, %v6903
        %v6977 = vpack.c.bf16 %v6908, %v6907
        %v6978 = vpack.c.bf16 %v6912, %v6911
        %v6979 = vpack.c.bf16 %v6916, %v6915
        %v6980 = vpack.c.bf16 %v6920, %v6919
        %v6981 = vpack.c.bf16 %v6924, %v6923
        %v6982 = vpack.c.bf16 %v6928, %v6927
        %v6983 = vpack.c.bf16 %v6932, %v6931
        %v6984 = vpack.c.bf16 %v6936, %v6935
        %v6985 = vpack.c.bf16 %v6940, %v6939
        %s6986 = scalar_lea.vmem %s10, 48
        %v6987 = vld [vmem:[%s6986] sm:$0xf]
        %v6988 = vld [vmem:[%s6986 + $0x4] sm:$0xf]
        %v6989 = vld [vmem:[%s6986 + $0x8] sm:$0xf]
        %v6990 = vld [vmem:[%s6986 + $0xc] sm:$0xf]
        %v6991 = vld [vmem:[%s6986 + $0x10] sm:$0xf]
        %v6992 = vld [vmem:[%s6986 + $0x14] sm:$0xf]
        %v6999 = vunpack.c.l.b16 %v6987
        %v7000 = vunpack.c.l.b16 %v6988
        %v7001 = vunpack.c.l.b16 %v6989
        %v7002 = vunpack.c.l.b16 %v6990
        %v7003 = vunpack.c.l.b16 %v6991
        %v7004 = vunpack.c.l.b16 %v6992
        %v7005 = vpack.c.b16 %v7000, %v6999
        %v7006 = vpack.c.b16 %v7002, %v7001
        %v7007 = vpack.c.b16 %v7004, %v7003
        %v7011 = vsel %vm6446, %v2244, 0
        %v7014 = vsel %vm6446, %v6971, 0
        %v7017 = vsel %vm6446, %v6972, 0
        %v7020 = vsel %vm6446, %v6973, 0
        %v7023 = vsel %vm6446, %v6974, 0
        %v7026 = vsel %vm6446, %v6975, 0
        %v7029 = vsel %vm6446, %v6976, 0
        %v7032 = vsel %vm6446, %v6977, 0
        %v7035 = vsel %vm6446, %v6978, 0
        %v7038 = vsel %vm6446, %v6979, 0
        %v7041 = vsel %vm6446, %v6980, 0
        %v7044 = vsel %vm6446, %v6981, 0
        %v7047 = vsel %vm6446, %v6982, 0
        %v7050 = vsel %vm6446, %v6983, 0
        %v7053 = vsel %vm6446, %v6984, 0
        %v7056 = vsel %vm6446, %v6985, 0
        %7058 = vmatprep.subr.bf16.mxu0 0
        %7059 = vmatpush1.bf16.msra.mxu0 0
        %7060 = vmatprep.subr.bf16.mxu0 0
        %7061 = vmatpush1.bf16.msra.mxu0 0
        %7062 = vmatprep.subr.bf16.mxu0 0
        %7063 = vmatpush1.bf16.msra.mxu0 0
        %7064 = vmatprep.subr.bf16.mxu0 0
        %7065 = vmatpush1.bf16.msra.mxu0 0
        %7066 = vmatprep.subr.bf16.mxu0 0
        %7067 = vmatpush1.bf16.msra.mxu0 0
        %7068 = vmatprep.subr.bf16.mxu0 0
        %7069 = vmatpush1.bf16.msra.mxu0 %v7007
        %7070 = vmatprep.subr.bf16.mxu0 0
        %7071 = vmatpush1.bf16.msra.mxu0 %v7006
        %7072 = vmatprep.subr.bf16.mxu0 0
        %7073 = vmatpush1.bf16.msra.mxu0 %v7005
        %7074 = vmatprep.subr.bf16.mxu0 0
        %7075 = vmatpush2.bf16.msra.mxu0 0
        %7076 = vmatprep.subr.bf16.mxu0 0
        %7077 = vmatpush2.bf16.msra.mxu0 0
        %7078 = vmatprep.subr.bf16.mxu0 0
        %7079 = vmatpush2.bf16.msra.mxu0 0
        %7080 = vmatprep.subr.bf16.mxu0 0
        %7081 = vmatpush2.bf16.msra.mxu0 0
        %7082 = vmatprep.subr.bf16.mxu0 0
        %7083 = vmatpush2.bf16.msra.mxu0 0
        %7084 = vmatprep.subr.bf16.mxu0 0
        %7085 = vmatpush2.bf16.msra.mxu0 0
        %7086 = vmatprep.subr.bf16.mxu0 0
        %7087 = vmatpush2.bf16.msra.mxu0 0
        %7088 = vmatprep.subr.bf16.mxu0 0
        %7089 = vmatpush2.bf16.msra.mxu0 0
        %7090 = vmatprep.mubr.bf16.mxu0 0
        %7091 = vmatmul.mubr.bf16.gmra.mxu0 %v7011
        %v7092 = vpop.f32.mrf.mxu0
        %v7093 = vadd.f32 0.0, %v7092
        %v7094 = vpop.f32.mrf.mxu0
        %v7095 = vpop.f32.mrf.mxu0
        %v7096 = vadd.f32 0.0, %v7095
        %v7097 = vpop.f32.mrf.mxu0
        %7098 = vmatprep.mubr.bf16.mxu0 0
        %7099 = vmatmul.mubr.bf16.gmra.mxu0 %v7014
        %v7100 = vpop.f32.mrf.mxu0
        %v7101 = vadd.f32 0.0, %v7100
        %v7102 = vpop.f32.mrf.mxu0
        %v7103 = vpop.f32.mrf.mxu0
        %v7104 = vadd.f32 0.0, %v7103
        %v7105 = vpop.f32.mrf.mxu0
        %7106 = vmatprep.mubr.bf16.mxu0 0
        %7107 = vmatmul.mubr.bf16.gmra.mxu0 %v7017
        %v7108 = vpop.f32.mrf.mxu0
        %v7109 = vadd.f32 0.0, %v7108
        %v7110 = vpop.f32.mrf.mxu0
        %v7111 = vpop.f32.mrf.mxu0
        %v7112 = vadd.f32 0.0, %v7111
        %v7113 = vpop.f32.mrf.mxu0
        %7114 = vmatprep.mubr.bf16.mxu0 0
        %7115 = vmatmul.mubr.bf16.gmra.mxu0 %v7020
        %v7116 = vpop.f32.mrf.mxu0
        %v7117 = vadd.f32 0.0, %v7116
        %v7118 = vpop.f32.mrf.mxu0
        %v7119 = vpop.f32.mrf.mxu0
        %v7120 = vadd.f32 0.0, %v7119
        %v7121 = vpop.f32.mrf.mxu0
        %7122 = vmatprep.mubr.bf16.mxu0 0
        %7123 = vmatmul.mubr.bf16.gmra.mxu0 %v7023
        %v7124 = vpop.f32.mrf.mxu0
        %v7125 = vadd.f32 0.0, %v7124
        %v7126 = vpop.f32.mrf.mxu0
        %v7127 = vpop.f32.mrf.mxu0
        %v7128 = vadd.f32 0.0, %v7127
        %v7129 = vpop.f32.mrf.mxu0
        %7130 = vmatprep.mubr.bf16.mxu0 0
        %7131 = vmatmul.mubr.bf16.gmra.mxu0 %v7026
        %v7132 = vpop.f32.mrf.mxu0
        %v7133 = vadd.f32 0.0, %v7132
        %v7134 = vpop.f32.mrf.mxu0
        %v7135 = vpop.f32.mrf.mxu0
        %v7136 = vadd.f32 0.0, %v7135
        %v7137 = vpop.f32.mrf.mxu0
        %7138 = vmatprep.mubr.bf16.mxu0 0
        %7139 = vmatmul.mubr.bf16.gmra.mxu0 %v7029
        %v7140 = vpop.f32.mrf.mxu0
        %v7141 = vadd.f32 0.0, %v7140
        %v7142 = vpop.f32.mrf.mxu0
        %v7143 = vpop.f32.mrf.mxu0
        %v7144 = vadd.f32 0.0, %v7143
        %v7145 = vpop.f32.mrf.mxu0
        %7146 = vmatprep.mubr.bf16.mxu0 0
        %7147 = vmatmul.mubr.bf16.gmra.mxu0 %v7032
        %v7148 = vpop.f32.mrf.mxu0
        %v7149 = vadd.f32 0.0, %v7148
        %v7150 = vpop.f32.mrf.mxu0
        %v7151 = vpop.f32.mrf.mxu0
        %v7152 = vadd.f32 0.0, %v7151
        %v7153 = vpop.f32.mrf.mxu0
        %7154 = vmatprep.mubr.bf16.mxu0 0
        %7155 = vmatmul.mubr.bf16.gmra.mxu0 %v7035
        %v7156 = vpop.f32.mrf.mxu0
        %v7157 = vadd.f32 0.0, %v7156
        %v7158 = vpop.f32.mrf.mxu0
        %v7159 = vpop.f32.mrf.mxu0
        %v7160 = vadd.f32 0.0, %v7159
        %v7161 = vpop.f32.mrf.mxu0
        %7162 = vmatprep.mubr.bf16.mxu0 0
        %7163 = vmatmul.mubr.bf16.gmra.mxu0 %v7038
        %v7164 = vpop.f32.mrf.mxu0
        %v7165 = vadd.f32 0.0, %v7164
        %v7166 = vpop.f32.mrf.mxu0
        %v7167 = vpop.f32.mrf.mxu0
        %v7168 = vadd.f32 0.0, %v7167
        %v7169 = vpop.f32.mrf.mxu0
        %7170 = vmatprep.mubr.bf16.mxu0 0
        %7171 = vmatmul.mubr.bf16.gmra.mxu0 %v7041
        %v7172 = vpop.f32.mrf.mxu0
        %v7173 = vadd.f32 0.0, %v7172
        %v7174 = vpop.f32.mrf.mxu0
        %v7175 = vpop.f32.mrf.mxu0
        %v7176 = vadd.f32 0.0, %v7175
        %v7177 = vpop.f32.mrf.mxu0
        %7178 = vmatprep.mubr.bf16.mxu0 0
        %7179 = vmatmul.mubr.bf16.gmra.mxu0 %v7044
        %v7180 = vpop.f32.mrf.mxu0
        %v7181 = vadd.f32 0.0, %v7180
        %v7182 = vpop.f32.mrf.mxu0
        %v7183 = vpop.f32.mrf.mxu0
        %v7184 = vadd.f32 0.0, %v7183
        %v7185 = vpop.f32.mrf.mxu0
        %7186 = vmatprep.mubr.bf16.mxu0 0
        %7187 = vmatmul.mubr.bf16.gmra.mxu0 %v7047
        %v7188 = vpop.f32.mrf.mxu0
        %v7189 = vadd.f32 0.0, %v7188
        %v7190 = vpop.f32.mrf.mxu0
        %v7191 = vpop.f32.mrf.mxu0
        %v7192 = vadd.f32 0.0, %v7191
        %v7193 = vpop.f32.mrf.mxu0
        %7194 = vmatprep.mubr.bf16.mxu0 0
        %7195 = vmatmul.mubr.bf16.gmra.mxu0 %v7050
        %v7196 = vpop.f32.mrf.mxu0
        %v7197 = vadd.f32 0.0, %v7196
        %v7198 = vpop.f32.mrf.mxu0
        %v7199 = vpop.f32.mrf.mxu0
        %v7200 = vadd.f32 0.0, %v7199
        %v7201 = vpop.f32.mrf.mxu0
        %7202 = vmatprep.mubr.bf16.mxu0 0
        %7203 = vmatmul.mubr.bf16.gmra.mxu0 %v7053
        %v7204 = vpop.f32.mrf.mxu0
        %v7205 = vadd.f32 0.0, %v7204
        %v7206 = vpop.f32.mrf.mxu0
        %v7207 = vpop.f32.mrf.mxu0
        %v7208 = vadd.f32 0.0, %v7207
        %v7209 = vpop.f32.mrf.mxu0
        %7210 = vmatprep.mubr.bf16.mxu0 0
        %7211 = vmatmul.mubr.bf16.gmra.mxu0 %v7056
        %v7212 = vpop.f32.mrf.mxu0
        %v7213 = vadd.f32 0.0, %v7212
        %v7214 = vpop.f32.mrf.mxu0
        %v7215 = vpop.f32.mrf.mxu0
        %v7216 = vadd.f32 0.0, %v7215
        %v7217 = vpop.f32.mrf.mxu0
        %7218 = vdwg.mxu0
        %v7219 = vadd.f32 %v6755, %v7093
        %v7220 = vadd.f32 %v6758, %v7096
        %v7221 = vadd.f32 %v6763, %v7101
        %v7222 = vadd.f32 %v6766, %v7104
        %v7223 = vadd.f32 %v6771, %v7109
        %v7224 = vadd.f32 %v6774, %v7112
        %v7225 = vadd.f32 %v6779, %v7117
        %v7226 = vadd.f32 %v6782, %v7120
        %v7227 = vadd.f32 %v6787, %v7125
        %v7228 = vadd.f32 %v6790, %v7128
        %v7229 = vadd.f32 %v6795, %v7133
        %v7230 = vadd.f32 %v6798, %v7136
        %v7231 = vadd.f32 %v6803, %v7141
        %v7232 = vadd.f32 %v6806, %v7144
        %v7233 = vadd.f32 %v6811, %v7149
        %v7234 = vadd.f32 %v6814, %v7152
        %v7235 = vadd.f32 %v6819, %v7157
        %v7236 = vadd.f32 %v6822, %v7160
        %v7237 = vadd.f32 %v6827, %v7165
        %v7238 = vadd.f32 %v6830, %v7168
        %v7239 = vadd.f32 %v6835, %v7173
        %v7240 = vadd.f32 %v6838, %v7176
        %v7241 = vadd.f32 %v6843, %v7181
        %v7242 = vadd.f32 %v6846, %v7184
        %v7243 = vadd.f32 %v6851, %v7189
        %v7244 = vadd.f32 %v6854, %v7192
        %v7245 = vadd.f32 %v6859, %v7197
        %v7246 = vadd.f32 %v6862, %v7200
        %v7247 = vadd.f32 %v6867, %v7205
        %v7248 = vadd.f32 %v6870, %v7208
        %v7249 = vadd.f32 %v6875, %v7213
        %v7250 = vadd.f32 %v6878, %v7216
        %v7253 = vrot.slane %v6263, 7
        %v7254 = vsel %vm1572, %v1573, %v7253
        %v7255 = vrot.slane %v6264, 7
        %v7256 = vsel %vm1572, %v7253, %v7255
        %v7259 = vpack.c.bf16 %v7256, %v7254
        %s7260 = scalar_lea.vmem %s10, 72
        %v7261 = vld [vmem:[%s7260] sm:$0xf]
        %v7262 = vld [vmem:[%s7260 + $0x4] sm:$0xf]
        %v7263 = vld [vmem:[%s7260 + $0x8] sm:$0xf]
        %v7264 = vld [vmem:[%s7260 + $0xc] sm:$0xf]
        %v7265 = vld [vmem:[%s7260 + $0x10] sm:$0xf]
        %v7266 = vld [vmem:[%s7260 + $0x14] sm:$0xf]
        %v7273 = vunpack.c.l.b16 %v7261
        %v7274 = vunpack.c.l.b16 %v7262
        %v7275 = vunpack.c.l.b16 %v7263
        %v7276 = vunpack.c.l.b16 %v7264
        %v7277 = vunpack.c.l.b16 %v7265
        %v7278 = vunpack.c.l.b16 %v7266
        %v7279 = vpack.c.b16 %v7274, %v7273
        %v7280 = vpack.c.b16 %v7276, %v7275
        %v7281 = vpack.c.b16 %v7278, %v7277
        %v7286 = vsel %vm6446, %v7259, 0
        %7288 = vmatprep.subr.bf16.mxu0 0
        %7289 = vmatpush1.bf16.msra.mxu0 0
        %7290 = vmatprep.subr.bf16.mxu0 0
        %7291 = vmatpush1.bf16.msra.mxu0 0
        %7292 = vmatprep.subr.bf16.mxu0 0
        %7293 = vmatpush1.bf16.msra.mxu0 0
        %7294 = vmatprep.subr.bf16.mxu0 0
        %7295 = vmatpush1.bf16.msra.mxu0 0
        %7296 = vmatprep.subr.bf16.mxu0 0
        %7297 = vmatpush1.bf16.msra.mxu0 0
        %7298 = vmatprep.subr.bf16.mxu0 0
        %7299 = vmatpush1.bf16.msra.mxu0 %v7281
        %7300 = vmatprep.subr.bf16.mxu0 0
        %7301 = vmatpush1.bf16.msra.mxu0 %v7280
        %7302 = vmatprep.subr.bf16.mxu0 0
        %7303 = vmatpush1.bf16.msra.mxu0 %v7279
        %7304 = vmatprep.subr.bf16.mxu0 0
        %7305 = vmatpush2.bf16.msra.mxu0 0
        %7306 = vmatprep.subr.bf16.mxu0 0
        %7307 = vmatpush2.bf16.msra.mxu0 0
        %7308 = vmatprep.subr.bf16.mxu0 0
        %7309 = vmatpush2.bf16.msra.mxu0 0
        %7310 = vmatprep.subr.bf16.mxu0 0
        %7311 = vmatpush2.bf16.msra.mxu0 0
        %7312 = vmatprep.subr.bf16.mxu0 0
        %7313 = vmatpush2.bf16.msra.mxu0 0
        %7314 = vmatprep.subr.bf16.mxu0 0
        %7315 = vmatpush2.bf16.msra.mxu0 0
        %7316 = vmatprep.subr.bf16.mxu0 0
        %7317 = vmatpush2.bf16.msra.mxu0 0
        %7318 = vmatprep.subr.bf16.mxu0 0
        %7319 = vmatpush2.bf16.msra.mxu0 0
        %7320 = vmatprep.mubr.bf16.mxu0 0
        %7321 = vmatmul.mubr.bf16.gmra.mxu0 %v6676
        %v7322 = vpop.f32.mrf.mxu0
        %v7323 = vadd.f32 0.0, %v7322
        %v7324 = vpop.f32.mrf.mxu0
        %v7325 = vpop.f32.mrf.mxu0
        %v7326 = vadd.f32 0.0, %v7325
        %v7327 = vpop.f32.mrf.mxu0
        %7328 = vmatprep.mubr.bf16.mxu0 0
        %7329 = vmatmul.mubr.bf16.gmra.mxu0 %v6679
        %v7330 = vpop.f32.mrf.mxu0
        %v7331 = vadd.f32 0.0, %v7330
        %v7332 = vpop.f32.mrf.mxu0
        %v7333 = vpop.f32.mrf.mxu0
        %v7334 = vadd.f32 0.0, %v7333
        %v7335 = vpop.f32.mrf.mxu0
        %7336 = vmatprep.mubr.bf16.mxu0 0
        %7337 = vmatmul.mubr.bf16.gmra.mxu0 %v6682
        %v7338 = vpop.f32.mrf.mxu0
        %v7339 = vadd.f32 0.0, %v7338
        %v7340 = vpop.f32.mrf.mxu0
        %v7341 = vpop.f32.mrf.mxu0
        %v7342 = vadd.f32 0.0, %v7341
        %v7343 = vpop.f32.mrf.mxu0
        %7344 = vmatprep.mubr.bf16.mxu0 0
        %7345 = vmatmul.mubr.bf16.gmra.mxu0 %v6685
        %v7346 = vpop.f32.mrf.mxu0
        %v7347 = vadd.f32 0.0, %v7346
        %v7348 = vpop.f32.mrf.mxu0
        %v7349 = vpop.f32.mrf.mxu0
        %v7350 = vadd.f32 0.0, %v7349
        %v7351 = vpop.f32.mrf.mxu0
        %7352 = vmatprep.mubr.bf16.mxu0 0
        %7353 = vmatmul.mubr.bf16.gmra.mxu0 %v6688
        %v7354 = vpop.f32.mrf.mxu0
        %v7355 = vadd.f32 0.0, %v7354
        %v7356 = vpop.f32.mrf.mxu0
        %v7357 = vpop.f32.mrf.mxu0
        %v7358 = vadd.f32 0.0, %v7357
        %v7359 = vpop.f32.mrf.mxu0
        %7360 = vmatprep.mubr.bf16.mxu0 0
        %7361 = vmatmul.mubr.bf16.gmra.mxu0 %v6691
        %v7362 = vpop.f32.mrf.mxu0
        %v7363 = vadd.f32 0.0, %v7362
        %v7364 = vpop.f32.mrf.mxu0
        %v7365 = vpop.f32.mrf.mxu0
        %v7366 = vadd.f32 0.0, %v7365
        %v7367 = vpop.f32.mrf.mxu0
        %7368 = vmatprep.mubr.bf16.mxu0 0
        %7369 = vmatmul.mubr.bf16.gmra.mxu0 %v6694
        %v7370 = vpop.f32.mrf.mxu0
        %v7371 = vadd.f32 0.0, %v7370
        %v7372 = vpop.f32.mrf.mxu0
        %v7373 = vpop.f32.mrf.mxu0
        %v7374 = vadd.f32 0.0, %v7373
        %v7375 = vpop.f32.mrf.mxu0
        %7376 = vmatprep.mubr.bf16.mxu0 0
        %7377 = vmatmul.mubr.bf16.gmra.mxu0 %v6697
        %v7378 = vpop.f32.mrf.mxu0
        %v7379 = vadd.f32 0.0, %v7378
        %v7380 = vpop.f32.mrf.mxu0
        %v7381 = vpop.f32.mrf.mxu0
        %v7382 = vadd.f32 0.0, %v7381
        %v7383 = vpop.f32.mrf.mxu0
        %7384 = vmatprep.mubr.bf16.mxu0 0
        %7385 = vmatmul.mubr.bf16.gmra.mxu0 %v6700
        %v7386 = vpop.f32.mrf.mxu0
        %v7387 = vadd.f32 0.0, %v7386
        %v7388 = vpop.f32.mrf.mxu0
        %v7389 = vpop.f32.mrf.mxu0
        %v7390 = vadd.f32 0.0, %v7389
        %v7391 = vpop.f32.mrf.mxu0
        %7392 = vmatprep.mubr.bf16.mxu0 0
        %7393 = vmatmul.mubr.bf16.gmra.mxu0 %v6703
        %v7394 = vpop.f32.mrf.mxu0
        %v7395 = vadd.f32 0.0, %v7394
        %v7396 = vpop.f32.mrf.mxu0
        %v7397 = vpop.f32.mrf.mxu0
        %v7398 = vadd.f32 0.0, %v7397
        %v7399 = vpop.f32.mrf.mxu0
        %7400 = vmatprep.mubr.bf16.mxu0 0
        %7401 = vmatmul.mubr.bf16.gmra.mxu0 %v6706
        %v7402 = vpop.f32.mrf.mxu0
        %v7403 = vadd.f32 0.0, %v7402
        %v7404 = vpop.f32.mrf.mxu0
        %v7405 = vpop.f32.mrf.mxu0
        %v7406 = vadd.f32 0.0, %v7405
        %v7407 = vpop.f32.mrf.mxu0
        %7408 = vmatprep.mubr.bf16.mxu0 0
        %7409 = vmatmul.mubr.bf16.gmra.mxu0 %v6709
        %v7410 = vpop.f32.mrf.mxu0
        %v7411 = vadd.f32 0.0, %v7410
        %v7412 = vpop.f32.mrf.mxu0
        %v7413 = vpop.f32.mrf.mxu0
        %v7414 = vadd.f32 0.0, %v7413
        %v7415 = vpop.f32.mrf.mxu0
        %7416 = vmatprep.mubr.bf16.mxu0 0
        %7417 = vmatmul.mubr.bf16.gmra.mxu0 %v6712
        %v7418 = vpop.f32.mrf.mxu0
        %v7419 = vadd.f32 0.0, %v7418
        %v7420 = vpop.f32.mrf.mxu0
        %v7421 = vpop.f32.mrf.mxu0
        %v7422 = vadd.f32 0.0, %v7421
        %v7423 = vpop.f32.mrf.mxu0
        %7424 = vmatprep.mubr.bf16.mxu0 0
        %7425 = vmatmul.mubr.bf16.gmra.mxu0 %v6715
        %v7426 = vpop.f32.mrf.mxu0
        %v7427 = vadd.f32 0.0, %v7426
        %v7428 = vpop.f32.mrf.mxu0
        %v7429 = vpop.f32.mrf.mxu0
        %v7430 = vadd.f32 0.0, %v7429
        %v7431 = vpop.f32.mrf.mxu0
        %7432 = vmatprep.mubr.bf16.mxu0 0
        %7433 = vmatmul.mubr.bf16.gmra.mxu0 %v6718
        %v7434 = vpop.f32.mrf.mxu0
        %v7435 = vadd.f32 0.0, %v7434
        %v7436 = vpop.f32.mrf.mxu0
        %v7437 = vpop.f32.mrf.mxu0
        %v7438 = vadd.f32 0.0, %v7437
        %v7439 = vpop.f32.mrf.mxu0
        %7440 = vmatprep.mubr.bf16.mxu0 0
        %7441 = vmatmul.mubr.bf16.gmra.mxu0 %v7286
        %v7442 = vpop.f32.mrf.mxu0
        %v7443 = vadd.f32 0.0, %v7442
        %v7444 = vpop.f32.mrf.mxu0
        %v7445 = vpop.f32.mrf.mxu0
        %v7446 = vadd.f32 0.0, %v7445
        %v7447 = vpop.f32.mrf.mxu0
        %7448 = vdwg.mxu0
        %v7449 = vadd.f32 %v7219, %v7323
        %v7450 = vadd.f32 %v7220, %v7326
        %v7451 = vadd.f32 %v7221, %v7331
        %v7452 = vadd.f32 %v7222, %v7334
        %v7453 = vadd.f32 %v7223, %v7339
        %v7454 = vadd.f32 %v7224, %v7342
        %v7455 = vadd.f32 %v7225, %v7347
        %v7456 = vadd.f32 %v7226, %v7350
        %v7457 = vadd.f32 %v7227, %v7355
        %v7458 = vadd.f32 %v7228, %v7358
        %v7459 = vadd.f32 %v7229, %v7363
        %v7460 = vadd.f32 %v7230, %v7366
        %v7461 = vadd.f32 %v7231, %v7371
        %v7462 = vadd.f32 %v7232, %v7374
        %v7463 = vadd.f32 %v7233, %v7379
        %v7464 = vadd.f32 %v7234, %v7382
        %v7465 = vadd.f32 %v7235, %v7387
        %v7466 = vadd.f32 %v7236, %v7390
        %v7467 = vadd.f32 %v7237, %v7395
        %v7468 = vadd.f32 %v7238, %v7398
        %v7469 = vadd.f32 %v7239, %v7403
        %v7470 = vadd.f32 %v7240, %v7406
        %v7471 = vadd.f32 %v7241, %v7411
        %v7472 = vadd.f32 %v7242, %v7414
        %v7473 = vadd.f32 %v7243, %v7419
        %v7474 = vadd.f32 %v7244, %v7422
        %v7475 = vadd.f32 %v7245, %v7427
        %v7476 = vadd.f32 %v7246, %v7430
        %v7477 = vadd.f32 %v7247, %v7435
        %v7478 = vadd.f32 %v7248, %v7438
        %v7479 = vadd.f32 %v7249, %v7443
        %v7480 = vadd.f32 %v7250, %v7446
        %v7481 = vpack.c.bf16 %v6264, %v6263
        %s7482 = scalar_lea.vmem %s10, 96
        %v7483 = vld [vmem:[%s7482] sm:$0xf]
        %v7484 = vld [vmem:[%s7482 + $0x4] sm:$0xf]
        %v7485 = vld [vmem:[%s7482 + $0x8] sm:$0xf]
        %v7486 = vld [vmem:[%s7482 + $0xc] sm:$0xf]
        %v7487 = vld [vmem:[%s7482 + $0x10] sm:$0xf]
        %v7488 = vld [vmem:[%s7482 + $0x14] sm:$0xf]
        %v7495 = vunpack.c.l.b16 %v7483
        %v7496 = vunpack.c.l.b16 %v7484
        %v7497 = vunpack.c.l.b16 %v7485
        %v7498 = vunpack.c.l.b16 %v7486
        %v7499 = vunpack.c.l.b16 %v7487
        %v7500 = vunpack.c.l.b16 %v7488
        %v7501 = vpack.c.b16 %v7496, %v7495
        %v7502 = vpack.c.b16 %v7498, %v7497
        %v7503 = vpack.c.b16 %v7500, %v7499
        %v7508 = vsel %vm6446, %v7481, 0
        %7510 = vmatprep.subr.bf16.mxu0 0
        %7511 = vmatpush1.bf16.msra.mxu0 0
        %7512 = vmatprep.subr.bf16.mxu0 0
        %7513 = vmatpush1.bf16.msra.mxu0 0
        %7514 = vmatprep.subr.bf16.mxu0 0
        %7515 = vmatpush1.bf16.msra.mxu0 0
        %7516 = vmatprep.subr.bf16.mxu0 0
        %7517 = vmatpush1.bf16.msra.mxu0 0
        %7518 = vmatprep.subr.bf16.mxu0 0
        %7519 = vmatpush1.bf16.msra.mxu0 0
        %7520 = vmatprep.subr.bf16.mxu0 0
        %7521 = vmatpush1.bf16.msra.mxu0 %v7503
        %7522 = vmatprep.subr.bf16.mxu0 0
        %7523 = vmatpush1.bf16.msra.mxu0 %v7502
        %7524 = vmatprep.subr.bf16.mxu0 0
        %7525 = vmatpush1.bf16.msra.mxu0 %v7501
        %7526 = vmatprep.subr.bf16.mxu0 0
        %7527 = vmatpush2.bf16.msra.mxu0 0
        %7528 = vmatprep.subr.bf16.mxu0 0
        %7529 = vmatpush2.bf16.msra.mxu0 0
        %7530 = vmatprep.subr.bf16.mxu0 0
        %7531 = vmatpush2.bf16.msra.mxu0 0
        %7532 = vmatprep.subr.bf16.mxu0 0
        %7533 = vmatpush2.bf16.msra.mxu0 0
        %7534 = vmatprep.subr.bf16.mxu0 0
        %7535 = vmatpush2.bf16.msra.mxu0 0
        %7536 = vmatprep.subr.bf16.mxu0 0
        %7537 = vmatpush2.bf16.msra.mxu0 0
        %7538 = vmatprep.subr.bf16.mxu0 0
        %7539 = vmatpush2.bf16.msra.mxu0 0
        %7540 = vmatprep.subr.bf16.mxu0 0
        %7541 = vmatpush2.bf16.msra.mxu0 0
        %7542 = vmatprep.mubr.bf16.mxu0 0
        %7543 = vmatmul.mubr.bf16.gmra.mxu0 %v6450
        %v7544 = vpop.f32.mrf.mxu0
        %v7545 = vadd.f32 0.0, %v7544
        %v7546 = vpop.f32.mrf.mxu0
        %v7547 = vpop.f32.mrf.mxu0
        %v7548 = vadd.f32 0.0, %v7547
        %v7549 = vpop.f32.mrf.mxu0
        %7550 = vmatprep.mubr.bf16.mxu0 0
        %7551 = vmatmul.mubr.bf16.gmra.mxu0 %v6453
        %v7552 = vpop.f32.mrf.mxu0
        %v7553 = vadd.f32 0.0, %v7552
        %v7554 = vpop.f32.mrf.mxu0
        %v7555 = vpop.f32.mrf.mxu0
        %v7556 = vadd.f32 0.0, %v7555
        %v7557 = vpop.f32.mrf.mxu0
        %7558 = vmatprep.mubr.bf16.mxu0 0
        %7559 = vmatmul.mubr.bf16.gmra.mxu0 %v6456
        %v7560 = vpop.f32.mrf.mxu0
        %v7561 = vadd.f32 0.0, %v7560
        %v7562 = vpop.f32.mrf.mxu0
        %v7563 = vpop.f32.mrf.mxu0
        %v7564 = vadd.f32 0.0, %v7563
        %v7565 = vpop.f32.mrf.mxu0
        %7566 = vmatprep.mubr.bf16.mxu0 0
        %7567 = vmatmul.mubr.bf16.gmra.mxu0 %v6459
        %v7568 = vpop.f32.mrf.mxu0
        %v7569 = vadd.f32 0.0, %v7568
        %v7570 = vpop.f32.mrf.mxu0
        %v7571 = vpop.f32.mrf.mxu0
        %v7572 = vadd.f32 0.0, %v7571
        %v7573 = vpop.f32.mrf.mxu0
        %7574 = vmatprep.mubr.bf16.mxu0 0
        %7575 = vmatmul.mubr.bf16.gmra.mxu0 %v6462
        %v7576 = vpop.f32.mrf.mxu0
        %v7577 = vadd.f32 0.0, %v7576
        %v7578 = vpop.f32.mrf.mxu0
        %v7579 = vpop.f32.mrf.mxu0
        %v7580 = vadd.f32 0.0, %v7579
        %v7581 = vpop.f32.mrf.mxu0
        %7582 = vmatprep.mubr.bf16.mxu0 0
        %7583 = vmatmul.mubr.bf16.gmra.mxu0 %v6465
        %v7584 = vpop.f32.mrf.mxu0
        %v7585 = vadd.f32 0.0, %v7584
        %v7586 = vpop.f32.mrf.mxu0
        %v7587 = vpop.f32.mrf.mxu0
        %v7588 = vadd.f32 0.0, %v7587
        %v7589 = vpop.f32.mrf.mxu0
        %7590 = vmatprep.mubr.bf16.mxu0 0
        %7591 = vmatmul.mubr.bf16.gmra.mxu0 %v6468
        %v7592 = vpop.f32.mrf.mxu0
        %v7593 = vadd.f32 0.0, %v7592
        %v7594 = vpop.f32.mrf.mxu0
        %v7595 = vpop.f32.mrf.mxu0
        %v7596 = vadd.f32 0.0, %v7595
        %v7597 = vpop.f32.mrf.mxu0
        %7598 = vmatprep.mubr.bf16.mxu0 0
        %7599 = vmatmul.mubr.bf16.gmra.mxu0 %v6471
        %v7600 = vpop.f32.mrf.mxu0
        %v7601 = vadd.f32 0.0, %v7600
        %v7602 = vpop.f32.mrf.mxu0
        %v7603 = vpop.f32.mrf.mxu0
        %v7604 = vadd.f32 0.0, %v7603
        %v7605 = vpop.f32.mrf.mxu0
        %7606 = vmatprep.mubr.bf16.mxu0 0
        %7607 = vmatmul.mubr.bf16.gmra.mxu0 %v6474
        %v7608 = vpop.f32.mrf.mxu0
        %v7609 = vadd.f32 0.0, %v7608
        %v7610 = vpop.f32.mrf.mxu0
        %v7611 = vpop.f32.mrf.mxu0
        %v7612 = vadd.f32 0.0, %v7611
        %v7613 = vpop.f32.mrf.mxu0
        %7614 = vmatprep.mubr.bf16.mxu0 0
        %7615 = vmatmul.mubr.bf16.gmra.mxu0 %v6477
        %v7616 = vpop.f32.mrf.mxu0
        %v7617 = vadd.f32 0.0, %v7616
        %v7618 = vpop.f32.mrf.mxu0
        %v7619 = vpop.f32.mrf.mxu0
        %v7620 = vadd.f32 0.0, %v7619
        %v7621 = vpop.f32.mrf.mxu0
        %7622 = vmatprep.mubr.bf16.mxu0 0
        %7623 = vmatmul.mubr.bf16.gmra.mxu0 %v6480
        %v7624 = vpop.f32.mrf.mxu0
        %v7625 = vadd.f32 0.0, %v7624
        %v7626 = vpop.f32.mrf.mxu0
        %v7627 = vpop.f32.mrf.mxu0
        %v7628 = vadd.f32 0.0, %v7627
        %v7629 = vpop.f32.mrf.mxu0
        %7630 = vmatprep.mubr.bf16.mxu0 0
        %7631 = vmatmul.mubr.bf16.gmra.mxu0 %v6483
        %v7632 = vpop.f32.mrf.mxu0
        %v7633 = vadd.f32 0.0, %v7632
        %v7634 = vpop.f32.mrf.mxu0
        %v7635 = vpop.f32.mrf.mxu0
        %v7636 = vadd.f32 0.0, %v7635
        %v7637 = vpop.f32.mrf.mxu0
        %7638 = vmatprep.mubr.bf16.mxu0 0
        %7639 = vmatmul.mubr.bf16.gmra.mxu0 %v6486
        %v7640 = vpop.f32.mrf.mxu0
        %v7641 = vadd.f32 0.0, %v7640
        %v7642 = vpop.f32.mrf.mxu0
        %v7643 = vpop.f32.mrf.mxu0
        %v7644 = vadd.f32 0.0, %v7643
        %v7645 = vpop.f32.mrf.mxu0
        %7646 = vmatprep.mubr.bf16.mxu0 0
        %7647 = vmatmul.mubr.bf16.gmra.mxu0 %v6489
        %v7648 = vpop.f32.mrf.mxu0
        %v7649 = vadd.f32 0.0, %v7648
        %v7650 = vpop.f32.mrf.mxu0
        %v7651 = vpop.f32.mrf.mxu0
        %v7652 = vadd.f32 0.0, %v7651
        %v7653 = vpop.f32.mrf.mxu0
        %7654 = vmatprep.mubr.bf16.mxu0 0
        %7655 = vmatmul.mubr.bf16.gmra.mxu0 %v6492
        %v7656 = vpop.f32.mrf.mxu0
        %v7657 = vadd.f32 0.0, %v7656
        %v7658 = vpop.f32.mrf.mxu0
        %v7659 = vpop.f32.mrf.mxu0
        %v7660 = vadd.f32 0.0, %v7659
        %v7661 = vpop.f32.mrf.mxu0
        %7662 = vmatprep.mubr.bf16.mxu0 0
        %7663 = vmatmul.mubr.bf16.gmra.mxu0 %v7508
        %v7664 = vpop.f32.mrf.mxu0
        %v7665 = vadd.f32 0.0, %v7664
        %v7666 = vpop.f32.mrf.mxu0
        %v7667 = vpop.f32.mrf.mxu0
        %v7668 = vadd.f32 0.0, %v7667
        %v7669 = vpop.f32.mrf.mxu0
        %7670 = vdwg.mxu0
        %v7671 = vadd.f32 %v7449, %v7545
        %v7672 = vadd.f32 %v7450, %v7548
        %v7673 = vadd.f32 %v7451, %v7553
        %v7674 = vadd.f32 %v7452, %v7556
        %v7675 = vadd.f32 %v7453, %v7561
        %v7676 = vadd.f32 %v7454, %v7564
        %v7677 = vadd.f32 %v7455, %v7569
        %v7678 = vadd.f32 %v7456, %v7572
        %v7679 = vadd.f32 %v7457, %v7577
        %v7680 = vadd.f32 %v7458, %v7580
        %v7681 = vadd.f32 %v7459, %v7585
        %v7682 = vadd.f32 %v7460, %v7588
        %v7683 = vadd.f32 %v7461, %v7593
        %v7684 = vadd.f32 %v7462, %v7596
        %v7685 = vadd.f32 %v7463, %v7601
        %v7686 = vadd.f32 %v7464, %v7604
        %v7687 = vadd.f32 %v7465, %v7609
        %v7688 = vadd.f32 %v7466, %v7612
        %v7689 = vadd.f32 %v7467, %v7617
        %v7690 = vadd.f32 %v7468, %v7620
        %v7691 = vadd.f32 %v7469, %v7625
        %v7692 = vadd.f32 %v7470, %v7628
        %v7693 = vadd.f32 %v7471, %v7633
        %v7694 = vadd.f32 %v7472, %v7636
        %v7695 = vadd.f32 %v7473, %v7641
        %v7696 = vadd.f32 %v7474, %v7644
        %v7697 = vadd.f32 %v7475, %v7649
        %v7698 = vadd.f32 %v7476, %v7652
        %v7699 = vadd.f32 %v7477, %v7657
        %v7700 = vadd.f32 %v7478, %v7660
        %v7701 = vadd.f32 %v7479, %v7665
        %v7702 = vadd.f32 %v7480, %v7668
        %v7703 = vrot.slane %v6263, 1
        %v7704 = vrot.slane %v6264, 1
        %v7705 = vsel %vm2150, %v7703, %v7704
        %v7706 = vsel %vm2150, %v7704, %v2151
        %v7709 = vpack.c.bf16 %v7706, %v7705
        %s7710 = scalar_lea.vmem %s10, 120
        %v7711 = vld [vmem:[%s7710] sm:$0xf]
        %v7712 = vld [vmem:[%s7710 + $0x4] sm:$0xf]
        %v7713 = vld [vmem:[%s7710 + $0x8] sm:$0xf]
        %v7714 = vld [vmem:[%s7710 + $0xc] sm:$0xf]
        %v7715 = vld [vmem:[%s7710 + $0x10] sm:$0xf]
        %v7716 = vld [vmem:[%s7710 + $0x14] sm:$0xf]
        %v7723 = vunpack.c.l.b16 %v7711
        %v7724 = vunpack.c.l.b16 %v7712
        %v7725 = vunpack.c.l.b16 %v7713
        %v7726 = vunpack.c.l.b16 %v7714
        %v7727 = vunpack.c.l.b16 %v7715
        %v7728 = vunpack.c.l.b16 %v7716
        %v7729 = vpack.c.b16 %v7724, %v7723
        %v7730 = vpack.c.b16 %v7726, %v7725
        %v7731 = vpack.c.b16 %v7728, %v7727
        %v7736 = vsel %vm6446, %v7709, 0
        %7738 = vmatprep.subr.bf16.mxu0 0
        %7739 = vmatpush1.bf16.msra.mxu0 0
        %7740 = vmatprep.subr.bf16.mxu0 0
        %7741 = vmatpush1.bf16.msra.mxu0 0
        %7742 = vmatprep.subr.bf16.mxu0 0
        %7743 = vmatpush1.bf16.msra.mxu0 0
        %7744 = vmatprep.subr.bf16.mxu0 0
        %7745 = vmatpush1.bf16.msra.mxu0 0
        %7746 = vmatprep.subr.bf16.mxu0 0
        %7747 = vmatpush1.bf16.msra.mxu0 0
        %7748 = vmatprep.subr.bf16.mxu0 0
        %7749 = vmatpush1.bf16.msra.mxu0 %v7731
        %7750 = vmatprep.subr.bf16.mxu0 0
        %7751 = vmatpush1.bf16.msra.mxu0 %v7730
        %7752 = vmatprep.subr.bf16.mxu0 0
        %7753 = vmatpush1.bf16.msra.mxu0 %v7729
        %7754 = vmatprep.subr.bf16.mxu0 0
        %7755 = vmatpush2.bf16.msra.mxu0 0
        %7756 = vmatprep.subr.bf16.mxu0 0
        %7757 = vmatpush2.bf16.msra.mxu0 0
        %7758 = vmatprep.subr.bf16.mxu0 0
        %7759 = vmatpush2.bf16.msra.mxu0 0
        %7760 = vmatprep.subr.bf16.mxu0 0
        %7761 = vmatpush2.bf16.msra.mxu0 0
        %7762 = vmatprep.subr.bf16.mxu0 0
        %7763 = vmatpush2.bf16.msra.mxu0 0
        %7764 = vmatprep.subr.bf16.mxu0 0
        %7765 = vmatpush2.bf16.msra.mxu0 0
        %7766 = vmatprep.subr.bf16.mxu0 0
        %7767 = vmatpush2.bf16.msra.mxu0 0
        %7768 = vmatprep.subr.bf16.mxu0 0
        %7769 = vmatpush2.bf16.msra.mxu0 0
        %7770 = vmatprep.mubr.bf16.mxu0 0
        %7771 = vmatmul.mubr.bf16.gmra.mxu0 %v7014
        %v7772 = vpop.f32.mrf.mxu0
        %v7773 = vadd.f32 0.0, %v7772
        %v7774 = vpop.f32.mrf.mxu0
        %v7775 = vpop.f32.mrf.mxu0
        %v7776 = vadd.f32 0.0, %v7775
        %v7777 = vpop.f32.mrf.mxu0
        %7778 = vmatprep.mubr.bf16.mxu0 0
        %7779 = vmatmul.mubr.bf16.gmra.mxu0 %v7017
        %v7780 = vpop.f32.mrf.mxu0
        %v7781 = vadd.f32 0.0, %v7780
        %v7782 = vpop.f32.mrf.mxu0
        %v7783 = vpop.f32.mrf.mxu0
        %v7784 = vadd.f32 0.0, %v7783
        %v7785 = vpop.f32.mrf.mxu0
        %7786 = vmatprep.mubr.bf16.mxu0 0
        %7787 = vmatmul.mubr.bf16.gmra.mxu0 %v7020
        %v7788 = vpop.f32.mrf.mxu0
        %v7789 = vadd.f32 0.0, %v7788
        %v7790 = vpop.f32.mrf.mxu0
        %v7791 = vpop.f32.mrf.mxu0
        %v7792 = vadd.f32 0.0, %v7791
        %v7793 = vpop.f32.mrf.mxu0
        %7794 = vmatprep.mubr.bf16.mxu0 0
        %7795 = vmatmul.mubr.bf16.gmra.mxu0 %v7023
        %v7796 = vpop.f32.mrf.mxu0
        %v7797 = vadd.f32 0.0, %v7796
        %v7798 = vpop.f32.mrf.mxu0
        %v7799 = vpop.f32.mrf.mxu0
        %v7800 = vadd.f32 0.0, %v7799
        %v7801 = vpop.f32.mrf.mxu0
        %7802 = vmatprep.mubr.bf16.mxu0 0
        %7803 = vmatmul.mubr.bf16.gmra.mxu0 %v7026
        %v7804 = vpop.f32.mrf.mxu0
        %v7805 = vadd.f32 0.0, %v7804
        %v7806 = vpop.f32.mrf.mxu0
        %v7807 = vpop.f32.mrf.mxu0
        %v7808 = vadd.f32 0.0, %v7807
        %v7809 = vpop.f32.mrf.mxu0
        %7810 = vmatprep.mubr.bf16.mxu0 0
        %7811 = vmatmul.mubr.bf16.gmra.mxu0 %v7029
        %v7812 = vpop.f32.mrf.mxu0
        %v7813 = vadd.f32 0.0, %v7812
        %v7814 = vpop.f32.mrf.mxu0
        %v7815 = vpop.f32.mrf.mxu0
        %v7816 = vadd.f32 0.0, %v7815
        %v7817 = vpop.f32.mrf.mxu0
        %7818 = vmatprep.mubr.bf16.mxu0 0
        %7819 = vmatmul.mubr.bf16.gmra.mxu0 %v7032
        %v7820 = vpop.f32.mrf.mxu0
        %v7821 = vadd.f32 0.0, %v7820
        %v7822 = vpop.f32.mrf.mxu0
        %v7823 = vpop.f32.mrf.mxu0
        %v7824 = vadd.f32 0.0, %v7823
        %v7825 = vpop.f32.mrf.mxu0
        %7826 = vmatprep.mubr.bf16.mxu0 0
        %7827 = vmatmul.mubr.bf16.gmra.mxu0 %v7035
        %v7828 = vpop.f32.mrf.mxu0
        %v7829 = vadd.f32 0.0, %v7828
        %v7830 = vpop.f32.mrf.mxu0
        %v7831 = vpop.f32.mrf.mxu0
        %v7832 = vadd.f32 0.0, %v7831
        %v7833 = vpop.f32.mrf.mxu0
        %7834 = vmatprep.mubr.bf16.mxu0 0
        %7835 = vmatmul.mubr.bf16.gmra.mxu0 %v7038
        %v7836 = vpop.f32.mrf.mxu0
        %v7837 = vadd.f32 0.0, %v7836
        %v7838 = vpop.f32.mrf.mxu0
        %v7839 = vpop.f32.mrf.mxu0
        %v7840 = vadd.f32 0.0, %v7839
        %v7841 = vpop.f32.mrf.mxu0
        %7842 = vmatprep.mubr.bf16.mxu0 0
        %7843 = vmatmul.mubr.bf16.gmra.mxu0 %v7041
        %v7844 = vpop.f32.mrf.mxu0
        %v7845 = vadd.f32 0.0, %v7844
        %v7846 = vpop.f32.mrf.mxu0
        %v7847 = vpop.f32.mrf.mxu0
        %v7848 = vadd.f32 0.0, %v7847
        %v7849 = vpop.f32.mrf.mxu0
        %7850 = vmatprep.mubr.bf16.mxu0 0
        %7851 = vmatmul.mubr.bf16.gmra.mxu0 %v7044
        %v7852 = vpop.f32.mrf.mxu0
        %v7853 = vadd.f32 0.0, %v7852
        %v7854 = vpop.f32.mrf.mxu0
        %v7855 = vpop.f32.mrf.mxu0
        %v7856 = vadd.f32 0.0, %v7855
        %v7857 = vpop.f32.mrf.mxu0
        %7858 = vmatprep.mubr.bf16.mxu0 0
        %7859 = vmatmul.mubr.bf16.gmra.mxu0 %v7047
        %v7860 = vpop.f32.mrf.mxu0
        %v7861 = vadd.f32 0.0, %v7860
        %v7862 = vpop.f32.mrf.mxu0
        %v7863 = vpop.f32.mrf.mxu0
        %v7864 = vadd.f32 0.0, %v7863
        %v7865 = vpop.f32.mrf.mxu0
        %7866 = vmatprep.mubr.bf16.mxu0 0
        %7867 = vmatmul.mubr.bf16.gmra.mxu0 %v7050
        %v7868 = vpop.f32.mrf.mxu0
        %v7869 = vadd.f32 0.0, %v7868
        %v7870 = vpop.f32.mrf.mxu0
        %v7871 = vpop.f32.mrf.mxu0
        %v7872 = vadd.f32 0.0, %v7871
        %v7873 = vpop.f32.mrf.mxu0
        %7874 = vmatprep.mubr.bf16.mxu0 0
        %7875 = vmatmul.mubr.bf16.gmra.mxu0 %v7053
        %v7876 = vpop.f32.mrf.mxu0
        %v7877 = vadd.f32 0.0, %v7876
        %v7878 = vpop.f32.mrf.mxu0
        %v7879 = vpop.f32.mrf.mxu0
        %v7880 = vadd.f32 0.0, %v7879
        %v7881 = vpop.f32.mrf.mxu0
        %7882 = vmatprep.mubr.bf16.mxu0 0
        %7883 = vmatmul.mubr.bf16.gmra.mxu0 %v7056
        %v7884 = vpop.f32.mrf.mxu0
        %v7885 = vadd.f32 0.0, %v7884
        %v7886 = vpop.f32.mrf.mxu0
        %v7887 = vpop.f32.mrf.mxu0
        %v7888 = vadd.f32 0.0, %v7887
        %v7889 = vpop.f32.mrf.mxu0
        %7890 = vmatprep.mubr.bf16.mxu0 0
        %7891 = vmatmul.mubr.bf16.gmra.mxu0 %v7736
        %v7892 = vpop.f32.mrf.mxu0
        %v7893 = vadd.f32 0.0, %v7892
        %v7894 = vpop.f32.mrf.mxu0
        %v7895 = vpop.f32.mrf.mxu0
        %v7896 = vadd.f32 0.0, %v7895
        %v7897 = vpop.f32.mrf.mxu0
        %7898 = vdwg.mxu0
        %v7899 = vadd.f32 %v7671, %v7773
        %v7900 = vadd.f32 %v7672, %v7776
        %v7901 = vadd.f32 %v7673, %v7781
        %v7902 = vadd.f32 %v7674, %v7784
        %v7903 = vadd.f32 %v7675, %v7789
        %v7904 = vadd.f32 %v7676, %v7792
        %v7905 = vadd.f32 %v7677, %v7797
        %v7906 = vadd.f32 %v7678, %v7800
        %v7907 = vadd.f32 %v7679, %v7805
        %v7908 = vadd.f32 %v7680, %v7808
        %v7909 = vadd.f32 %v7681, %v7813
        %v7910 = vadd.f32 %v7682, %v7816
        %v7911 = vadd.f32 %v7683, %v7821
        %v7912 = vadd.f32 %v7684, %v7824
        %v7913 = vadd.f32 %v7685, %v7829
        %v7914 = vadd.f32 %v7686, %v7832
        %v7915 = vadd.f32 %v7687, %v7837
        %v7916 = vadd.f32 %v7688, %v7840
        %v7917 = vadd.f32 %v7689, %v7845
        %v7918 = vadd.f32 %v7690, %v7848
        %v7919 = vadd.f32 %v7691, %v7853
        %v7920 = vadd.f32 %v7692, %v7856
        %v7921 = vadd.f32 %v7693, %v7861
        %v7922 = vadd.f32 %v7694, %v7864
        %v7923 = vadd.f32 %v7695, %v7869
        %v7924 = vadd.f32 %v7696, %v7872
        %v7925 = vadd.f32 %v7697, %v7877
        %v7926 = vadd.f32 %v7698, %v7880
        %v7927 = vadd.f32 %v7699, %v7885
        %v7928 = vadd.f32 %v7700, %v7888
        %v7929 = vadd.f32 %v7701, %v7893
        %v7930 = vadd.f32 %v7702, %v7896
        %s7931 = scalar_lea.vmem %s10, 144
        %v7932 = vld [vmem:[%s7931] sm:$0xf]
        %v7933 = vld [vmem:[%s7931 + $0x4] sm:$0xf]
        %v7934 = vld [vmem:[%s7931 + $0x8] sm:$0xf]
        %v7935 = vld [vmem:[%s7931 + $0xc] sm:$0xf]
        %v7936 = vld [vmem:[%s7931 + $0x10] sm:$0xf]
        %v7937 = vld [vmem:[%s7931 + $0x14] sm:$0xf]
        %v7944 = vunpack.c.l.b16 %v7932
        %v7945 = vunpack.c.l.b16 %v7933
        %v7946 = vunpack.c.l.b16 %v7934
        %v7947 = vunpack.c.l.b16 %v7935
        %v7948 = vunpack.c.l.b16 %v7936
        %v7949 = vunpack.c.l.b16 %v7937
        %v7950 = vpack.c.b16 %v7945, %v7944
        %v7951 = vpack.c.b16 %v7947, %v7946
        %v7952 = vpack.c.b16 %v7949, %v7948
        %7956 = vmatprep.subr.bf16.mxu0 0
        %7957 = vmatpush1.bf16.msra.mxu0 0
        %7958 = vmatprep.subr.bf16.mxu0 0
        %7959 = vmatpush1.bf16.msra.mxu0 0
        %7960 = vmatprep.subr.bf16.mxu0 0
        %7961 = vmatpush1.bf16.msra.mxu0 0
        %7962 = vmatprep.subr.bf16.mxu0 0
        %7963 = vmatpush1.bf16.msra.mxu0 0
        %7964 = vmatprep.subr.bf16.mxu0 0
        %7965 = vmatpush1.bf16.msra.mxu0 0
        %7966 = vmatprep.subr.bf16.mxu0 0
        %7967 = vmatpush1.bf16.msra.mxu0 %v7952
        %7968 = vmatprep.subr.bf16.mxu0 0
        %7969 = vmatpush1.bf16.msra.mxu0 %v7951
        %7970 = vmatprep.subr.bf16.mxu0 0
        %7971 = vmatpush1.bf16.msra.mxu0 %v7950
        %7972 = vmatprep.subr.bf16.mxu0 0
        %7973 = vmatpush2.bf16.msra.mxu0 0
        %7974 = vmatprep.subr.bf16.mxu0 0
        %7975 = vmatpush2.bf16.msra.mxu0 0
        %7976 = vmatprep.subr.bf16.mxu0 0
        %7977 = vmatpush2.bf16.msra.mxu0 0
        %7978 = vmatprep.subr.bf16.mxu0 0
        %7979 = vmatpush2.bf16.msra.mxu0 0
        %7980 = vmatprep.subr.bf16.mxu0 0
        %7981 = vmatpush2.bf16.msra.mxu0 0
        %7982 = vmatprep.subr.bf16.mxu0 0
        %7983 = vmatpush2.bf16.msra.mxu0 0
        %7984 = vmatprep.subr.bf16.mxu0 0
        %7985 = vmatpush2.bf16.msra.mxu0 0
        %7986 = vmatprep.subr.bf16.mxu0 0
        %7987 = vmatpush2.bf16.msra.mxu0 0
        %7988 = vmatprep.mubr.bf16.mxu0 0
        %7989 = vmatmul.mubr.bf16.gmra.mxu0 %v6679
        %v7990 = vpop.f32.mrf.mxu0
        %v7991 = vadd.f32 0.0, %v7990
        %v7992 = vpop.f32.mrf.mxu0
        %v7993 = vpop.f32.mrf.mxu0
        %v7994 = vadd.f32 0.0, %v7993
        %v7995 = vpop.f32.mrf.mxu0
        %7996 = vmatprep.mubr.bf16.mxu0 0
        %7997 = vmatmul.mubr.bf16.gmra.mxu0 %v6682
        %v7998 = vpop.f32.mrf.mxu0
        %v7999 = vadd.f32 0.0, %v7998
        %v8000 = vpop.f32.mrf.mxu0
        %v8001 = vpop.f32.mrf.mxu0
        %v8002 = vadd.f32 0.0, %v8001
        %v8003 = vpop.f32.mrf.mxu0
        %8004 = vmatprep.mubr.bf16.mxu0 0
        %8005 = vmatmul.mubr.bf16.gmra.mxu0 %v6685
        %v8006 = vpop.f32.mrf.mxu0
        %v8007 = vadd.f32 0.0, %v8006
        %v8008 = vpop.f32.mrf.mxu0
        %v8009 = vpop.f32.mrf.mxu0
        %v8010 = vadd.f32 0.0, %v8009
        %v8011 = vpop.f32.mrf.mxu0
        %8012 = vmatprep.mubr.bf16.mxu0 0
        %8013 = vmatmul.mubr.bf16.gmra.mxu0 %v6688
        %v8014 = vpop.f32.mrf.mxu0
        %v8015 = vadd.f32 0.0, %v8014
        %v8016 = vpop.f32.mrf.mxu0
        %v8017 = vpop.f32.mrf.mxu0
        %v8018 = vadd.f32 0.0, %v8017
        %v8019 = vpop.f32.mrf.mxu0
        %8020 = vmatprep.mubr.bf16.mxu0 0
        %8021 = vmatmul.mubr.bf16.gmra.mxu0 %v6691
        %v8022 = vpop.f32.mrf.mxu0
        %v8023 = vadd.f32 0.0, %v8022
        %v8024 = vpop.f32.mrf.mxu0
        %v8025 = vpop.f32.mrf.mxu0
        %v8026 = vadd.f32 0.0, %v8025
        %v8027 = vpop.f32.mrf.mxu0
        %8028 = vmatprep.mubr.bf16.mxu0 0
        %8029 = vmatmul.mubr.bf16.gmra.mxu0 %v6694
        %v8030 = vpop.f32.mrf.mxu0
        %v8031 = vadd.f32 0.0, %v8030
        %v8032 = vpop.f32.mrf.mxu0
        %v8033 = vpop.f32.mrf.mxu0
        %v8034 = vadd.f32 0.0, %v8033
        %v8035 = vpop.f32.mrf.mxu0
        %8036 = vmatprep.mubr.bf16.mxu0 0
        %8037 = vmatmul.mubr.bf16.gmra.mxu0 %v6697
        %v8038 = vpop.f32.mrf.mxu0
        %v8039 = vadd.f32 0.0, %v8038
        %v8040 = vpop.f32.mrf.mxu0
        %v8041 = vpop.f32.mrf.mxu0
        %v8042 = vadd.f32 0.0, %v8041
        %v8043 = vpop.f32.mrf.mxu0
        %8044 = vmatprep.mubr.bf16.mxu0 0
        %8045 = vmatmul.mubr.bf16.gmra.mxu0 %v6700
        %v8046 = vpop.f32.mrf.mxu0
        %v8047 = vadd.f32 0.0, %v8046
        %v8048 = vpop.f32.mrf.mxu0
        %v8049 = vpop.f32.mrf.mxu0
        %v8050 = vadd.f32 0.0, %v8049
        %v8051 = vpop.f32.mrf.mxu0
        %8052 = vmatprep.mubr.bf16.mxu0 0
        %8053 = vmatmul.mubr.bf16.gmra.mxu0 %v6703
        %v8054 = vpop.f32.mrf.mxu0
        %v8055 = vadd.f32 0.0, %v8054
        %v8056 = vpop.f32.mrf.mxu0
        %v8057 = vpop.f32.mrf.mxu0
        %v8058 = vadd.f32 0.0, %v8057
        %v8059 = vpop.f32.mrf.mxu0
        %8060 = vmatprep.mubr.bf16.mxu0 0
        %8061 = vmatmul.mubr.bf16.gmra.mxu0 %v6706
        %v8062 = vpop.f32.mrf.mxu0
        %v8063 = vadd.f32 0.0, %v8062
        %v8064 = vpop.f32.mrf.mxu0
        %v8065 = vpop.f32.mrf.mxu0
        %v8066 = vadd.f32 0.0, %v8065
        %v8067 = vpop.f32.mrf.mxu0
        %8068 = vmatprep.mubr.bf16.mxu0 0
        %8069 = vmatmul.mubr.bf16.gmra.mxu0 %v6709
        %v8070 = vpop.f32.mrf.mxu0
        %v8071 = vadd.f32 0.0, %v8070
        %v8072 = vpop.f32.mrf.mxu0
        %v8073 = vpop.f32.mrf.mxu0
        %v8074 = vadd.f32 0.0, %v8073
        %v8075 = vpop.f32.mrf.mxu0
        %8076 = vmatprep.mubr.bf16.mxu0 0
        %8077 = vmatmul.mubr.bf16.gmra.mxu0 %v6712
        %v8078 = vpop.f32.mrf.mxu0
        %v8079 = vadd.f32 0.0, %v8078
        %v8080 = vpop.f32.mrf.mxu0
        %v8081 = vpop.f32.mrf.mxu0
        %v8082 = vadd.f32 0.0, %v8081
        %v8083 = vpop.f32.mrf.mxu0
        %8084 = vmatprep.mubr.bf16.mxu0 0
        %8085 = vmatmul.mubr.bf16.gmra.mxu0 %v6715
        %v8086 = vpop.f32.mrf.mxu0
        %v8087 = vadd.f32 0.0, %v8086
        %v8088 = vpop.f32.mrf.mxu0
        %v8089 = vpop.f32.mrf.mxu0
        %v8090 = vadd.f32 0.0, %v8089
        %v8091 = vpop.f32.mrf.mxu0
        %8092 = vmatprep.mubr.bf16.mxu0 0
        %8093 = vmatmul.mubr.bf16.gmra.mxu0 %v6718
        %v8094 = vpop.f32.mrf.mxu0
        %v8095 = vadd.f32 0.0, %v8094
        %v8096 = vpop.f32.mrf.mxu0
        %v8097 = vpop.f32.mrf.mxu0
        %v8098 = vadd.f32 0.0, %v8097
        %v8099 = vpop.f32.mrf.mxu0
        %8100 = vmatprep.mubr.bf16.mxu0 0
        %8101 = vmatmul.mubr.bf16.gmra.mxu0 %v7286
        %v8102 = vpop.f32.mrf.mxu0
        %v8103 = vadd.f32 0.0, %v8102
        %v8104 = vpop.f32.mrf.mxu0
        %v8105 = vpop.f32.mrf.mxu0
        %v8106 = vadd.f32 0.0, %v8105
        %v8107 = vpop.f32.mrf.mxu0
        %8108 = vmatprep.mubr.bf16.mxu0 0
        %8109 = vmatmul.mubr.bf16.gmra.mxu0 %v6673
        %v8110 = vpop.f32.mrf.mxu0
        %v8111 = vadd.f32 0.0, %v8110
        %v8112 = vpop.f32.mrf.mxu0
        %v8113 = vpop.f32.mrf.mxu0
        %v8114 = vadd.f32 0.0, %v8113
        %v8115 = vpop.f32.mrf.mxu0
        %8116 = vdwg.mxu0
        %v8117 = vadd.f32 %v7899, %v7991
        %v8118 = vadd.f32 %v7900, %v7994
        %v8119 = vadd.f32 %v7901, %v7999
        %v8120 = vadd.f32 %v7902, %v8002
        %v8121 = vadd.f32 %v7903, %v8007
        %v8122 = vadd.f32 %v7904, %v8010
        %v8123 = vadd.f32 %v7905, %v8015
        %v8124 = vadd.f32 %v7906, %v8018
        %v8125 = vadd.f32 %v7907, %v8023
        %v8126 = vadd.f32 %v7908, %v8026
        %v8127 = vadd.f32 %v7909, %v8031
        %v8128 = vadd.f32 %v7910, %v8034
        %v8129 = vadd.f32 %v7911, %v8039
        %v8130 = vadd.f32 %v7912, %v8042
        %v8131 = vadd.f32 %v7913, %v8047
        %v8132 = vadd.f32 %v7914, %v8050
        %v8133 = vadd.f32 %v7915, %v8055
        %v8134 = vadd.f32 %v7916, %v8058
        %v8135 = vadd.f32 %v7917, %v8063
        %v8136 = vadd.f32 %v7918, %v8066
        %v8137 = vadd.f32 %v7919, %v8071
        %v8138 = vadd.f32 %v7920, %v8074
        %v8139 = vadd.f32 %v7921, %v8079
        %v8140 = vadd.f32 %v7922, %v8082
        %v8141 = vadd.f32 %v7923, %v8087
        %v8142 = vadd.f32 %v7924, %v8090
        %v8143 = vadd.f32 %v7925, %v8095
        %v8144 = vadd.f32 %v7926, %v8098
        %v8145 = vadd.f32 %v7927, %v8103
        %v8146 = vadd.f32 %v7928, %v8106
        %v8147 = vadd.f32 %v7929, %v8111
        %v8148 = vadd.f32 %v7930, %v8114
        %s8149 = scalar_lea.vmem %s10, 168
        %v8150 = vld [vmem:[%s8149] sm:$0xf]
        %v8151 = vld [vmem:[%s8149 + $0x4] sm:$0xf]
        %v8152 = vld [vmem:[%s8149 + $0x8] sm:$0xf]
        %v8153 = vld [vmem:[%s8149 + $0xc] sm:$0xf]
        %v8154 = vld [vmem:[%s8149 + $0x10] sm:$0xf]
        %v8155 = vld [vmem:[%s8149 + $0x14] sm:$0xf]
        %v8162 = vunpack.c.l.b16 %v8150
        %v8163 = vunpack.c.l.b16 %v8151
        %v8164 = vunpack.c.l.b16 %v8152
        %v8165 = vunpack.c.l.b16 %v8153
        %v8166 = vunpack.c.l.b16 %v8154
        %v8167 = vunpack.c.l.b16 %v8155
        %v8168 = vpack.c.b16 %v8163, %v8162
        %v8169 = vpack.c.b16 %v8165, %v8164
        %v8170 = vpack.c.b16 %v8167, %v8166
        %8174 = vmatprep.subr.bf16.mxu0 0
        %8175 = vmatpush1.bf16.msra.mxu0 0
        %8176 = vmatprep.subr.bf16.mxu0 0
        %8177 = vmatpush1.bf16.msra.mxu0 0
        %8178 = vmatprep.subr.bf16.mxu0 0
        %8179 = vmatpush1.bf16.msra.mxu0 0
        %8180 = vmatprep.subr.bf16.mxu0 0
        %8181 = vmatpush1.bf16.msra.mxu0 0
        %8182 = vmatprep.subr.bf16.mxu0 0
        %8183 = vmatpush1.bf16.msra.mxu0 0
        %8184 = vmatprep.subr.bf16.mxu0 0
        %8185 = vmatpush1.bf16.msra.mxu0 %v8170
        %8186 = vmatprep.subr.bf16.mxu0 0
        %8187 = vmatpush1.bf16.msra.mxu0 %v8169
        %8188 = vmatprep.subr.bf16.mxu0 0
        %8189 = vmatpush1.bf16.msra.mxu0 %v8168
        %8190 = vmatprep.subr.bf16.mxu0 0
        %8191 = vmatpush2.bf16.msra.mxu0 0
        %8192 = vmatprep.subr.bf16.mxu0 0
        %8193 = vmatpush2.bf16.msra.mxu0 0
        %8194 = vmatprep.subr.bf16.mxu0 0
        %8195 = vmatpush2.bf16.msra.mxu0 0
        %8196 = vmatprep.subr.bf16.mxu0 0
        %8197 = vmatpush2.bf16.msra.mxu0 0
        %8198 = vmatprep.subr.bf16.mxu0 0
        %8199 = vmatpush2.bf16.msra.mxu0 0
        %8200 = vmatprep.subr.bf16.mxu0 0
        %8201 = vmatpush2.bf16.msra.mxu0 0
        %8202 = vmatprep.subr.bf16.mxu0 0
        %8203 = vmatpush2.bf16.msra.mxu0 0
        %8204 = vmatprep.subr.bf16.mxu0 0
        %8205 = vmatpush2.bf16.msra.mxu0 0
        %8206 = vmatprep.mubr.bf16.mxu0 0
        %8207 = vmatmul.mubr.bf16.gmra.mxu0 %v6453
        %v8208 = vpop.f32.mrf.mxu0
        %v8209 = vadd.f32 0.0, %v8208
        %v8210 = vpop.f32.mrf.mxu0
        %v8211 = vpop.f32.mrf.mxu0
        %v8212 = vadd.f32 0.0, %v8211
        %v8213 = vpop.f32.mrf.mxu0
        %8214 = vmatprep.mubr.bf16.mxu0 0
        %8215 = vmatmul.mubr.bf16.gmra.mxu0 %v6456
        %v8216 = vpop.f32.mrf.mxu0
        %v8217 = vadd.f32 0.0, %v8216
        %v8218 = vpop.f32.mrf.mxu0
        %v8219 = vpop.f32.mrf.mxu0
        %v8220 = vadd.f32 0.0, %v8219
        %v8221 = vpop.f32.mrf.mxu0
        %8222 = vmatprep.mubr.bf16.mxu0 0
        %8223 = vmatmul.mubr.bf16.gmra.mxu0 %v6459
        %v8224 = vpop.f32.mrf.mxu0
        %v8225 = vadd.f32 0.0, %v8224
        %v8226 = vpop.f32.mrf.mxu0
        %v8227 = vpop.f32.mrf.mxu0
        %v8228 = vadd.f32 0.0, %v8227
        %v8229 = vpop.f32.mrf.mxu0
        %8230 = vmatprep.mubr.bf16.mxu0 0
        %8231 = vmatmul.mubr.bf16.gmra.mxu0 %v6462
        %v8232 = vpop.f32.mrf.mxu0
        %v8233 = vadd.f32 0.0, %v8232
        %v8234 = vpop.f32.mrf.mxu0
        %v8235 = vpop.f32.mrf.mxu0
        %v8236 = vadd.f32 0.0, %v8235
        %v8237 = vpop.f32.mrf.mxu0
        %8238 = vmatprep.mubr.bf16.mxu0 0
        %8239 = vmatmul.mubr.bf16.gmra.mxu0 %v6465
        %v8240 = vpop.f32.mrf.mxu0
        %v8241 = vadd.f32 0.0, %v8240
        %v8242 = vpop.f32.mrf.mxu0
        %v8243 = vpop.f32.mrf.mxu0
        %v8244 = vadd.f32 0.0, %v8243
        %v8245 = vpop.f32.mrf.mxu0
        %8246 = vmatprep.mubr.bf16.mxu0 0
        %8247 = vmatmul.mubr.bf16.gmra.mxu0 %v6468
        %v8248 = vpop.f32.mrf.mxu0
        %v8249 = vadd.f32 0.0, %v8248
        %v8250 = vpop.f32.mrf.mxu0
        %v8251 = vpop.f32.mrf.mxu0
        %v8252 = vadd.f32 0.0, %v8251
        %v8253 = vpop.f32.mrf.mxu0
        %8254 = vmatprep.mubr.bf16.mxu0 0
        %8255 = vmatmul.mubr.bf16.gmra.mxu0 %v6471
        %v8256 = vpop.f32.mrf.mxu0
        %v8257 = vadd.f32 0.0, %v8256
        %v8258 = vpop.f32.mrf.mxu0
        %v8259 = vpop.f32.mrf.mxu0
        %v8260 = vadd.f32 0.0, %v8259
        %v8261 = vpop.f32.mrf.mxu0
        %8262 = vmatprep.mubr.bf16.mxu0 0
        %8263 = vmatmul.mubr.bf16.gmra.mxu0 %v6474
        %v8264 = vpop.f32.mrf.mxu0
        %v8265 = vadd.f32 0.0, %v8264
        %v8266 = vpop.f32.mrf.mxu0
        %v8267 = vpop.f32.mrf.mxu0
        %v8268 = vadd.f32 0.0, %v8267
        %v8269 = vpop.f32.mrf.mxu0
        %8270 = vmatprep.mubr.bf16.mxu0 0
        %8271 = vmatmul.mubr.bf16.gmra.mxu0 %v6477
        %v8272 = vpop.f32.mrf.mxu0
        %v8273 = vadd.f32 0.0, %v8272
        %v8274 = vpop.f32.mrf.mxu0
        %v8275 = vpop.f32.mrf.mxu0
        %v8276 = vadd.f32 0.0, %v8275
        %v8277 = vpop.f32.mrf.mxu0
        %8278 = vmatprep.mubr.bf16.mxu0 0
        %8279 = vmatmul.mubr.bf16.gmra.mxu0 %v6480
        %v8280 = vpop.f32.mrf.mxu0
        %v8281 = vadd.f32 0.0, %v8280
        %v8282 = vpop.f32.mrf.mxu0
        %v8283 = vpop.f32.mrf.mxu0
        %v8284 = vadd.f32 0.0, %v8283
        %v8285 = vpop.f32.mrf.mxu0
        %8286 = vmatprep.mubr.bf16.mxu0 0
        %8287 = vmatmul.mubr.bf16.gmra.mxu0 %v6483
        %v8288 = vpop.f32.mrf.mxu0
        %v8289 = vadd.f32 0.0, %v8288
        %v8290 = vpop.f32.mrf.mxu0
        %v8291 = vpop.f32.mrf.mxu0
        %v8292 = vadd.f32 0.0, %v8291
        %v8293 = vpop.f32.mrf.mxu0
        %8294 = vmatprep.mubr.bf16.mxu0 0
        %8295 = vmatmul.mubr.bf16.gmra.mxu0 %v6486
        %v8296 = vpop.f32.mrf.mxu0
        %v8297 = vadd.f32 0.0, %v8296
        %v8298 = vpop.f32.mrf.mxu0
        %v8299 = vpop.f32.mrf.mxu0
        %v8300 = vadd.f32 0.0, %v8299
        %v8301 = vpop.f32.mrf.mxu0
        %8302 = vmatprep.mubr.bf16.mxu0 0
        %8303 = vmatmul.mubr.bf16.gmra.mxu0 %v6489
        %v8304 = vpop.f32.mrf.mxu0
        %v8305 = vadd.f32 0.0, %v8304
        %v8306 = vpop.f32.mrf.mxu0
        %v8307 = vpop.f32.mrf.mxu0
        %v8308 = vadd.f32 0.0, %v8307
        %v8309 = vpop.f32.mrf.mxu0
        %8310 = vmatprep.mubr.bf16.mxu0 0
        %8311 = vmatmul.mubr.bf16.gmra.mxu0 %v6492
        %v8312 = vpop.f32.mrf.mxu0
        %v8313 = vadd.f32 0.0, %v8312
        %v8314 = vpop.f32.mrf.mxu0
        %v8315 = vpop.f32.mrf.mxu0
        %v8316 = vadd.f32 0.0, %v8315
        %v8317 = vpop.f32.mrf.mxu0
        %8318 = vmatprep.mubr.bf16.mxu0 0
        %8319 = vmatmul.mubr.bf16.gmra.mxu0 %v7508
        %v8320 = vpop.f32.mrf.mxu0
        %v8321 = vadd.f32 0.0, %v8320
        %v8322 = vpop.f32.mrf.mxu0
        %v8323 = vpop.f32.mrf.mxu0
        %v8324 = vadd.f32 0.0, %v8323
        %v8325 = vpop.f32.mrf.mxu0
        %8326 = vmatprep.mubr.bf16.mxu0 0
        %8327 = vmatmul.mubr.bf16.gmra.mxu0 %v6447
        %v8328 = vpop.f32.mrf.mxu0
        %v8329 = vadd.f32 0.0, %v8328
        %v8330 = vpop.f32.mrf.mxu0
        %v8331 = vpop.f32.mrf.mxu0
        %v8332 = vadd.f32 0.0, %v8331
        %v8333 = vpop.f32.mrf.mxu0
        %8334 = vdwg.mxu0
        %v8335 = vadd.f32 %v8117, %v8209
        %v8336 = vadd.f32 %v8118, %v8212
        %v8337 = vadd.f32 %v8119, %v8217
        %v8338 = vadd.f32 %v8120, %v8220
        %v8339 = vadd.f32 %v8121, %v8225
        %v8340 = vadd.f32 %v8122, %v8228
        %v8341 = vadd.f32 %v8123, %v8233
        %v8342 = vadd.f32 %v8124, %v8236
        %v8343 = vadd.f32 %v8125, %v8241
        %v8344 = vadd.f32 %v8126, %v8244
        %v8345 = vadd.f32 %v8127, %v8249
        %v8346 = vadd.f32 %v8128, %v8252
        %v8347 = vadd.f32 %v8129, %v8257
        %v8348 = vadd.f32 %v8130, %v8260
        %v8349 = vadd.f32 %v8131, %v8265
        %v8350 = vadd.f32 %v8132, %v8268
        %v8351 = vadd.f32 %v8133, %v8273
        %v8352 = vadd.f32 %v8134, %v8276
        %v8353 = vadd.f32 %v8135, %v8281
        %v8354 = vadd.f32 %v8136, %v8284
        %v8355 = vadd.f32 %v8137, %v8289
        %v8356 = vadd.f32 %v8138, %v8292
        %v8357 = vadd.f32 %v8139, %v8297
        %v8358 = vadd.f32 %v8140, %v8300
        %v8359 = vadd.f32 %v8141, %v8305
        %v8360 = vadd.f32 %v8142, %v8308
        %v8361 = vadd.f32 %v8143, %v8313
        %v8362 = vadd.f32 %v8144, %v8316
        %v8363 = vadd.f32 %v8145, %v8321
        %v8364 = vadd.f32 %v8146, %v8324
        %v8365 = vadd.f32 %v8147, %v8329
        %v8366 = vadd.f32 %v8148, %v8332
        %s8367 = scalar_lea.vmem %s10, 192
        %v8368 = vld [vmem:[%s8367] sm:$0xf]
        %v8369 = vld [vmem:[%s8367 + $0x4] sm:$0xf]
        %v8370 = vld [vmem:[%s8367 + $0x8] sm:$0xf]
        %v8371 = vld [vmem:[%s8367 + $0xc] sm:$0xf]
        %v8372 = vld [vmem:[%s8367 + $0x10] sm:$0xf]
        %v8373 = vld [vmem:[%s8367 + $0x14] sm:$0xf]
        %v8380 = vunpack.c.l.b16 %v8368
        %v8381 = vunpack.c.l.b16 %v8369
        %v8382 = vunpack.c.l.b16 %v8370
        %v8383 = vunpack.c.l.b16 %v8371
        %v8384 = vunpack.c.l.b16 %v8372
        %v8385 = vunpack.c.l.b16 %v8373
        %v8386 = vpack.c.b16 %v8381, %v8380
        %v8387 = vpack.c.b16 %v8383, %v8382
        %v8388 = vpack.c.b16 %v8385, %v8384
        %8392 = vmatprep.subr.bf16.mxu0 0
        %8393 = vmatpush1.bf16.msra.mxu0 0
        %8394 = vmatprep.subr.bf16.mxu0 0
        %8395 = vmatpush1.bf16.msra.mxu0 0
        %8396 = vmatprep.subr.bf16.mxu0 0
        %8397 = vmatpush1.bf16.msra.mxu0 0
        %8398 = vmatprep.subr.bf16.mxu0 0
        %8399 = vmatpush1.bf16.msra.mxu0 0
        %8400 = vmatprep.subr.bf16.mxu0 0
        %8401 = vmatpush1.bf16.msra.mxu0 0
        %8402 = vmatprep.subr.bf16.mxu0 0
        %8403 = vmatpush1.bf16.msra.mxu0 %v8388
        %8404 = vmatprep.subr.bf16.mxu0 0
        %8405 = vmatpush1.bf16.msra.mxu0 %v8387
        %8406 = vmatprep.subr.bf16.mxu0 0
        %8407 = vmatpush1.bf16.msra.mxu0 %v8386
        %8408 = vmatprep.subr.bf16.mxu0 0
        %8409 = vmatpush2.bf16.msra.mxu0 0
        %8410 = vmatprep.subr.bf16.mxu0 0
        %8411 = vmatpush2.bf16.msra.mxu0 0
        %8412 = vmatprep.subr.bf16.mxu0 0
        %8413 = vmatpush2.bf16.msra.mxu0 0
        %8414 = vmatprep.subr.bf16.mxu0 0
        %8415 = vmatpush2.bf16.msra.mxu0 0
        %8416 = vmatprep.subr.bf16.mxu0 0
        %8417 = vmatpush2.bf16.msra.mxu0 0
        %8418 = vmatprep.subr.bf16.mxu0 0
        %8419 = vmatpush2.bf16.msra.mxu0 0
        %8420 = vmatprep.subr.bf16.mxu0 0
        %8421 = vmatpush2.bf16.msra.mxu0 0
        %8422 = vmatprep.subr.bf16.mxu0 0
        %8423 = vmatpush2.bf16.msra.mxu0 0
        %8424 = vmatprep.mubr.bf16.mxu0 0
        %8425 = vmatmul.mubr.bf16.gmra.mxu0 %v7017
        %v8426 = vpop.f32.mrf.mxu0
        %v8427 = vadd.f32 0.0, %v8426
        %v8428 = vpop.f32.mrf.mxu0
        %v8429 = vpop.f32.mrf.mxu0
        %v8430 = vadd.f32 0.0, %v8429
        %v8431 = vpop.f32.mrf.mxu0
        %8432 = vmatprep.mubr.bf16.mxu0 0
        %8433 = vmatmul.mubr.bf16.gmra.mxu0 %v7020
        %v8434 = vpop.f32.mrf.mxu0
        %v8435 = vadd.f32 0.0, %v8434
        %v8436 = vpop.f32.mrf.mxu0
        %v8437 = vpop.f32.mrf.mxu0
        %v8438 = vadd.f32 0.0, %v8437
        %v8439 = vpop.f32.mrf.mxu0
        %8440 = vmatprep.mubr.bf16.mxu0 0
        %8441 = vmatmul.mubr.bf16.gmra.mxu0 %v7023
        %v8442 = vpop.f32.mrf.mxu0
        %v8443 = vadd.f32 0.0, %v8442
        %v8444 = vpop.f32.mrf.mxu0
        %v8445 = vpop.f32.mrf.mxu0
        %v8446 = vadd.f32 0.0, %v8445
        %v8447 = vpop.f32.mrf.mxu0
        %8448 = vmatprep.mubr.bf16.mxu0 0
        %8449 = vmatmul.mubr.bf16.gmra.mxu0 %v7026
        %v8450 = vpop.f32.mrf.mxu0
        %v8451 = vadd.f32 0.0, %v8450
        %v8452 = vpop.f32.mrf.mxu0
        %v8453 = vpop.f32.mrf.mxu0
        %v8454 = vadd.f32 0.0, %v8453
        %v8455 = vpop.f32.mrf.mxu0
        %8456 = vmatprep.mubr.bf16.mxu0 0
        %8457 = vmatmul.mubr.bf16.gmra.mxu0 %v7029
        %v8458 = vpop.f32.mrf.mxu0
        %v8459 = vadd.f32 0.0, %v8458
        %v8460 = vpop.f32.mrf.mxu0
        %v8461 = vpop.f32.mrf.mxu0
        %v8462 = vadd.f32 0.0, %v8461
        %v8463 = vpop.f32.mrf.mxu0
        %8464 = vmatprep.mubr.bf16.mxu0 0
        %8465 = vmatmul.mubr.bf16.gmra.mxu0 %v7032
        %v8466 = vpop.f32.mrf.mxu0
        %v8467 = vadd.f32 0.0, %v8466
        %v8468 = vpop.f32.mrf.mxu0
        %v8469 = vpop.f32.mrf.mxu0
        %v8470 = vadd.f32 0.0, %v8469
        %v8471 = vpop.f32.mrf.mxu0
        %8472 = vmatprep.mubr.bf16.mxu0 0
        %8473 = vmatmul.mubr.bf16.gmra.mxu0 %v7035
        %v8474 = vpop.f32.mrf.mxu0
        %v8475 = vadd.f32 0.0, %v8474
        %v8476 = vpop.f32.mrf.mxu0
        %v8477 = vpop.f32.mrf.mxu0
        %v8478 = vadd.f32 0.0, %v8477
        %v8479 = vpop.f32.mrf.mxu0
        %8480 = vmatprep.mubr.bf16.mxu0 0
        %8481 = vmatmul.mubr.bf16.gmra.mxu0 %v7038
        %v8482 = vpop.f32.mrf.mxu0
        %v8483 = vadd.f32 0.0, %v8482
        %v8484 = vpop.f32.mrf.mxu0
        %v8485 = vpop.f32.mrf.mxu0
        %v8486 = vadd.f32 0.0, %v8485
        %v8487 = vpop.f32.mrf.mxu0
        %8488 = vmatprep.mubr.bf16.mxu0 0
        %8489 = vmatmul.mubr.bf16.gmra.mxu0 %v7041
        %v8490 = vpop.f32.mrf.mxu0
        %v8491 = vadd.f32 0.0, %v8490
        %v8492 = vpop.f32.mrf.mxu0
        %v8493 = vpop.f32.mrf.mxu0
        %v8494 = vadd.f32 0.0, %v8493
        %v8495 = vpop.f32.mrf.mxu0
        %8496 = vmatprep.mubr.bf16.mxu0 0
        %8497 = vmatmul.mubr.bf16.gmra.mxu0 %v7044
        %v8498 = vpop.f32.mrf.mxu0
        %v8499 = vadd.f32 0.0, %v8498
        %v8500 = vpop.f32.mrf.mxu0
        %v8501 = vpop.f32.mrf.mxu0
        %v8502 = vadd.f32 0.0, %v8501
        %v8503 = vpop.f32.mrf.mxu0
        %8504 = vmatprep.mubr.bf16.mxu0 0
        %8505 = vmatmul.mubr.bf16.gmra.mxu0 %v7047
        %v8506 = vpop.f32.mrf.mxu0
        %v8507 = vadd.f32 0.0, %v8506
        %v8508 = vpop.f32.mrf.mxu0
        %v8509 = vpop.f32.mrf.mxu0
        %v8510 = vadd.f32 0.0, %v8509
        %v8511 = vpop.f32.mrf.mxu0
        %8512 = vmatprep.mubr.bf16.mxu0 0
        %8513 = vmatmul.mubr.bf16.gmra.mxu0 %v7050
        %v8514 = vpop.f32.mrf.mxu0
        %v8515 = vadd.f32 0.0, %v8514
        %v8516 = vpop.f32.mrf.mxu0
        %v8517 = vpop.f32.mrf.mxu0
        %v8518 = vadd.f32 0.0, %v8517
        %v8519 = vpop.f32.mrf.mxu0
        %8520 = vmatprep.mubr.bf16.mxu0 0
        %8521 = vmatmul.mubr.bf16.gmra.mxu0 %v7053
        %v8522 = vpop.f32.mrf.mxu0
        %v8523 = vadd.f32 0.0, %v8522
        %v8524 = vpop.f32.mrf.mxu0
        %v8525 = vpop.f32.mrf.mxu0
        %v8526 = vadd.f32 0.0, %v8525
        %v8527 = vpop.f32.mrf.mxu0
        %8528 = vmatprep.mubr.bf16.mxu0 0
        %8529 = vmatmul.mubr.bf16.gmra.mxu0 %v7056
        %v8530 = vpop.f32.mrf.mxu0
        %v8531 = vadd.f32 0.0, %v8530
        %v8532 = vpop.f32.mrf.mxu0
        %v8533 = vpop.f32.mrf.mxu0
        %v8534 = vadd.f32 0.0, %v8533
        %v8535 = vpop.f32.mrf.mxu0
        %8536 = vmatprep.mubr.bf16.mxu0 0
        %8537 = vmatmul.mubr.bf16.gmra.mxu0 %v7736
        %v8538 = vpop.f32.mrf.mxu0
        %v8539 = vadd.f32 0.0, %v8538
        %v8540 = vpop.f32.mrf.mxu0
        %v8541 = vpop.f32.mrf.mxu0
        %v8542 = vadd.f32 0.0, %v8541
        %v8543 = vpop.f32.mrf.mxu0
        %8544 = vmatprep.mubr.bf16.mxu0 0
        %8545 = vmatmul.mubr.bf16.gmra.mxu0 %v7011
        %v8546 = vpop.f32.mrf.mxu0
        %v8547 = vadd.f32 0.0, %v8546
        %v8548 = vpop.f32.mrf.mxu0
        %v8549 = vpop.f32.mrf.mxu0
        %v8550 = vadd.f32 0.0, %v8549
        %v8551 = vpop.f32.mrf.mxu0
        %8552 = vdwg.mxu0
        %v8553 = vadd.f32 %v8335, %v8427
        %v8554 = vadd.f32 %v8336, %v8430
        %v8555 = vadd.f32 %v8337, %v8435
        %v8556 = vadd.f32 %v8338, %v8438
        %v8557 = vadd.f32 %v8339, %v8443
        %v8558 = vadd.f32 %v8340, %v8446
        %v8559 = vadd.f32 %v8341, %v8451
        %v8560 = vadd.f32 %v8342, %v8454
        %v8561 = vadd.f32 %v8343, %v8459
        %v8562 = vadd.f32 %v8344, %v8462
        %v8563 = vadd.f32 %v8345, %v8467
        %v8564 = vadd.f32 %v8346, %v8470
        %v8565 = vadd.f32 %v8347, %v8475
        %v8566 = vadd.f32 %v8348, %v8478
        %v8567 = vadd.f32 %v8349, %v8483
        %v8568 = vadd.f32 %v8350, %v8486
        %v8569 = vadd.f32 %v8351, %v8491
        %v8570 = vadd.f32 %v8352, %v8494
        %v8571 = vadd.f32 %v8353, %v8499
        %v8572 = vadd.f32 %v8354, %v8502
        %v8573 = vadd.f32 %v8355, %v8507
        %v8574 = vadd.f32 %v8356, %v8510
        %v8575 = vadd.f32 %v8357, %v8515
        %v8576 = vadd.f32 %v8358, %v8518
        %v8577 = vadd.f32 %v8359, %v8523
        %v8578 = vadd.f32 %v8360, %v8526
        %v8579 = vadd.f32 %v8361, %v8531
        %v8580 = vadd.f32 %v8362, %v8534
        %v8581 = vadd.f32 %v8363, %v8539
        %v8582 = vadd.f32 %v8364, %v8542
        %v8583 = vadd.f32 %v8365, %v8547
        %v8584 = vadd.f32 %v8366, %v8550
        %v8585 = vld [vmem:[%s11] sm:$0x1]
        %v8587 = vlaneseq
        %v8588 = vshrl.u32 %v8587, 7
        %v8589 = vsub.s32 0, %v8588
        %v8590 = vrot.slane %v8585, %v8589
        %v8592 = vmul.f32 %v8553, %v8590
        %v8593 = vmul.f32 %v8554, %v8590
        %v8594 = vmul.f32 %v8555, %v8590
        %v8595 = vmul.f32 %v8556, %v8590
        %v8596 = vmul.f32 %v8557, %v8590
        %v8597 = vmul.f32 %v8558, %v8590
        %v8598 = vmul.f32 %v8559, %v8590
        %v8599 = vmul.f32 %v8560, %v8590
        %v8600 = vmul.f32 %v8561, %v8590
        %v8601 = vmul.f32 %v8562, %v8590
        %v8602 = vmul.f32 %v8563, %v8590
        %v8603 = vmul.f32 %v8564, %v8590
        %v8604 = vmul.f32 %v8565, %v8590
        %v8605 = vmul.f32 %v8566, %v8590
        %v8606 = vmul.f32 %v8567, %v8590
        %v8607 = vmul.f32 %v8568, %v8590
        %v8608 = vmul.f32 %v8569, %v8590
        %v8609 = vmul.f32 %v8570, %v8590
        %v8610 = vmul.f32 %v8571, %v8590
        %v8611 = vmul.f32 %v8572, %v8590
        %v8612 = vmul.f32 %v8573, %v8590
        %v8613 = vmul.f32 %v8574, %v8590
        %v8614 = vmul.f32 %v8575, %v8590
        %v8615 = vmul.f32 %v8576, %v8590
        %v8616 = vmul.f32 %v8577, %v8590
        %v8617 = vmul.f32 %v8578, %v8590
        %v8618 = vmul.f32 %v8579, %v8590
        %v8619 = vmul.f32 %v8580, %v8590
        %v8620 = vmul.f32 %v8581, %v8590
        %v8621 = vmul.f32 %v8582, %v8590
        %v8622 = vmul.f32 %v8583, %v8590
        %v8623 = vmul.f32 %v8584, %v8590
        %v8624 = vld [vmem:[%s12] sm:$0x1]
        %v8626 = vlaneseq
        %v8627 = vshrl.u32 %v8626, 7
        %v8628 = vsub.s32 0, %v8627
        %v8629 = vrot.slane %v8624, %v8628
        %v8631 = vadd.f32 %v8592, %v8629
        %v8632 = vadd.f32 %v8593, %v8629
        %v8633 = vadd.f32 %v8594, %v8629
        %v8634 = vadd.f32 %v8595, %v8629
        %v8635 = vadd.f32 %v8596, %v8629
        %v8636 = vadd.f32 %v8597, %v8629
        %v8637 = vadd.f32 %v8598, %v8629
        %v8638 = vadd.f32 %v8599, %v8629
        %v8639 = vadd.f32 %v8600, %v8629
        %v8640 = vadd.f32 %v8601, %v8629
        %v8641 = vadd.f32 %v8602, %v8629
        %v8642 = vadd.f32 %v8603, %v8629
        %v8643 = vadd.f32 %v8604, %v8629
        %v8644 = vadd.f32 %v8605, %v8629
        %v8645 = vadd.f32 %v8606, %v8629
        %v8646 = vadd.f32 %v8607, %v8629
        %v8647 = vadd.f32 %v8608, %v8629
        %v8648 = vadd.f32 %v8609, %v8629
        %v8649 = vadd.f32 %v8610, %v8629
        %v8650 = vadd.f32 %v8611, %v8629
        %v8651 = vadd.f32 %v8612, %v8629
        %v8652 = vadd.f32 %v8613, %v8629
        %v8653 = vadd.f32 %v8614, %v8629
        %v8654 = vadd.f32 %v8615, %v8629
        %v8655 = vadd.f32 %v8616, %v8629
        %v8656 = vadd.f32 %v8617, %v8629
        %v8657 = vadd.f32 %v8618, %v8629
        %v8658 = vadd.f32 %v8619, %v8629
        %v8659 = vadd.f32 %v8620, %v8629
        %v8660 = vadd.f32 %v8621, %v8629
        %v8661 = vadd.f32 %v8622, %v8629
        %v8662 = vadd.f32 %v8623, %v8629
        %v8663 = vmax.f32 %v8631, 0.0
        %v8664 = vmax.f32 %v8632, 0.0
        %v8665 = vmax.f32 %v8633, 0.0
        %v8666 = vmax.f32 %v8634, 0.0
        %v8667 = vmax.f32 %v8635, 0.0
        %v8668 = vmax.f32 %v8636, 0.0
        %v8669 = vmax.f32 %v8637, 0.0
        %v8670 = vmax.f32 %v8638, 0.0
        %v8671 = vmax.f32 %v8639, 0.0
        %v8672 = vmax.f32 %v8640, 0.0
        %v8673 = vmax.f32 %v8641, 0.0
        %v8674 = vmax.f32 %v8642, 0.0
        %v8675 = vmax.f32 %v8643, 0.0
        %v8676 = vmax.f32 %v8644, 0.0
        %v8677 = vmax.f32 %v8645, 0.0
        %v8678 = vmax.f32 %v8646, 0.0
        %v8679 = vmax.f32 %v8647, 0.0
        %v8680 = vmax.f32 %v8648, 0.0
        %v8681 = vmax.f32 %v8649, 0.0
        %v8682 = vmax.f32 %v8650, 0.0
        %v8683 = vmax.f32 %v8651, 0.0
        %v8684 = vmax.f32 %v8652, 0.0
        %v8685 = vmax.f32 %v8653, 0.0
        %v8686 = vmax.f32 %v8654, 0.0
        %v8687 = vmax.f32 %v8655, 0.0
        %v8688 = vmax.f32 %v8656, 0.0
        %v8689 = vmax.f32 %v8657, 0.0
        %v8690 = vmax.f32 %v8658, 0.0
        %v8691 = vmax.f32 %v8659, 0.0
        %v8692 = vmax.f32 %v8660, 0.0
        %v8693 = vmax.f32 %v8661, 0.0
        %v8694 = vmax.f32 %v8662, 0.0
        %v8695 = vpack.c.bf16 %v954, %v953
        %v8696 = vpack.c.bf16 %v956, %v955
        %v8697 = vpack.c.bf16 %v958, %v957
        %v8698 = vpack.c.bf16 %v960, %v959
        %v8699 = vpack.c.bf16 %v962, %v961
        %v8700 = vpack.c.bf16 %v964, %v963
        %v8701 = vpack.c.bf16 %v966, %v965
        %v8702 = vpack.c.bf16 %v968, %v967
        %v8703 = vpack.c.bf16 %v970, %v969
        %v8704 = vpack.c.bf16 %v972, %v971
        %v8705 = vpack.c.bf16 %v974, %v973
        %v8706 = vpack.c.bf16 %v976, %v975
        %v8707 = vpack.c.bf16 %v978, %v977
        %v8708 = vpack.c.bf16 %v980, %v979
        %v8709 = vpack.c.bf16 %v982, %v981
        %v8710 = vpack.c.bf16 %v984, %v983
        %v8711 = vld [vmem:[%s13] sm:$0xff]
        %v8712 = vld [vmem:[%s13 + $0x8] sm:$0xf]
        %v8713 = vld [vmem:[%s13 + $0xc] sm:$0xff]
        %v8714 = vld [vmem:[%s13 + $0x14] sm:$0xf]
        %v8715 = vld [vmem:[%s13 + $0x18] sm:$0xff]
        %v8716 = vld [vmem:[%s13 + $0x20] sm:$0xf]
        %v8717 = vld [vmem:[%s13 + $0x24] sm:$0xff]
        %v8718 = vld [vmem:[%s13 + $0x2c] sm:$0xf]
        %v8719 = vpack.c.bf16 %v3883, %v3882
        %v8720 = vpack.c.bf16 %v3885, %v3884
        %v8721 = vpack.c.bf16 %v3887, %v3886
        %v8722 = vpack.c.bf16 %v3889, %v3888
        %v8723 = vpack.c.bf16 %v3891, %v3890
        %v8724 = vpack.c.bf16 %v3893, %v3892
        %v8725 = vpack.c.bf16 %v3895, %v3894
        %v8726 = vpack.c.bf16 %v3897, %v3896
        %v8727 = vpack.c.bf16 %v3899, %v3898
        %v8728 = vpack.c.bf16 %v3901, %v3900
        %v8729 = vpack.c.bf16 %v3903, %v3902
        %v8730 = vpack.c.bf16 %v3905, %v3904
        %v8731 = vpack.c.bf16 %v3907, %v3906
        %v8732 = vpack.c.bf16 %v3909, %v3908
        %v8733 = vpack.c.bf16 %v3911, %v3910
        %v8734 = vpack.c.bf16 %v3913, %v3912
        %v8735 = vld [vmem:[%s13 + $0x30] sm:$0xff]
        %v8736 = vld [vmem:[%s13 + $0x38] sm:$0xf]
        %v8737 = vld [vmem:[%s13 + $0x3c] sm:$0xff]
        %v8738 = vld [vmem:[%s13 + $0x44] sm:$0xf]
        %v8739 = vld [vmem:[%s13 + $0x48] sm:$0xff]
        %v8740 = vld [vmem:[%s13 + $0x50] sm:$0xf]
        %v8741 = vld [vmem:[%s13 + $0x54] sm:$0xff]
        %v8742 = vld [vmem:[%s13 + $0x5c] sm:$0xf]
        %v8751 = vunpack.c.l.b16 %v8735
        %v8752 = vunpack.c.h.b16 %v8735
        %v8753 = vunpack.c.l.b16 %v8736
        %v8754 = vunpack.c.l.b16 %v8737
        %v8755 = vunpack.c.h.b16 %v8737
        %v8756 = vunpack.c.l.b16 %v8738
        %v8757 = vunpack.c.l.b16 %v8739
        %v8758 = vunpack.c.h.b16 %v8739
        %v8759 = vunpack.c.l.b16 %v8740
        %v8760 = vunpack.c.l.b16 %v8741
        %v8761 = vunpack.c.h.b16 %v8741
        %v8762 = vunpack.c.l.b16 %v8742
        %v8763 = vpack.c.b16 %v8754, %v8751
        %v8764 = vpack.c.b16 %v8755, %v8752
        %v8765 = vpack.c.b16 %v8756, %v8753
        %v8766 = vpack.c.b16 %v8760, %v8757
        %v8767 = vpack.c.b16 %v8761, %v8758
        %v8768 = vpack.c.b16 %v8762, %v8759
        %v8776 = vsel %vm1719, %v8719, 0
        %v8779 = vsel %vm1719, %v8720, 0
        %v8782 = vsel %vm1719, %v8721, 0
        %v8785 = vsel %vm1719, %v8722, 0
        %v8788 = vsel %vm1719, %v8723, 0
        %v8791 = vsel %vm1719, %v8724, 0
        %v8794 = vsel %vm1719, %v8725, 0
        %v8797 = vsel %vm1719, %v8726, 0
        %v8800 = vsel %vm1719, %v8727, 0
        %v8803 = vsel %vm1719, %v8728, 0
        %v8806 = vsel %vm1719, %v8729, 0
        %v8809 = vsel %vm1719, %v8730, 0
        %v8812 = vsel %vm1719, %v8731, 0
        %v8815 = vsel %vm1719, %v8732, 0
        %v8818 = vsel %vm1719, %v8733, 0
        %v8821 = vsel %vm1719, %v8734, 0
        %8823 = vmatprep.subr.bf16.mxu0 0
        %8824 = vmatpush1.bf16.msra.mxu0 0
        %8825 = vmatprep.subr.bf16.mxu0 0
        %8826 = vmatpush1.bf16.msra.mxu0 0
        %8827 = vmatprep.subr.bf16.mxu0 0
        %8828 = vmatpush1.bf16.msra.mxu0 0
        %8829 = vmatprep.subr.bf16.mxu0 0
        %8830 = vmatpush1.bf16.msra.mxu0 0
        %8831 = vmatprep.subr.bf16.mxu0 0
        %8832 = vmatpush1.bf16.msra.mxu0 0
        %8833 = vmatprep.subr.bf16.mxu0 0
        %8834 = vmatpush1.bf16.msra.mxu0 0
        %8835 = vmatprep.subr.bf16.mxu0 %v8767
        %8836 = vmatpush1.bf16.msra.mxu0 %v8766
        %8837 = vmatprep.subr.bf16.mxu0 %v8764
        %8838 = vmatpush1.bf16.msra.mxu0 %v8763
        %8839 = vmatprep.subr.bf16.mxu0 0
        %8840 = vmatpush2.bf16.msra.mxu0 0
        %8841 = vmatprep.subr.bf16.mxu0 0
        %8842 = vmatpush2.bf16.msra.mxu0 0
        %8843 = vmatprep.subr.bf16.mxu0 0
        %8844 = vmatpush2.bf16.msra.mxu0 0
        %8845 = vmatprep.subr.bf16.mxu0 0
        %8846 = vmatpush2.bf16.msra.mxu0 0
        %8847 = vmatprep.subr.bf16.mxu0 0
        %8848 = vmatpush2.bf16.msra.mxu0 0
        %8849 = vmatprep.subr.bf16.mxu0 0
        %8850 = vmatpush2.bf16.msra.mxu0 0
        %8851 = vmatprep.subr.bf16.mxu0 0
        %8852 = vmatpush2.bf16.msra.mxu0 0
        %8853 = vmatprep.subr.bf16.mxu0 0
        %8854 = vmatpush2.bf16.msra.mxu0 0
        %8855 = vmatprep.mubr.bf16.mxu0 0
        %8856 = vmatmul.mubr.bf16.gmra.mxu0 %v8776
        %v8857 = vpop.f32.mrf.mxu0
        %v8858 = vadd.f32 0.0, %v8857
        %v8859 = vpop.f32.mrf.mxu0
        %v8860 = vadd.f32 0.0, %v8859
        %v8861 = vpop.f32.mrf.mxu0
        %v8862 = vadd.f32 0.0, %v8861
        %v8863 = vpop.f32.mrf.mxu0
        %v8864 = vadd.f32 0.0, %v8863
        %8865 = vmatprep.mubr.bf16.mxu0 0
        %8866 = vmatmul.mubr.bf16.gmra.mxu0 %v8779
        %v8867 = vpop.f32.mrf.mxu0
        %v8868 = vadd.f32 0.0, %v8867
        %v8869 = vpop.f32.mrf.mxu0
        %v8870 = vadd.f32 0.0, %v8869
        %v8871 = vpop.f32.mrf.mxu0
        %v8872 = vadd.f32 0.0, %v8871
        %v8873 = vpop.f32.mrf.mxu0
        %v8874 = vadd.f32 0.0, %v8873
        %8875 = vmatprep.mubr.bf16.mxu0 0
        %8876 = vmatmul.mubr.bf16.gmra.mxu0 %v8782
        %v8877 = vpop.f32.mrf.mxu0
        %v8878 = vadd.f32 0.0, %v8877
        %v8879 = vpop.f32.mrf.mxu0
        %v8880 = vadd.f32 0.0, %v8879
        %v8881 = vpop.f32.mrf.mxu0
        %v8882 = vadd.f32 0.0, %v8881
        %v8883 = vpop.f32.mrf.mxu0
        %v8884 = vadd.f32 0.0, %v8883
        %8885 = vmatprep.mubr.bf16.mxu0 0
        %8886 = vmatmul.mubr.bf16.gmra.mxu0 %v8785
        %v8887 = vpop.f32.mrf.mxu0
        %v8888 = vadd.f32 0.0, %v8887
        %v8889 = vpop.f32.mrf.mxu0
        %v8890 = vadd.f32 0.0, %v8889
        %v8891 = vpop.f32.mrf.mxu0
        %v8892 = vadd.f32 0.0, %v8891
        %v8893 = vpop.f32.mrf.mxu0
        %v8894 = vadd.f32 0.0, %v8893
        %8895 = vmatprep.mubr.bf16.mxu0 0
        %8896 = vmatmul.mubr.bf16.gmra.mxu0 %v8788
        %v8897 = vpop.f32.mrf.mxu0
        %v8898 = vadd.f32 0.0, %v8897
        %v8899 = vpop.f32.mrf.mxu0
        %v8900 = vadd.f32 0.0, %v8899
        %v8901 = vpop.f32.mrf.mxu0
        %v8902 = vadd.f32 0.0, %v8901
        %v8903 = vpop.f32.mrf.mxu0
        %v8904 = vadd.f32 0.0, %v8903
        %8905 = vmatprep.mubr.bf16.mxu0 0
        %8906 = vmatmul.mubr.bf16.gmra.mxu0 %v8791
        %v8907 = vpop.f32.mrf.mxu0
        %v8908 = vadd.f32 0.0, %v8907
        %v8909 = vpop.f32.mrf.mxu0
        %v8910 = vadd.f32 0.0, %v8909
        %v8911 = vpop.f32.mrf.mxu0
        %v8912 = vadd.f32 0.0, %v8911
        %v8913 = vpop.f32.mrf.mxu0
        %v8914 = vadd.f32 0.0, %v8913
        %8915 = vmatprep.mubr.bf16.mxu0 0
        %8916 = vmatmul.mubr.bf16.gmra.mxu0 %v8794
        %v8917 = vpop.f32.mrf.mxu0
        %v8918 = vadd.f32 0.0, %v8917
        %v8919 = vpop.f32.mrf.mxu0
        %v8920 = vadd.f32 0.0, %v8919
        %v8921 = vpop.f32.mrf.mxu0
        %v8922 = vadd.f32 0.0, %v8921
        %v8923 = vpop.f32.mrf.mxu0
        %v8924 = vadd.f32 0.0, %v8923
        %8925 = vmatprep.mubr.bf16.mxu0 0
        %8926 = vmatmul.mubr.bf16.gmra.mxu0 %v8797
        %v8927 = vpop.f32.mrf.mxu0
        %v8928 = vadd.f32 0.0, %v8927
        %v8929 = vpop.f32.mrf.mxu0
        %v8930 = vadd.f32 0.0, %v8929
        %v8931 = vpop.f32.mrf.mxu0
        %v8932 = vadd.f32 0.0, %v8931
        %v8933 = vpop.f32.mrf.mxu0
        %v8934 = vadd.f32 0.0, %v8933
        %8935 = vmatprep.mubr.bf16.mxu0 0
        %8936 = vmatmul.mubr.bf16.gmra.mxu0 %v8800
        %v8937 = vpop.f32.mrf.mxu0
        %v8938 = vadd.f32 0.0, %v8937
        %v8939 = vpop.f32.mrf.mxu0
        %v8940 = vadd.f32 0.0, %v8939
        %v8941 = vpop.f32.mrf.mxu0
        %v8942 = vadd.f32 0.0, %v8941
        %v8943 = vpop.f32.mrf.mxu0
        %v8944 = vadd.f32 0.0, %v8943
        %8945 = vmatprep.mubr.bf16.mxu0 0
        %8946 = vmatmul.mubr.bf16.gmra.mxu0 %v8803
        %v8947 = vpop.f32.mrf.mxu0
        %v8948 = vadd.f32 0.0, %v8947
        %v8949 = vpop.f32.mrf.mxu0
        %v8950 = vadd.f32 0.0, %v8949
        %v8951 = vpop.f32.mrf.mxu0
        %v8952 = vadd.f32 0.0, %v8951
        %v8953 = vpop.f32.mrf.mxu0
        %v8954 = vadd.f32 0.0, %v8953
        %8955 = vmatprep.mubr.bf16.mxu0 0
        %8956 = vmatmul.mubr.bf16.gmra.mxu0 %v8806
        %v8957 = vpop.f32.mrf.mxu0
        %v8958 = vadd.f32 0.0, %v8957
        %v8959 = vpop.f32.mrf.mxu0
        %v8960 = vadd.f32 0.0, %v8959
        %v8961 = vpop.f32.mrf.mxu0
        %v8962 = vadd.f32 0.0, %v8961
        %v8963 = vpop.f32.mrf.mxu0
        %v8964 = vadd.f32 0.0, %v8963
        %8965 = vmatprep.mubr.bf16.mxu0 0
        %8966 = vmatmul.mubr.bf16.gmra.mxu0 %v8809
        %v8967 = vpop.f32.mrf.mxu0
        %v8968 = vadd.f32 0.0, %v8967
        %v8969 = vpop.f32.mrf.mxu0
        %v8970 = vadd.f32 0.0, %v8969
        %v8971 = vpop.f32.mrf.mxu0
        %v8972 = vadd.f32 0.0, %v8971
        %v8973 = vpop.f32.mrf.mxu0
        %v8974 = vadd.f32 0.0, %v8973
        %8975 = vmatprep.mubr.bf16.mxu0 0
        %8976 = vmatmul.mubr.bf16.gmra.mxu0 %v8812
        %v8977 = vpop.f32.mrf.mxu0
        %v8978 = vadd.f32 0.0, %v8977
        %v8979 = vpop.f32.mrf.mxu0
        %v8980 = vadd.f32 0.0, %v8979
        %v8981 = vpop.f32.mrf.mxu0
        %v8982 = vadd.f32 0.0, %v8981
        %v8983 = vpop.f32.mrf.mxu0
        %v8984 = vadd.f32 0.0, %v8983
        %8985 = vmatprep.mubr.bf16.mxu0 0
        %8986 = vmatmul.mubr.bf16.gmra.mxu0 %v8815
        %v8987 = vpop.f32.mrf.mxu0
        %v8988 = vadd.f32 0.0, %v8987
        %v8989 = vpop.f32.mrf.mxu0
        %v8990 = vadd.f32 0.0, %v8989
        %v8991 = vpop.f32.mrf.mxu0
        %v8992 = vadd.f32 0.0, %v8991
        %v8993 = vpop.f32.mrf.mxu0
        %v8994 = vadd.f32 0.0, %v8993
        %8995 = vmatprep.mubr.bf16.mxu0 0
        %8996 = vmatmul.mubr.bf16.gmra.mxu0 %v8818
        %v8997 = vpop.f32.mrf.mxu0
        %v8998 = vadd.f32 0.0, %v8997
        %v8999 = vpop.f32.mrf.mxu0
        %v9000 = vadd.f32 0.0, %v8999
        %v9001 = vpop.f32.mrf.mxu0
        %v9002 = vadd.f32 0.0, %v9001
        %v9003 = vpop.f32.mrf.mxu0
        %v9004 = vadd.f32 0.0, %v9003
        %9005 = vmatprep.mubr.bf16.mxu0 0
        %9006 = vmatmul.mubr.bf16.gmra.mxu0 %v8821
        %v9007 = vpop.f32.mrf.mxu0
        %v9008 = vadd.f32 0.0, %v9007
        %v9009 = vpop.f32.mrf.mxu0
        %v9010 = vadd.f32 0.0, %v9009
        %v9011 = vpop.f32.mrf.mxu0
        %v9012 = vadd.f32 0.0, %v9011
        %v9013 = vpop.f32.mrf.mxu0
        %v9014 = vadd.f32 0.0, %v9013
        %9015 = vdwg.mxu0
        %9016 = vmatprep.subr.bf16.mxu0 0
        %9017 = vmatpush1.bf16.msra.mxu0 0
        %9018 = vmatprep.subr.bf16.mxu0 0
        %9019 = vmatpush1.bf16.msra.mxu0 0
        %9020 = vmatprep.subr.bf16.mxu0 0
        %9021 = vmatpush1.bf16.msra.mxu0 0
        %9022 = vmatprep.subr.bf16.mxu0 0
        %9023 = vmatpush1.bf16.msra.mxu0 0
        %9024 = vmatprep.subr.bf16.mxu0 0
        %9025 = vmatpush1.bf16.msra.mxu0 0
        %9026 = vmatprep.subr.bf16.mxu0 0
        %9027 = vmatpush1.bf16.msra.mxu0 0
        %9028 = vmatprep.subr.bf16.mxu0 0
        %9029 = vmatpush1.bf16.msra.mxu0 %v8768
        %9030 = vmatprep.subr.bf16.mxu0 0
        %9031 = vmatpush1.bf16.msra.mxu0 %v8765
        %9032 = vmatprep.subr.bf16.mxu0 0
        %9033 = vmatpush2.bf16.msra.mxu0 0
        %9034 = vmatprep.subr.bf16.mxu0 0
        %9035 = vmatpush2.bf16.msra.mxu0 0
        %9036 = vmatprep.subr.bf16.mxu0 0
        %9037 = vmatpush2.bf16.msra.mxu0 0
        %9038 = vmatprep.subr.bf16.mxu0 0
        %9039 = vmatpush2.bf16.msra.mxu0 0
        %9040 = vmatprep.subr.bf16.mxu0 0
        %9041 = vmatpush2.bf16.msra.mxu0 0
        %9042 = vmatprep.subr.bf16.mxu0 0
        %9043 = vmatpush2.bf16.msra.mxu0 0
        %9044 = vmatprep.subr.bf16.mxu0 0
        %9045 = vmatpush2.bf16.msra.mxu0 0
        %9046 = vmatprep.subr.bf16.mxu0 0
        %9047 = vmatpush2.bf16.msra.mxu0 0
        %9048 = vmatprep.mubr.bf16.mxu0 0
        %9049 = vmatmul.mubr.bf16.gmra.mxu0 %v8776
        %v9050 = vpop.f32.mrf.mxu0
        %v9051 = vadd.f32 0.0, %v9050
        %v9052 = vpop.f32.mrf.mxu0
        %v9053 = vpop.f32.mrf.mxu0
        %v9054 = vadd.f32 0.0, %v9053
        %v9055 = vpop.f32.mrf.mxu0
        %9056 = vmatprep.mubr.bf16.mxu0 0
        %9057 = vmatmul.mubr.bf16.gmra.mxu0 %v8779
        %v9058 = vpop.f32.mrf.mxu0
        %v9059 = vadd.f32 0.0, %v9058
        %v9060 = vpop.f32.mrf.mxu0
        %v9061 = vpop.f32.mrf.mxu0
        %v9062 = vadd.f32 0.0, %v9061
        %v9063 = vpop.f32.mrf.mxu0
        %9064 = vmatprep.mubr.bf16.mxu0 0
        %9065 = vmatmul.mubr.bf16.gmra.mxu0 %v8782
        %v9066 = vpop.f32.mrf.mxu0
        %v9067 = vadd.f32 0.0, %v9066
        %v9068 = vpop.f32.mrf.mxu0
        %v9069 = vpop.f32.mrf.mxu0
        %v9070 = vadd.f32 0.0, %v9069
        %v9071 = vpop.f32.mrf.mxu0
        %9072 = vmatprep.mubr.bf16.mxu0 0
        %9073 = vmatmul.mubr.bf16.gmra.mxu0 %v8785
        %v9074 = vpop.f32.mrf.mxu0
        %v9075 = vadd.f32 0.0, %v9074
        %v9076 = vpop.f32.mrf.mxu0
        %v9077 = vpop.f32.mrf.mxu0
        %v9078 = vadd.f32 0.0, %v9077
        %v9079 = vpop.f32.mrf.mxu0
        %9080 = vmatprep.mubr.bf16.mxu0 0
        %9081 = vmatmul.mubr.bf16.gmra.mxu0 %v8788
        %v9082 = vpop.f32.mrf.mxu0
        %v9083 = vadd.f32 0.0, %v9082
        %v9084 = vpop.f32.mrf.mxu0
        %v9085 = vpop.f32.mrf.mxu0
        %v9086 = vadd.f32 0.0, %v9085
        %v9087 = vpop.f32.mrf.mxu0
        %9088 = vmatprep.mubr.bf16.mxu0 0
        %9089 = vmatmul.mubr.bf16.gmra.mxu0 %v8791
        %v9090 = vpop.f32.mrf.mxu0
        %v9091 = vadd.f32 0.0, %v9090
        %v9092 = vpop.f32.mrf.mxu0
        %v9093 = vpop.f32.mrf.mxu0
        %v9094 = vadd.f32 0.0, %v9093
        %v9095 = vpop.f32.mrf.mxu0
        %9096 = vmatprep.mubr.bf16.mxu0 0
        %9097 = vmatmul.mubr.bf16.gmra.mxu0 %v8794
        %v9098 = vpop.f32.mrf.mxu0
        %v9099 = vadd.f32 0.0, %v9098
        %v9100 = vpop.f32.mrf.mxu0
        %v9101 = vpop.f32.mrf.mxu0
        %v9102 = vadd.f32 0.0, %v9101
        %v9103 = vpop.f32.mrf.mxu0
        %9104 = vmatprep.mubr.bf16.mxu0 0
        %9105 = vmatmul.mubr.bf16.gmra.mxu0 %v8797
        %v9106 = vpop.f32.mrf.mxu0
        %v9107 = vadd.f32 0.0, %v9106
        %v9108 = vpop.f32.mrf.mxu0
        %v9109 = vpop.f32.mrf.mxu0
        %v9110 = vadd.f32 0.0, %v9109
        %v9111 = vpop.f32.mrf.mxu0
        %9112 = vmatprep.mubr.bf16.mxu0 0
        %9113 = vmatmul.mubr.bf16.gmra.mxu0 %v8800
        %v9114 = vpop.f32.mrf.mxu0
        %v9115 = vadd.f32 0.0, %v9114
        %v9116 = vpop.f32.mrf.mxu0
        %v9117 = vpop.f32.mrf.mxu0
        %v9118 = vadd.f32 0.0, %v9117
        %v9119 = vpop.f32.mrf.mxu0
        %9120 = vmatprep.mubr.bf16.mxu0 0
        %9121 = vmatmul.mubr.bf16.gmra.mxu0 %v8803
        %v9122 = vpop.f32.mrf.mxu0
        %v9123 = vadd.f32 0.0, %v9122
        %v9124 = vpop.f32.mrf.mxu0
        %v9125 = vpop.f32.mrf.mxu0
        %v9126 = vadd.f32 0.0, %v9125
        %v9127 = vpop.f32.mrf.mxu0
        %9128 = vmatprep.mubr.bf16.mxu0 0
        %9129 = vmatmul.mubr.bf16.gmra.mxu0 %v8806
        %v9130 = vpop.f32.mrf.mxu0
        %v9131 = vadd.f32 0.0, %v9130
        %v9132 = vpop.f32.mrf.mxu0
        %v9133 = vpop.f32.mrf.mxu0
        %v9134 = vadd.f32 0.0, %v9133
        %v9135 = vpop.f32.mrf.mxu0
        %9136 = vmatprep.mubr.bf16.mxu0 0
        %9137 = vmatmul.mubr.bf16.gmra.mxu0 %v8809
        %v9138 = vpop.f32.mrf.mxu0
        %v9139 = vadd.f32 0.0, %v9138
        %v9140 = vpop.f32.mrf.mxu0
        %v9141 = vpop.f32.mrf.mxu0
        %v9142 = vadd.f32 0.0, %v9141
        %v9143 = vpop.f32.mrf.mxu0
        %9144 = vmatprep.mubr.bf16.mxu0 0
        %9145 = vmatmul.mubr.bf16.gmra.mxu0 %v8812
        %v9146 = vpop.f32.mrf.mxu0
        %v9147 = vadd.f32 0.0, %v9146
        %v9148 = vpop.f32.mrf.mxu0
        %v9149 = vpop.f32.mrf.mxu0
        %v9150 = vadd.f32 0.0, %v9149
        %v9151 = vpop.f32.mrf.mxu0
        %9152 = vmatprep.mubr.bf16.mxu0 0
        %9153 = vmatmul.mubr.bf16.gmra.mxu0 %v8815
        %v9154 = vpop.f32.mrf.mxu0
        %v9155 = vadd.f32 0.0, %v9154
        %v9156 = vpop.f32.mrf.mxu0
        %v9157 = vpop.f32.mrf.mxu0
        %v9158 = vadd.f32 0.0, %v9157
        %v9159 = vpop.f32.mrf.mxu0
        %9160 = vmatprep.mubr.bf16.mxu0 0
        %9161 = vmatmul.mubr.bf16.gmra.mxu0 %v8818
        %v9162 = vpop.f32.mrf.mxu0
        %v9163 = vadd.f32 0.0, %v9162
        %v9164 = vpop.f32.mrf.mxu0
        %v9165 = vpop.f32.mrf.mxu0
        %v9166 = vadd.f32 0.0, %v9165
        %v9167 = vpop.f32.mrf.mxu0
        %9168 = vmatprep.mubr.bf16.mxu0 0
        %9169 = vmatmul.mubr.bf16.gmra.mxu0 %v8821
        %v9170 = vpop.f32.mrf.mxu0
        %v9171 = vadd.f32 0.0, %v9170
        %v9172 = vpop.f32.mrf.mxu0
        %v9173 = vpop.f32.mrf.mxu0
        %v9174 = vadd.f32 0.0, %v9173
        %v9175 = vpop.f32.mrf.mxu0
        %9176 = vdwg.mxu0
        %v9185 = vunpack.c.l.b16 %v8711
        %v9186 = vunpack.c.h.b16 %v8711
        %v9187 = vunpack.c.l.b16 %v8712
        %v9188 = vunpack.c.l.b16 %v8713
        %v9189 = vunpack.c.h.b16 %v8713
        %v9190 = vunpack.c.l.b16 %v8714
        %v9191 = vunpack.c.l.b16 %v8715
        %v9192 = vunpack.c.h.b16 %v8715
        %v9193 = vunpack.c.l.b16 %v8716
        %v9194 = vunpack.c.l.b16 %v8717
        %v9195 = vunpack.c.h.b16 %v8717
        %v9196 = vunpack.c.l.b16 %v8718
        %v9197 = vpack.c.b16 %v9188, %v9185
        %v9198 = vpack.c.b16 %v9189, %v9186
        %v9199 = vpack.c.b16 %v9190, %v9187
        %v9200 = vpack.c.b16 %v9194, %v9191
        %v9201 = vpack.c.b16 %v9195, %v9192
        %v9202 = vpack.c.b16 %v9196, %v9193
        %v9210 = vsel %vm1719, %v8695, 0
        %v9213 = vsel %vm1719, %v8696, 0
        %v9216 = vsel %vm1719, %v8697, 0
        %v9219 = vsel %vm1719, %v8698, 0
        %v9222 = vsel %vm1719, %v8699, 0
        %v9225 = vsel %vm1719, %v8700, 0
        %v9228 = vsel %vm1719, %v8701, 0
        %v9231 = vsel %vm1719, %v8702, 0
        %v9234 = vsel %vm1719, %v8703, 0
        %v9237 = vsel %vm1719, %v8704, 0
        %v9240 = vsel %vm1719, %v8705, 0
        %v9243 = vsel %vm1719, %v8706, 0
        %v9246 = vsel %vm1719, %v8707, 0
        %v9249 = vsel %vm1719, %v8708, 0
        %v9252 = vsel %vm1719, %v8709, 0
        %v9255 = vsel %vm1719, %v8710, 0
        %9257 = vmatprep.subr.bf16.mxu0 0
        %9258 = vmatpush1.bf16.msra.mxu0 0
        %9259 = vmatprep.subr.bf16.mxu0 0
        %9260 = vmatpush1.bf16.msra.mxu0 0
        %9261 = vmatprep.subr.bf16.mxu0 0
        %9262 = vmatpush1.bf16.msra.mxu0 0
        %9263 = vmatprep.subr.bf16.mxu0 0
        %9264 = vmatpush1.bf16.msra.mxu0 0
        %9265 = vmatprep.subr.bf16.mxu0 0
        %9266 = vmatpush1.bf16.msra.mxu0 0
        %9267 = vmatprep.subr.bf16.mxu0 0
        %9268 = vmatpush1.bf16.msra.mxu0 0
        %9269 = vmatprep.subr.bf16.mxu0 %v9201
        %9270 = vmatpush1.bf16.msra.mxu0 %v9200
        %9271 = vmatprep.subr.bf16.mxu0 %v9198
        %9272 = vmatpush1.bf16.msra.mxu0 %v9197
        %9273 = vmatprep.subr.bf16.mxu0 0
        %9274 = vmatpush2.bf16.msra.mxu0 0
        %9275 = vmatprep.subr.bf16.mxu0 0
        %9276 = vmatpush2.bf16.msra.mxu0 0
        %9277 = vmatprep.subr.bf16.mxu0 0
        %9278 = vmatpush2.bf16.msra.mxu0 0
        %9279 = vmatprep.subr.bf16.mxu0 0
        %9280 = vmatpush2.bf16.msra.mxu0 0
        %9281 = vmatprep.subr.bf16.mxu0 0
        %9282 = vmatpush2.bf16.msra.mxu0 0
        %9283 = vmatprep.subr.bf16.mxu0 0
        %9284 = vmatpush2.bf16.msra.mxu0 0
        %9285 = vmatprep.subr.bf16.mxu0 0
        %9286 = vmatpush2.bf16.msra.mxu0 0
        %9287 = vmatprep.subr.bf16.mxu0 0
        %9288 = vmatpush2.bf16.msra.mxu0 0
        %9289 = vmatprep.mubr.bf16.mxu0 0
        %9290 = vmatmul.mubr.bf16.gmra.mxu0 %v9210
        %v9291 = vpop.f32.mrf.mxu0
        %v9292 = vadd.f32 %v8858, %v9291
        %v9293 = vpop.f32.mrf.mxu0
        %v9294 = vadd.f32 %v8860, %v9293
        %v9295 = vpop.f32.mrf.mxu0
        %v9296 = vadd.f32 %v8862, %v9295
        %v9297 = vpop.f32.mrf.mxu0
        %v9298 = vadd.f32 %v8864, %v9297
        %9299 = vmatprep.mubr.bf16.mxu0 0
        %9300 = vmatmul.mubr.bf16.gmra.mxu0 %v9213
        %v9301 = vpop.f32.mrf.mxu0
        %v9302 = vadd.f32 %v8868, %v9301
        %v9303 = vpop.f32.mrf.mxu0
        %v9304 = vadd.f32 %v8870, %v9303
        %v9305 = vpop.f32.mrf.mxu0
        %v9306 = vadd.f32 %v8872, %v9305
        %v9307 = vpop.f32.mrf.mxu0
        %v9308 = vadd.f32 %v8874, %v9307
        %9309 = vmatprep.mubr.bf16.mxu0 0
        %9310 = vmatmul.mubr.bf16.gmra.mxu0 %v9216
        %v9311 = vpop.f32.mrf.mxu0
        %v9312 = vadd.f32 %v8878, %v9311
        %v9313 = vpop.f32.mrf.mxu0
        %v9314 = vadd.f32 %v8880, %v9313
        %v9315 = vpop.f32.mrf.mxu0
        %v9316 = vadd.f32 %v8882, %v9315
        %v9317 = vpop.f32.mrf.mxu0
        %v9318 = vadd.f32 %v8884, %v9317
        %9319 = vmatprep.mubr.bf16.mxu0 0
        %9320 = vmatmul.mubr.bf16.gmra.mxu0 %v9219
        %v9321 = vpop.f32.mrf.mxu0
        %v9322 = vadd.f32 %v8888, %v9321
        %v9323 = vpop.f32.mrf.mxu0
        %v9324 = vadd.f32 %v8890, %v9323
        %v9325 = vpop.f32.mrf.mxu0
        %v9326 = vadd.f32 %v8892, %v9325
        %v9327 = vpop.f32.mrf.mxu0
        %v9328 = vadd.f32 %v8894, %v9327
        %9329 = vmatprep.mubr.bf16.mxu0 0
        %9330 = vmatmul.mubr.bf16.gmra.mxu0 %v9222
        %v9331 = vpop.f32.mrf.mxu0
        %v9332 = vadd.f32 %v8898, %v9331
        %v9333 = vpop.f32.mrf.mxu0
        %v9334 = vadd.f32 %v8900, %v9333
        %v9335 = vpop.f32.mrf.mxu0
        %v9336 = vadd.f32 %v8902, %v9335
        %v9337 = vpop.f32.mrf.mxu0
        %v9338 = vadd.f32 %v8904, %v9337
        %9339 = vmatprep.mubr.bf16.mxu0 0
        %9340 = vmatmul.mubr.bf16.gmra.mxu0 %v9225
        %v9341 = vpop.f32.mrf.mxu0
        %v9342 = vadd.f32 %v8908, %v9341
        %v9343 = vpop.f32.mrf.mxu0
        %v9344 = vadd.f32 %v8910, %v9343
        %v9345 = vpop.f32.mrf.mxu0
        %v9346 = vadd.f32 %v8912, %v9345
        %v9347 = vpop.f32.mrf.mxu0
        %v9348 = vadd.f32 %v8914, %v9347
        %9349 = vmatprep.mubr.bf16.mxu0 0
        %9350 = vmatmul.mubr.bf16.gmra.mxu0 %v9228
        %v9351 = vpop.f32.mrf.mxu0
        %v9352 = vadd.f32 %v8918, %v9351
        %v9353 = vpop.f32.mrf.mxu0
        %v9354 = vadd.f32 %v8920, %v9353
        %v9355 = vpop.f32.mrf.mxu0
        %v9356 = vadd.f32 %v8922, %v9355
        %v9357 = vpop.f32.mrf.mxu0
        %v9358 = vadd.f32 %v8924, %v9357
        %9359 = vmatprep.mubr.bf16.mxu0 0
        %9360 = vmatmul.mubr.bf16.gmra.mxu0 %v9231
        %v9361 = vpop.f32.mrf.mxu0
        %v9362 = vadd.f32 %v8928, %v9361
        %v9363 = vpop.f32.mrf.mxu0
        %v9364 = vadd.f32 %v8930, %v9363
        %v9365 = vpop.f32.mrf.mxu0
        %v9366 = vadd.f32 %v8932, %v9365
        %v9367 = vpop.f32.mrf.mxu0
        %v9368 = vadd.f32 %v8934, %v9367
        %9369 = vmatprep.mubr.bf16.mxu0 0
        %9370 = vmatmul.mubr.bf16.gmra.mxu0 %v9234
        %v9371 = vpop.f32.mrf.mxu0
        %v9372 = vadd.f32 %v8938, %v9371
        %v9373 = vpop.f32.mrf.mxu0
        %v9374 = vadd.f32 %v8940, %v9373
        %v9375 = vpop.f32.mrf.mxu0
        %v9376 = vadd.f32 %v8942, %v9375
        %v9377 = vpop.f32.mrf.mxu0
        %v9378 = vadd.f32 %v8944, %v9377
        %9379 = vmatprep.mubr.bf16.mxu0 0
        %9380 = vmatmul.mubr.bf16.gmra.mxu0 %v9237
        %v9381 = vpop.f32.mrf.mxu0
        %v9382 = vadd.f32 %v8948, %v9381
        %v9383 = vpop.f32.mrf.mxu0
        %v9384 = vadd.f32 %v8950, %v9383
        %v9385 = vpop.f32.mrf.mxu0
        %v9386 = vadd.f32 %v8952, %v9385
        %v9387 = vpop.f32.mrf.mxu0
        %v9388 = vadd.f32 %v8954, %v9387
        %9389 = vmatprep.mubr.bf16.mxu0 0
        %9390 = vmatmul.mubr.bf16.gmra.mxu0 %v9240
        %v9391 = vpop.f32.mrf.mxu0
        %v9392 = vadd.f32 %v8958, %v9391
        %v9393 = vpop.f32.mrf.mxu0
        %v9394 = vadd.f32 %v8960, %v9393
        %v9395 = vpop.f32.mrf.mxu0
        %v9396 = vadd.f32 %v8962, %v9395
        %v9397 = vpop.f32.mrf.mxu0
        %v9398 = vadd.f32 %v8964, %v9397
        %9399 = vmatprep.mubr.bf16.mxu0 0
        %9400 = vmatmul.mubr.bf16.gmra.mxu0 %v9243
        %v9401 = vpop.f32.mrf.mxu0
        %v9402 = vadd.f32 %v8968, %v9401
        %v9403 = vpop.f32.mrf.mxu0
        %v9404 = vadd.f32 %v8970, %v9403
        %v9405 = vpop.f32.mrf.mxu0
        %v9406 = vadd.f32 %v8972, %v9405
        %v9407 = vpop.f32.mrf.mxu0
        %v9408 = vadd.f32 %v8974, %v9407
        %9409 = vmatprep.mubr.bf16.mxu0 0
        %9410 = vmatmul.mubr.bf16.gmra.mxu0 %v9246
        %v9411 = vpop.f32.mrf.mxu0
        %v9412 = vadd.f32 %v8978, %v9411
        %v9413 = vpop.f32.mrf.mxu0
        %v9414 = vadd.f32 %v8980, %v9413
        %v9415 = vpop.f32.mrf.mxu0
        %v9416 = vadd.f32 %v8982, %v9415
        %v9417 = vpop.f32.mrf.mxu0
        %v9418 = vadd.f32 %v8984, %v9417
        %9419 = vmatprep.mubr.bf16.mxu0 0
        %9420 = vmatmul.mubr.bf16.gmra.mxu0 %v9249
        %v9421 = vpop.f32.mrf.mxu0
        %v9422 = vadd.f32 %v8988, %v9421
        %v9423 = vpop.f32.mrf.mxu0
        %v9424 = vadd.f32 %v8990, %v9423
        %v9425 = vpop.f32.mrf.mxu0
        %v9426 = vadd.f32 %v8992, %v9425
        %v9427 = vpop.f32.mrf.mxu0
        %v9428 = vadd.f32 %v8994, %v9427
        %9429 = vmatprep.mubr.bf16.mxu0 0
        %9430 = vmatmul.mubr.bf16.gmra.mxu0 %v9252
        %v9431 = vpop.f32.mrf.mxu0
        %v9432 = vadd.f32 %v8998, %v9431
        %v9433 = vpop.f32.mrf.mxu0
        %v9434 = vadd.f32 %v9000, %v9433
        %v9435 = vpop.f32.mrf.mxu0
        %v9436 = vadd.f32 %v9002, %v9435
        %v9437 = vpop.f32.mrf.mxu0
        %v9438 = vadd.f32 %v9004, %v9437
        %9439 = vmatprep.mubr.bf16.mxu0 0
        %9440 = vmatmul.mubr.bf16.gmra.mxu0 %v9255
        %v9441 = vpop.f32.mrf.mxu0
        %v9442 = vadd.f32 %v9008, %v9441
        %v9443 = vpop.f32.mrf.mxu0
        %v9444 = vadd.f32 %v9010, %v9443
        %v9445 = vpop.f32.mrf.mxu0
        %v9446 = vadd.f32 %v9012, %v9445
        %v9447 = vpop.f32.mrf.mxu0
        %v9448 = vadd.f32 %v9014, %v9447
        %9449 = vdwg.mxu0
        %9450 = vmatprep.subr.bf16.mxu0 0
        %9451 = vmatpush1.bf16.msra.mxu0 0
        %9452 = vmatprep.subr.bf16.mxu0 0
        %9453 = vmatpush1.bf16.msra.mxu0 0
        %9454 = vmatprep.subr.bf16.mxu0 0
        %9455 = vmatpush1.bf16.msra.mxu0 0
        %9456 = vmatprep.subr.bf16.mxu0 0
        %9457 = vmatpush1.bf16.msra.mxu0 0
        %9458 = vmatprep.subr.bf16.mxu0 0
        %9459 = vmatpush1.bf16.msra.mxu0 0
        %9460 = vmatprep.subr.bf16.mxu0 0
        %9461 = vmatpush1.bf16.msra.mxu0 0
        %9462 = vmatprep.subr.bf16.mxu0 0
        %9463 = vmatpush1.bf16.msra.mxu0 %v9202
        %9464 = vmatprep.subr.bf16.mxu0 0
        %9465 = vmatpush1.bf16.msra.mxu0 %v9199
        %9466 = vmatprep.subr.bf16.mxu0 0
        %9467 = vmatpush2.bf16.msra.mxu0 0
        %9468 = vmatprep.subr.bf16.mxu0 0
        %9469 = vmatpush2.bf16.msra.mxu0 0
        %9470 = vmatprep.subr.bf16.mxu0 0
        %9471 = vmatpush2.bf16.msra.mxu0 0
        %9472 = vmatprep.subr.bf16.mxu0 0
        %9473 = vmatpush2.bf16.msra.mxu0 0
        %9474 = vmatprep.subr.bf16.mxu0 0
        %9475 = vmatpush2.bf16.msra.mxu0 0
        %9476 = vmatprep.subr.bf16.mxu0 0
        %9477 = vmatpush2.bf16.msra.mxu0 0
        %9478 = vmatprep.subr.bf16.mxu0 0
        %9479 = vmatpush2.bf16.msra.mxu0 0
        %9480 = vmatprep.subr.bf16.mxu0 0
        %9481 = vmatpush2.bf16.msra.mxu0 0
        %9482 = vmatprep.mubr.bf16.mxu0 0
        %9483 = vmatmul.mubr.bf16.gmra.mxu0 %v9210
        %v9484 = vpop.f32.mrf.mxu0
        %v9485 = vadd.f32 %v9051, %v9484
        %v9486 = vpop.f32.mrf.mxu0
        %v9487 = vpop.f32.mrf.mxu0
        %v9488 = vadd.f32 %v9054, %v9487
        %v9489 = vpop.f32.mrf.mxu0
        %9490 = vmatprep.mubr.bf16.mxu0 0
        %9491 = vmatmul.mubr.bf16.gmra.mxu0 %v9213
        %v9492 = vpop.f32.mrf.mxu0
        %v9493 = vadd.f32 %v9059, %v9492
        %v9494 = vpop.f32.mrf.mxu0
        %v9495 = vpop.f32.mrf.mxu0
        %v9496 = vadd.f32 %v9062, %v9495
        %v9497 = vpop.f32.mrf.mxu0
        %9498 = vmatprep.mubr.bf16.mxu0 0
        %9499 = vmatmul.mubr.bf16.gmra.mxu0 %v9216
        %v9500 = vpop.f32.mrf.mxu0
        %v9501 = vadd.f32 %v9067, %v9500
        %v9502 = vpop.f32.mrf.mxu0
        %v9503 = vpop.f32.mrf.mxu0
        %v9504 = vadd.f32 %v9070, %v9503
        %v9505 = vpop.f32.mrf.mxu0
        %9506 = vmatprep.mubr.bf16.mxu0 0
        %9507 = vmatmul.mubr.bf16.gmra.mxu0 %v9219
        %v9508 = vpop.f32.mrf.mxu0
        %v9509 = vadd.f32 %v9075, %v9508
        %v9510 = vpop.f32.mrf.mxu0
        %v9511 = vpop.f32.mrf.mxu0
        %v9512 = vadd.f32 %v9078, %v9511
        %v9513 = vpop.f32.mrf.mxu0
        %9514 = vmatprep.mubr.bf16.mxu0 0
        %9515 = vmatmul.mubr.bf16.gmra.mxu0 %v9222
        %v9516 = vpop.f32.mrf.mxu0
        %v9517 = vadd.f32 %v9083, %v9516
        %v9518 = vpop.f32.mrf.mxu0
        %v9519 = vpop.f32.mrf.mxu0
        %v9520 = vadd.f32 %v9086, %v9519
        %v9521 = vpop.f32.mrf.mxu0
        %9522 = vmatprep.mubr.bf16.mxu0 0
        %9523 = vmatmul.mubr.bf16.gmra.mxu0 %v9225
        %v9524 = vpop.f32.mrf.mxu0
        %v9525 = vadd.f32 %v9091, %v9524
        %v9526 = vpop.f32.mrf.mxu0
        %v9527 = vpop.f32.mrf.mxu0
        %v9528 = vadd.f32 %v9094, %v9527
        %v9529 = vpop.f32.mrf.mxu0
        %9530 = vmatprep.mubr.bf16.mxu0 0
        %9531 = vmatmul.mubr.bf16.gmra.mxu0 %v9228
        %v9532 = vpop.f32.mrf.mxu0
        %v9533 = vadd.f32 %v9099, %v9532
        %v9534 = vpop.f32.mrf.mxu0
        %v9535 = vpop.f32.mrf.mxu0
        %v9536 = vadd.f32 %v9102, %v9535
        %v9537 = vpop.f32.mrf.mxu0
        %9538 = vmatprep.mubr.bf16.mxu0 0
        %9539 = vmatmul.mubr.bf16.gmra.mxu0 %v9231
        %v9540 = vpop.f32.mrf.mxu0
        %v9541 = vadd.f32 %v9107, %v9540
        %v9542 = vpop.f32.mrf.mxu0
        %v9543 = vpop.f32.mrf.mxu0
        %v9544 = vadd.f32 %v9110, %v9543
        %v9545 = vpop.f32.mrf.mxu0
        %9546 = vmatprep.mubr.bf16.mxu0 0
        %9547 = vmatmul.mubr.bf16.gmra.mxu0 %v9234
        %v9548 = vpop.f32.mrf.mxu0
        %v9549 = vadd.f32 %v9115, %v9548
        %v9550 = vpop.f32.mrf.mxu0
        %v9551 = vpop.f32.mrf.mxu0
        %v9552 = vadd.f32 %v9118, %v9551
        %v9553 = vpop.f32.mrf.mxu0
        %9554 = vmatprep.mubr.bf16.mxu0 0
        %9555 = vmatmul.mubr.bf16.gmra.mxu0 %v9237
        %v9556 = vpop.f32.mrf.mxu0
        %v9557 = vadd.f32 %v9123, %v9556
        %v9558 = vpop.f32.mrf.mxu0
        %v9559 = vpop.f32.mrf.mxu0
        %v9560 = vadd.f32 %v9126, %v9559
        %v9561 = vpop.f32.mrf.mxu0
        %9562 = vmatprep.mubr.bf16.mxu0 0
        %9563 = vmatmul.mubr.bf16.gmra.mxu0 %v9240
        %v9564 = vpop.f32.mrf.mxu0
        %v9565 = vadd.f32 %v9131, %v9564
        %v9566 = vpop.f32.mrf.mxu0
        %v9567 = vpop.f32.mrf.mxu0
        %v9568 = vadd.f32 %v9134, %v9567
        %v9569 = vpop.f32.mrf.mxu0
        %9570 = vmatprep.mubr.bf16.mxu0 0
        %9571 = vmatmul.mubr.bf16.gmra.mxu0 %v9243
        %v9572 = vpop.f32.mrf.mxu0
        %v9573 = vadd.f32 %v9139, %v9572
        %v9574 = vpop.f32.mrf.mxu0
        %v9575 = vpop.f32.mrf.mxu0
        %v9576 = vadd.f32 %v9142, %v9575
        %v9577 = vpop.f32.mrf.mxu0
        %9578 = vmatprep.mubr.bf16.mxu0 0
        %9579 = vmatmul.mubr.bf16.gmra.mxu0 %v9246
        %v9580 = vpop.f32.mrf.mxu0
        %v9581 = vadd.f32 %v9147, %v9580
        %v9582 = vpop.f32.mrf.mxu0
        %v9583 = vpop.f32.mrf.mxu0
        %v9584 = vadd.f32 %v9150, %v9583
        %v9585 = vpop.f32.mrf.mxu0
        %9586 = vmatprep.mubr.bf16.mxu0 0
        %9587 = vmatmul.mubr.bf16.gmra.mxu0 %v9249
        %v9588 = vpop.f32.mrf.mxu0
        %v9589 = vadd.f32 %v9155, %v9588
        %v9590 = vpop.f32.mrf.mxu0
        %v9591 = vpop.f32.mrf.mxu0
        %v9592 = vadd.f32 %v9158, %v9591
        %v9593 = vpop.f32.mrf.mxu0
        %9594 = vmatprep.mubr.bf16.mxu0 0
        %9595 = vmatmul.mubr.bf16.gmra.mxu0 %v9252
        %v9596 = vpop.f32.mrf.mxu0
        %v9597 = vadd.f32 %v9163, %v9596
        %v9598 = vpop.f32.mrf.mxu0
        %v9599 = vpop.f32.mrf.mxu0
        %v9600 = vadd.f32 %v9166, %v9599
        %v9601 = vpop.f32.mrf.mxu0
        %9602 = vmatprep.mubr.bf16.mxu0 0
        %9603 = vmatmul.mubr.bf16.gmra.mxu0 %v9255
        %v9604 = vpop.f32.mrf.mxu0
        %v9605 = vadd.f32 %v9171, %v9604
        %v9606 = vpop.f32.mrf.mxu0
        %v9607 = vpop.f32.mrf.mxu0
        %v9608 = vadd.f32 %v9174, %v9607
        %v9609 = vpop.f32.mrf.mxu0
        %9610 = vdwg.mxu0
        %v9611 = vpack.c.bf16 %v8664, %v8663
        %v9612 = vpack.c.bf16 %v8666, %v8665
        %v9613 = vpack.c.bf16 %v8668, %v8667
        %v9614 = vpack.c.bf16 %v8670, %v8669
        %v9615 = vpack.c.bf16 %v8672, %v8671
        %v9616 = vpack.c.bf16 %v8674, %v8673
        %v9617 = vpack.c.bf16 %v8676, %v8675
        %v9618 = vpack.c.bf16 %v8678, %v8677
        %v9619 = vpack.c.bf16 %v8680, %v8679
        %v9620 = vpack.c.bf16 %v8682, %v8681
        %v9621 = vpack.c.bf16 %v8684, %v8683
        %v9622 = vpack.c.bf16 %v8686, %v8685
        %v9623 = vpack.c.bf16 %v8688, %v8687
        %v9624 = vpack.c.bf16 %v8690, %v8689
        %v9625 = vpack.c.bf16 %v8692, %v8691
        %v9626 = vpack.c.bf16 %v8694, %v8693
        %v9627 = vld [vmem:[%s13 + $0x60] sm:$0xff]
        %v9628 = vld [vmem:[%s13 + $0x68] sm:$0xf]
        %v9629 = vld [vmem:[%s13 + $0x6c] sm:$0xff]
        %v9630 = vld [vmem:[%s13 + $0x74] sm:$0xf]
        %v9631 = vld [vmem:[%s13 + $0x78] sm:$0xff]
        %v9632 = vld [vmem:[%s13 + $0x80] sm:$0xf]
        %v9633 = vld [vmem:[%s13 + $0x84] sm:$0xff]
        %v9634 = vld [vmem:[%s13 + $0x8c] sm:$0xf]
        %v9635 = vld [vmem:[%s13 + $0x90] sm:$0xff]
        %v9636 = vld [vmem:[%s13 + $0x98] sm:$0xf]
        %v9637 = vld [vmem:[%s13 + $0x9c] sm:$0xff]
        %v9638 = vld [vmem:[%s13 + $0xa4] sm:$0xf]
        %v9639 = vld [vmem:[%s13 + $0xa8] sm:$0xff]
        %v9640 = vld [vmem:[%s13 + $0xb0] sm:$0xf]
        %v9641 = vld [vmem:[%s13 + $0xb4] sm:$0xff]
        %v9642 = vld [vmem:[%s13 + $0xbc] sm:$0xf]
        %v9659 = vunpack.c.l.b16 %v9627
        %v9660 = vunpack.c.h.b16 %v9627
        %v9661 = vunpack.c.l.b16 %v9628
        %v9662 = vunpack.c.l.b16 %v9629
        %v9663 = vunpack.c.h.b16 %v9629
        %v9664 = vunpack.c.l.b16 %v9630
        %v9665 = vunpack.c.l.b16 %v9631
        %v9666 = vunpack.c.h.b16 %v9631
        %v9667 = vunpack.c.l.b16 %v9632
        %v9668 = vunpack.c.l.b16 %v9633
        %v9669 = vunpack.c.h.b16 %v9633
        %v9670 = vunpack.c.l.b16 %v9634
        %v9671 = vunpack.c.l.b16 %v9635
        %v9672 = vunpack.c.h.b16 %v9635
        %v9673 = vunpack.c.l.b16 %v9636
        %v9674 = vunpack.c.l.b16 %v9637
        %v9675 = vunpack.c.h.b16 %v9637
        %v9676 = vunpack.c.l.b16 %v9638
        %v9677 = vunpack.c.l.b16 %v9639
        %v9678 = vunpack.c.h.b16 %v9639
        %v9679 = vunpack.c.l.b16 %v9640
        %v9680 = vunpack.c.l.b16 %v9641
        %v9681 = vunpack.c.h.b16 %v9641
        %v9682 = vunpack.c.l.b16 %v9642
        %v9683 = vpack.c.b16 %v9662, %v9659
        %v9684 = vpack.c.b16 %v9663, %v9660
        %v9685 = vpack.c.b16 %v9664, %v9661
        %v9686 = vpack.c.b16 %v9668, %v9665
        %v9687 = vpack.c.b16 %v9669, %v9666
        %v9688 = vpack.c.b16 %v9670, %v9667
        %v9689 = vpack.c.b16 %v9674, %v9671
        %v9690 = vpack.c.b16 %v9675, %v9672
        %v9691 = vpack.c.b16 %v9676, %v9673
        %v9692 = vpack.c.b16 %v9680, %v9677
        %v9693 = vpack.c.b16 %v9681, %v9678
        %v9694 = vpack.c.b16 %v9682, %v9679
        %vm9707 = vcmask 523264
        %v9709 = vsel %vm9707, %v9611, 0
        %v9712 = vsel %vm9707, %v9612, 0
        %v9715 = vsel %vm9707, %v9613, 0
        %v9718 = vsel %vm9707, %v9614, 0
        %v9721 = vsel %vm9707, %v9615, 0
        %v9724 = vsel %vm9707, %v9616, 0
        %v9727 = vsel %vm9707, %v9617, 0
        %v9730 = vsel %vm9707, %v9618, 0
        %v9733 = vsel %vm9707, %v9619, 0
        %v9736 = vsel %vm9707, %v9620, 0
        %v9739 = vsel %vm9707, %v9621, 0
        %v9742 = vsel %vm9707, %v9622, 0
        %v9745 = vsel %vm9707, %v9623, 0
        %v9748 = vsel %vm9707, %v9624, 0
        %v9751 = vsel %vm9707, %v9625, 0
        %v9754 = vsel %vm9707, %v9626, 0
        %9756 = vmatprep.subr.bf16.mxu0 0
        %9757 = vmatpush1.bf16.msra.mxu0 0
        %9758 = vmatprep.subr.bf16.mxu0 0
        %9759 = vmatpush1.bf16.msra.mxu0 0
        %9760 = vmatprep.subr.bf16.mxu0 0
        %9761 = vmatpush1.bf16.msra.mxu0 0
        %9762 = vmatprep.subr.bf16.mxu0 0
        %9763 = vmatpush1.bf16.msra.mxu0 0
        %9764 = vmatprep.subr.bf16.mxu0 %v9693
        %9765 = vmatpush1.bf16.msra.mxu0 %v9692
        %9766 = vmatprep.subr.bf16.mxu0 %v9690
        %9767 = vmatpush1.bf16.msra.mxu0 %v9689
        %9768 = vmatprep.subr.bf16.mxu0 %v9687
        %9769 = vmatpush1.bf16.msra.mxu0 %v9686
        %9770 = vmatprep.subr.bf16.mxu0 %v9684
        %9771 = vmatpush1.bf16.msra.mxu0 %v9683
        %9772 = vmatprep.subr.bf16.mxu0 0
        %9773 = vmatpush2.bf16.msra.mxu0 0
        %9774 = vmatprep.subr.bf16.mxu0 0
        %9775 = vmatpush2.bf16.msra.mxu0 0
        %9776 = vmatprep.subr.bf16.mxu0 0
        %9777 = vmatpush2.bf16.msra.mxu0 0
        %9778 = vmatprep.subr.bf16.mxu0 0
        %9779 = vmatpush2.bf16.msra.mxu0 0
        %9780 = vmatprep.subr.bf16.mxu0 0
        %9781 = vmatpush2.bf16.msra.mxu0 0
        %9782 = vmatprep.subr.bf16.mxu0 0
        %9783 = vmatpush2.bf16.msra.mxu0 0
        %9784 = vmatprep.subr.bf16.mxu0 0
        %9785 = vmatpush2.bf16.msra.mxu0 0
        %9786 = vmatprep.subr.bf16.mxu0 0
        %9787 = vmatpush2.bf16.msra.mxu0 0
        %9788 = vmatprep.mubr.bf16.mxu0 0
        %9789 = vmatmul.mubr.bf16.gmra.mxu0 %v9709
        %v9790 = vpop.f32.mrf.mxu0
        %v9791 = vadd.f32 0.0, %v9790
        %v9792 = vpop.f32.mrf.mxu0
        %v9793 = vadd.f32 0.0, %v9792
        %v9794 = vpop.f32.mrf.mxu0
        %v9795 = vadd.f32 0.0, %v9794
        %v9796 = vpop.f32.mrf.mxu0
        %v9797 = vadd.f32 0.0, %v9796
        %9798 = vmatprep.mubr.bf16.mxu0 0
        %9799 = vmatmul.mubr.bf16.gmra.mxu0 %v9712
        %v9800 = vpop.f32.mrf.mxu0
        %v9801 = vadd.f32 0.0, %v9800
        %v9802 = vpop.f32.mrf.mxu0
        %v9803 = vadd.f32 0.0, %v9802
        %v9804 = vpop.f32.mrf.mxu0
        %v9805 = vadd.f32 0.0, %v9804
        %v9806 = vpop.f32.mrf.mxu0
        %v9807 = vadd.f32 0.0, %v9806
        %9808 = vmatprep.mubr.bf16.mxu0 0
        %9809 = vmatmul.mubr.bf16.gmra.mxu0 %v9715
        %v9810 = vpop.f32.mrf.mxu0
        %v9811 = vadd.f32 0.0, %v9810
        %v9812 = vpop.f32.mrf.mxu0
        %v9813 = vadd.f32 0.0, %v9812
        %v9814 = vpop.f32.mrf.mxu0
        %v9815 = vadd.f32 0.0, %v9814
        %v9816 = vpop.f32.mrf.mxu0
        %v9817 = vadd.f32 0.0, %v9816
        %9818 = vmatprep.mubr.bf16.mxu0 0
        %9819 = vmatmul.mubr.bf16.gmra.mxu0 %v9718
        %v9820 = vpop.f32.mrf.mxu0
        %v9821 = vadd.f32 0.0, %v9820
        %v9822 = vpop.f32.mrf.mxu0
        %v9823 = vadd.f32 0.0, %v9822
        %v9824 = vpop.f32.mrf.mxu0
        %v9825 = vadd.f32 0.0, %v9824
        %v9826 = vpop.f32.mrf.mxu0
        %v9827 = vadd.f32 0.0, %v9826
        %9828 = vmatprep.mubr.bf16.mxu0 0
        %9829 = vmatmul.mubr.bf16.gmra.mxu0 %v9721
        %v9830 = vpop.f32.mrf.mxu0
        %v9831 = vadd.f32 0.0, %v9830
        %v9832 = vpop.f32.mrf.mxu0
        %v9833 = vadd.f32 0.0, %v9832
        %v9834 = vpop.f32.mrf.mxu0
        %v9835 = vadd.f32 0.0, %v9834
        %v9836 = vpop.f32.mrf.mxu0
        %v9837 = vadd.f32 0.0, %v9836
        %9838 = vmatprep.mubr.bf16.mxu0 0
        %9839 = vmatmul.mubr.bf16.gmra.mxu0 %v9724
        %v9840 = vpop.f32.mrf.mxu0
        %v9841 = vadd.f32 0.0, %v9840
        %v9842 = vpop.f32.mrf.mxu0
        %v9843 = vadd.f32 0.0, %v9842
        %v9844 = vpop.f32.mrf.mxu0
        %v9845 = vadd.f32 0.0, %v9844
        %v9846 = vpop.f32.mrf.mxu0
        %v9847 = vadd.f32 0.0, %v9846
        %9848 = vmatprep.mubr.bf16.mxu0 0
        %9849 = vmatmul.mubr.bf16.gmra.mxu0 %v9727
        %v9850 = vpop.f32.mrf.mxu0
        %v9851 = vadd.f32 0.0, %v9850
        %v9852 = vpop.f32.mrf.mxu0
        %v9853 = vadd.f32 0.0, %v9852
        %v9854 = vpop.f32.mrf.mxu0
        %v9855 = vadd.f32 0.0, %v9854
        %v9856 = vpop.f32.mrf.mxu0
        %v9857 = vadd.f32 0.0, %v9856
        %9858 = vmatprep.mubr.bf16.mxu0 0
        %9859 = vmatmul.mubr.bf16.gmra.mxu0 %v9730
        %v9860 = vpop.f32.mrf.mxu0
        %v9861 = vadd.f32 0.0, %v9860
        %v9862 = vpop.f32.mrf.mxu0
        %v9863 = vadd.f32 0.0, %v9862
        %v9864 = vpop.f32.mrf.mxu0
        %v9865 = vadd.f32 0.0, %v9864
        %v9866 = vpop.f32.mrf.mxu0
        %v9867 = vadd.f32 0.0, %v9866
        %9868 = vmatprep.mubr.bf16.mxu0 0
        %9869 = vmatmul.mubr.bf16.gmra.mxu0 %v9733
        %v9870 = vpop.f32.mrf.mxu0
        %v9871 = vadd.f32 0.0, %v9870
        %v9872 = vpop.f32.mrf.mxu0
        %v9873 = vadd.f32 0.0, %v9872
        %v9874 = vpop.f32.mrf.mxu0
        %v9875 = vadd.f32 0.0, %v9874
        %v9876 = vpop.f32.mrf.mxu0
        %v9877 = vadd.f32 0.0, %v9876
        %9878 = vmatprep.mubr.bf16.mxu0 0
        %9879 = vmatmul.mubr.bf16.gmra.mxu0 %v9736
        %v9880 = vpop.f32.mrf.mxu0
        %v9881 = vadd.f32 0.0, %v9880
        %v9882 = vpop.f32.mrf.mxu0
        %v9883 = vadd.f32 0.0, %v9882
        %v9884 = vpop.f32.mrf.mxu0
        %v9885 = vadd.f32 0.0, %v9884
        %v9886 = vpop.f32.mrf.mxu0
        %v9887 = vadd.f32 0.0, %v9886
        %9888 = vmatprep.mubr.bf16.mxu0 0
        %9889 = vmatmul.mubr.bf16.gmra.mxu0 %v9739
        %v9890 = vpop.f32.mrf.mxu0
        %v9891 = vadd.f32 0.0, %v9890
        %v9892 = vpop.f32.mrf.mxu0
        %v9893 = vadd.f32 0.0, %v9892
        %v9894 = vpop.f32.mrf.mxu0
        %v9895 = vadd.f32 0.0, %v9894
        %v9896 = vpop.f32.mrf.mxu0
        %v9897 = vadd.f32 0.0, %v9896
        %9898 = vmatprep.mubr.bf16.mxu0 0
        %9899 = vmatmul.mubr.bf16.gmra.mxu0 %v9742
        %v9900 = vpop.f32.mrf.mxu0
        %v9901 = vadd.f32 0.0, %v9900
        %v9902 = vpop.f32.mrf.mxu0
        %v9903 = vadd.f32 0.0, %v9902
        %v9904 = vpop.f32.mrf.mxu0
        %v9905 = vadd.f32 0.0, %v9904
        %v9906 = vpop.f32.mrf.mxu0
        %v9907 = vadd.f32 0.0, %v9906
        %9908 = vmatprep.mubr.bf16.mxu0 0
        %9909 = vmatmul.mubr.bf16.gmra.mxu0 %v9745
        %v9910 = vpop.f32.mrf.mxu0
        %v9911 = vadd.f32 0.0, %v9910
        %v9912 = vpop.f32.mrf.mxu0
        %v9913 = vadd.f32 0.0, %v9912
        %v9914 = vpop.f32.mrf.mxu0
        %v9915 = vadd.f32 0.0, %v9914
        %v9916 = vpop.f32.mrf.mxu0
        %v9917 = vadd.f32 0.0, %v9916
        %9918 = vmatprep.mubr.bf16.mxu0 0
        %9919 = vmatmul.mubr.bf16.gmra.mxu0 %v9748
        %v9920 = vpop.f32.mrf.mxu0
        %v9921 = vadd.f32 0.0, %v9920
        %v9922 = vpop.f32.mrf.mxu0
        %v9923 = vadd.f32 0.0, %v9922
        %v9924 = vpop.f32.mrf.mxu0
        %v9925 = vadd.f32 0.0, %v9924
        %v9926 = vpop.f32.mrf.mxu0
        %v9927 = vadd.f32 0.0, %v9926
        %9928 = vmatprep.mubr.bf16.mxu0 0
        %9929 = vmatmul.mubr.bf16.gmra.mxu0 %v9751
        %v9930 = vpop.f32.mrf.mxu0
        %v9931 = vadd.f32 0.0, %v9930
        %v9932 = vpop.f32.mrf.mxu0
        %v9933 = vadd.f32 0.0, %v9932
        %v9934 = vpop.f32.mrf.mxu0
        %v9935 = vadd.f32 0.0, %v9934
        %v9936 = vpop.f32.mrf.mxu0
        %v9937 = vadd.f32 0.0, %v9936
        %9938 = vmatprep.mubr.bf16.mxu0 0
        %9939 = vmatmul.mubr.bf16.gmra.mxu0 %v9754
        %v9940 = vpop.f32.mrf.mxu0
        %v9941 = vadd.f32 0.0, %v9940
        %v9942 = vpop.f32.mrf.mxu0
        %v9943 = vadd.f32 0.0, %v9942
        %v9944 = vpop.f32.mrf.mxu0
        %v9945 = vadd.f32 0.0, %v9944
        %v9946 = vpop.f32.mrf.mxu0
        %v9947 = vadd.f32 0.0, %v9946
        %9948 = vdwg.mxu0
        %9949 = vmatprep.subr.bf16.mxu0 0
        %9950 = vmatpush1.bf16.msra.mxu0 0
        %9951 = vmatprep.subr.bf16.mxu0 0
        %9952 = vmatpush1.bf16.msra.mxu0 0
        %9953 = vmatprep.subr.bf16.mxu0 0
        %9954 = vmatpush1.bf16.msra.mxu0 0
        %9955 = vmatprep.subr.bf16.mxu0 0
        %9956 = vmatpush1.bf16.msra.mxu0 0
        %9957 = vmatprep.subr.bf16.mxu0 0
        %9958 = vmatpush1.bf16.msra.mxu0 %v9694
        %9959 = vmatprep.subr.bf16.mxu0 0
        %9960 = vmatpush1.bf16.msra.mxu0 %v9691
        %9961 = vmatprep.subr.bf16.mxu0 0
        %9962 = vmatpush1.bf16.msra.mxu0 %v9688
        %9963 = vmatprep.subr.bf16.mxu0 0
        %9964 = vmatpush1.bf16.msra.mxu0 %v9685
        %9965 = vmatprep.subr.bf16.mxu0 0
        %9966 = vmatpush2.bf16.msra.mxu0 0
        %9967 = vmatprep.subr.bf16.mxu0 0
        %9968 = vmatpush2.bf16.msra.mxu0 0
        %9969 = vmatprep.subr.bf16.mxu0 0
        %9970 = vmatpush2.bf16.msra.mxu0 0
        %9971 = vmatprep.subr.bf16.mxu0 0
        %9972 = vmatpush2.bf16.msra.mxu0 0
        %9973 = vmatprep.subr.bf16.mxu0 0
        %9974 = vmatpush2.bf16.msra.mxu0 0
        %9975 = vmatprep.subr.bf16.mxu0 0
        %9976 = vmatpush2.bf16.msra.mxu0 0
        %9977 = vmatprep.subr.bf16.mxu0 0
        %9978 = vmatpush2.bf16.msra.mxu0 0
        %9979 = vmatprep.subr.bf16.mxu0 0
        %9980 = vmatpush2.bf16.msra.mxu0 0
        %9981 = vmatprep.mubr.bf16.mxu0 0
        %9982 = vmatmul.mubr.bf16.gmra.mxu0 %v9709
        %v9983 = vpop.f32.mrf.mxu0
        %v9984 = vadd.f32 0.0, %v9983
        %v9985 = vpop.f32.mrf.mxu0
        %v9986 = vpop.f32.mrf.mxu0
        %v9987 = vadd.f32 0.0, %v9986
        %v9988 = vpop.f32.mrf.mxu0
        %9989 = vmatprep.mubr.bf16.mxu0 0
        %9990 = vmatmul.mubr.bf16.gmra.mxu0 %v9712
        %v9991 = vpop.f32.mrf.mxu0
        %v9992 = vadd.f32 0.0, %v9991
        %v9993 = vpop.f32.mrf.mxu0
        %v9994 = vpop.f32.mrf.mxu0
        %v9995 = vadd.f32 0.0, %v9994
        %v9996 = vpop.f32.mrf.mxu0
        %9997 = vmatprep.mubr.bf16.mxu0 0
        %9998 = vmatmul.mubr.bf16.gmra.mxu0 %v9715
        %v9999 = vpop.f32.mrf.mxu0
        %v10000 = vadd.f32 0.0, %v9999
        %v10001 = vpop.f32.mrf.mxu0
        %v10002 = vpop.f32.mrf.mxu0
        %v10003 = vadd.f32 0.0, %v10002
        %v10004 = vpop.f32.mrf.mxu0
        %10005 = vmatprep.mubr.bf16.mxu0 0
        %10006 = vmatmul.mubr.bf16.gmra.mxu0 %v9718
        %v10007 = vpop.f32.mrf.mxu0
        %v10008 = vadd.f32 0.0, %v10007
        %v10009 = vpop.f32.mrf.mxu0
        %v10010 = vpop.f32.mrf.mxu0
        %v10011 = vadd.f32 0.0, %v10010
        %v10012 = vpop.f32.mrf.mxu0
        %10013 = vmatprep.mubr.bf16.mxu0 0
        %10014 = vmatmul.mubr.bf16.gmra.mxu0 %v9721
        %v10015 = vpop.f32.mrf.mxu0
        %v10016 = vadd.f32 0.0, %v10015
        %v10017 = vpop.f32.mrf.mxu0
        %v10018 = vpop.f32.mrf.mxu0
        %v10019 = vadd.f32 0.0, %v10018
        %v10020 = vpop.f32.mrf.mxu0
        %10021 = vmatprep.mubr.bf16.mxu0 0
        %10022 = vmatmul.mubr.bf16.gmra.mxu0 %v9724
        %v10023 = vpop.f32.mrf.mxu0
        %v10024 = vadd.f32 0.0, %v10023
        %v10025 = vpop.f32.mrf.mxu0
        %v10026 = vpop.f32.mrf.mxu0
        %v10027 = vadd.f32 0.0, %v10026
        %v10028 = vpop.f32.mrf.mxu0
        %10029 = vmatprep.mubr.bf16.mxu0 0
        %10030 = vmatmul.mubr.bf16.gmra.mxu0 %v9727
        %v10031 = vpop.f32.mrf.mxu0
        %v10032 = vadd.f32 0.0, %v10031
        %v10033 = vpop.f32.mrf.mxu0
        %v10034 = vpop.f32.mrf.mxu0
        %v10035 = vadd.f32 0.0, %v10034
        %v10036 = vpop.f32.mrf.mxu0
        %10037 = vmatprep.mubr.bf16.mxu0 0
        %10038 = vmatmul.mubr.bf16.gmra.mxu0 %v9730
        %v10039 = vpop.f32.mrf.mxu0
        %v10040 = vadd.f32 0.0, %v10039
        %v10041 = vpop.f32.mrf.mxu0
        %v10042 = vpop.f32.mrf.mxu0
        %v10043 = vadd.f32 0.0, %v10042
        %v10044 = vpop.f32.mrf.mxu0
        %10045 = vmatprep.mubr.bf16.mxu0 0
        %10046 = vmatmul.mubr.bf16.gmra.mxu0 %v9733
        %v10047 = vpop.f32.mrf.mxu0
        %v10048 = vadd.f32 0.0, %v10047
        %v10049 = vpop.f32.mrf.mxu0
        %v10050 = vpop.f32.mrf.mxu0
        %v10051 = vadd.f32 0.0, %v10050
        %v10052 = vpop.f32.mrf.mxu0
        %10053 = vmatprep.mubr.bf16.mxu0 0
        %10054 = vmatmul.mubr.bf16.gmra.mxu0 %v9736
        %v10055 = vpop.f32.mrf.mxu0
        %v10056 = vadd.f32 0.0, %v10055
        %v10057 = vpop.f32.mrf.mxu0
        %v10058 = vpop.f32.mrf.mxu0
        %v10059 = vadd.f32 0.0, %v10058
        %v10060 = vpop.f32.mrf.mxu0
        %10061 = vmatprep.mubr.bf16.mxu0 0
        %10062 = vmatmul.mubr.bf16.gmra.mxu0 %v9739
        %v10063 = vpop.f32.mrf.mxu0
        %v10064 = vadd.f32 0.0, %v10063
        %v10065 = vpop.f32.mrf.mxu0
        %v10066 = vpop.f32.mrf.mxu0
        %v10067 = vadd.f32 0.0, %v10066
        %v10068 = vpop.f32.mrf.mxu0
        %10069 = vmatprep.mubr.bf16.mxu0 0
        %10070 = vmatmul.mubr.bf16.gmra.mxu0 %v9742
        %v10071 = vpop.f32.mrf.mxu0
        %v10072 = vadd.f32 0.0, %v10071
        %v10073 = vpop.f32.mrf.mxu0
        %v10074 = vpop.f32.mrf.mxu0
        %v10075 = vadd.f32 0.0, %v10074
        %v10076 = vpop.f32.mrf.mxu0
        %10077 = vmatprep.mubr.bf16.mxu0 0
        %10078 = vmatmul.mubr.bf16.gmra.mxu0 %v9745
        %v10079 = vpop.f32.mrf.mxu0
        %v10080 = vadd.f32 0.0, %v10079
        %v10081 = vpop.f32.mrf.mxu0
        %v10082 = vpop.f32.mrf.mxu0
        %v10083 = vadd.f32 0.0, %v10082
        %v10084 = vpop.f32.mrf.mxu0
        %10085 = vmatprep.mubr.bf16.mxu0 0
        %10086 = vmatmul.mubr.bf16.gmra.mxu0 %v9748
        %v10087 = vpop.f32.mrf.mxu0
        %v10088 = vadd.f32 0.0, %v10087
        %v10089 = vpop.f32.mrf.mxu0
        %v10090 = vpop.f32.mrf.mxu0
        %v10091 = vadd.f32 0.0, %v10090
        %v10092 = vpop.f32.mrf.mxu0
        %10093 = vmatprep.mubr.bf16.mxu0 0
        %10094 = vmatmul.mubr.bf16.gmra.mxu0 %v9751
        %v10095 = vpop.f32.mrf.mxu0
        %v10096 = vadd.f32 0.0, %v10095
        %v10097 = vpop.f32.mrf.mxu0
        %v10098 = vpop.f32.mrf.mxu0
        %v10099 = vadd.f32 0.0, %v10098
        %v10100 = vpop.f32.mrf.mxu0
        %10101 = vmatprep.mubr.bf16.mxu0 0
        %10102 = vmatmul.mubr.bf16.gmra.mxu0 %v9754
        %v10103 = vpop.f32.mrf.mxu0
        %v10104 = vadd.f32 0.0, %v10103
        %v10105 = vpop.f32.mrf.mxu0
        %v10106 = vpop.f32.mrf.mxu0
        %v10107 = vadd.f32 0.0, %v10106
        %v10108 = vpop.f32.mrf.mxu0
        %10109 = vdwg.mxu0
        %v10110 = vadd.f32 %v9292, %v9791
        %v10111 = vadd.f32 %v9294, %v9793
        %v10112 = vadd.f32 %v9485, %v9984
        %v10113 = vadd.f32 %v9296, %v9795
        %v10114 = vadd.f32 %v9298, %v9797
        %v10115 = vadd.f32 %v9488, %v9987
        %v10116 = vadd.f32 %v9302, %v9801
        %v10117 = vadd.f32 %v9304, %v9803
        %v10118 = vadd.f32 %v9493, %v9992
        %v10119 = vadd.f32 %v9306, %v9805
        %v10120 = vadd.f32 %v9308, %v9807
        %v10121 = vadd.f32 %v9496, %v9995
        %v10122 = vadd.f32 %v9312, %v9811
        %v10123 = vadd.f32 %v9314, %v9813
        %v10124 = vadd.f32 %v9501, %v10000
        %v10125 = vadd.f32 %v9316, %v9815
        %v10126 = vadd.f32 %v9318, %v9817
        %v10127 = vadd.f32 %v9504, %v10003
        %v10128 = vadd.f32 %v9322, %v9821
        %v10129 = vadd.f32 %v9324, %v9823
        %v10130 = vadd.f32 %v9509, %v10008
        %v10131 = vadd.f32 %v9326, %v9825
        %v10132 = vadd.f32 %v9328, %v9827
        %v10133 = vadd.f32 %v9512, %v10011
        %v10134 = vadd.f32 %v9332, %v9831
        %v10135 = vadd.f32 %v9334, %v9833
        %v10136 = vadd.f32 %v9517, %v10016
        %v10137 = vadd.f32 %v9336, %v9835
        %v10138 = vadd.f32 %v9338, %v9837
        %v10139 = vadd.f32 %v9520, %v10019
        %v10140 = vadd.f32 %v9342, %v9841
        %v10141 = vadd.f32 %v9344, %v9843
        %v10142 = vadd.f32 %v9525, %v10024
        %v10143 = vadd.f32 %v9346, %v9845
        %v10144 = vadd.f32 %v9348, %v9847
        %v10145 = vadd.f32 %v9528, %v10027
        %v10146 = vadd.f32 %v9352, %v9851
        %v10147 = vadd.f32 %v9354, %v9853
        %v10148 = vadd.f32 %v9533, %v10032
        %v10149 = vadd.f32 %v9356, %v9855
        %v10150 = vadd.f32 %v9358, %v9857
        %v10151 = vadd.f32 %v9536, %v10035
        %v10152 = vadd.f32 %v9362, %v9861
        %v10153 = vadd.f32 %v9364, %v9863
        %v10154 = vadd.f32 %v9541, %v10040
        %v10155 = vadd.f32 %v9366, %v9865
        %v10156 = vadd.f32 %v9368, %v9867
        %v10157 = vadd.f32 %v9544, %v10043
        %v10158 = vadd.f32 %v9372, %v9871
        %v10159 = vadd.f32 %v9374, %v9873
        %v10160 = vadd.f32 %v9549, %v10048
        %v10161 = vadd.f32 %v9376, %v9875
        %v10162 = vadd.f32 %v9378, %v9877
        %v10163 = vadd.f32 %v9552, %v10051
        %v10164 = vadd.f32 %v9382, %v9881
        %v10165 = vadd.f32 %v9384, %v9883
        %v10166 = vadd.f32 %v9557, %v10056
        %v10167 = vadd.f32 %v9386, %v9885
        %v10168 = vadd.f32 %v9388, %v9887
        %v10169 = vadd.f32 %v9560, %v10059
        %v10170 = vadd.f32 %v9392, %v9891
        %v10171 = vadd.f32 %v9394, %v9893
        %v10172 = vadd.f32 %v9565, %v10064
        %v10173 = vadd.f32 %v9396, %v9895
        %v10174 = vadd.f32 %v9398, %v9897
        %v10175 = vadd.f32 %v9568, %v10067
        %v10176 = vadd.f32 %v9402, %v9901
        %v10177 = vadd.f32 %v9404, %v9903
        %v10178 = vadd.f32 %v9573, %v10072
        %v10179 = vadd.f32 %v9406, %v9905
        %v10180 = vadd.f32 %v9408, %v9907
        %v10181 = vadd.f32 %v9576, %v10075
        %v10182 = vadd.f32 %v9412, %v9911
        %v10183 = vadd.f32 %v9414, %v9913
        %v10184 = vadd.f32 %v9581, %v10080
        %v10185 = vadd.f32 %v9416, %v9915
        %v10186 = vadd.f32 %v9418, %v9917
        %v10187 = vadd.f32 %v9584, %v10083
        %v10188 = vadd.f32 %v9422, %v9921
        %v10189 = vadd.f32 %v9424, %v9923
        %v10190 = vadd.f32 %v9589, %v10088
        %v10191 = vadd.f32 %v9426, %v9925
        %v10192 = vadd.f32 %v9428, %v9927
        %v10193 = vadd.f32 %v9592, %v10091
        %v10194 = vadd.f32 %v9432, %v9931
        %v10195 = vadd.f32 %v9434, %v9933
        %v10196 = vadd.f32 %v9597, %v10096
        %v10197 = vadd.f32 %v9436, %v9935
        %v10198 = vadd.f32 %v9438, %v9937
        %v10199 = vadd.f32 %v9600, %v10099
        %v10200 = vadd.f32 %v9442, %v9941
        %v10201 = vadd.f32 %v9444, %v9943
        %v10202 = vadd.f32 %v9605, %v10104
        %v10203 = vadd.f32 %v9446, %v9945
        %v10204 = vadd.f32 %v9448, %v9947
        %v10205 = vadd.f32 %v9608, %v10107
        %v10206 = vld [vmem:[%s14] sm:$0x3f]
        %v10208 = vcombine.high %v10206, %v10206
        %v10210 = vunpack.c.l.s4 1983009808
        %v10211 = vunpack.c.0.s8 %v10210
        %v10212 = vlaneseq
        %v10213 = vshrl.u32 %v10212, 7
        %v10214 = vsub.s32 %v10211, %v10213
        %v10215 = vrot.slane %v10206, %v10214
        %v10217 = vunpack.c.l.s4 1983009808
        %v10218 = vunpack.c.0.s8 %v10217
        %v10219 = vlaneseq
        %v10220 = vshrl.u32 %v10219, 7
        %v10221 = vsub.s32 %v10218, %v10220
        %v10222 = vrot.slane %v10208, %v10221
        %v10223 = vcombine.high %v10215, %v10215
        %v10225 = vsel %vm710, %v10215, 0
        %v10228 = vsel %vm710, %v10223, 0
        %v10231 = vsel %vm710, %v10222, 0
        %10233 = vmatprep.subr.bf16.mxu0 0
        %10234 = vmatpush1.bf16.msra.mxu0 0
        %10235 = vmatprep.subr.bf16.mxu0 0
        %10236 = vmatpush1.bf16.msra.mxu0 0
        %10237 = vmatprep.subr.bf16.mxu0 0
        %10238 = vmatpush1.bf16.msra.mxu0 0
        %10239 = vmatprep.subr.bf16.mxu0 0
        %10240 = vmatpush1.bf16.msra.mxu0 0
        %10241 = vmatprep.subr.bf16.mxu0 0
        %10242 = vmatpush1.bf16.msra.mxu0 0
        %10243 = vmatprep.subr.bf16.mxu0 0
        %10244 = vmatpush1.bf16.msra.mxu0 0
        %10245 = vmatprep.subr.bf16.mxu0 0
        %10246 = vmatpush1.bf16.msra.mxu0 0
        %10247 = vmatprep.subr.bf16.mxu0 %v10228
        %10248 = vmatpush1.bf16.msra.mxu0 %v10225
        %10249 = vmatprep.subr.bf16.mxu0 0
        %10250 = vmatpush2.bf16.msra.mxu0 0
        %10251 = vmatprep.subr.bf16.mxu0 0
        %10252 = vmatpush2.bf16.msra.mxu0 0
        %10253 = vmatprep.subr.bf16.mxu0 0
        %10254 = vmatpush2.bf16.msra.mxu0 0
        %10255 = vmatprep.subr.bf16.mxu0 0
        %10256 = vmatpush2.bf16.msra.mxu0 0
        %10257 = vmatprep.subr.bf16.mxu0 0
        %10258 = vmatpush2.bf16.msra.mxu0 0
        %10259 = vmatprep.subr.bf16.mxu0 0
        %10260 = vmatpush2.bf16.msra.mxu0 0
        %10261 = vmatprep.subr.bf16.mxu0 0
        %10262 = vmatpush2.bf16.msra.mxu0 0
        %10263 = vmatprep.subr.bf16.mxu0 0
        %10264 = vmatpush2.bf16.msra.mxu0 0
        %10265 = vmatprep.mubr.bf16.mxu0 0
        %10266 = vmatmul.mubr.bf16.gmra.mxu0 %v663
        %v10267 = vpop.f32.mrf.mxu0
        %v10268 = vadd.f32 0.0, %v10267
        %v10269 = vpop.f32.mrf.mxu0
        %v10270 = vadd.f32 0.0, %v10269
        %v10271 = vpop.f32.mrf.mxu0
        %v10272 = vadd.f32 0.0, %v10271
        %v10273 = vpop.f32.mrf.mxu0
        %v10274 = vadd.f32 0.0, %v10273
        %10275 = vmatprep.mubr.bf16.mxu0 0
        %10276 = vmatmul.mubr.bf16.gmra.mxu0 %v666
        %v10277 = vpop.f32.mrf.mxu0
        %v10278 = vadd.f32 0.0, %v10277
        %v10279 = vpop.f32.mrf.mxu0
        %v10280 = vadd.f32 0.0, %v10279
        %v10281 = vpop.f32.mrf.mxu0
        %v10282 = vadd.f32 0.0, %v10281
        %v10283 = vpop.f32.mrf.mxu0
        %v10284 = vadd.f32 0.0, %v10283
        %10285 = vmatprep.mubr.bf16.mxu0 0
        %10286 = vmatmul.mubr.bf16.gmra.mxu0 %v669
        %v10287 = vpop.f32.mrf.mxu0
        %v10288 = vadd.f32 0.0, %v10287
        %v10289 = vpop.f32.mrf.mxu0
        %v10290 = vadd.f32 0.0, %v10289
        %v10291 = vpop.f32.mrf.mxu0
        %v10292 = vadd.f32 0.0, %v10291
        %v10293 = vpop.f32.mrf.mxu0
        %v10294 = vadd.f32 0.0, %v10293
        %10295 = vmatprep.mubr.bf16.mxu0 0
        %10296 = vmatmul.mubr.bf16.gmra.mxu0 %v672
        %v10297 = vpop.f32.mrf.mxu0
        %v10298 = vadd.f32 0.0, %v10297
        %v10299 = vpop.f32.mrf.mxu0
        %v10300 = vadd.f32 0.0, %v10299
        %v10301 = vpop.f32.mrf.mxu0
        %v10302 = vadd.f32 0.0, %v10301
        %v10303 = vpop.f32.mrf.mxu0
        %v10304 = vadd.f32 0.0, %v10303
        %10305 = vmatprep.mubr.bf16.mxu0 0
        %10306 = vmatmul.mubr.bf16.gmra.mxu0 %v675
        %v10307 = vpop.f32.mrf.mxu0
        %v10308 = vadd.f32 0.0, %v10307
        %v10309 = vpop.f32.mrf.mxu0
        %v10310 = vadd.f32 0.0, %v10309
        %v10311 = vpop.f32.mrf.mxu0
        %v10312 = vadd.f32 0.0, %v10311
        %v10313 = vpop.f32.mrf.mxu0
        %v10314 = vadd.f32 0.0, %v10313
        %10315 = vmatprep.mubr.bf16.mxu0 0
        %10316 = vmatmul.mubr.bf16.gmra.mxu0 %v678
        %v10317 = vpop.f32.mrf.mxu0
        %v10318 = vadd.f32 0.0, %v10317
        %v10319 = vpop.f32.mrf.mxu0
        %v10320 = vadd.f32 0.0, %v10319
        %v10321 = vpop.f32.mrf.mxu0
        %v10322 = vadd.f32 0.0, %v10321
        %v10323 = vpop.f32.mrf.mxu0
        %v10324 = vadd.f32 0.0, %v10323
        %10325 = vmatprep.mubr.bf16.mxu0 0
        %10326 = vmatmul.mubr.bf16.gmra.mxu0 %v681
        %v10327 = vpop.f32.mrf.mxu0
        %v10328 = vadd.f32 0.0, %v10327
        %v10329 = vpop.f32.mrf.mxu0
        %v10330 = vadd.f32 0.0, %v10329
        %v10331 = vpop.f32.mrf.mxu0
        %v10332 = vadd.f32 0.0, %v10331
        %v10333 = vpop.f32.mrf.mxu0
        %v10334 = vadd.f32 0.0, %v10333
        %10335 = vmatprep.mubr.bf16.mxu0 0
        %10336 = vmatmul.mubr.bf16.gmra.mxu0 %v684
        %v10337 = vpop.f32.mrf.mxu0
        %v10338 = vadd.f32 0.0, %v10337
        %v10339 = vpop.f32.mrf.mxu0
        %v10340 = vadd.f32 0.0, %v10339
        %v10341 = vpop.f32.mrf.mxu0
        %v10342 = vadd.f32 0.0, %v10341
        %v10343 = vpop.f32.mrf.mxu0
        %v10344 = vadd.f32 0.0, %v10343
        %10345 = vmatprep.mubr.bf16.mxu0 0
        %10346 = vmatmul.mubr.bf16.gmra.mxu0 %v687
        %v10347 = vpop.f32.mrf.mxu0
        %v10348 = vadd.f32 0.0, %v10347
        %v10349 = vpop.f32.mrf.mxu0
        %v10350 = vadd.f32 0.0, %v10349
        %v10351 = vpop.f32.mrf.mxu0
        %v10352 = vadd.f32 0.0, %v10351
        %v10353 = vpop.f32.mrf.mxu0
        %v10354 = vadd.f32 0.0, %v10353
        %10355 = vmatprep.mubr.bf16.mxu0 0
        %10356 = vmatmul.mubr.bf16.gmra.mxu0 %v690
        %v10357 = vpop.f32.mrf.mxu0
        %v10358 = vadd.f32 0.0, %v10357
        %v10359 = vpop.f32.mrf.mxu0
        %v10360 = vadd.f32 0.0, %v10359
        %v10361 = vpop.f32.mrf.mxu0
        %v10362 = vadd.f32 0.0, %v10361
        %v10363 = vpop.f32.mrf.mxu0
        %v10364 = vadd.f32 0.0, %v10363
        %10365 = vmatprep.mubr.bf16.mxu0 0
        %10366 = vmatmul.mubr.bf16.gmra.mxu0 %v693
        %v10367 = vpop.f32.mrf.mxu0
        %v10368 = vadd.f32 0.0, %v10367
        %v10369 = vpop.f32.mrf.mxu0
        %v10370 = vadd.f32 0.0, %v10369
        %v10371 = vpop.f32.mrf.mxu0
        %v10372 = vadd.f32 0.0, %v10371
        %v10373 = vpop.f32.mrf.mxu0
        %v10374 = vadd.f32 0.0, %v10373
        %10375 = vmatprep.mubr.bf16.mxu0 0
        %10376 = vmatmul.mubr.bf16.gmra.mxu0 %v696
        %v10377 = vpop.f32.mrf.mxu0
        %v10378 = vadd.f32 0.0, %v10377
        %v10379 = vpop.f32.mrf.mxu0
        %v10380 = vadd.f32 0.0, %v10379
        %v10381 = vpop.f32.mrf.mxu0
        %v10382 = vadd.f32 0.0, %v10381
        %v10383 = vpop.f32.mrf.mxu0
        %v10384 = vadd.f32 0.0, %v10383
        %10385 = vmatprep.mubr.bf16.mxu0 0
        %10386 = vmatmul.mubr.bf16.gmra.mxu0 %v699
        %v10387 = vpop.f32.mrf.mxu0
        %v10388 = vadd.f32 0.0, %v10387
        %v10389 = vpop.f32.mrf.mxu0
        %v10390 = vadd.f32 0.0, %v10389
        %v10391 = vpop.f32.mrf.mxu0
        %v10392 = vadd.f32 0.0, %v10391
        %v10393 = vpop.f32.mrf.mxu0
        %v10394 = vadd.f32 0.0, %v10393
        %10395 = vmatprep.mubr.bf16.mxu0 0
        %10396 = vmatmul.mubr.bf16.gmra.mxu0 %v702
        %v10397 = vpop.f32.mrf.mxu0
        %v10398 = vadd.f32 0.0, %v10397
        %v10399 = vpop.f32.mrf.mxu0
        %v10400 = vadd.f32 0.0, %v10399
        %v10401 = vpop.f32.mrf.mxu0
        %v10402 = vadd.f32 0.0, %v10401
        %v10403 = vpop.f32.mrf.mxu0
        %v10404 = vadd.f32 0.0, %v10403
        %10405 = vmatprep.mubr.bf16.mxu0 0
        %10406 = vmatmul.mubr.bf16.gmra.mxu0 %v705
        %v10407 = vpop.f32.mrf.mxu0
        %v10408 = vadd.f32 0.0, %v10407
        %v10409 = vpop.f32.mrf.mxu0
        %v10410 = vadd.f32 0.0, %v10409
        %v10411 = vpop.f32.mrf.mxu0
        %v10412 = vadd.f32 0.0, %v10411
        %v10413 = vpop.f32.mrf.mxu0
        %v10414 = vadd.f32 0.0, %v10413
        %10415 = vmatprep.mubr.bf16.mxu0 0
        %10416 = vmatmul.mubr.bf16.gmra.mxu0 %v708
        %v10417 = vpop.f32.mrf.mxu0
        %v10418 = vadd.f32 0.0, %v10417
        %v10419 = vpop.f32.mrf.mxu0
        %v10420 = vadd.f32 0.0, %v10419
        %v10421 = vpop.f32.mrf.mxu0
        %v10422 = vadd.f32 0.0, %v10421
        %v10423 = vpop.f32.mrf.mxu0
        %v10424 = vadd.f32 0.0, %v10423
        %10425 = vdwg.mxu0
        %10426 = vmatprep.subr.bf16.mxu0 0
        %10427 = vmatpush1.bf16.msra.mxu0 0
        %10428 = vmatprep.subr.bf16.mxu0 0
        %10429 = vmatpush1.bf16.msra.mxu0 0
        %10430 = vmatprep.subr.bf16.mxu0 0
        %10431 = vmatpush1.bf16.msra.mxu0 0
        %10432 = vmatprep.subr.bf16.mxu0 0
        %10433 = vmatpush1.bf16.msra.mxu0 0
        %10434 = vmatprep.subr.bf16.mxu0 0
        %10435 = vmatpush1.bf16.msra.mxu0 0
        %10436 = vmatprep.subr.bf16.mxu0 0
        %10437 = vmatpush1.bf16.msra.mxu0 0
        %10438 = vmatprep.subr.bf16.mxu0 0
        %10439 = vmatpush1.bf16.msra.mxu0 0
        %10440 = vmatprep.subr.bf16.mxu0 0
        %10441 = vmatpush1.bf16.msra.mxu0 %v10231
        %10442 = vmatprep.subr.bf16.mxu0 0
        %10443 = vmatpush2.bf16.msra.mxu0 0
        %10444 = vmatprep.subr.bf16.mxu0 0
        %10445 = vmatpush2.bf16.msra.mxu0 0
        %10446 = vmatprep.subr.bf16.mxu0 0
        %10447 = vmatpush2.bf16.msra.mxu0 0
        %10448 = vmatprep.subr.bf16.mxu0 0
        %10449 = vmatpush2.bf16.msra.mxu0 0
        %10450 = vmatprep.subr.bf16.mxu0 0
        %10451 = vmatpush2.bf16.msra.mxu0 0
        %10452 = vmatprep.subr.bf16.mxu0 0
        %10453 = vmatpush2.bf16.msra.mxu0 0
        %10454 = vmatprep.subr.bf16.mxu0 0
        %10455 = vmatpush2.bf16.msra.mxu0 0
        %10456 = vmatprep.subr.bf16.mxu0 0
        %10457 = vmatpush2.bf16.msra.mxu0 0
        %10458 = vmatprep.mubr.bf16.mxu0 0
        %10459 = vmatmul.mubr.bf16.gmra.mxu0 %v663
        %v10460 = vpop.f32.mrf.mxu0
        %v10461 = vadd.f32 0.0, %v10460
        %v10462 = vpop.f32.mrf.mxu0
        %v10463 = vpop.f32.mrf.mxu0
        %v10464 = vadd.f32 0.0, %v10463
        %v10465 = vpop.f32.mrf.mxu0
        %10466 = vmatprep.mubr.bf16.mxu0 0
        %10467 = vmatmul.mubr.bf16.gmra.mxu0 %v666
        %v10468 = vpop.f32.mrf.mxu0
        %v10469 = vadd.f32 0.0, %v10468
        %v10470 = vpop.f32.mrf.mxu0
        %v10471 = vpop.f32.mrf.mxu0
        %v10472 = vadd.f32 0.0, %v10471
        %v10473 = vpop.f32.mrf.mxu0
        %10474 = vmatprep.mubr.bf16.mxu0 0
        %10475 = vmatmul.mubr.bf16.gmra.mxu0 %v669
        %v10476 = vpop.f32.mrf.mxu0
        %v10477 = vadd.f32 0.0, %v10476
        %v10478 = vpop.f32.mrf.mxu0
        %v10479 = vpop.f32.mrf.mxu0
        %v10480 = vadd.f32 0.0, %v10479
        %v10481 = vpop.f32.mrf.mxu0
        %10482 = vmatprep.mubr.bf16.mxu0 0
        %10483 = vmatmul.mubr.bf16.gmra.mxu0 %v672
        %v10484 = vpop.f32.mrf.mxu0
        %v10485 = vadd.f32 0.0, %v10484
        %v10486 = vpop.f32.mrf.mxu0
        %v10487 = vpop.f32.mrf.mxu0
        %v10488 = vadd.f32 0.0, %v10487
        %v10489 = vpop.f32.mrf.mxu0
        %10490 = vmatprep.mubr.bf16.mxu0 0
        %10491 = vmatmul.mubr.bf16.gmra.mxu0 %v675
        %v10492 = vpop.f32.mrf.mxu0
        %v10493 = vadd.f32 0.0, %v10492
        %v10494 = vpop.f32.mrf.mxu0
        %v10495 = vpop.f32.mrf.mxu0
        %v10496 = vadd.f32 0.0, %v10495
        %v10497 = vpop.f32.mrf.mxu0
        %10498 = vmatprep.mubr.bf16.mxu0 0
        %10499 = vmatmul.mubr.bf16.gmra.mxu0 %v678
        %v10500 = vpop.f32.mrf.mxu0
        %v10501 = vadd.f32 0.0, %v10500
        %v10502 = vpop.f32.mrf.mxu0
        %v10503 = vpop.f32.mrf.mxu0
        %v10504 = vadd.f32 0.0, %v10503
        %v10505 = vpop.f32.mrf.mxu0
        %10506 = vmatprep.mubr.bf16.mxu0 0
        %10507 = vmatmul.mubr.bf16.gmra.mxu0 %v681
        %v10508 = vpop.f32.mrf.mxu0
        %v10509 = vadd.f32 0.0, %v10508
        %v10510 = vpop.f32.mrf.mxu0
        %v10511 = vpop.f32.mrf.mxu0
        %v10512 = vadd.f32 0.0, %v10511
        %v10513 = vpop.f32.mrf.mxu0
        %10514 = vmatprep.mubr.bf16.mxu0 0
        %10515 = vmatmul.mubr.bf16.gmra.mxu0 %v684
        %v10516 = vpop.f32.mrf.mxu0
        %v10517 = vadd.f32 0.0, %v10516
        %v10518 = vpop.f32.mrf.mxu0
        %v10519 = vpop.f32.mrf.mxu0
        %v10520 = vadd.f32 0.0, %v10519
        %v10521 = vpop.f32.mrf.mxu0
        %10522 = vmatprep.mubr.bf16.mxu0 0
        %10523 = vmatmul.mubr.bf16.gmra.mxu0 %v687
        %v10524 = vpop.f32.mrf.mxu0
        %v10525 = vadd.f32 0.0, %v10524
        %v10526 = vpop.f32.mrf.mxu0
        %v10527 = vpop.f32.mrf.mxu0
        %v10528 = vadd.f32 0.0, %v10527
        %v10529 = vpop.f32.mrf.mxu0
        %10530 = vmatprep.mubr.bf16.mxu0 0
        %10531 = vmatmul.mubr.bf16.gmra.mxu0 %v690
        %v10532 = vpop.f32.mrf.mxu0
        %v10533 = vadd.f32 0.0, %v10532
        %v10534 = vpop.f32.mrf.mxu0
        %v10535 = vpop.f32.mrf.mxu0
        %v10536 = vadd.f32 0.0, %v10535
        %v10537 = vpop.f32.mrf.mxu0
        %10538 = vmatprep.mubr.bf16.mxu0 0
        %10539 = vmatmul.mubr.bf16.gmra.mxu0 %v693
        %v10540 = vpop.f32.mrf.mxu0
        %v10541 = vadd.f32 0.0, %v10540
        %v10542 = vpop.f32.mrf.mxu0
        %v10543 = vpop.f32.mrf.mxu0
        %v10544 = vadd.f32 0.0, %v10543
        %v10545 = vpop.f32.mrf.mxu0
        %10546 = vmatprep.mubr.bf16.mxu0 0
        %10547 = vmatmul.mubr.bf16.gmra.mxu0 %v696
        %v10548 = vpop.f32.mrf.mxu0
        %v10549 = vadd.f32 0.0, %v10548
        %v10550 = vpop.f32.mrf.mxu0
        %v10551 = vpop.f32.mrf.mxu0
        %v10552 = vadd.f32 0.0, %v10551
        %v10553 = vpop.f32.mrf.mxu0
        %10554 = vmatprep.mubr.bf16.mxu0 0
        %10555 = vmatmul.mubr.bf16.gmra.mxu0 %v699
        %v10556 = vpop.f32.mrf.mxu0
        %v10557 = vadd.f32 0.0, %v10556
        %v10558 = vpop.f32.mrf.mxu0
        %v10559 = vpop.f32.mrf.mxu0
        %v10560 = vadd.f32 0.0, %v10559
        %v10561 = vpop.f32.mrf.mxu0
        %10562 = vmatprep.mubr.bf16.mxu0 0
        %10563 = vmatmul.mubr.bf16.gmra.mxu0 %v702
        %v10564 = vpop.f32.mrf.mxu0
        %v10565 = vadd.f32 0.0, %v10564
        %v10566 = vpop.f32.mrf.mxu0
        %v10567 = vpop.f32.mrf.mxu0
        %v10568 = vadd.f32 0.0, %v10567
        %v10569 = vpop.f32.mrf.mxu0
        %10570 = vmatprep.mubr.bf16.mxu0 0
        %10571 = vmatmul.mubr.bf16.gmra.mxu0 %v705
        %v10572 = vpop.f32.mrf.mxu0
        %v10573 = vadd.f32 0.0, %v10572
        %v10574 = vpop.f32.mrf.mxu0
        %v10575 = vpop.f32.mrf.mxu0
        %v10576 = vadd.f32 0.0, %v10575
        %v10577 = vpop.f32.mrf.mxu0
        %10578 = vmatprep.mubr.bf16.mxu0 0
        %10579 = vmatmul.mubr.bf16.gmra.mxu0 %v708
        %v10580 = vpop.f32.mrf.mxu0
        %v10581 = vadd.f32 0.0, %v10580
        %v10582 = vpop.f32.mrf.mxu0
        %v10583 = vpop.f32.mrf.mxu0
        %v10584 = vadd.f32 0.0, %v10583
        %v10585 = vpop.f32.mrf.mxu0
        %10586 = vdwg.mxu0
        %v10587 = vadd.f32 %v10110, %v10268
        %v10588 = vadd.f32 %v10111, %v10270
        %v10589 = vadd.f32 %v10112, %v10461
        %v10590 = vadd.f32 %v10113, %v10272
        %v10591 = vadd.f32 %v10114, %v10274
        %v10592 = vadd.f32 %v10115, %v10464
        %v10593 = vadd.f32 %v10116, %v10278
        %v10594 = vadd.f32 %v10117, %v10280
        %v10595 = vadd.f32 %v10118, %v10469
        %v10596 = vadd.f32 %v10119, %v10282
        %v10597 = vadd.f32 %v10120, %v10284
        %v10598 = vadd.f32 %v10121, %v10472
        %v10599 = vadd.f32 %v10122, %v10288
        %v10600 = vadd.f32 %v10123, %v10290
        %v10601 = vadd.f32 %v10124, %v10477
        %v10602 = vadd.f32 %v10125, %v10292
        %v10603 = vadd.f32 %v10126, %v10294
        %v10604 = vadd.f32 %v10127, %v10480
        %v10605 = vadd.f32 %v10128, %v10298
        %v10606 = vadd.f32 %v10129, %v10300
        %v10607 = vadd.f32 %v10130, %v10485
        %v10608 = vadd.f32 %v10131, %v10302
        %v10609 = vadd.f32 %v10132, %v10304
        %v10610 = vadd.f32 %v10133, %v10488
        %v10611 = vadd.f32 %v10134, %v10308
        %v10612 = vadd.f32 %v10135, %v10310
        %v10613 = vadd.f32 %v10136, %v10493
        %v10614 = vadd.f32 %v10137, %v10312
        %v10615 = vadd.f32 %v10138, %v10314
        %v10616 = vadd.f32 %v10139, %v10496
        %v10617 = vadd.f32 %v10140, %v10318
        %v10618 = vadd.f32 %v10141, %v10320
        %v10619 = vadd.f32 %v10142, %v10501
        %v10620 = vadd.f32 %v10143, %v10322
        %v10621 = vadd.f32 %v10144, %v10324
        %v10622 = vadd.f32 %v10145, %v10504
        %v10623 = vadd.f32 %v10146, %v10328
        %v10624 = vadd.f32 %v10147, %v10330
        %v10625 = vadd.f32 %v10148, %v10509
        %v10626 = vadd.f32 %v10149, %v10332
        %v10627 = vadd.f32 %v10150, %v10334
        %v10628 = vadd.f32 %v10151, %v10512
        %v10629 = vadd.f32 %v10152, %v10338
        %v10630 = vadd.f32 %v10153, %v10340
        %v10631 = vadd.f32 %v10154, %v10517
        %v10632 = vadd.f32 %v10155, %v10342
        %v10633 = vadd.f32 %v10156, %v10344
        %v10634 = vadd.f32 %v10157, %v10520
        %v10635 = vadd.f32 %v10158, %v10348
        %v10636 = vadd.f32 %v10159, %v10350
        %v10637 = vadd.f32 %v10160, %v10525
        %v10638 = vadd.f32 %v10161, %v10352
        %v10639 = vadd.f32 %v10162, %v10354
        %v10640 = vadd.f32 %v10163, %v10528
        %v10641 = vadd.f32 %v10164, %v10358
        %v10642 = vadd.f32 %v10165, %v10360
        %v10643 = vadd.f32 %v10166, %v10533
        %v10644 = vadd.f32 %v10167, %v10362
        %v10645 = vadd.f32 %v10168, %v10364
        %v10646 = vadd.f32 %v10169, %v10536
        %v10647 = vadd.f32 %v10170, %v10368
        %v10648 = vadd.f32 %v10171, %v10370
        %v10649 = vadd.f32 %v10172, %v10541
        %v10650 = vadd.f32 %v10173, %v10372
        %v10651 = vadd.f32 %v10174, %v10374
        %v10652 = vadd.f32 %v10175, %v10544
        %v10653 = vadd.f32 %v10176, %v10378
        %v10654 = vadd.f32 %v10177, %v10380
        %v10655 = vadd.f32 %v10178, %v10549
        %v10656 = vadd.f32 %v10179, %v10382
        %v10657 = vadd.f32 %v10180, %v10384
        %v10658 = vadd.f32 %v10181, %v10552
        %v10659 = vadd.f32 %v10182, %v10388
        %v10660 = vadd.f32 %v10183, %v10390
        %v10661 = vadd.f32 %v10184, %v10557
        %v10662 = vadd.f32 %v10185, %v10392
        %v10663 = vadd.f32 %v10186, %v10394
        %v10664 = vadd.f32 %v10187, %v10560
        %v10665 = vadd.f32 %v10188, %v10398
        %v10666 = vadd.f32 %v10189, %v10400
        %v10667 = vadd.f32 %v10190, %v10565
        %v10668 = vadd.f32 %v10191, %v10402
        %v10669 = vadd.f32 %v10192, %v10404
        %v10670 = vadd.f32 %v10193, %v10568
        %v10671 = vadd.f32 %v10194, %v10408
        %v10672 = vadd.f32 %v10195, %v10410
        %v10673 = vadd.f32 %v10196, %v10573
        %v10674 = vadd.f32 %v10197, %v10412
        %v10675 = vadd.f32 %v10198, %v10414
        %v10676 = vadd.f32 %v10199, %v10576
        %v10677 = vadd.f32 %v10200, %v10418
        %v10678 = vadd.f32 %v10201, %v10420
        %v10679 = vadd.f32 %v10202, %v10581
        %v10680 = vadd.f32 %v10203, %v10422
        %v10681 = vadd.f32 %v10204, %v10424
        %v10682 = vadd.f32 %v10205, %v10584
        %v10683 = vld [vmem:[%s15] sm:$0x7]
        %v10685 = vlaneseq
        %v10686 = vshrl.u32 %v10685, 7
        %v10687 = vsub.s32 0, %v10686
        %v10688 = vrot.slane %v10683, %v10687
        %v10689 = vlaneseq
        %v10690 = vshrl.u32 %v10689, 7
        %v10691 = vsub.s32 1, %v10690
        %v10692 = vrot.slane %v10683, %v10691
        %v10693 = vlaneseq
        %v10694 = vshrl.u32 %v10693, 7
        %v10695 = vsub.s32 2, %v10694
        %v10696 = vrot.slane %v10683, %v10695
        %v10700 = vmul.f32 %v10587, %v10688
        %v10701 = vmul.f32 %v10588, %v10692
        %v10702 = vmul.f32 %v10589, %v10696
        %v10703 = vmul.f32 %v10590, %v10688
        %v10704 = vmul.f32 %v10591, %v10692
        %v10705 = vmul.f32 %v10592, %v10696
        %v10706 = vmul.f32 %v10593, %v10688
        %v10707 = vmul.f32 %v10594, %v10692
        %v10708 = vmul.f32 %v10595, %v10696
        %v10709 = vmul.f32 %v10596, %v10688
        %v10710 = vmul.f32 %v10597, %v10692
        %v10711 = vmul.f32 %v10598, %v10696
        %v10712 = vmul.f32 %v10599, %v10688
        %v10713 = vmul.f32 %v10600, %v10692
        %v10714 = vmul.f32 %v10601, %v10696
        %v10715 = vmul.f32 %v10602, %v10688
        %v10716 = vmul.f32 %v10603, %v10692
        %v10717 = vmul.f32 %v10604, %v10696
        %v10718 = vmul.f32 %v10605, %v10688
        %v10719 = vmul.f32 %v10606, %v10692
        %v10720 = vmul.f32 %v10607, %v10696
        %v10721 = vmul.f32 %v10608, %v10688
        %v10722 = vmul.f32 %v10609, %v10692
        %v10723 = vmul.f32 %v10610, %v10696
        %v10724 = vmul.f32 %v10611, %v10688
        %v10725 = vmul.f32 %v10612, %v10692
        %v10726 = vmul.f32 %v10613, %v10696
        %v10727 = vmul.f32 %v10614, %v10688
        %v10728 = vmul.f32 %v10615, %v10692
        %v10729 = vmul.f32 %v10616, %v10696
        %v10730 = vmul.f32 %v10617, %v10688
        %v10731 = vmul.f32 %v10618, %v10692
        %v10732 = vmul.f32 %v10619, %v10696
        %v10733 = vmul.f32 %v10620, %v10688
        %v10734 = vmul.f32 %v10621, %v10692
        %v10735 = vmul.f32 %v10622, %v10696
        %v10736 = vmul.f32 %v10623, %v10688
        %v10737 = vmul.f32 %v10624, %v10692
        %v10738 = vmul.f32 %v10625, %v10696
        %v10739 = vmul.f32 %v10626, %v10688
        %v10740 = vmul.f32 %v10627, %v10692
        %v10741 = vmul.f32 %v10628, %v10696
        %v10742 = vmul.f32 %v10629, %v10688
        %v10743 = vmul.f32 %v10630, %v10692
        %v10744 = vmul.f32 %v10631, %v10696
        %v10745 = vmul.f32 %v10632, %v10688
        %v10746 = vmul.f32 %v10633, %v10692
        %v10747 = vmul.f32 %v10634, %v10696
        %v10748 = vmul.f32 %v10635, %v10688
        %v10749 = vmul.f32 %v10636, %v10692
        %v10750 = vmul.f32 %v10637, %v10696
        %v10751 = vmul.f32 %v10638, %v10688
        %v10752 = vmul.f32 %v10639, %v10692
        %v10753 = vmul.f32 %v10640, %v10696
        %v10754 = vmul.f32 %v10641, %v10688
        %v10755 = vmul.f32 %v10642, %v10692
        %v10756 = vmul.f32 %v10643, %v10696
        %v10757 = vmul.f32 %v10644, %v10688
        %v10758 = vmul.f32 %v10645, %v10692
        %v10759 = vmul.f32 %v10646, %v10696
        %v10760 = vmul.f32 %v10647, %v10688
        %v10761 = vmul.f32 %v10648, %v10692
        %v10762 = vmul.f32 %v10649, %v10696
        %v10763 = vmul.f32 %v10650, %v10688
        %v10764 = vmul.f32 %v10651, %v10692
        %v10765 = vmul.f32 %v10652, %v10696
        %v10766 = vmul.f32 %v10653, %v10688
        %v10767 = vmul.f32 %v10654, %v10692
        %v10768 = vmul.f32 %v10655, %v10696
        %v10769 = vmul.f32 %v10656, %v10688
        %v10770 = vmul.f32 %v10657, %v10692
        %v10771 = vmul.f32 %v10658, %v10696
        %v10772 = vmul.f32 %v10659, %v10688
        %v10773 = vmul.f32 %v10660, %v10692
        %v10774 = vmul.f32 %v10661, %v10696
        %v10775 = vmul.f32 %v10662, %v10688
        %v10776 = vmul.f32 %v10663, %v10692
        %v10777 = vmul.f32 %v10664, %v10696
        %v10778 = vmul.f32 %v10665, %v10688
        %v10779 = vmul.f32 %v10666, %v10692
        %v10780 = vmul.f32 %v10667, %v10696
        %v10781 = vmul.f32 %v10668, %v10688
        %v10782 = vmul.f32 %v10669, %v10692
        %v10783 = vmul.f32 %v10670, %v10696
        %v10784 = vmul.f32 %v10671, %v10688
        %v10785 = vmul.f32 %v10672, %v10692
        %v10786 = vmul.f32 %v10673, %v10696
        %v10787 = vmul.f32 %v10674, %v10688
        %v10788 = vmul.f32 %v10675, %v10692
        %v10789 = vmul.f32 %v10676, %v10696
        %v10790 = vmul.f32 %v10677, %v10688
        %v10791 = vmul.f32 %v10678, %v10692
        %v10792 = vmul.f32 %v10679, %v10696
        %v10793 = vmul.f32 %v10680, %v10688
        %v10794 = vmul.f32 %v10681, %v10692
        %v10795 = vmul.f32 %v10682, %v10696
        %v10796 = vld [vmem:[%s16] sm:$0x7]
        %v10798 = vlaneseq
        %v10799 = vshrl.u32 %v10798, 7
        %v10800 = vsub.s32 0, %v10799
        %v10801 = vrot.slane %v10796, %v10800
        %v10802 = vlaneseq
        %v10803 = vshrl.u32 %v10802, 7
        %v10804 = vsub.s32 1, %v10803
        %v10805 = vrot.slane %v10796, %v10804
        %v10806 = vlaneseq
        %v10807 = vshrl.u32 %v10806, 7
        %v10808 = vsub.s32 2, %v10807
        %v10809 = vrot.slane %v10796, %v10808
        %v10813 = vadd.f32 %v10700, %v10801
        %v10814 = vadd.f32 %v10701, %v10805
        %v10815 = vadd.f32 %v10702, %v10809
        %v10816 = vadd.f32 %v10703, %v10801
        %v10817 = vadd.f32 %v10704, %v10805
        %v10818 = vadd.f32 %v10705, %v10809
        %v10819 = vadd.f32 %v10706, %v10801
        %v10820 = vadd.f32 %v10707, %v10805
        %v10821 = vadd.f32 %v10708, %v10809
        %v10822 = vadd.f32 %v10709, %v10801
        %v10823 = vadd.f32 %v10710, %v10805
        %v10824 = vadd.f32 %v10711, %v10809
        %v10825 = vadd.f32 %v10712, %v10801
        %v10826 = vadd.f32 %v10713, %v10805
        %v10827 = vadd.f32 %v10714, %v10809
        %v10828 = vadd.f32 %v10715, %v10801
        %v10829 = vadd.f32 %v10716, %v10805
        %v10830 = vadd.f32 %v10717, %v10809
        %v10831 = vadd.f32 %v10718, %v10801
        %v10832 = vadd.f32 %v10719, %v10805
        %v10833 = vadd.f32 %v10720, %v10809
        %v10834 = vadd.f32 %v10721, %v10801
        %v10835 = vadd.f32 %v10722, %v10805
        %v10836 = vadd.f32 %v10723, %v10809
        %v10837 = vadd.f32 %v10724, %v10801
        %v10838 = vadd.f32 %v10725, %v10805
        %v10839 = vadd.f32 %v10726, %v10809
        %v10840 = vadd.f32 %v10727, %v10801
        %v10841 = vadd.f32 %v10728, %v10805
        %v10842 = vadd.f32 %v10729, %v10809
        %v10843 = vadd.f32 %v10730, %v10801
        %v10844 = vadd.f32 %v10731, %v10805
        %v10845 = vadd.f32 %v10732, %v10809
        %v10846 = vadd.f32 %v10733, %v10801
        %v10847 = vadd.f32 %v10734, %v10805
        %v10848 = vadd.f32 %v10735, %v10809
        %v10849 = vadd.f32 %v10736, %v10801
        %v10850 = vadd.f32 %v10737, %v10805
        %v10851 = vadd.f32 %v10738, %v10809
        %v10852 = vadd.f32 %v10739, %v10801
        %v10853 = vadd.f32 %v10740, %v10805
        %v10854 = vadd.f32 %v10741, %v10809
        %v10855 = vadd.f32 %v10742, %v10801
        %v10856 = vadd.f32 %v10743, %v10805
        %v10857 = vadd.f32 %v10744, %v10809
        %v10858 = vadd.f32 %v10745, %v10801
        %v10859 = vadd.f32 %v10746, %v10805
        %v10860 = vadd.f32 %v10747, %v10809
        %v10861 = vadd.f32 %v10748, %v10801
        %v10862 = vadd.f32 %v10749, %v10805
        %v10863 = vadd.f32 %v10750, %v10809
        %v10864 = vadd.f32 %v10751, %v10801
        %v10865 = vadd.f32 %v10752, %v10805
        %v10866 = vadd.f32 %v10753, %v10809
        %v10867 = vadd.f32 %v10754, %v10801
        %v10868 = vadd.f32 %v10755, %v10805
        %v10869 = vadd.f32 %v10756, %v10809
        %v10870 = vadd.f32 %v10757, %v10801
        %v10871 = vadd.f32 %v10758, %v10805
        %v10872 = vadd.f32 %v10759, %v10809
        %v10873 = vadd.f32 %v10760, %v10801
        %v10874 = vadd.f32 %v10761, %v10805
        %v10875 = vadd.f32 %v10762, %v10809
        %v10876 = vadd.f32 %v10763, %v10801
        %v10877 = vadd.f32 %v10764, %v10805
        %v10878 = vadd.f32 %v10765, %v10809
        %v10879 = vadd.f32 %v10766, %v10801
        %v10880 = vadd.f32 %v10767, %v10805
        %v10881 = vadd.f32 %v10768, %v10809
        %v10882 = vadd.f32 %v10769, %v10801
        %v10883 = vadd.f32 %v10770, %v10805
        %v10884 = vadd.f32 %v10771, %v10809
        %v10885 = vadd.f32 %v10772, %v10801
        %v10886 = vadd.f32 %v10773, %v10805
        %v10887 = vadd.f32 %v10774, %v10809
        %v10888 = vadd.f32 %v10775, %v10801
        %v10889 = vadd.f32 %v10776, %v10805
        %v10890 = vadd.f32 %v10777, %v10809
        %v10891 = vadd.f32 %v10778, %v10801
        %v10892 = vadd.f32 %v10779, %v10805
        %v10893 = vadd.f32 %v10780, %v10809
        %v10894 = vadd.f32 %v10781, %v10801
        %v10895 = vadd.f32 %v10782, %v10805
        %v10896 = vadd.f32 %v10783, %v10809
        %v10897 = vadd.f32 %v10784, %v10801
        %v10898 = vadd.f32 %v10785, %v10805
        %v10899 = vadd.f32 %v10786, %v10809
        %v10900 = vadd.f32 %v10787, %v10801
        %v10901 = vadd.f32 %v10788, %v10805
        %v10902 = vadd.f32 %v10789, %v10809
        %v10903 = vadd.f32 %v10790, %v10801
        %v10904 = vadd.f32 %v10791, %v10805
        %v10905 = vadd.f32 %v10792, %v10809
        %v10906 = vadd.f32 %v10793, %v10801
        %v10907 = vadd.f32 %v10794, %v10805
        %v10908 = vadd.f32 %v10795, %v10809
        %v10909 = vmax.f32 %v10813, 0.0
        %v10910 = vmax.f32 %v10814, 0.0
        %v10911 = vmax.f32 %v10815, 0.0
        %v10912 = vmax.f32 %v10816, 0.0
        %v10913 = vmax.f32 %v10817, 0.0
        %v10914 = vmax.f32 %v10818, 0.0
        %v10915 = vmax.f32 %v10819, 0.0
        %v10916 = vmax.f32 %v10820, 0.0
        %v10917 = vmax.f32 %v10821, 0.0
        %v10918 = vmax.f32 %v10822, 0.0
        %v10919 = vmax.f32 %v10823, 0.0
        %v10920 = vmax.f32 %v10824, 0.0
        %v10921 = vmax.f32 %v10825, 0.0
        %v10922 = vmax.f32 %v10826, 0.0
        %v10923 = vmax.f32 %v10827, 0.0
        %v10924 = vmax.f32 %v10828, 0.0
        %v10925 = vmax.f32 %v10829, 0.0
        %v10926 = vmax.f32 %v10830, 0.0
        %v10927 = vmax.f32 %v10831, 0.0
        %v10928 = vmax.f32 %v10832, 0.0
        %v10929 = vmax.f32 %v10833, 0.0
        %v10930 = vmax.f32 %v10834, 0.0
        %v10931 = vmax.f32 %v10835, 0.0
        %v10932 = vmax.f32 %v10836, 0.0
        %v10933 = vmax.f32 %v10837, 0.0
        %v10934 = vmax.f32 %v10838, 0.0
        %v10935 = vmax.f32 %v10839, 0.0
        %v10936 = vmax.f32 %v10840, 0.0
        %v10937 = vmax.f32 %v10841, 0.0
        %v10938 = vmax.f32 %v10842, 0.0
        %v10939 = vmax.f32 %v10843, 0.0
        %v10940 = vmax.f32 %v10844, 0.0
        %v10941 = vmax.f32 %v10845, 0.0
        %v10942 = vmax.f32 %v10846, 0.0
        %v10943 = vmax.f32 %v10847, 0.0
        %v10944 = vmax.f32 %v10848, 0.0
        %v10945 = vmax.f32 %v10849, 0.0
        %v10946 = vmax.f32 %v10850, 0.0
        %v10947 = vmax.f32 %v10851, 0.0
        %v10948 = vmax.f32 %v10852, 0.0
        %v10949 = vmax.f32 %v10853, 0.0
        %v10950 = vmax.f32 %v10854, 0.0
        %v10951 = vmax.f32 %v10855, 0.0
        %v10952 = vmax.f32 %v10856, 0.0
        %v10953 = vmax.f32 %v10857, 0.0
        %v10954 = vmax.f32 %v10858, 0.0
        %v10955 = vmax.f32 %v10859, 0.0
        %v10956 = vmax.f32 %v10860, 0.0
        %v10957 = vmax.f32 %v10861, 0.0
        %v10958 = vmax.f32 %v10862, 0.0
        %v10959 = vmax.f32 %v10863, 0.0
        %v10960 = vmax.f32 %v10864, 0.0
        %v10961 = vmax.f32 %v10865, 0.0
        %v10962 = vmax.f32 %v10866, 0.0
        %v10963 = vmax.f32 %v10867, 0.0
        %v10964 = vmax.f32 %v10868, 0.0
        %v10965 = vmax.f32 %v10869, 0.0
        %v10966 = vmax.f32 %v10870, 0.0
        %v10967 = vmax.f32 %v10871, 0.0
        %v10968 = vmax.f32 %v10872, 0.0
        %v10969 = vmax.f32 %v10873, 0.0
        %v10970 = vmax.f32 %v10874, 0.0
        %v10971 = vmax.f32 %v10875, 0.0
        %v10972 = vmax.f32 %v10876, 0.0
        %v10973 = vmax.f32 %v10877, 0.0
        %v10974 = vmax.f32 %v10878, 0.0
        %v10975 = vmax.f32 %v10879, 0.0
        %v10976 = vmax.f32 %v10880, 0.0
        %v10977 = vmax.f32 %v10881, 0.0
        %v10978 = vmax.f32 %v10882, 0.0
        %v10979 = vmax.f32 %v10883, 0.0
        %v10980 = vmax.f32 %v10884, 0.0
        %v10981 = vmax.f32 %v10885, 0.0
        %v10982 = vmax.f32 %v10886, 0.0
        %v10983 = vmax.f32 %v10887, 0.0
        %v10984 = vmax.f32 %v10888, 0.0
        %v10985 = vmax.f32 %v10889, 0.0
        %v10986 = vmax.f32 %v10890, 0.0
        %v10987 = vmax.f32 %v10891, 0.0
        %v10988 = vmax.f32 %v10892, 0.0
        %v10989 = vmax.f32 %v10893, 0.0
        %v10990 = vmax.f32 %v10894, 0.0
        %v10991 = vmax.f32 %v10895, 0.0
        %v10992 = vmax.f32 %v10896, 0.0
        %v10993 = vmax.f32 %v10897, 0.0
        %v10994 = vmax.f32 %v10898, 0.0
        %v10995 = vmax.f32 %v10899, 0.0
        %v10996 = vmax.f32 %v10900, 0.0
        %v10997 = vmax.f32 %v10901, 0.0
        %v10998 = vmax.f32 %v10902, 0.0
        %v10999 = vmax.f32 %v10903, 0.0
        %v11000 = vmax.f32 %v10904, 0.0
        %v11001 = vmax.f32 %v10905, 0.0
        %v11002 = vmax.f32 %v10906, 0.0
        %v11003 = vmax.f32 %v10907, 0.0
        %v11004 = vmax.f32 %v10908, 0.0
        %11005 = vst [vmem:[%s541] sm:$0xff] %v10909
        %11006 = vst [vmem:[%s541 + $0x8] sm:$0xff] %v10910
        %11007 = vst [vmem:[%s541 + $0x10] sm:$0xff] %v10911
        %11008 = vst [vmem:[%s541 + $0x18] sm:$0xff] %v10912
        %11009 = vst [vmem:[%s541 + $0x20] sm:$0xff] %v10913
        %11010 = vst [vmem:[%s541 + $0x28] sm:$0xff] %v10914
        %11011 = vst [vmem:[%s541 + $0x30] sm:$0xff] %v10915
        %11012 = vst [vmem:[%s541 + $0x38] sm:$0xff] %v10916
        %11013 = vst [vmem:[%s541 + $0x40] sm:$0xff] %v10917
        %11014 = vst [vmem:[%s541 + $0x48] sm:$0xff] %v10918
        %11015 = vst [vmem:[%s541 + $0x50] sm:$0xff] %v10919
        %11016 = vst [vmem:[%s541 + $0x58] sm:$0xff] %v10920
        %11017 = vst [vmem:[%s541 + $0x60] sm:$0xff] %v10921
        %11018 = vst [vmem:[%s541 + $0x68] sm:$0xff] %v10922
        %11019 = vst [vmem:[%s541 + $0x70] sm:$0xff] %v10923
        %11020 = vst [vmem:[%s541 + $0x78] sm:$0xff] %v10924
        %11021 = vst [vmem:[%s541 + $0x80] sm:$0xff] %v10925
        %11022 = vst [vmem:[%s541 + $0x88] sm:$0xff] %v10926
        %11023 = vst [vmem:[%s541 + $0x90] sm:$0xff] %v10927
        %11024 = vst [vmem:[%s541 + $0x98] sm:$0xff] %v10928
        %11025 = vst [vmem:[%s541 + $0xa0] sm:$0xff] %v10929
        %11026 = vst [vmem:[%s541 + $0xa8] sm:$0xff] %v10930
        %11027 = vst [vmem:[%s541 + $0xb0] sm:$0xff] %v10931
        %11028 = vst [vmem:[%s541 + $0xb8] sm:$0xff] %v10932
        %11029 = vst [vmem:[%s541 + $0xc0] sm:$0xff] %v10933
        %11030 = vst [vmem:[%s541 + $0xc8] sm:$0xff] %v10934
        %11031 = vst [vmem:[%s541 + $0xd0] sm:$0xff] %v10935
        %11032 = vst [vmem:[%s541 + $0xd8] sm:$0xff] %v10936
        %11033 = vst [vmem:[%s541 + $0xe0] sm:$0xff] %v10937
        %11034 = vst [vmem:[%s541 + $0xe8] sm:$0xff] %v10938
        %11035 = vst [vmem:[%s541 + $0xf0] sm:$0xff] %v10939
        %11036 = vst [vmem:[%s541 + $0xf8] sm:$0xff] %v10940
        %11037 = vst [vmem:[%s541 + $0x100] sm:$0xff] %v10941
        %11038 = vst [vmem:[%s541 + $0x108] sm:$0xff] %v10942
        %11039 = vst [vmem:[%s541 + $0x110] sm:$0xff] %v10943
        %11040 = vst [vmem:[%s541 + $0x118] sm:$0xff] %v10944
        %11041 = vst [vmem:[%s541 + $0x120] sm:$0xff] %v10945
        %11042 = vst [vmem:[%s541 + $0x128] sm:$0xff] %v10946
        %11043 = vst [vmem:[%s541 + $0x130] sm:$0xff] %v10947
        %11044 = vst [vmem:[%s541 + $0x138] sm:$0xff] %v10948
        %11045 = vst [vmem:[%s541 + $0x140] sm:$0xff] %v10949
        %11046 = vst [vmem:[%s541 + $0x148] sm:$0xff] %v10950
        %11047 = vst [vmem:[%s541 + $0x150] sm:$0xff] %v10951
        %11048 = vst [vmem:[%s541 + $0x158] sm:$0xff] %v10952
        %11049 = vst [vmem:[%s541 + $0x160] sm:$0xff] %v10953
        %11050 = vst [vmem:[%s541 + $0x168] sm:$0xff] %v10954
        %11051 = vst [vmem:[%s541 + $0x170] sm:$0xff] %v10955
        %11052 = vst [vmem:[%s541 + $0x178] sm:$0xff] %v10956
        %11053 = vst [vmem:[%s541 + $0x180] sm:$0xff] %v10957
        %11054 = vst [vmem:[%s541 + $0x188] sm:$0xff] %v10958
        %11055 = vst [vmem:[%s541 + $0x190] sm:$0xff] %v10959
        %11056 = vst [vmem:[%s541 + $0x198] sm:$0xff] %v10960
        %11057 = vst [vmem:[%s541 + $0x1a0] sm:$0xff] %v10961
        %11058 = vst [vmem:[%s541 + $0x1a8] sm:$0xff] %v10962
        %11059 = vst [vmem:[%s541 + $0x1b0] sm:$0xff] %v10963
        %11060 = vst [vmem:[%s541 + $0x1b8] sm:$0xff] %v10964
        %11061 = vst [vmem:[%s541 + $0x1c0] sm:$0xff] %v10965
        %11062 = vst [vmem:[%s541 + $0x1c8] sm:$0xff] %v10966
        %11063 = vst [vmem:[%s541 + $0x1d0] sm:$0xff] %v10967
        %11064 = vst [vmem:[%s541 + $0x1d8] sm:$0xff] %v10968
        %11065 = vst [vmem:[%s541 + $0x1e0] sm:$0xff] %v10969
        %11066 = vst [vmem:[%s541 + $0x1e8] sm:$0xff] %v10970
        %11067 = vst [vmem:[%s541 + $0x1f0] sm:$0xff] %v10971
        %11068 = vst [vmem:[%s541 + $0x1f8] sm:$0xff] %v10972
        %11069 = vst [vmem:[%s541 + $0x200] sm:$0xff] %v10973
        %11070 = vst [vmem:[%s541 + $0x208] sm:$0xff] %v10974
        %11071 = vst [vmem:[%s541 + $0x210] sm:$0xff] %v10975
        %11072 = vst [vmem:[%s541 + $0x218] sm:$0xff] %v10976
        %11073 = vst [vmem:[%s541 + $0x220] sm:$0xff] %v10977
        %11074 = vst [vmem:[%s541 + $0x228] sm:$0xff] %v10978
        %11075 = vst [vmem:[%s541 + $0x230] sm:$0xff] %v10979
        %11076 = vst [vmem:[%s541 + $0x238] sm:$0xff] %v10980
        %11077 = vst [vmem:[%s541 + $0x240] sm:$0xff] %v10981
        %11078 = vst [vmem:[%s541 + $0x248] sm:$0xff] %v10982
        %11079 = vst [vmem:[%s541 + $0x250] sm:$0xff] %v10983
        %11080 = vst [vmem:[%s541 + $0x258] sm:$0xff] %v10984
        %11081 = vst [vmem:[%s541 + $0x260] sm:$0xff] %v10985
        %11082 = vst [vmem:[%s541 + $0x268] sm:$0xff] %v10986
        %11083 = vst [vmem:[%s541 + $0x270] sm:$0xff] %v10987
        %11084 = vst [vmem:[%s541 + $0x278] sm:$0xff] %v10988
        %11085 = vst [vmem:[%s541 + $0x280] sm:$0xff] %v10989
        %11086 = vst [vmem:[%s541 + $0x288] sm:$0xff] %v10990
        %11087 = vst [vmem:[%s541 + $0x290] sm:$0xff] %v10991
        %11088 = vst [vmem:[%s541 + $0x298] sm:$0xff] %v10992
        %11089 = vst [vmem:[%s541 + $0x2a0] sm:$0xff] %v10993
        %11090 = vst [vmem:[%s541 + $0x2a8] sm:$0xff] %v10994
        %11091 = vst [vmem:[%s541 + $0x2b0] sm:$0xff] %v10995
        %11092 = vst [vmem:[%s541 + $0x2b8] sm:$0xff] %v10996
        %11093 = vst [vmem:[%s541 + $0x2c0] sm:$0xff] %v10997
        %11094 = vst [vmem:[%s541 + $0x2c8] sm:$0xff] %v10998
        %11095 = vst [vmem:[%s541 + $0x2d0] sm:$0xff] %v10999
        %11096 = vst [vmem:[%s541 + $0x2d8] sm:$0xff] %v11000
        %11097 = vst [vmem:[%s541 + $0x2e0] sm:$0xff] %v11001
        %11098 = vst [vmem:[%s541 + $0x2e8] sm:$0xff] %v11002
        %11099 = vst [vmem:[%s541 + $0x2f0] sm:$0xff] %v11003
        %11100 = vst [vmem:[%s541 + $0x2f8] sm:$0xff] %v11004
        %s11101 = sand.u32 %s401, 1
        %s11102 = scalar_lea.sflag [#allocation3], %s11101
        %s11103 = sand.u32 %s401, 1
        %s11104 = smul.addr %s11103, 768
        %s11105 = scalar_lea.vmem [#allocation2], %s11104
        // Predicated region
        $region89: #{inception_resnet_a_forward.1} parent=87 // pred_check
          %p11106 = pneg %p411
        $region90: #{inception_resnet_a_forward.1} parent=87 // pred_check_branch
          %11108 = sbr.rel (%p11106) target = $region92
        $region91: #{inception_resnet_a_forward.1} parent=87 // pred_region
          %s11110 = ssub.s32 12288, 12288
          %11111 = vsyncadd %s11102, %s11110
          %s11112 = smul.addr %s31, 96
          %s11113 = smul.addr %s11112, 128
          %s11114 = scalar_lea.hbm %s17, %s11113
          %s11115 = sshll.u32 %s11105, 4
          %s11116 = int_to_ptr.vmem [resolvable:$true] %s11115
          %11121 = dma.vmem_to_hbm [thread:$0]  %s11116, 12288, %s11114, %s11102, 384, 384, 24
        $region92: #{inception_resnet_a_forward.1} parent=87 // pred_fallthru
          _
      $region88: #{inception_resnet_a_forward.1} parent=5 // pred_fallthru
        _
      %p11122 = scmp.le.s32.totalorder 2, %s26
      // Predicated region
      $region93: #{inception_resnet_a_forward.1} parent=5 // pred_check
        %p11123 = pneg %p11122
      $region94: #{inception_resnet_a_forward.1} parent=5 // pred_check_branch
        %11125 = sbr.rel (%p11123) target = $region96
      $region95: #{inception_resnet_a_forward.1} parent=5 // pred_region
        %s11126 = ssub.s32 %s26, 2
        // Predicated region
        $region97: #{inception_resnet_a_forward.1} parent=95 // pred_check
          %p11127 = pneg %p417
        $region98: #{inception_resnet_a_forward.1} parent=95 // pred_check_branch
          %11129 = sbr.rel (%p11127) target = $region100
        $region99: #{inception_resnet_a_forward.1} parent=95 // pred_region
          %s11130 = sand.u32 %s402, 1
          %s11131 = scalar_lea.sflag [#allocation3], %s11130
          %s11132 = sand.u32 %s402, 1
          %s11133 = smul.addr %s11132, 768
          %s11134 = scalar_lea.vmem [#allocation2], %s11133
          %11135 = dma.done %s11131, 12288
        $region100: #{inception_resnet_a_forward.1} parent=95 // pred_fallthru
          _
      $region96: #{inception_resnet_a_forward.1} parent=5 // pred_fallthru
        _
    $region6: #{inception_resnet_a_forward.1} parent=1 // loop_footer
      %s30 = sadd.s32 1, %s26
    $region7: #{inception_resnet_a_forward.1} parent=1 // loop_footer_branch
      %25 = sbr.rel target = $region3
    $region8: #{inception_resnet_a_forward.1} parent=1 // loop_exit
      _
    %11136 = vsyncpa [#allocation3], 1
    %s11137 = scalar_lea.sflag [#allocation3], 1
    %11138 = vsyncpa %s11137, 1

</llo_original>
